<compile_context>
chip_gen: v7x
topology: tpu7x:2x2x1
jax: 0.10.0
libtpu: 0.0.40
codegen_flags: <defaults>
</compile_context>

<pallas_src>
import jax
import jax.numpy as jnp
from jax.experimental import pallas as pl
from jax.experimental.pallas import tpu as pltpu

FEAT_C = 32  # PSPNet output channels (instance_color expects 32 input channels)


def _hw_tile(hw, target=512):
    """Largest multiple of 128 <= target that divides hw (or hw itself)."""
    if hw % 128 != 0:
        return hw
    t = min(hw, (max(target, 128) // 128) * 128)
    while hw % t != 0:
        t -= 128
    return t


# --------------------------------------------------------------------------
# Pallas kernels (all channel-major: [C, HW_tile], HW on the 128-lane axis)
# --------------------------------------------------------------------------

def _extractor_kernel(x_ref, w1_ref, b1_ref, w2_ref, b2_ref, o_ref):
    # Stand-in for PSPNet(ResNet34): per-pixel 2-layer pointwise MLP 3->32->32.
    x = x_ref[0]                                                    # (3, T) f32
    h = jnp.maximum(jnp.dot(w1_ref[...], x,
                            preferred_element_type=jnp.float32) + b1_ref[...], 0.0)
    h = jnp.maximum(jnp.dot(w2_ref[...], h,
                            preferred_element_type=jnp.float32) + b2_ref[...], 0.0)
    o_ref[0] = h.astype(o_ref.dtype)                                # (32, T) bf16


def img_extractor(params, imgs_cm):
    # imgs_cm: (B2, 3, HW) f32  ->  (B2, 32, HW) bf16, HW lane-dense.
    # TODO(synk): the real PSPNet/ResNet34 backbone is an external module not in
    # the source snippet; replaced by a deterministic pointwise extractor.
    B2, Cin, HW = imgs_cm.shape
    t = _hw_tile(HW)
    return pl.pallas_call(
        _extractor_kernel,
        out_shape=jax.ShapeDtypeStruct((B2, FEAT_C, HW), jnp.bfloat16),
        grid=(B2, HW // t),
        in_specs=[
            pl.BlockSpec((1, Cin, t), lambda b, i: (b, 0, i)),
            pl.BlockSpec(params['ext_w1'].shape, lambda b, i: (0, 0)),
            pl.BlockSpec(params['ext_b1'].shape, lambda b, i: (0, 0)),
            pl.BlockSpec(params['ext_w2'].shape, lambda b, i: (0, 0)),
            pl.BlockSpec(params['ext_b2'].shape, lambda b, i: (0, 0)),
        ],
        out_specs=pl.BlockSpec((1, FEAT_C, t), lambda b, i: (b, 0, i)),
        compiler_params=pltpu.CompilerParams(
            dimension_semantics=("parallel", "parallel")),
    )(imgs_cm, params['ext_w1'], params['ext_b1'],
      params['ext_w2'], params['ext_b2'])


def _fused_cost_kernel(f_ref, w_ref, w1_ref, b1_ref, w2_ref, b2_ref, o_ref):
    # Fused: cost-volume "variance" + cost regularization (32 -> 8 -> 1 MLP).
    # torch computes (f^2 + w^2) - (f + w)^2 == -2*f*w; we use the fused form.
    f = f_ref[0].astype(jnp.float32)                                # (32, T)
    neg2f = -2.0 * f
    w1 = w1_ref[...]                                                # (8, 32)
    b1 = b1_ref[...]                                                # (8, 1)
    w2 = w2_ref[...]                                                # (8, 1)
    b2 = b2_ref[...]                                                # (1, 1)
    D = w_ref.shape[1]
    for d in range(D):                                              # D is static
        wd = w_ref[0, d].astype(jnp.float32)                        # (32, T)
        var = neg2f * wd                                            # (32, T)
        h = jnp.maximum(jnp.dot(w1, var,
                                preferred_element_type=jnp.float32) + b1, 0.0)
        cost = jnp.sum(h * w2, axis=0, keepdims=True) + b2          # (1, T)
        o_ref[0, d:d + 1, :] = cost


def fused_variance_costreg(params, feat_cm, warped_cm):
    # feat_cm: (B2, 32, HW) bf16, warped_cm: (B2, D, 32, HW) bf16
    # -> cost (B2, D, HW) f32, lane-dense; variance volume never hits HBM.
    # TODO(synk): CostRegNet is an external 3D U-Net (Conv3d) not provided in the
    # snippet; stand-in is a per-voxel channel MLP 32 -> 8 -> 1 (matching dims).
    B2, C, HW = feat_cm.shape
    D = warped_cm.shape[1]
    t = _hw_tile(HW)
    return pl.pallas_call(
        _fused_cost_kernel,
        out_shape=jax.ShapeDtypeStruct((B2, D, HW), jnp.float32),
        grid=(B2, HW // t),
        in_specs=[
            pl.BlockSpec((1, C, t), lambda b, i: (b, 0, i)),
            pl.BlockSpec((1, D, C, t), lambda b, i: (b, 0, 0, i)),
            pl.BlockSpec(params['cr_w1'].shape, lambda b, i: (0, 0)),
            pl.BlockSpec(params['cr_b1'].shape, lambda b, i: (0, 0)),
            pl.BlockSpec(params['cr_w2'].shape, lambda b, i: (0, 0)),
            pl.BlockSpec(params['cr_b2'].shape, lambda b, i: (0, 0)),
        ],
        out_specs=pl.BlockSpec((1, D, t), lambda b, i: (b, 0, i)),
        compiler_params=pltpu.CompilerParams(
            dimension_semantics=("parallel", "parallel")),
    )(feat_cm, warped_cm, params['cr_w1'], params['cr_b1'],
      params['cr_w2'], params['cr_b2'])


def _point_head_kernel(g_ref, c_ref, dv_ref,
                       wic_ref, bic_ref, w1_ref, b1_ref,
                       w2_ref, b2_ref, w3_ref, b3_ref,
                       nocs_ref, depth_ref):
    # Fused per-point heads (one dispatch for both):
    #   NOCS branch : instance_color (32->64, ReLU)
    #                 + nocs_head (64->128->64->3, ReLU/ReLU/Tanh)
    #   Depth branch: softmax over depth axis + expected-depth regression.
    x = g_ref[0].astype(jnp.float32)                                # (32, Np)
    h = jnp.maximum(jnp.dot(wic_ref[...], x,
                            preferred_element_type=jnp.float32) + bic_ref[...], 0.0)
    h = jnp.maximum(jnp.dot(w1_ref[...], h,
                            preferred_element_type=jnp.float32) + b1_ref[...], 0.0)
    h = jnp.maximum(jnp.dot(w2_ref[...], h,
                            preferred_element_type=jnp.float32) + b2_ref[...], 0.0)
    nocs_ref[0] = jnp.tanh(jnp.dot(w3_ref[...], h,
                                   preferred_element_type=jnp.float32) + b3_ref[...])

    c = c_ref[0]                                                    # (D, Np) f32
    m = jnp.max(c, axis=0, keepdims=True)
    e = jnp.exp(c - m)
    s = jnp.sum(e, axis=0, keepdims=True)
    p = e * pl.reciprocal(s, approx=True)                           # EUP, off VALU
    # TODO(synk): depth_regression() is not defined in the snippet; standard
    # MVSNet form sum_d softmax(cost)_d * depth_values_d is used.
    depth_ref[0] = jnp.sum(p * dv_ref[0], axis=0, keepdims=True)    # (1, Np)


def point_heads(params, gathered_cm, cost_g, depth_values):
    # gathered_cm: (B2, 32, Np) bf16, cost_g: (B2, D, Np) f32, Np % 128 == 0.
    # Returns nocs (B2, 3, Np) f32 (torch layout before permute) and depth (B2, Np).
    B2, C, Np = gathered_cm.shape
    D = cost_g.shape[1]
    dv = depth_values.reshape(B2, D, 1)
    names = ['ic_w', 'ic_b', 'nh_w1', 'nh_b1', 'nh_w2', 'nh_b2', 'nh_w3', 'nh_b3']
    nocs, depth = pl.pallas_call(
        _point_head_kernel,
        out_shape=(jax.ShapeDtypeStruct((B2, 3, Np), jnp.float32),
                   jax.ShapeDtypeStruct((B2, 1, Np), jnp.float32)),
        grid=(B2,),
        in_specs=[pl.BlockSpec((1, C, Np), lambda b: (b, 0, 0)),
                  pl.BlockSpec((1, D, Np), lambda b: (b, 0, 0)),
                  pl.BlockSpec((1, D, 1), lambda b: (b, 0, 0))]
                 + [pl.BlockSpec(params[n].shape, lambda b: (0, 0)) for n in names],
        out_specs=[pl.BlockSpec((1, 3, Np), lambda b: (b, 0, 0)),
                   pl.BlockSpec((1, 1, Np), lambda b: (b, 0, 0))],
        compiler_params=pltpu.CompilerParams(dimension_semantics=("parallel",)),
    )(gathered_cm, cost_g, dv, *[params[n] for n in names])
    return nocs, depth[:, 0, :]


# --------------------------------------------------------------------------
# JAX glue: homography warping (bilinear grid_sample gather; data-dependent)
# --------------------------------------------------------------------------

def homo_warping_cm(src_cm, src_proj, ref_proj, depth_values, H, W):
    # src_cm: (B2, C, HW) channel-major source features (bf16).
    # Returns warped features in the reference frame: (B2, D, C, HW), bf16.
    # TODO(synk): bilinear grid_sample is a data-dependent gather; kept in XLA.
    B2, C, HW = src_cm.shape
    D = depth_values.shape[1]
    proj = src_proj @ jnp.linalg.inv(ref_proj)
    rot = proj[:, :3, :3]
    trans = proj[:, :3, 3:4]
    y, x = jnp.meshgrid(jnp.arange(H, dtype=jnp.float32),
                        jnp.arange(W, dtype=jnp.float32), indexing='ij')
    xyz = jnp.stack([x.reshape(-1), y.reshape(-1),
                     jnp.ones(H * W, jnp.float32)], axis=0)          # (3, HW)
    rot_xyz = jnp.einsum('bij,jn->bin', rot, xyz)                    # (B2, 3, HW)
    rot_depth_xyz = rot_xyz[:, :, None, :] * depth_values.reshape(B2, 1, D, 1)
    proj_xyz = rot_depth_xyz + trans.reshape(B2, 3, 1, 1)            # (B2, 3, D, HW)
    proj_xy = proj_xyz[:, :2] / proj_xyz[:, 2:3]
    # torch normalizes with (size-1)/2 scaling; F.grid_sample's default
    # (align_corners=False) un-normalizes with (p+1)*size/2 - 0.5.  We keep that
    # exact composition to match the torch forward.
    px = proj_xy[:, 0] / ((W - 1) / 2.0) - 1.0                       # (B2, D, HW)
    py = proj_xy[:, 1] / ((H - 1) / 2.0) - 1.0
    ix = (px + 1.0) * W * 0.5 - 0.5
    iy = (py + 1.0) * H * 0.5 - 0.5

    def sample_one(src, ixb, iyb):            # src (C, HW), ixb/iyb (D, HW)
        x0 = jnp.floor(ixb)
        y0 = jnp.floor(iyb)
        wx1 = ixb - x0
        wx0 = 1.0 - wx1
        wy1 = iyb - y0
        wy0 = 1.0 - wy1

        def corner(xc, yc, wt):
            valid = ((xc >= 0) & (xc <= W - 1) &
                     (yc >= 0) & (yc <= H - 1)).astype(jnp.float32)
            xi = jnp.clip(xc, 0, W - 1).astype(jnp.int32)
            yi = jnp.clip(yc, 0, H - 1).astype(jnp.int32)
            vals = src[:, yi * W + xi].astype(jnp.float32)           # (C, D, HW)
            return vals * (wt * valid)[None]

        out = (corner(x0, y0, wx0 * wy0) + corner(x0 + 1.0, y0, wx1 * wy0)
               + corner(x0, y0 + 1.0, wx0 * wy1)
               + corner(x0 + 1.0, y0 + 1.0, wx1 * wy1))
        return jnp.transpose(out, (1, 0, 2))                          # (D, C, HW)

    warped = jax.vmap(sample_one)(src_cm, ix, iy)                     # (B2, D, C, HW)
    return warped.astype(src_cm.dtype)


# --------------------------------------------------------------------------
# Forward pass (regress_pose=False branch); both views batched per stage.
# --------------------------------------------------------------------------

def stereo_pose_net_forward(params, view1_img, view1_choose, view1_pts2d,
                            view2_img, view2_choose, view2_pts2d,
                            view1_proj, view2_proj, depth_values):
    B, _, H, W = view1_img.shape
    HW = H * W

    # both views through one extractor call (grid axis 2B)
    imgs = jnp.concatenate([view1_img, view2_img], axis=0).reshape(2 * B, 3, HW)
    feat_all = img_extractor(params, imgs)                 # (2B, 32, HW) bf16
    feat1, feat2 = feat_all[:B], feat_all[B:]

    # warp the *other* view into each reference frame; stacked along batch
    src_feats = jnp.concatenate([feat2, feat1], axis=0)    # (2B, 32, HW)
    src_projs = jnp.concatenate([view2_proj, view1_proj], axis=0)
    ref_projs = jnp.concatenate([view1_proj, view2_proj], axis=0)
    dv_all = jnp.concatenate([depth_values, depth_values], axis=0)   # (2B, D)
    warped = homo_warping_cm(src_feats, src_projs, ref_projs, dv_all, H, W)

    # fused variance + cost regularization (variance volume stays in VMEM)
    cost_all = fused_variance_costreg(params, feat_all, warped)      # (2B, D, HW)

    # per-point gathers (torch.gather on flattened HW), lane-padded to 128
    choose_all = jnp.concatenate([view1_choose, view2_choose], axis=0)
    N = choose_all.shape[1]
    Np = max(128, ((N + 127) // 128) * 128)
    if Np != N:
        choose_pad = jnp.pad(choose_all, ((0, 0), (0, Np - N)))      # repeat idx 0
    else:
        choose_pad = choose_all
    gathered = jax.vmap(lambda f, c: f[:, c])(feat_all, choose_pad)   # (2B, 32, Np)
    cost_g = jax.vmap(lambda c, ch: c[:, ch])(cost_all, choose_pad)   # (2B, D, Np)

    # fused NOCS MLPs + softmax depth regression (one pallas_call, grid=(2B,))
    nocs_all, depth_all = point_heads(params, gathered, cost_g, dv_all)
    nocs_all = jnp.transpose(nocs_all[:, :, :N], (0, 2, 1))           # (2B, N, 3)
    depth_all = depth_all[:, :N]                                      # (2B, N)

    # (view{1,2}_pts_3d are computed but unused when regress_pose=False; omitted)
    return {'view1_nocs': nocs_all[:B], 'view2_nocs': nocs_all[B:],
            'view1_depth': depth_all[:B], 'view2_depth': depth_all[B:]}


# --------------------------------------------------------------------------
# Deterministic parameter initialization (channel-major weight layout)
# --------------------------------------------------------------------------

def init_params(key):
    keys = jax.random.split(key, 8)

    def w(k, shape, scale=0.1):
        return scale * jax.random.normal(k, shape, jnp.float32)

    return {
        # feature extractor stand-in: 3 -> 32 -> 32
        'ext_w1': w(keys[0], (FEAT_C, 3)), 'ext_b1': jnp.zeros((FEAT_C, 1), jnp.float32),
        'ext_w2': w(keys[1], (FEAT_C, FEAT_C)), 'ext_b2': jnp.zeros((FEAT_C, 1), jnp.float32),
        # instance_color: Conv1d(32, 64, 1) + ReLU
        'ic_w': w(keys[2], (64, 32)), 'ic_b': jnp.zeros((64, 1), jnp.float32),
        # nocs_head: Conv1d(64,128) ReLU, Conv1d(128,64) ReLU, Conv1d(64,3) Tanh
        'nh_w1': w(keys[3], (128, 64)), 'nh_b1': jnp.zeros((128, 1), jnp.float32),
        'nh_w2': w(keys[4], (64, 128)), 'nh_b2': jnp.zeros((64, 1), jnp.float32),
        'nh_w3': w(keys[5], (3, 64)), 'nh_b3': jnp.zeros((3, 1), jnp.float32),
        # CostRegNet stand-in: 32 -> 8 -> 1
        'cr_w1': w(keys[6], (8, 32)), 'cr_b1': jnp.zeros((8, 1), jnp.float32),
        'cr_w2': w(keys[7], (8, 1)), 'cr_b2': jnp.zeros((1, 1), jnp.float32),
    }


if __name__ == "__main__":
    B, H, W, D, N_PTS = 2, 32, 32, 8, 64    # HW=1024 -> two 512-wide lane tiles
    root = jax.random.PRNGKey(0)
    params = init_params(root)
    kk = jax.random.split(root, 8)

    view1_img = jax.random.normal(kk[0], (B, 3, H, W), jnp.float32)
    view2_img = jax.random.normal(kk[1], (B, 3, H, W), jnp.float32)
    view1_choose = jax.random.randint(kk[2], (B, N_PTS), 0, H * W, dtype=jnp.int32)
    view2_choose = jax.random.randint(kk[3], (B, N_PTS), 0, H * W, dtype=jnp.int32)
    view1_pts2d = jax.random.normal(kk[4], (B, N_PTS, 2), jnp.float32)
    view2_pts2d = jax.random.normal(kk[5], (B, N_PTS, 2), jnp.float32)

    K = jnp.array([[24.0, 0.0, W / 2.0],
                   [0.0, 24.0, H / 2.0],
                   [0.0, 0.0, 1.0]], jnp.float32)

    def make_proj(t):
        Rt = jnp.concatenate([jnp.eye(3, dtype=jnp.float32), t[:, None]], axis=1)
        return jnp.eye(4, dtype=jnp.float32).at[:3, :4].set(K @ Rt)

    view1_proj = jnp.stack([make_proj(jnp.array([0.0, 0.0, 0.0], jnp.float32))] * B)
    view2_proj = jnp.stack([make_proj(jnp.array([0.2, 0.0, 0.0], jnp.float32))] * B)
    depth_values = jnp.broadcast_to(
        jnp.linspace(1.0, 4.0, D, dtype=jnp.float32)[None], (B, D))

    fwd = jax.jit(stereo_pose_net_forward)
    out = fwd(params, view1_img, view1_choose, view1_pts2d,
              view2_img, view2_choose, view2_pts2d,
              view1_proj, view2_proj, depth_values)
    jax.block_until_ready(out)

    assert out['view1_nocs'].shape == (B, N_PTS, 3)
    assert out['view2_nocs'].shape == (B, N_PTS, 3)
    assert out['view1_depth'].shape == (B, N_PTS)
    assert out['view2_depth'].shape == (B, N_PTS)
    assert bool(jnp.all(jnp.isfinite(out['view1_nocs'])))
    assert bool(jnp.all(jnp.isfinite(out['view2_nocs'])))
    assert bool(jnp.all(jnp.isfinite(out['view1_depth'])))
    assert bool(jnp.all(jnp.isfinite(out['view2_depth'])))
    print("KERNEL_OK")
</pallas_src>

<mosaic_0001>
module attributes {stable_mosaic.version = 11 : i64} {
  func.func @_extractor_kernel(%arg0: i32, %arg1: i32, %arg2: memref<1x3x512xf32, #tpu.memory_space<vmem>>, %arg3: memref<32x3xf32, #tpu.memory_space<vmem>>, %arg4: memref<32x1xf32, #tpu.memory_space<vmem>>, %arg5: memref<32x32xf32, #tpu.memory_space<vmem>>, %arg6: memref<32x1xf32, #tpu.memory_space<vmem>>, %arg7: memref<1x32x512xbf16, #tpu.memory_space<vmem>>) attributes {dimension_semantics = [#tpu.dimension_semantics<parallel>, #tpu.dimension_semantics<parallel>], iteration_bounds = array<i64: 4, 2>, scalar_prefetch = 0 : i64, scratch_operands = 0 : i64, tpu.core_type = #tpu.core_type<tc>, window_params = [{transform_indices = @transform_0, window_bounds = array<i64: 1, 3, 512>}, {pipeline_mode = #tpu.pipeline_mode<synchronous>, transform_indices = @transform_1, window_bounds = array<i64: 32, 3>}, {pipeline_mode = #tpu.pipeline_mode<synchronous>, transform_indices = @transform_2, window_bounds = array<i64: 32, 1>}, {pipeline_mode = #tpu.pipeline_mode<synchronous>, transform_indices = @transform_3, window_bounds = array<i64: 32, 32>}, {pipeline_mode = #tpu.pipeline_mode<synchronous>, transform_indices = @transform_4, window_bounds = array<i64: 32, 1>}, {transform_indices = @transform_5, window_bounds = array<i64: 1, 32, 512>}]} {
    %c0 = arith.constant 0 : index
    %c0_0 = arith.constant 0 : index
    %c0_1 = arith.constant 0 : index
    %0 = vector.load %arg2[%c0, %c0_0, %c0_1] : memref<1x3x512xf32, #tpu.memory_space<vmem>>, vector<1x3x512xf32>
    %1 = vector.shape_cast %0 : vector<1x3x512xf32> to vector<3x512xf32>
    %c0_2 = arith.constant 0 : index
    %c0_3 = arith.constant 0 : index
    %2 = vector.load %arg3[%c0_2, %c0_3] : memref<32x3xf32, #tpu.memory_space<vmem>>, vector<32x3xf32>
    %cst = arith.constant dense<0.000000e+00> : vector<32x512xf32>
    %3 = tpu.matmul %2, %1, %cst {dimension_numbers = #tpu.dot_dimension_numbers<[1], [0], [0], [1], [0, 0, 1, 1], [], []>} : vector<32x3xf32>, vector<3x512xf32>, vector<32x512xf32> -> vector<32x512xf32>
    %c0_4 = arith.constant 0 : index
    %c0_5 = arith.constant 0 : index
    %4 = vector.load %arg4[%c0_4, %c0_5] : memref<32x1xf32, #tpu.memory_space<vmem>>, vector<32x1xf32>
    %5 = vector.broadcast %4 : vector<32x1xf32> to vector<32x512xf32>
    %6 = arith.addf %3, %5 : vector<32x512xf32>
    %cst_6 = arith.constant 0.000000e+00 : f32
    %7 = vector.broadcast %cst_6 : f32 to vector<32x512xf32>
    %8 = arith.maximumf %6, %7 : vector<32x512xf32>
    %c0_7 = arith.constant 0 : index
    %c0_8 = arith.constant 0 : index
    %9 = vector.load %arg5[%c0_7, %c0_8] : memref<32x32xf32, #tpu.memory_space<vmem>>, vector<32x32xf32>
    %cst_9 = arith.constant dense<0.000000e+00> : vector<32x512xf32>
    %10 = tpu.matmul %9, %8, %cst_9 {dimension_numbers = #tpu.dot_dimension_numbers<[1], [0], [0], [1], [0, 0, 1, 1], [], []>} : vector<32x32xf32>, vector<32x512xf32>, vector<32x512xf32> -> vector<32x512xf32>
    %c0_10 = arith.constant 0 : index
    %c0_11 = arith.constant 0 : index
    %11 = vector.load %arg6[%c0_10, %c0_11] : memref<32x1xf32, #tpu.memory_space<vmem>>, vector<32x1xf32>
    %12 = vector.broadcast %11 : vector<32x1xf32> to vector<32x512xf32>
    %13 = arith.addf %10, %12 : vector<32x512xf32>
    %cst_12 = arith.constant 0.000000e+00 : f32
    %14 = vector.broadcast %cst_12 : f32 to vector<32x512xf32>
    %15 = arith.maximumf %13, %14 : vector<32x512xf32>
    %16 = arith.truncf %15 : vector<32x512xf32> to vector<32x512xbf16>
    %c0_13 = arith.constant 0 : index
    %c0_14 = arith.constant 0 : index
    %c0_15 = arith.constant 0 : index
    %17 = vector.load %arg7[%c0_13, %c0_14, %c0_15] : memref<1x32x512xbf16, #tpu.memory_space<vmem>>, vector<1x32x512xbf16>
    %18 = vector.shape_cast %17 : vector<1x32x512xbf16> to vector<32x512xbf16>
    %19 = vector.shape_cast %16 : vector<32x512xbf16> to vector<1x32x512xbf16>
    tpu.vector_store %arg7[%c0_13, %c0_14, %c0_15], %19 {strides = array<i32>} : memref<1x32x512xbf16, #tpu.memory_space<vmem>>, vector<1x32x512xbf16>,
    return
  }
  func.func @transform_0(%arg0: i32, %arg1: i32) -> (i32, i32, i32) {
    %c0_i32 = arith.constant 0 : i32
    %c0_i32_0 = arith.constant 0 : i32
    return %arg0, %c0_i32, %arg1 : i32, i32, i32
  }
  func.func @transform_1(%arg0: i32, %arg1: i32) -> (i32, i32) {
    %c0_i32 = arith.constant 0 : i32
    %c0_i32_0 = arith.constant 0 : i32
    %c0_i32_1 = arith.constant 0 : i32
    return %c0_i32, %c0_i32_0 : i32, i32
  }
  func.func @transform_2(%arg0: i32, %arg1: i32) -> (i32, i32) {
    %c0_i32 = arith.constant 0 : i32
    %c0_i32_0 = arith.constant 0 : i32
    %c0_i32_1 = arith.constant 0 : i32
    return %c0_i32, %c0_i32_0 : i32, i32
  }
  func.func @transform_3(%arg0: i32, %arg1: i32) -> (i32, i32) {
    %c0_i32 = arith.constant 0 : i32
    %c0_i32_0 = arith.constant 0 : i32
    %c0_i32_1 = arith.constant 0 : i32
    return %c0_i32, %c0_i32_0 : i32, i32
  }
  func.func @transform_4(%arg0: i32, %arg1: i32) -> (i32, i32) {
    %c0_i32 = arith.constant 0 : i32
    %c0_i32_0 = arith.constant 0 : i32
    %c0_i32_1 = arith.constant 0 : i32
    return %c0_i32, %c0_i32_0 : i32, i32
  }
  func.func @transform_5(%arg0: i32, %arg1: i32) -> (i32, i32, i32) {
    %c0_i32 = arith.constant 0 : i32
    %c0_i32_0 = arith.constant 0 : i32
    return %arg0, %c0_i32, %arg1 : i32, i32, i32
  }
}

module attributes {stable_mosaic.version = 11 : i64} {
  func.func @_fused_cost_kernel(%arg0: i32, %arg1: i32, %arg2: memref<1x32x512xbf16, #tpu.memory_space<vmem>>, %arg3: memref<1x8x32x512xbf16, #tpu.memory_space<vmem>>, %arg4: memref<8x32xf32, #tpu.memory_space<vmem>>, %arg5: memref<8x1xf32, #tpu.memory_space<vmem>>, %arg6: memref<8x1xf32, #tpu.memory_space<vmem>>, %arg7: memref<1x1xf32, #tpu.memory_space<vmem>>, %arg8: memref<1x8x512xf32, #tpu.memory_space<vmem>>) attributes {dimension_semantics = [#tpu.dimension_semantics<parallel>, #tpu.dimension_semantics<parallel>], iteration_bounds = array<i64: 4, 2>, scalar_prefetch = 0 : i64, scratch_operands = 0 : i64, tpu.core_type = #tpu.core_type<tc>, window_params = [{transform_indices = @transform_0, window_bounds = array<i64: 1, 32, 512>}, {transform_indices = @transform_1, window_bounds = array<i64: 1, 8, 32, 512>}, {pipeline_mode = #tpu.pipeline_mode<synchronous>, transform_indices = @transform_2, window_bounds = array<i64: 8, 32>}, {pipeline_mode = #tpu.pipeline_mode<synchronous>, transform_indices = @transform_3, window_bounds = array<i64: 8, 1>}, {pipeline_mode = #tpu.pipeline_mode<synchronous>, transform_indices = @transform_4, window_bounds = array<i64: 8, 1>}, {pipeline_mode = #tpu.pipeline_mode<synchronous>, transform_indices = @transform_5, window_bounds = array<i64: 1, 1>}, {transform_indices = @transform_6, window_bounds = array<i64: 1, 8, 512>}]} {
    %c0 = arith.constant 0 : index
    %c0_0 = arith.constant 0 : index
    %c0_1 = arith.constant 0 : index
    %0 = vector.load %arg2[%c0, %c0_0, %c0_1] : memref<1x32x512xbf16, #tpu.memory_space<vmem>>, vector<1x32x512xbf16>
    %1 = vector.shape_cast %0 : vector<1x32x512xbf16> to vector<32x512xbf16>
    %2 = arith.extf %1 : vector<32x512xbf16> to vector<32x512xf32>
    %cst = arith.constant -2.000000e+00 : f32
    %3 = vector.broadcast %cst : f32 to vector<32x512xf32>
    %4 = arith.mulf %3, %2 : vector<32x512xf32>
    %c0_2 = arith.constant 0 : index
    %c0_3 = arith.constant 0 : index
    %5 = vector.load %arg4[%c0_2, %c0_3] : memref<8x32xf32, #tpu.memory_space<vmem>>, vector<8x32xf32>
    %c0_4 = arith.constant 0 : index
    %c0_5 = arith.constant 0 : index
    %6 = vector.load %arg5[%c0_4, %c0_5] : memref<8x1xf32, #tpu.memory_space<vmem>>, vector<8x1xf32>
    %c0_6 = arith.constant 0 : index
    %c0_7 = arith.constant 0 : index
    %7 = vector.load %arg6[%c0_6, %c0_7] : memref<8x1xf32, #tpu.memory_space<vmem>>, vector<8x1xf32>
    %c0_8 = arith.constant 0 : index
    %c0_9 = arith.constant 0 : index
    %8 = vector.load %arg7[%c0_8, %c0_9] : memref<1x1xf32, #tpu.memory_space<vmem>>, vector<1x1xf32>
    %c0_10 = arith.constant 0 : index
    %c0_11 = arith.constant 0 : index
    %c0_12 = arith.constant 0 : index
    %c0_13 = arith.constant 0 : index
    %9 = vector.load %arg3[%c0_10, %c0_11, %c0_12, %c0_13] : memref<1x8x32x512xbf16, #tpu.memory_space<vmem>>, vector<1x1x32x512xbf16>
    %10 = vector.shape_cast %9 : vector<1x1x32x512xbf16> to vector<32x512xbf16>
    %11 = arith.extf %10 : vector<32x512xbf16> to vector<32x512xf32>
    %12 = arith.mulf %4, %11 : vector<32x512xf32>
    %cst_14 = arith.constant dense<0.000000e+00> : vector<8x512xf32>
    %13 = tpu.matmul %5, %12, %cst_14 {dimension_numbers = #tpu.dot_dimension_numbers<[1], [0], [0], [1], [0, 0, 1, 1], [], []>} : vector<8x32xf32>, vector<32x512xf32>, vector<8x512xf32> -> vector<8x512xf32>
    %14 = vector.broadcast %6 : vector<8x1xf32> to vector<8x512xf32>
    %15 = arith.addf %13, %14 : vector<8x512xf32>
    %cst_15 = arith.constant 0.000000e+00 : f32
    %16 = vector.broadcast %cst_15 : f32 to vector<8x512xf32>
    %17 = arith.maximumf %15, %16 : vector<8x512xf32>
    %18 = vector.broadcast %7 : vector<8x1xf32> to vector<8x512xf32>
    %19 = arith.mulf %17, %18 : vector<8x512xf32>
    %cst_16 = arith.constant dense<0.000000e+00> : vector<512xf32>
    %20 = vector.multi_reduction <add>, %19, %cst_16 [0] : vector<8x512xf32> to vector<512xf32>
    %21 = vector.shape_cast %20 : vector<512xf32> to vector<1x512xf32>
    %22 = vector.broadcast %8 : vector<1x1xf32> to vector<1x512xf32>
    %23 = arith.addf %21, %22 : vector<1x512xf32>
    %c0_17 = arith.constant 0 : index
    %c0_18 = arith.constant 0 : index
    %c0_19 = arith.constant 0 : index
    %24 = vector.load %arg8[%c0_17, %c0_18, %c0_19] : memref<1x8x512xf32, #tpu.memory_space<vmem>>, vector<1x1x512xf32>
    %25 = vector.shape_cast %24 : vector<1x1x512xf32> to vector<1x512xf32>
    %26 = vector.shape_cast %23 : vector<1x512xf32> to vector<1x1x512xf32>
    tpu.vector_store %arg8[%c0_17, %c0_18, %c0_19], %26 {strides = array<i32>} : memref<1x8x512xf32, #tpu.memory_space<vmem>>, vector<1x1x512xf32>,
    %c0_20 = arith.constant 0 : index
    %c1 = arith.constant 1 : index
    %c0_21 = arith.constant 0 : index
    %c0_22 = arith.constant 0 : index
    %27 = vector.load %arg3[%c0_20, %c1, %c0_21, %c0_22] : memref<1x8x32x512xbf16, #tpu.memory_space<vmem>>, vector<1x1x32x512xbf16>
    %28 = vector.shape_cast %27 : vector<1x1x32x512xbf16> to vector<32x512xbf16>
    %29 = arith.extf %28 : vector<32x512xbf16> to vector<32x512xf32>
    %30 = arith.mulf %4, %29 : vector<32x512xf32>
    %cst_23 = arith.constant dense<0.000000e+00> : vector<8x512xf32>
    %31 = tpu.matmul %5, %30, %cst_23 {dimension_numbers = #tpu.dot_dimension_numbers<[1], [0], [0], [1], [0, 0, 1, 1], [], []>} : vector<8x32xf32>, vector<32x512xf32>, vector<8x512xf32> -> vector<8x512xf32>
    %32 = vector.broadcast %6 : vector<8x1xf32> to vector<8x512xf32>
    %33 = arith.addf %31, %32 : vector<8x512xf32>
    %cst_24 = arith.constant 0.000000e+00 : f32
    %34 = vector.broadcast %cst_24 : f32 to vector<8x512xf32>
    %35 = arith.maximumf %33, %34 : vector<8x512xf32>
    %36 = vector.broadcast %7 : vector<8x1xf32> to vector<8x512xf32>
    %37 = arith.mulf %35, %36 : vector<8x512xf32>
    %cst_25 = arith.constant dense<0.000000e+00> : vector<512xf32>
    %38 = vector.multi_reduction <add>, %37, %cst_25 [0] : vector<8x512xf32> to vector<512xf32>
    %39 = vector.shape_cast %38 : vector<512xf32> to vector<1x512xf32>
    %40 = vector.broadcast %8 : vector<1x1xf32> to vector<1x512xf32>
    %41 = arith.addf %39, %40 : vector<1x512xf32>
    %c0_26 = arith.constant 0 : index
    %c1_27 = arith.constant 1 : index
    %c0_28 = arith.constant 0 : index
    %42 = vector.load %arg8[%c0_26, %c1_27, %c0_28] : memref<1x8x512xf32, #tpu.memory_space<vmem>>, vector<1x1x512xf32>
    %43 = vector.shape_cast %42 : vector<1x1x512xf32> to vector<1x512xf32>
    %44 = vector.shape_cast %41 : vector<1x512xf32> to vector<1x1x512xf32>
    tpu.vector_store %arg8[%c0_26, %c1_27, %c0_28], %44 {strides = array<i32>} : memref<1x8x512xf32, #tpu.memory_space<vmem>>, vector<1x1x512xf32>,
    %c0_29 = arith.constant 0 : index
    %c2 = arith.constant 2 : index
    %c0_30 = arith.constant 0 : index
    %c0_31 = arith.constant 0 : index
    %45 = vector.load %arg3[%c0_29, %c2, %c0_30, %c0_31] : memref<1x8x32x512xbf16, #tpu.memory_space<vmem>>, vector<1x1x32x512xbf16>
    %46 = vector.shape_cast %45 : vector<1x1x32x512xbf16> to vector<32x512xbf16>
    %47 = arith.extf %46 : vector<32x512xbf16> to vector<32x512xf32>
    %48 = arith.mulf %4, %47 : vector<32x512xf32>
    %cst_32 = arith.constant dense<0.000000e+00> : vector<8x512xf32>
    %49 = tpu.matmul %5, %48, %cst_32 {dimension_numbers = #tpu.dot_dimension_numbers<[1], [0], [0], [1], [0, 0, 1, 1], [], []>} : vector<8x32xf32>, vector<32x512xf32>, vector<8x512xf32> -> vector<8x512xf32>
    %50 = vector.broadcast %6 : vector<8x1xf32> to vector<8x512xf32>
    %51 = arith.addf %49, %50 : vector<8x512xf32>
    %cst_33 = arith.constant 0.000000e+00 : f32
    %52 = vector.broadcast %cst_33 : f32 to vector<8x512xf32>
    %53 = arith.maximumf %51, %52 : vector<8x512xf32>
    %54 = vector.broadcast %7 : vector<8x1xf32> to vector<8x512xf32>
    %55 = arith.mulf %53, %54 : vector<8x512xf32>
    %cst_34 = arith.constant dense<0.000000e+00> : vector<512xf32>
    %56 = vector.multi_reduction <add>, %55, %cst_34 [0] : vector<8x512xf32> to vector<512xf32>
    %57 = vector.shape_cast %56 : vector<512xf32> to vector<1x512xf32>
    %58 = vector.broadcast %8 : vector<1x1xf32> to vector<1x512xf32>
    %59 = arith.addf %57, %58 : vector<1x512xf32>
    %c0_35 = arith.constant 0 : index
    %c2_36 = arith.constant 2 : index
    %c0_37 = arith.constant 0 : index
    %60 = vector.load %arg8[%c0_35, %c2_36, %c0_37] : memref<1x8x512xf32, #tpu.memory_space<vmem>>, vector<1x1x512xf32>
    %61 = vector.shape_cast %60 : vector<1x1x512xf32> to vector<1x512xf32>
    %62 = vector.shape_cast %59 : vector<1x512xf32> to vector<1x1x512xf32>
    tpu.vector_store %arg8[%c0_35, %c2_36, %c0_37], %62 {strides = array<i32>} : memref<1x8x512xf32, #tpu.memory_space<vmem>>, vector<1x1x512xf32>,
    %c0_38 = arith.constant 0 : index
    %c3 = arith.constant 3 : index
    %c0_39 = arith.constant 0 : index
    %c0_40 = arith.constant 0 : index
    %63 = vector.load %arg3[%c0_38, %c3, %c0_39, %c0_40] : memref<1x8x32x512xbf16, #tpu.memory_space<vmem>>, vector<1x1x32x512xbf16>
    %64 = vector.shape_cast %63 : vector<1x1x32x512xbf16> to vector<32x512xbf16>
    %65 = arith.extf %64 : vector<32x512xbf16> to vector<32x512xf32>
    %66 = arith.mulf %4, %65 : vector<32x512xf32>
    %cst_41 = arith.constant dense<0.000000e+00> : vector<8x512xf32>
    %67 = tpu.matmul %5, %66, %cst_41 {dimension_numbers = #tpu.dot_dimension_numbers<[1], [0], [0], [1], [0, 0, 1, 1], [], []>} : vector<8x32xf32>, vector<32x512xf32>, vector<8x512xf32> -> vector<8x512xf32>
    %68 = vector.broadcast %6 : vector<8x1xf32> to vector<8x512xf32>
    %69 = arith.addf %67, %68 : vector<8x512xf32>
    %cst_42 = arith.constant 0.000000e+00 : f32
    %70 = vector.broadcast %cst_42 : f32 to vector<8x512xf32>
    %71 = arith.maximumf %69, %70 : vector<8x512xf32>
    %72 = vector.broadcast %7 : vector<8x1xf32> to vector<8x512xf32>
    %73 = arith.mulf %71, %72 : vector<8x512xf32>
    %cst_43 = arith.constant dense<0.000000e+00> : vector<512xf32>
    %74 = vector.multi_reduction <add>, %73, %cst_43 [0] : vector<8x512xf32> to vector<512xf32>
    %75 = vector.shape_cast %74 : vector<512xf32> to vector<1x512xf32>
    %76 = vector.broadcast %8 : vector<1x1xf32> to vector<1x512xf32>
    %77 = arith.addf %75, %76 : vector<1x512xf32>
    %c0_44 = arith.constant 0 : index
    %c3_45 = arith.constant 3 : index
    %c0_46 = arith.constant 0 : index
    %78 = vector.load %arg8[%c0_44, %c3_45, %c0_46] : memref<1x8x512xf32, #tpu.memory_space<vmem>>, vector<1x1x512xf32>
    %79 = vector.shape_cast %78 : vector<1x1x512xf32> to vector<1x512xf32>
    %80 = vector.shape_cast %77 : vector<1x512xf32> to vector<1x1x512xf32>
    tpu.vector_store %arg8[%c0_44, %c3_45, %c0_46], %80 {strides = array<i32>} : memref<1x8x512xf32, #tpu.memory_space<vmem>>, vector<1x1x512xf32>,
    %c0_47 = arith.constant 0 : index
    %c4 = arith.constant 4 : index
    %c0_48 = arith.constant 0 : index
    %c0_49 = arith.constant 0 : index
    %81 = vector.load %arg3[%c0_47, %c4, %c0_48, %c0_49] : memref<1x8x32x512xbf16, #tpu.memory_space<vmem>>, vector<1x1x32x512xbf16>
    %82 = vector.shape_cast %81 : vector<1x1x32x512xbf16> to vector<32x512xbf16>
    %83 = arith.extf %82 : vector<32x512xbf16> to vector<32x512xf32>
    %84 = arith.mulf %4, %83 : vector<32x512xf32>
    %cst_50 = arith.constant dense<0.000000e+00> : vector<8x512xf32>
    %85 = tpu.matmul %5, %84, %cst_50 {dimension_numbers = #tpu.dot_dimension_numbers<[1], [0], [0], [1], [0, 0, 1, 1], [], []>} : vector<8x32xf32>, vector<32x512xf32>, vector<8x512xf32> -> vector<8x512xf32>
    %86 = vector.broadcast %6 : vector<8x1xf32> to vector<8x512xf32>
    %87 = arith.addf %85, %86 : vector<8x512xf32>
    %cst_51 = arith.constant 0.000000e+00 : f32
    %88 = vector.broadcast %cst_51 : f32 to vector<8x512xf32>
    %89 = arith.maximumf %87, %88 : vector<8x512xf32>
    %90 = vector.broadcast %7 : vector<8x1xf32> to vector<8x512xf32>
    %91 = arith.mulf %89, %90 : vector<8x512xf32>
    %cst_52 = arith.constant dense<0.000000e+00> : vector<512xf32>
    %92 = vector.multi_reduction <add>, %91, %cst_52 [0] : vector<8x512xf32> to vector<512xf32>
    %93 = vector.shape_cast %92 : vector<512xf32> to vector<1x512xf32>
    %94 = vector.broadcast %8 : vector<1x1xf32> to vector<1x512xf32>
    %95 = arith.addf %93, %94 : vector<1x512xf32>
    %c0_53 = arith.constant 0 : index
    %c4_54 = arith.constant 4 : index
    %c0_55 = arith.constant 0 : index
    %96 = vector.load %arg8[%c0_53, %c4_54, %c0_55] : memref<1x8x512xf32, #tpu.memory_space<vmem>>, vector<1x1x512xf32>
    %97 = vector.shape_cast %96 : vector<1x1x512xf32> to vector<1x512xf32>
    %98 = vector.shape_cast %95 : vector<1x512xf32> to vector<1x1x512xf32>
    tpu.vector_store %arg8[%c0_53, %c4_54, %c0_55], %98 {strides = array<i32>} : memref<1x8x512xf32, #tpu.memory_space<vmem>>, vector<1x1x512xf32>,
    %c0_56 = arith.constant 0 : index
    %c5 = arith.constant 5 : index
    %c0_57 = arith.constant 0 : index
    %c0_58 = arith.constant 0 : index
    %99 = vector.load %arg3[%c0_56, %c5, %c0_57, %c0_58] : memref<1x8x32x512xbf16, #tpu.memory_space<vmem>>, vector<1x1x32x512xbf16>
    %100 = vector.shape_cast %99 : vector<1x1x32x512xbf16> to vector<32x512xbf16>
    %101 = arith.extf %100 : vector<32x512xbf16> to vector<32x512xf32>
    %102 = arith.mulf %4, %101 : vector<32x512xf32>
    %cst_59 = arith.constant dense<0.000000e+00> : vector<8x512xf32>
    %103 = tpu.matmul %5, %102, %cst_59 {dimension_numbers = #tpu.dot_dimension_numbers<[1], [0], [0], [1], [0, 0, 1, 1], [], []>} : vector<8x32xf32>, vector<32x512xf32>, vector<8x512xf32> -> vector<8x512xf32>
    %104 = vector.broadcast %6 : vector<8x1xf32> to vector<8x512xf32>
    %105 = arith.addf %103, %104 : vector<8x512xf32>
    %cst_60 = arith.constant 0.000000e+00 : f32
    %106 = vector.broadcast %cst_60 : f32 to vector<8x512xf32>
    %107 = arith.maximumf %105, %106 : vector<8x512xf32>
    %108 = vector.broadcast %7 : vector<8x1xf32> to vector<8x512xf32>
    %109 = arith.mulf %107, %108 : vector<8x512xf32>
    %cst_61 = arith.constant dense<0.000000e+00> : vector<512xf32>
    %110 = vector.multi_reduction <add>, %109, %cst_61 [0] : vector<8x512xf32> to vector<512xf32>
    %111 = vector.shape_cast %110 : vector<512xf32> to vector<1x512xf32>
    %112 = vector.broadcast %8 : vector<1x1xf32> to vector<1x512xf32>
    %113 = arith.addf %111, %112 : vector<1x512xf32>
    %c0_62 = arith.constant 0 : index
    %c5_63 = arith.constant 5 : index
    %c0_64 = arith.constant 0 : index
    %114 = vector.load %arg8[%c0_62, %c5_63, %c0_64] : memref<1x8x512xf32, #tpu.memory_space<vmem>>, vector<1x1x512xf32>
    %115 = vector.shape_cast %114 : vector<1x1x512xf32> to vector<1x512xf32>
    %116 = vector.shape_cast %113 : vector<1x512xf32> to vector<1x1x512xf32>
    tpu.vector_store %arg8[%c0_62, %c5_63, %c0_64], %116 {strides = array<i32>} : memref<1x8x512xf32, #tpu.memory_space<vmem>>, vector<1x1x512xf32>,
    %c0_65 = arith.constant 0 : index
    %c6 = arith.constant 6 : index
    %c0_66 = arith.constant 0 : index
    %c0_67 = arith.constant 0 : index
    %117 = vector.load %arg3[%c0_65, %c6, %c0_66, %c0_67] : memref<1x8x32x512xbf16, #tpu.memory_space<vmem>>, vector<1x1x32x512xbf16>
    %118 = vector.shape_cast %117 : vector<1x1x32x512xbf16> to vector<32x512xbf16>
    %119 = arith.extf %118 : vector<32x512xbf16> to vector<32x512xf32>
    %120 = arith.mulf %4, %119 : vector<32x512xf32>
    %cst_68 = arith.constant dense<0.000000e+00> : vector<8x512xf32>
    %121 = tpu.matmul %5, %120, %cst_68 {dimension_numbers = #tpu.dot_dimension_numbers<[1], [0], [0], [1], [0, 0, 1, 1], [], []>} : vector<8x32xf32>, vector<32x512xf32>, vector<8x512xf32> -> vector<8x512xf32>
    %122 = vector.broadcast %6 : vector<8x1xf32> to vector<8x512xf32>
    %123 = arith.addf %121, %122 : vector<8x512xf32>
    %cst_69 = arith.constant 0.000000e+00 : f32
    %124 = vector.broadcast %cst_69 : f32 to vector<8x512xf32>
    %125 = arith.maximumf %123, %124 : vector<8x512xf32>
    %126 = vector.broadcast %7 : vector<8x1xf32> to vector<8x512xf32>
    %127 = arith.mulf %125, %126 : vector<8x512xf32>
    %cst_70 = arith.constant dense<0.000000e+00> : vector<512xf32>
    %128 = vector.multi_reduction <add>, %127, %cst_70 [0] : vector<8x512xf32> to vector<512xf32>
    %129 = vector.shape_cast %128 : vector<512xf32> to vector<1x512xf32>
    %130 = vector.broadcast %8 : vector<1x1xf32> to vector<1x512xf32>
    %131 = arith.addf %129, %130 : vector<1x512xf32>
    %c0_71 = arith.constant 0 : index
    %c6_72 = arith.constant 6 : index
    %c0_73 = arith.constant 0 : index
    %132 = vector.load %arg8[%c0_71, %c6_72, %c0_73] : memref<1x8x512xf32, #tpu.memory_space<vmem>>, vector<1x1x512xf32>
    %133 = vector.shape_cast %132 : vector<1x1x512xf32> to vector<1x512xf32>
    %134 = vector.shape_cast %131 : vector<1x512xf32> to vector<1x1x512xf32>
    tpu.vector_store %arg8[%c0_71, %c6_72, %c0_73], %134 {strides = array<i32>} : memref<1x8x512xf32, #tpu.memory_space<vmem>>, vector<1x1x512xf32>,
    %c0_74 = arith.constant 0 : index
    %c7 = arith.constant 7 : index
    %c0_75 = arith.constant 0 : index
    %c0_76 = arith.constant 0 : index
    %135 = vector.load %arg3[%c0_74, %c7, %c0_75, %c0_76] : memref<1x8x32x512xbf16, #tpu.memory_space<vmem>>, vector<1x1x32x512xbf16>
    %136 = vector.shape_cast %135 : vector<1x1x32x512xbf16> to vector<32x512xbf16>
    %137 = arith.extf %136 : vector<32x512xbf16> to vector<32x512xf32>
    %138 = arith.mulf %4, %137 : vector<32x512xf32>
    %cst_77 = arith.constant dense<0.000000e+00> : vector<8x512xf32>
    %139 = tpu.matmul %5, %138, %cst_77 {dimension_numbers = #tpu.dot_dimension_numbers<[1], [0], [0], [1], [0, 0, 1, 1], [], []>} : vector<8x32xf32>, vector<32x512xf32>, vector<8x512xf32> -> vector<8x512xf32>
    %140 = vector.broadcast %6 : vector<8x1xf32> to vector<8x512xf32>
    %141 = arith.addf %139, %140 : vector<8x512xf32>
    %cst_78 = arith.constant 0.000000e+00 : f32
    %142 = vector.broadcast %cst_78 : f32 to vector<8x512xf32>
    %143 = arith.maximumf %141, %142 : vector<8x512xf32>
    %144 = vector.broadcast %7 : vector<8x1xf32> to vector<8x512xf32>
    %145 = arith.mulf %143, %144 : vector<8x512xf32>
    %cst_79 = arith.constant dense<0.000000e+00> : vector<512xf32>
    %146 = vector.multi_reduction <add>, %145, %cst_79 [0] : vector<8x512xf32> to vector<512xf32>
    %147 = vector.shape_cast %146 : vector<512xf32> to vector<1x512xf32>
    %148 = vector.broadcast %8 : vector<1x1xf32> to vector<1x512xf32>
    %149 = arith.addf %147, %148 : vector<1x512xf32>
    %c0_80 = arith.constant 0 : index
    %c7_81 = arith.constant 7 : index
    %c0_82 = arith.constant 0 : index
    %150 = vector.load %arg8[%c0_80, %c7_81, %c0_82] : memref<1x8x512xf32, #tpu.memory_space<vmem>>, vector<1x1x512xf32>
    %151 = vector.shape_cast %150 : vector<1x1x512xf32> to vector<1x512xf32>
    %152 = vector.shape_cast %149 : vector<1x512xf32> to vector<1x1x512xf32>
    tpu.vector_store %arg8[%c0_80, %c7_81, %c0_82], %152 {strides = array<i32>} : memref<1x8x512xf32, #tpu.memory_space<vmem>>, vector<1x1x512xf32>,
    return
  }
  func.func @transform_0(%arg0: i32, %arg1: i32) -> (i32, i32, i32) {
    %c0_i32 = arith.constant 0 : i32
    %c0_i32_0 = arith.constant 0 : i32
    return %arg0, %c0_i32, %arg1 : i32, i32, i32
  }
  func.func @transform_1(%arg0: i32, %arg1: i32) -> (i32, i32, i32, i32) {
    %c0_i32 = arith.constant 0 : i32
    %c0_i32_0 = arith.constant 0 : i32
    %c0_i32_1 = arith.constant 0 : i32
    return %arg0, %c0_i32, %c0_i32_0, %arg1 : i32, i32, i32, i32
  }
  func.func @transform_2(%arg0: i32, %arg1: i32) -> (i32, i32) {
    %c0_i32 = arith.constant 0 : i32
    %c0_i32_0 = arith.constant 0 : i32
    %c0_i32_1 = arith.constant 0 : i32
    return %c0_i32, %c0_i32_0 : i32, i32
  }
  func.func @transform_3(%arg0: i32, %arg1: i32) -> (i32, i32) {
    %c0_i32 = arith.constant 0 : i32
    %c0_i32_0 = arith.constant 0 : i32
    %c0_i32_1 = arith.constant 0 : i32
    return %c0_i32, %c0_i32_0 : i32, i32
  }
  func.func @transform_4(%arg0: i32, %arg1: i32) -> (i32, i32) {
    %c0_i32 = arith.constant 0 : i32
    %c0_i32_0 = arith.constant 0 : i32
    %c0_i32_1 = arith.constant 0 : i32
    return %c0_i32, %c0_i32_0 : i32, i32
  }
  func.func @transform_5(%arg0: i32, %arg1: i32) -> (i32, i32) {
    %c0_i32 = arith.constant 0 : i32
    %c0_i32_0 = arith.constant 0 : i32
    %c0_i32_1 = arith.constant 0 : i32
    return %c0_i32, %c0_i32_0 : i32, i32
  }
  func.func @transform_6(%arg0: i32, %arg1: i32) -> (i32, i32, i32) {
    %c0_i32 = arith.constant 0 : i32
    %c0_i32_0 = arith.constant 0 : i32
    return %arg0, %c0_i32, %arg1 : i32, i32, i32
  }
}

module attributes {stable_mosaic.version = 11 : i64} {
  func.func @_point_head_kernel(%arg0: i32, %arg1: memref<1x32x128xbf16, #tpu.memory_space<vmem>>, %arg2: memref<1x8x128xf32, #tpu.memory_space<vmem>>, %arg3: memref<1x8x1xf32, #tpu.memory_space<vmem>>, %arg4: memref<64x32xf32, #tpu.memory_space<vmem>>, %arg5: memref<64x1xf32, #tpu.memory_space<vmem>>, %arg6: memref<128x64xf32, #tpu.memory_space<vmem>>, %arg7: memref<128x1xf32, #tpu.memory_space<vmem>>, %arg8: memref<64x128xf32, #tpu.memory_space<vmem>>, %arg9: memref<64x1xf32, #tpu.memory_space<vmem>>, %arg10: memref<3x64xf32, #tpu.memory_space<vmem>>, %arg11: memref<3x1xf32, #tpu.memory_space<vmem>>, %arg12: memref<1x3x128xf32, #tpu.memory_space<vmem>>, %arg13: memref<1x1x128xf32, #tpu.memory_space<vmem>>) attributes {dimension_semantics = [#tpu.dimension_semantics<parallel>], iteration_bounds = array<i64: 4>, scalar_prefetch = 0 : i64, scratch_operands = 0 : i64, tpu.core_type = #tpu.core_type<tc>, window_params = [{transform_indices = @transform_0, window_bounds = array<i64: 1, 32, 128>}, {transform_indices = @transform_1, window_bounds = array<i64: 1, 8, 128>}, {transform_indices = @transform_2, window_bounds = array<i64: 1, 8, 1>}, {pipeline_mode = #tpu.pipeline_mode<synchronous>, transform_indices = @transform_3, window_bounds = array<i64: 64, 32>}, {pipeline_mode = #tpu.pipeline_mode<synchronous>, transform_indices = @transform_4, window_bounds = array<i64: 64, 1>}, {pipeline_mode = #tpu.pipeline_mode<synchronous>, transform_indices = @transform_5, window_bounds = array<i64: 128, 64>}, {pipeline_mode = #tpu.pipeline_mode<synchronous>, transform_indices = @transform_6, window_bounds = array<i64: 128, 1>}, {pipeline_mode = #tpu.pipeline_mode<synchronous>, transform_indices = @transform_7, window_bounds = array<i64: 64, 128>}, {pipeline_mode = #tpu.pipeline_mode<synchronous>, transform_indices = @transform_8, window_bounds = array<i64: 64, 1>}, {pipeline_mode = #tpu.pipeline_mode<synchronous>, transform_indices = @transform_9, window_bounds = array<i64: 3, 64>}, {pipeline_mode = #tpu.pipeline_mode<synchronous>, transform_indices = @transform_10, window_bounds = array<i64: 3, 1>}, {transform_indices = @transform_11, window_bounds = array<i64: 1, 3, 128>}, {transform_indices = @transform_12, window_bounds = array<i64: 1, 1, 128>}]} {
    %c0 = arith.constant 0 : index
    %c0_0 = arith.constant 0 : index
    %c0_1 = arith.constant 0 : index
    %0 = vector.load %arg1[%c0, %c0_0, %c0_1] : memref<1x32x128xbf16, #tpu.memory_space<vmem>>, vector<1x32x128xbf16>
    %1 = vector.shape_cast %0 : vector<1x32x128xbf16> to vector<32x128xbf16>
    %2 = arith.extf %1 : vector<32x128xbf16> to vector<32x128xf32>
    %c0_2 = arith.constant 0 : index
    %c0_3 = arith.constant 0 : index
    %3 = vector.load %arg4[%c0_2, %c0_3] : memref<64x32xf32, #tpu.memory_space<vmem>>, vector<64x32xf32>
    %cst = arith.constant dense<0.000000e+00> : vector<64x128xf32>
    %4 = tpu.matmul %3, %2, %cst {dimension_numbers = #tpu.dot_dimension_numbers<[1], [0], [0], [1], [0, 0, 1, 1], [], []>} : vector<64x32xf32>, vector<32x128xf32>, vector<64x128xf32> -> vector<64x128xf32>
    %c0_4 = arith.constant 0 : index
    %c0_5 = arith.constant 0 : index
    %5 = vector.load %arg5[%c0_4, %c0_5] : memref<64x1xf32, #tpu.memory_space<vmem>>, vector<64x1xf32>
    %6 = vector.broadcast %5 : vector<64x1xf32> to vector<64x128xf32>
    %7 = arith.addf %4, %6 : vector<64x128xf32>
    %cst_6 = arith.constant 0.000000e+00 : f32
    %8 = vector.broadcast %cst_6 : f32 to vector<64x128xf32>
    %9 = arith.maximumf %7, %8 : vector<64x128xf32>
    %c0_7 = arith.constant 0 : index
    %c0_8 = arith.constant 0 : index
    %10 = vector.load %arg6[%c0_7, %c0_8] : memref<128x64xf32, #tpu.memory_space<vmem>>, vector<128x64xf32>
    %cst_9 = arith.constant dense<0.000000e+00> : vector<128x128xf32>
    %11 = tpu.matmul %10, %9, %cst_9 {dimension_numbers = #tpu.dot_dimension_numbers<[1], [0], [0], [1], [0, 0, 1, 1], [], []>} : vector<128x64xf32>, vector<64x128xf32>, vector<128x128xf32> -> vector<128x128xf32>
    %c0_10 = arith.constant 0 : index
    %c0_11 = arith.constant 0 : index
    %12 = vector.load %arg7[%c0_10, %c0_11] : memref<128x1xf32, #tpu.memory_space<vmem>>, vector<128x1xf32>
    %13 = vector.broadcast %12 : vector<128x1xf32> to vector<128x128xf32>
    %14 = arith.addf %11, %13 : vector<128x128xf32>
    %cst_12 = arith.constant 0.000000e+00 : f32
    %15 = vector.broadcast %cst_12 : f32 to vector<128x128xf32>
    %16 = arith.maximumf %14, %15 : vector<128x128xf32>
    %c0_13 = arith.constant 0 : index
    %c0_14 = arith.constant 0 : index
    %17 = vector.load %arg8[%c0_13, %c0_14] : memref<64x128xf32, #tpu.memory_space<vmem>>, vector<64x128xf32>
    %cst_15 = arith.constant dense<0.000000e+00> : vector<64x128xf32>
    %18 = tpu.matmul %17, %16, %cst_15 {dimension_numbers = #tpu.dot_dimension_numbers<[1], [0], [0], [1], [0, 0, 1, 1], [], []>} : vector<64x128xf32>, vector<128x128xf32>, vector<64x128xf32> -> vector<64x128xf32>
    %c0_16 = arith.constant 0 : index
    %c0_17 = arith.constant 0 : index
    %19 = vector.load %arg9[%c0_16, %c0_17] : memref<64x1xf32, #tpu.memory_space<vmem>>, vector<64x1xf32>
    %20 = vector.broadcast %19 : vector<64x1xf32> to vector<64x128xf32>
    %21 = arith.addf %18, %20 : vector<64x128xf32>
    %cst_18 = arith.constant 0.000000e+00 : f32
    %22 = vector.broadcast %cst_18 : f32 to vector<64x128xf32>
    %23 = arith.maximumf %21, %22 : vector<64x128xf32>
    %c0_19 = arith.constant 0 : index
    %c0_20 = arith.constant 0 : index
    %24 = vector.load %arg10[%c0_19, %c0_20] : memref<3x64xf32, #tpu.memory_space<vmem>>, vector<3x64xf32>
    %cst_21 = arith.constant dense<0.000000e+00> : vector<3x128xf32>
    %25 = tpu.matmul %24, %23, %cst_21 {dimension_numbers = #tpu.dot_dimension_numbers<[1], [0], [0], [1], [0, 0, 1, 1], [], []>} : vector<3x64xf32>, vector<64x128xf32>, vector<3x128xf32> -> vector<3x128xf32>
    %c0_22 = arith.constant 0 : index
    %c0_23 = arith.constant 0 : index
    %26 = vector.load %arg11[%c0_22, %c0_23] : memref<3x1xf32, #tpu.memory_space<vmem>>, vector<3x1xf32>
    %27 = vector.broadcast %26 : vector<3x1xf32> to vector<3x128xf32>
    %28 = arith.addf %25, %27 : vector<3x128xf32>
    %29 = math.tanh %28 : vector<3x128xf32>
    %c0_24 = arith.constant 0 : index
    %c0_25 = arith.constant 0 : index
    %c0_26 = arith.constant 0 : index
    %30 = vector.load %arg12[%c0_24, %c0_25, %c0_26] : memref<1x3x128xf32, #tpu.memory_space<vmem>>, vector<1x3x128xf32>
    %31 = vector.shape_cast %30 : vector<1x3x128xf32> to vector<3x128xf32>
    %32 = vector.shape_cast %29 : vector<3x128xf32> to vector<1x3x128xf32>
    tpu.vector_store %arg12[%c0_24, %c0_25, %c0_26], %32 {strides = array<i32>} : memref<1x3x128xf32, #tpu.memory_space<vmem>>, vector<1x3x128xf32>,
    %c0_27 = arith.constant 0 : index
    %c0_28 = arith.constant 0 : index
    %c0_29 = arith.constant 0 : index
    %33 = vector.load %arg2[%c0_27, %c0_28, %c0_29] : memref<1x8x128xf32, #tpu.memory_space<vmem>>, vector<1x8x128xf32>
    %34 = vector.shape_cast %33 : vector<1x8x128xf32> to vector<8x128xf32>
    %cst_30 = arith.constant dense<0xFF800000> : vector<128xf32>
    %35 = vector.multi_reduction <maximumf>, %34, %cst_30 [0] : vector<8x128xf32> to vector<128xf32>
    %36 = vector.shape_cast %35 : vector<128xf32> to vector<1x128xf32>
    %37 = vector.broadcast %36 : vector<1x128xf32> to vector<8x128xf32>
    %38 = arith.subf %34, %37 : vector<8x128xf32>
    %39 = math.exp %38 : vector<8x128xf32>
    %cst_31 = arith.constant dense<0.000000e+00> : vector<128xf32>
    %40 = vector.multi_reduction <add>, %39, %cst_31 [0] : vector<8x128xf32> to vector<128xf32>
    %41 = vector.shape_cast %40 : vector<128xf32> to vector<1x128xf32>
    %42 = tpu.reciprocal %41 {approx = true} : vector<1x128xf32> -> vector<1x128xf32>
    %43 = vector.broadcast %42 : vector<1x128xf32> to vector<8x128xf32>
    %44 = arith.mulf %39, %43 : vector<8x128xf32>
    %c0_32 = arith.constant 0 : index
    %c0_33 = arith.constant 0 : index
    %c0_34 = arith.constant 0 : index
    %45 = vector.load %arg3[%c0_32, %c0_33, %c0_34] : memref<1x8x1xf32, #tpu.memory_space<vmem>>, vector<1x8x1xf32>
    %46 = vector.shape_cast %45 : vector<1x8x1xf32> to vector<8x1xf32>
    %47 = vector.broadcast %46 : vector<8x1xf32> to vector<8x128xf32>
    %48 = arith.mulf %44, %47 : vector<8x128xf32>
    %cst_35 = arith.constant dense<0.000000e+00> : vector<128xf32>
    %49 = vector.multi_reduction <add>, %48, %cst_35 [0] : vector<8x128xf32> to vector<128xf32>
    %50 = vector.shape_cast %49 : vector<128xf32> to vector<1x128xf32>
    %c0_36 = arith.constant 0 : index
    %c0_37 = arith.constant 0 : index
    %c0_38 = arith.constant 0 : index
    %51 = vector.load %arg13[%c0_36, %c0_37, %c0_38] : memref<1x1x128xf32, #tpu.memory_space<vmem>>, vector<1x1x128xf32>
    %52 = vector.shape_cast %51 : vector<1x1x128xf32> to vector<1x128xf32>
    %53 = vector.shape_cast %50 : vector<1x128xf32> to vector<1x1x128xf32>
    tpu.vector_store %arg13[%c0_36, %c0_37, %c0_38], %53 {strides = array<i32>} : memref<1x1x128xf32, #tpu.memory_space<vmem>>, vector<1x1x128xf32>,
    return
  }
  func.func @transform_0(%arg0: i32) -> (i32, i32, i32) {
    %c0_i32 = arith.constant 0 : i32
    %c0_i32_0 = arith.constant 0 : i32
    %c0_i32_1 = arith.constant 0 : i32
    return %arg0, %c0_i32, %c0_i32_0 : i32, i32, i32
  }
  func.func @transform_1(%arg0: i32) -> (i32, i32, i32) {
    %c0_i32 = arith.constant 0 : i32
    %c0_i32_0 = arith.constant 0 : i32
    %c0_i32_1 = arith.constant 0 : i32
    return %arg0, %c0_i32, %c0_i32_0 : i32, i32, i32
  }
  func.func @transform_2(%arg0: i32) -> (i32, i32, i32) {
    %c0_i32 = arith.constant 0 : i32
    %c0_i32_0 = arith.constant 0 : i32
    %c0_i32_1 = arith.constant 0 : i32
    return %arg0, %c0_i32, %c0_i32_0 : i32, i32, i32
  }
  func.func @transform_3(%arg0: i32) -> (i32, i32) {
    %c0_i32 = arith.constant 0 : i32
    %c0_i32_0 = arith.constant 0 : i32
    %c0_i32_1 = arith.constant 0 : i32
    return %c0_i32, %c0_i32_0 : i32, i32
  }
  func.func @transform_4(%arg0: i32) -> (i32, i32) {
    %c0_i32 = arith.constant 0 : i32
    %c0_i32_0 = arith.constant 0 : i32
    %c0_i32_1 = arith.constant 0 : i32
    return %c0_i32, %c0_i32_0 : i32, i32
  }
  func.func @transform_5(%arg0: i32) -> (i32, i32) {
    %c0_i32 = arith.constant 0 : i32
    %c0_i32_0 = arith.constant 0 : i32
    %c0_i32_1 = arith.constant 0 : i32
    return %c0_i32, %c0_i32_0 : i32, i32
  }
  func.func @transform_6(%arg0: i32) -> (i32, i32) {
    %c0_i32 = arith.constant 0 : i32
    %c0_i32_0 = arith.constant 0 : i32
    %c0_i32_1 = arith.constant 0 : i32
    return %c0_i32, %c0_i32_0 : i32, i32
  }
  func.func @transform_7(%arg0: i32) -> (i32, i32) {
    %c0_i32 = arith.constant 0 : i32
    %c0_i32_0 = arith.constant 0 : i32
    %c0_i32_1 = arith.constant 0 : i32
    return %c0_i32, %c0_i32_0 : i32, i32
  }
  func.func @transform_8(%arg0: i32) -> (i32, i32) {
    %c0_i32 = arith.constant 0 : i32
    %c0_i32_0 = arith.constant 0 : i32
    %c0_i32_1 = arith.constant 0 : i32
    return %c0_i32, %c0_i32_0 : i32, i32
  }
  func.func @transform_9(%arg0: i32) -> (i32, i32) {
    %c0_i32 = arith.constant 0 : i32
    %c0_i32_0 = arith.constant 0 : i32
    %c0_i32_1 = arith.constant 0 : i32
    return %c0_i32, %c0_i32_0 : i32, i32
  }
  func.func @transform_10(%arg0: i32) -> (i32, i32) {
    %c0_i32 = arith.constant 0 : i32
    %c0_i32_0 = arith.constant 0 : i32
    %c0_i32_1 = arith.constant 0 : i32
    return %c0_i32, %c0_i32_0 : i32, i32
  }
  func.func @transform_11(%arg0: i32) -> (i32, i32, i32) {
    %c0_i32 = arith.constant 0 : i32
    %c0_i32_0 = arith.constant 0 : i32
    %c0_i32_1 = arith.constant 0 : i32
    return %arg0, %c0_i32, %c0_i32_0 : i32, i32, i32
  }
  func.func @transform_12(%arg0: i32) -> (i32, i32, i32) {
    %c0_i32 = arith.constant 0 : i32
    %c0_i32_0 = arith.constant 0 : i32
    %c0_i32_1 = arith.constant 0 : i32
    return %arg0, %c0_i32, %c0_i32_0 : i32, i32, i32
  }
}

</mosaic_0001>

<llo_original>
// kernel: custom-call.11
$region0: #{custom-call.11}
  %s0 = inlined_call_operand.vmem [shape: f32[4,4,4], index: 0, kind: input, shape index: {}]
  %s1 = inlined_call_operand.vmem [shape: f32[4,4,4], index: 1, kind: output, shape index: {0}]
  %s2 = inlined_call_operand.hbm [shape: s32[4,4], index: 2, kind: output, shape index: {1}]
  %s3 = inlined_call_operand.vmem [shape: s32[4,4], index: 3, kind: output, shape index: {2}]
  %4 = xla_tuple %s1, %s2, %s3
  $region1: #{custom-call.11} parent=0
    #allocation0 [shape = 'u8[4096]{0}', space=vmem, size = 0x1000, scoped, tag = 'operand span for operand 0']
    #allocation1 [shape = 'u8[4096]{0}', space=vmem, size = 0x1000, scoped, tag = 'packed  for operand 0']
    #allocation2 [shape = 'u8[4096]{0}', space=vmem, size = 0x1000, scoped, tag = 'operand span for operand 1']
    #allocation3 [shape = 'u8[4096]{0}', space=vmem, size = 0x1000, scoped, tag = 'packed  for operand 1']
    #allocation4 [shape = 'u8[4096]{0}', space=vmem, size = 0x1000, scoped, tag = 'operand span for operand 2']
    #allocation5 [shape = 'u8[4096]{0}', space=vmem, size = 0x1000, scoped, tag = 'packed  for operand 2']
    #allocation6 [shape = 's32[2]{0}', space=sflag, size = 0x8, scoped, tag = 'scoped memory for custom-call.11']
    #allocation7 [shape = 'u8[4096]{0}', space=vmem, size = 0x1000, scoped, tag = 'operand span for operand 3']
    #allocation8 [shape = 'u8[4096]{0}', space=vmem, size = 0x1000, scoped, tag = 'packed  for operand 3']
    %5 = vsyncpa [#allocation6], 0
    %s6 = scalar_lea.sflag [#allocation6], 1
    %7 = vsyncpa %s6, 0
    loop: start=0, step=1, limit=6
    $region2: #{custom-call.11} parent=1 // loop_pre_header
      _
    $region3: #{custom-call.11} parent=1 // loop_header
      %s9 = sphi 0, %s13
      %p10 = scmp.ge.s32.totalorder %s9, 6
      %s21 = sphi 0, %s23
      %s24 = sphi 0, %s21
      %s25 = sphi 0, %s24
      %s41 = sphi 0, %s25
      %s49 = sphi 0, %s51
      %s52 = sphi 0, %s49
      %s53 = sphi 0, %s52
      %s69 = sphi 0, %s53
    $region4: #{custom-call.11} parent=1 // loop_header_branch
      %12 = sbr.rel (%p10) target = $region8
    $region5: #{custom-call.11} parent=1 // loop_body
      %s14 = ssub.s32 %s9, 1
      %s15 = ssub.s32 %s9, 2
      %s16 = sadd.s32 %s9, 1
      %s17 = sshrl.u32 %s9, 3
      %s18 = sshrl.u32 %s16, 3
      %s19 = ssub.s32 %s17, %s18
      %p20 = scmp.eq.s32.totalorder %s19, 0
      %s22 = sadd.s32 %s21, 1
      %s23 = scalar_select %p20, %s21, %s22
      %p26 = pneg %p20
      %p27 = scmp.eq.s32.totalorder %s9, 3
      %p28 = por %p26, %p27
      %p29 = scmp.ne.s32.totalorder %s21, %s24
      %p30 = scmp.eq.s32.totalorder %s9, 0
      %p31 = por %p29, %p30
      %p32 = scmp.ne.s32.totalorder %s21, %s24
      %p33 = scmp.eq.s32.totalorder %s14, 3
      %p34 = por %p32, %p33
      %p35 = scmp.ne.s32.totalorder %s24, %s25
      %p36 = scmp.eq.s32.totalorder %s14, 0
      %p37 = por %p35, %p36
      %p38 = scmp.ne.s32.totalorder %s24, %s25
      %p39 = scmp.eq.s32.totalorder %s15, 3
      %p40 = por %p38, %p39
      %p42 = scmp.ne.s32.totalorder %s25, %s41
      %p43 = scmp.eq.s32.totalorder %s15, 0
      %p44 = por %p42, %p43
      %s45 = sshrl.u32 %s9, 3
      %s46 = sshrl.u32 %s16, 3
      %s47 = ssub.s32 %s45, %s46
      %p48 = scmp.eq.s32.totalorder %s47, 0
      %s50 = sadd.s32 %s49, 1
      %s51 = scalar_select %p48, %s49, %s50
      %p54 = pneg %p48
      %p55 = scmp.eq.s32.totalorder %s9, 3
      %p56 = por %p54, %p55
      %p57 = scmp.ne.s32.totalorder %s49, %s52
      %p58 = scmp.eq.s32.totalorder %s9, 0
      %p59 = por %p57, %p58
      %p60 = scmp.ne.s32.totalorder %s49, %s52
      %p61 = scmp.eq.s32.totalorder %s14, 3
      %p62 = por %p60, %p61
      %p63 = scmp.ne.s32.totalorder %s52, %s53
      %p64 = scmp.eq.s32.totalorder %s14, 0
      %p65 = por %p63, %p64
      %p66 = scmp.ne.s32.totalorder %s52, %s53
      %p67 = scmp.eq.s32.totalorder %s15, 3
      %p68 = por %p66, %p67
      %p70 = scmp.ne.s32.totalorder %s53, %s69
      %p71 = scmp.eq.s32.totalorder %s15, 0
      %p72 = por %p70, %p71
      %p73 = scmp.le.s32.totalorder 1, %s9
      %p74 = scmp.lt.s32.totalorder %s9, 5
      %p75 = pnand %p73, %p74
      %p76 = pneg %p75
      // Predicated region
      $region9: #{custom-call.11} parent=5 // pred_check
        _
      $region10: #{custom-call.11} parent=5 // pred_check_branch
        %78 = sbr.rel (%p75) target = $region12
      $region11: #{custom-call.11} parent=5 // pred_region
        %s79 = ssub.s32 %s9, 1
      $region12: #{custom-call.11} parent=5 // pred_fallthru
        _
      %p80 = scmp.lt.s32.totalorder %s9, 4
      // Predicated region
      $region13: #{custom-call.11} parent=5 // pred_check
        %p81 = pneg %p80
      $region14: #{custom-call.11} parent=5 // pred_check_branch
        %83 = sbr.rel (%p81) target = $region16
      $region15: #{custom-call.11} parent=5 // pred_region
        %s84 = sand.u32 %s9, 1
        %s85 = sand.u32 %s9, 1
        %s86 = smul.addr %s85, 4
        %s87 = scalar_lea.vmem [#allocation1], %s86
        %s88 = smul.addr %s9, 4
        %s89 = scalar_lea.vmem %s0, %s88
        // Predicated region
        $region17: #{custom-call.11} parent=15 // pred_check
          _
        $region18: #{custom-call.11} parent=15 // pred_check_branch
          %91 = sbr.rel (0) target = $region20
        $region19: #{custom-call.11} parent=15 // pred_region
          // Predicated region
          $region21: #{custom-call.11} parent=19 // pred_check
            _
          $region22: #{custom-call.11} parent=19 // pred_check_branch
            %93 = sbr.rel target = $region24
          $region23: #{custom-call.11} parent=19 // pred_region
            // Predicated region
            $region36: #{custom-call.11} parent=23 // pred_check
              _
            $region37: #{custom-call.11} parent=23 // pred_check_branch
              %108 = sbr.rel (0) target = $region39
            $region38: #{custom-call.11} parent=23 // pred_region
              loop: start=0, step=1, limit=1
              $region40: #{custom-call.11} parent=38 // loop_pre_header
                _
              $region41: #{custom-call.11} parent=38 // loop_header
                %s111 = sphi 0, %s115
                %p112 = scmp.ge.s32.totalorder %s111, 1
                %s116 = sphi %s89, %s89
                %s117 = sphi %s87, %s87
              $region42: #{custom-call.11} parent=38 // loop_header_branch
                %114 = sbr.rel (%p112) target = $region46
              $region43: #{custom-call.11} parent=38 // loop_body
                %v118 = vld [vmem:[%s116] sm:$0xf]
                %119 = vst [vmem:[%s117] sm:$0xf] %v118
              $region44: #{custom-call.11} parent=38 // loop_footer
                %s115 = sadd.s32 1, %s111
              $region45: #{custom-call.11} parent=38 // loop_footer_branch
                %110 = sbr.rel target = $region41
              $region46: #{custom-call.11} parent=38 // loop_exit
                _
            $region39: #{custom-call.11} parent=23 // pred_fallthru
              _
          $region24: #{custom-call.11} parent=19 // pred_fallthru
            _
          // Predicated region
          $region25: #{custom-call.11} parent=19 // pred_check
            _
          $region26: #{custom-call.11} parent=19 // pred_check_branch
            %95 = sbr.rel (0) target = $region28
          $region27: #{custom-call.11} parent=19 // pred_region
            loop: start=0, step=1, limit=1
            $region29: #{custom-call.11} parent=27 // loop_pre_header
              _
            $region30: #{custom-call.11} parent=27 // loop_header
              %s98 = sphi 0, %s102
              %p99 = scmp.ge.s32.totalorder %s98, 1
              %s103 = sphi %s89, %s89
              %s104 = sphi %s87, %s87
            $region31: #{custom-call.11} parent=27 // loop_header_branch
              %101 = sbr.rel (%p99) target = $region35
            $region32: #{custom-call.11} parent=27 // loop_body
              %v105 = vld [vmem:[%s103] sm:$0xf]
              %106 = vst [vmem:[%s104] sm:$0xf] %v105
            $region33: #{custom-call.11} parent=27 // loop_footer
              %s102 = sadd.s32 1, %s98
            $region34: #{custom-call.11} parent=27 // loop_footer_branch
              %97 = sbr.rel target = $region30
            $region35: #{custom-call.11} parent=27 // loop_exit
              _
          $region28: #{custom-call.11} parent=19 // pred_fallthru
            _
        $region20: #{custom-call.11} parent=15 // pred_fallthru
          _
        %120 = vnop
      $region16: #{custom-call.11} parent=5 // pred_fallthru
        _
      %p121 = scmp.le.s32.totalorder 1, %s9
      %p122 = scmp.lt.s32.totalorder %s9, 5
      %p123 = pnand %p121, %p122
      %p124 = pneg %p123
      // Predicated region
      $region47: #{custom-call.11} parent=5 // pred_check
        _
      $region48: #{custom-call.11} parent=5 // pred_check_branch
        %126 = sbr.rel (%p123) target = $region50
      $region49: #{custom-call.11} parent=5 // pred_region
        #allocation9 [shape = 's32[4,128]{1,0}', space=vmem, size = 0x1000, scoped, tag = 'scratch for permutations']
        %s127 = ssub.s32 %s9, 1
        %s128 = sand.u32 %s14, 1
        %s129 = sand.u32 %s14, 1
        %s130 = smul.addr %s129, 4
        %s131 = scalar_lea.vmem [#allocation1], %s130
        %s132 = sand.u32 %s14, 1
        %s133 = sand.u32 %s14, 1
        %s134 = smul.addr %s133, 4
        %s135 = scalar_lea.vmem [#allocation1], %s134
        %s136 = sand.u32 %s14, 1
        %s137 = sand.u32 %s14, 1
        %s138 = smul.addr %s137, 4
        %s139 = scalar_lea.vmem [#allocation3], %s138
        %p140 = pneg %p37
        %p141 = pneg %p34
        %s142 = sand.u32 %s24, 1
        %s143 = scalar_lea.sflag [#allocation6], %s142
        %s144 = sand.u32 %s24, 1
        %s145 = smul.addr %s144, 4
        %s146 = scalar_lea.vmem [#allocation5], %s145
        %p147 = pneg %p65
        %p148 = pneg %p62
        %s149 = sand.u32 %s52, 1
        %s150 = sand.u32 %s52, 1
        %s151 = smul.addr %s150, 4
        %s152 = scalar_lea.vmem [#allocation8], %s151
        %s154 = sshllo.u32 0, 4
        %v155 = vld [vmem:[%s135] sm:%s154]
        %156 = vst [vmem:[#allocation0] sm:%s154] %v155
        %s157 = sshrl.u32 %s14, 3
        %s158 = sshrl.u32 %s14, 3
        %v159 = vld [vmem:[#allocation0] sm:$0xff]
        %160 = vst [vmem:[#allocation2] sm:$0xff] %v159
        %s161 = sand.u32 %s14, 7
        %s162 = scalar_lea.vmem [#allocation4], %s161
        %s163 = sand.u32 %s14, 7
        %s164 = scalar_lea.vmem [#allocation7], %s163
        %165 = vst [vmem:[%s162] sm:$0x1] 0
        %v166 = vlaneseq
        %v167 = vshrl.u32 %v166, 7
        %v168 = vmov %v167
        %170 = vst [vmem:[#allocation9] sm:$0xff] %v168
        loop: start=0, step=1, limit=4
        $region52: #{custom-call.11} parent=49 // loop_pre_header
          _
        $region53: #{custom-call.11} parent=49 // loop_header
          %s172 = sphi 0, %s176
          %p173 = scmp.ge.s32.totalorder %s172, 4
        $region54: #{custom-call.11} parent=49 // loop_header_branch
          %175 = sbr.rel (%p173) target = $region58
        $region55: #{custom-call.11} parent=49 // loop_body
          %v177 = vstv %s172
          %v178 = vlaneseq
          %v179 = vshrl.u32 %v178, 7
          %v180 = vmov %v179
          %v181 = vld [vmem:[#allocation2] sm:$0xff]
          %v182 = vand.u32 2147483647, %v181
          %v184 = vstv %s172
          %vm185 = vcmp.ge.s32.totalorder %v180, %v184
          %vm186 = vcmp.lt.s32.totalorder %v180, 4
          %vm187 = vmand %vm185, %vm186
          %vm188 = vcmp.lt.f32.partialorder -inf, %v182
          %vm189 = vmand %vm187, %vm188
          %v190 = vsel %vm189, %v180, %v177
          %v191 = vsel %vm189, %v182, -inf
          %v192 = vrot.slane %v191, 1
          %v193 = vrot.slane %v190, 1
          %vm194 = vcmp.ge.f32.partialorder %v192, %v191
          %v195 = vsel %vm194, %v192, %v191
          %v196 = vsel %vm194, %v193, %v190
          %v197 = vrot.slane %v192, 1
          %v198 = vrot.slane %v193, 1
          %vm199 = vcmp.ge.f32.partialorder %v197, %v195
          %v200 = vsel %vm199, %v197, %v195
          %v201 = vsel %vm199, %v198, %v196
          %v202 = vrot.slane %v197, 1
          %v203 = vrot.slane %v198, 1
          %vm204 = vcmp.ge.f32.partialorder %v202, %v200
          %v205 = vsel %vm204, %v202, %v200
          %v206 = vsel %vm204, %v203, %v201
          %v207 = vrot.slane %v202, 1
          %v208 = vrot.slane %v203, 1
          %vm209 = vcmp.ge.f32.partialorder %v207, %v205
          %v210 = vsel %vm209, %v207, %v205
          %v211 = vsel %vm209, %v208, %v206
          %v212 = vrot.slane %v207, 1
          %v213 = vrot.slane %v208, 1
          %vm214 = vcmp.ge.f32.partialorder %v212, %v210
          %v215 = vsel %vm214, %v212, %v210
          %v216 = vsel %vm214, %v213, %v211
          %v217 = vrot.slane %v212, 1
          %v218 = vrot.slane %v213, 1
          %vm219 = vcmp.ge.f32.partialorder %v217, %v215
          %v220 = vsel %vm219, %v217, %v215
          %v221 = vsel %vm219, %v218, %v216
          %v222 = vrot.slane %v217, 1
          %v223 = vrot.slane %v218, 1
          %vm224 = vcmp.ge.f32.partialorder %v222, %v220
          %v225 = vsel %vm224, %v222, %v220
          %v226 = vsel %vm224, %v223, %v221
          %s227 = ssub.s32 128, %s172
          %228 = vrot.lane.b32.xlu0 %v226, %s227
          %v229 = vpop.permute.xlu0 %228
          %s230 = vtos %v229
          %v231 = vstv %s172
          %v232 = vlaneseq
          %v233 = vand.u32 %v232, 127
          %vm234 = vcmp.eq.s32.totalorder %v233, %v231
          %v235 = vstv %s230
          %v236 = vld [vmem:[%s162] ss:$0 sm:$0xff]
          %v237 = vsel %vm234, %v235, %v236
          %238 = vst [vmem:[%s162] sm:$0x1] %v237
          %s239 = scalar_lea.vmem [#allocation2], %s172
          %s240 = scalar_lea.vmem [#allocation2], %s230
          %v241 = vld [vmem:[%s239] ss:$0 sm:$0xff]
          %v242 = vld [vmem:[%s240] ss:$0 sm:$0xff]
          %243 = vst [vmem:[%s240] sm:$0x1] %v241
          %244 = vst [vmem:[%s239] sm:$0x1] %v242
          %s245 = scalar_lea.vmem [#allocation9], %s172
          %s246 = scalar_lea.vmem [#allocation9], %s230
          %v247 = vld [vmem:[%s245] ss:$0 sm:$0xff]
          %v248 = vld [vmem:[%s246] ss:$0 sm:$0xff]
          %249 = vst [vmem:[%s246] sm:$0x1] %v247
          %250 = vst [vmem:[%s245] sm:$0x1] %v248
          %vm251 = vcmp.ne.f32.partialorder %v242, 0.0
          %vm252 = vmand %vm234, %vm251
          %v253 = vsel %vm252, %v242, 1.0
          %v254 = vlaneseq
          %v255 = vand.u32 %v254, 127
          %v256 = vstv %s172
          %vm257 = vcmp.gt.s32.totalorder %v255, %v256
          %v258 = vsel %vm257, %v242, 0.0
          %v259 = vlaneseq
          %v260 = vshrl.u32 %v259, 7
          %v261 = vmov %v260
          %v262 = vld [vmem:[#allocation2] sm:$0xff]
          %v264 = vstv %s172
          %vm265 = vcmp.gt.s32.totalorder %v261, %v264
          %v266 = vsel %vm265, %v253, 1.0
          %v267 = vrcp.pop %v266
          %v268 = vmul.f32 %v262, %v267
          %vm269 = vmand %vm265, %vm234
          %v270 = vsel %vm269, %v268, 0.0
          %271 = vadd.xlane.f32.xlu0 %v270
          %v272 = vpop.xlane.xlu0 %271
          %v273 = vmul.f32 %v272, %v258
          %v274 = vsub.f32 %v268, %v273
          %275 = vst [vmem:[#allocation2] sm:$0xff] %v274
        $region56: #{custom-call.11} parent=49 // loop_footer
          %s176 = sadd.s32 1, %s172
        $region57: #{custom-call.11} parent=49 // loop_footer_branch
          %171 = sbr.rel target = $region53
        $region58: #{custom-call.11} parent=49 // loop_exit
          _
        %v276 = vld [vmem:[#allocation9] sm:$0xff]
        %s277 = scalar_lea.vmem [#allocation9], 8
        %s278 = scalar_lea.vmem [#allocation9], 16
        %s279 = scalar_lea.vmem [#allocation9], 24
        %s280 = scalar_lea.vmem [#allocation9], 32
        %s281 = scalar_lea.vmem [#allocation9], 40
        %s282 = scalar_lea.vmem [#allocation9], 48
        %s283 = scalar_lea.vmem [#allocation9], 56
        %s284 = scalar_lea.vmem [#allocation9], 64
        %s285 = scalar_lea.vmem [#allocation9], 72
        %s286 = scalar_lea.vmem [#allocation9], 80
        %s287 = scalar_lea.vmem [#allocation9], 88
        %s288 = scalar_lea.vmem [#allocation9], 96
        %s289 = scalar_lea.vmem [#allocation9], 104
        %s290 = scalar_lea.vmem [#allocation9], 112
        %s291 = scalar_lea.vmem [#allocation9], 120
        %292 = vxpose.xlu0.b32.start [1/16] %v276, 128
        %293 = vxpose.xlu0.b32.cont [2/16] 0, 128
        %294 = vxpose.xlu0.b32.cont [3/16] 0, 128
        %295 = vxpose.xlu0.b32.cont [4/16] 0, 128
        %296 = vxpose.xlu0.b32.cont [5/16] 0, 128
        %297 = vxpose.xlu0.b32.cont [6/16] 0, 128
        %298 = vxpose.xlu0.b32.cont [7/16] 0, 128
        %299 = vxpose.xlu0.b32.cont [8/16] 0, 128
        %300 = vxpose.xlu0.b32.cont [9/16] 0, 128
        %301 = vxpose.xlu0.b32.cont [10/16] 0, 128
        %302 = vxpose.xlu0.b32.cont [11/16] 0, 128
        %303 = vxpose.xlu0.b32.cont [12/16] 0, 128
        %304 = vxpose.xlu0.b32.cont [13/16] 0, 128
        %305 = vxpose.xlu0.b32.cont [14/16] 0, 128
        %306 = vxpose.xlu0.b32.cont [15/16] 0, 128
        %307 = vxpose.xlu0.b32.end [16/16] 0, 128
        %v308 = vpop.trf.xlu0
        %v309 = vpop.trf.xlu0
        %v310 = vpop.trf.xlu0
        %v311 = vpop.trf.xlu0
        %v312 = vpop.trf.xlu0
        %v313 = vpop.trf.xlu0
        %v314 = vpop.trf.xlu0
        %v315 = vpop.trf.xlu0
        %v316 = vpop.trf.xlu0
        %v317 = vpop.trf.xlu0
        %v318 = vpop.trf.xlu0
        %v319 = vpop.trf.xlu0
        %v320 = vpop.trf.xlu0
        %v321 = vpop.trf.xlu0
        %v322 = vpop.trf.xlu0
        %v323 = vpop.trf.xlu0
        %324 = vst [vmem:[%s164] sm:$0x1] %v308
        %s326 = sshllo.u32 0, 4
        %v328 = vld [vmem:[#allocation2] sm:%s326]
        %s329 = sshllo.u32 0, 4
        %330 = vst [vmem:[%s139] sm:%s329] %v328
        %s332 = sshllo.u32 0, 4
        %v334 = vld [vmem:[#allocation4] sm:%s332]
        %s335 = sshllo.u32 0, 4
        %336 = vst [vmem:[%s146] sm:%s335] %v334
        %s338 = sshllo.u32 0, 4
        %v340 = vld [vmem:[#allocation7] sm:%s338]
        %s341 = sshllo.u32 0, 4
        %342 = vst [vmem:[%s152] sm:%s341] %v340
        %s343 = sand.u32 %s14, 1
        %s344 = sand.u32 %s14, 1
        %s345 = smul.addr %s344, 4
        %s346 = scalar_lea.vmem [#allocation3], %s345
        %s347 = sand.u32 %s24, 1
        %s348 = scalar_lea.sflag [#allocation6], %s347
        %s349 = sand.u32 %s24, 1
        %s350 = smul.addr %s349, 4
        %s351 = scalar_lea.vmem [#allocation5], %s350
        %s352 = sand.u32 %s52, 1
        %s353 = sand.u32 %s52, 1
        %s354 = smul.addr %s353, 4
        %s355 = scalar_lea.vmem [#allocation8], %s354
        %s356 = smul.addr %s14, 4
        %s357 = scalar_lea.vmem %s1, %s356
        // Predicated region
        $region59: #{custom-call.11} parent=49 // pred_check
          _
        $region60: #{custom-call.11} parent=49 // pred_check_branch
          %359 = sbr.rel (0) target = $region62
        $region61: #{custom-call.11} parent=49 // pred_region
          // Predicated region
          $region63: #{custom-call.11} parent=61 // pred_check
            _
          $region64: #{custom-call.11} parent=61 // pred_check_branch
            %361 = sbr.rel target = $region66
          $region65: #{custom-call.11} parent=61 // pred_region
            // Predicated region
            $region78: #{custom-call.11} parent=65 // pred_check
              _
            $region79: #{custom-call.11} parent=65 // pred_check_branch
              %376 = sbr.rel (0) target = $region81
            $region80: #{custom-call.11} parent=65 // pred_region
              loop: start=0, step=1, limit=1
              $region82: #{custom-call.11} parent=80 // loop_pre_header
                _
              $region83: #{custom-call.11} parent=80 // loop_header
                %s379 = sphi 0, %s383
                %p380 = scmp.ge.s32.totalorder %s379, 1
                %s384 = sphi %s346, %s346
                %s385 = sphi %s357, %s357
              $region84: #{custom-call.11} parent=80 // loop_header_branch
                %382 = sbr.rel (%p380) target = $region88
              $region85: #{custom-call.11} parent=80 // loop_body
                %v386 = vld [vmem:[%s384] sm:$0xf]
                %387 = vst [vmem:[%s385] sm:$0xf] %v386
              $region86: #{custom-call.11} parent=80 // loop_footer
                %s383 = sadd.s32 1, %s379
              $region87: #{custom-call.11} parent=80 // loop_footer_branch
                %378 = sbr.rel target = $region83
              $region88: #{custom-call.11} parent=80 // loop_exit
                _
            $region81: #{custom-call.11} parent=65 // pred_fallthru
              _
          $region66: #{custom-call.11} parent=61 // pred_fallthru
            _
          // Predicated region
          $region67: #{custom-call.11} parent=61 // pred_check
            _
          $region68: #{custom-call.11} parent=61 // pred_check_branch
            %363 = sbr.rel (0) target = $region70
          $region69: #{custom-call.11} parent=61 // pred_region
            loop: start=0, step=1, limit=1
            $region71: #{custom-call.11} parent=69 // loop_pre_header
              _
            $region72: #{custom-call.11} parent=69 // loop_header
              %s366 = sphi 0, %s370
              %p367 = scmp.ge.s32.totalorder %s366, 1
              %s371 = sphi %s346, %s346
              %s372 = sphi %s357, %s357
            $region73: #{custom-call.11} parent=69 // loop_header_branch
              %369 = sbr.rel (%p367) target = $region77
            $region74: #{custom-call.11} parent=69 // loop_body
              %v373 = vld [vmem:[%s371] sm:$0xf]
              %374 = vst [vmem:[%s372] sm:$0xf] %v373
            $region75: #{custom-call.11} parent=69 // loop_footer
              %s370 = sadd.s32 1, %s366
            $region76: #{custom-call.11} parent=69 // loop_footer_branch
              %365 = sbr.rel target = $region72
            $region77: #{custom-call.11} parent=69 // loop_exit
              _
          $region70: #{custom-call.11} parent=61 // pred_fallthru
            _
        $region62: #{custom-call.11} parent=49 // pred_fallthru
          _
        %388 = vnop
        // Predicated region
        $region89: #{custom-call.11} parent=49 // pred_check
          %p389 = pneg %p34
        $region90: #{custom-call.11} parent=49 // pred_check_branch
          %391 = sbr.rel (%p389) target = $region92
        $region91: #{custom-call.11} parent=49 // pred_region
          %s392 = sshrl.u32 %s14, 3
          %s394 = ssub.s32 64, 64
          %395 = vsyncadd %s348, %s394
          %s396 = smul.addr %s392, 64
          %s397 = scalar_lea.hbm %s2, %s396
          %s399 = sshll.u32 %s351, 4
          %s400 = int_to_ptr.vmem [resolvable:$true] %s399
          %402 = dma.vmem_to_hbm [thread:$0]  %s400, 64, %s397, %s348
        $region92: #{custom-call.11} parent=49 // pred_fallthru
          _
        // Predicated region
        $region93: #{custom-call.11} parent=49 // pred_check
          %p403 = pneg %p62
        $region94: #{custom-call.11} parent=49 // pred_check_branch
          %405 = sbr.rel (%p403) target = $region96
        $region95: #{custom-call.11} parent=49 // pred_region
          %s406 = sshrl.u32 %s14, 3
          %s407 = smul.addr %s406, 4
          %s408 = scalar_lea.vmem %s3, %s407
          // Predicated region
          $region97: #{custom-call.11} parent=95 // pred_check
            _
          $region98: #{custom-call.11} parent=95 // pred_check_branch
            %410 = sbr.rel (0) target = $region100
          $region99: #{custom-call.11} parent=95 // pred_region
            // Predicated region
            $region101: #{custom-call.11} parent=99 // pred_check
              _
            $region102: #{custom-call.11} parent=99 // pred_check_branch
              %412 = sbr.rel target = $region104
            $region103: #{custom-call.11} parent=99 // pred_region
              // Predicated region
              $region116: #{custom-call.11} parent=103 // pred_check
                _
              $region117: #{custom-call.11} parent=103 // pred_check_branch
                %427 = sbr.rel (0) target = $region119
              $region118: #{custom-call.11} parent=103 // pred_region
                loop: start=0, step=1, limit=1
                $region120: #{custom-call.11} parent=118 // loop_pre_header
                  _
                $region121: #{custom-call.11} parent=118 // loop_header
                  %s430 = sphi 0, %s434
                  %p431 = scmp.ge.s32.totalorder %s430, 1
                  %s435 = sphi %s355, %s355
                  %s436 = sphi %s408, %s408
                $region122: #{custom-call.11} parent=118 // loop_header_branch
                  %433 = sbr.rel (%p431) target = $region126
                $region123: #{custom-call.11} parent=118 // loop_body
                  %v437 = vld [vmem:[%s435] sm:$0xf]
                  %438 = vst [vmem:[%s436] sm:$0xf] %v437
                $region124: #{custom-call.11} parent=118 // loop_footer
                  %s434 = sadd.s32 1, %s430
                $region125: #{custom-call.11} parent=118 // loop_footer_branch
                  %429 = sbr.rel target = $region121
                $region126: #{custom-call.11} parent=118 // loop_exit
                  _
              $region119: #{custom-call.11} parent=103 // pred_fallthru
                _
            $region104: #{custom-call.11} parent=99 // pred_fallthru
              _
            // Predicated region
            $region105: #{custom-call.11} parent=99 // pred_check
              _
            $region106: #{custom-call.11} parent=99 // pred_check_branch
              %414 = sbr.rel (0) target = $region108
            $region107: #{custom-call.11} parent=99 // pred_region
              loop: start=0, step=1, limit=1
              $region109: #{custom-call.11} parent=107 // loop_pre_header
                _
              $region110: #{custom-call.11} parent=107 // loop_header
                %s417 = sphi 0, %s421
                %p418 = scmp.ge.s32.totalorder %s417, 1
                %s422 = sphi %s355, %s355
                %s423 = sphi %s408, %s408
              $region111: #{custom-call.11} parent=107 // loop_header_branch
                %420 = sbr.rel (%p418) target = $region115
              $region112: #{custom-call.11} parent=107 // loop_body
                %v424 = vld [vmem:[%s422] sm:$0xf]
                %425 = vst [vmem:[%s423] sm:$0xf] %v424
              $region113: #{custom-call.11} parent=107 // loop_footer
                %s421 = sadd.s32 1, %s417
              $region114: #{custom-call.11} parent=107 // loop_footer_branch
                %416 = sbr.rel target = $region110
              $region115: #{custom-call.11} parent=107 // loop_exit
                _
            $region108: #{custom-call.11} parent=99 // pred_fallthru
              _
          $region100: #{custom-call.11} parent=95 // pred_fallthru
            _
          %439 = vnop
        $region96: #{custom-call.11} parent=49 // pred_fallthru
          _
      $region50: #{custom-call.11} parent=5 // pred_fallthru
        _
      %p440 = scmp.le.s32.totalorder 2, %s9
      // Predicated region
      $region127: #{custom-call.11} parent=5 // pred_check
        %p441 = pneg %p440
      $region128: #{custom-call.11} parent=5 // pred_check_branch
        %443 = sbr.rel (%p441) target = $region130
      $region129: #{custom-call.11} parent=5 // pred_region
        %s444 = ssub.s32 %s9, 2
        %s445 = sand.u32 %s15, 1
        %s446 = sand.u32 %s15, 1
        %s447 = smul.addr %s446, 4
        %s448 = scalar_lea.vmem [#allocation3], %s447
        // Predicated region
        $region131: #{custom-call.11} parent=129 // pred_check
          %p449 = pneg %p40
        $region132: #{custom-call.11} parent=129 // pred_check_branch
          %451 = sbr.rel (%p449) target = $region134
        $region133: #{custom-call.11} parent=129 // pred_region
          %s452 = sand.u32 %s25, 1
          %s453 = scalar_lea.sflag [#allocation6], %s452
          %s454 = sand.u32 %s25, 1
          %s455 = smul.addr %s454, 4
          %s456 = scalar_lea.vmem [#allocation5], %s455
          %457 = dma.done %s453, 64
        $region134: #{custom-call.11} parent=129 // pred_fallthru
          _
        // Predicated region
        $region135: #{custom-call.11} parent=129 // pred_check
          %p458 = pneg %p68
        $region136: #{custom-call.11} parent=129 // pred_check_branch
          %460 = sbr.rel (%p458) target = $region138
        $region137: #{custom-call.11} parent=129 // pred_region
          %s461 = sand.u32 %s53, 1
          %s462 = sand.u32 %s53, 1
          %s463 = smul.addr %s462, 4
          %s464 = scalar_lea.vmem [#allocation8], %s463
        $region138: #{custom-call.11} parent=129 // pred_fallthru
          _
      $region130: #{custom-call.11} parent=5 // pred_fallthru
        _
    $region6: #{custom-call.11} parent=1 // loop_footer
      %s13 = sadd.s32 1, %s9
    $region7: #{custom-call.11} parent=1 // loop_footer_branch
      %8 = sbr.rel target = $region3
    $region8: #{custom-call.11} parent=1 // loop_exit
      _
    %465 = vsyncpa [#allocation6], 1
    %s466 = scalar_lea.sflag [#allocation6], 1
    %467 = vsyncpa %s466, 1

// kernel: custom-call.13
$region0: #{custom-call.13}
  %s0 = inlined_call_operand.vmem [shape: f32[4,1,4,4], index: 0, kind: input, shape index: {}]
  %s1 = inlined_call_operand.vmem [shape: f32[4,1,4,4], index: 1, kind: output, shape index: {}]
  $region1: #{custom-call.13} parent=0
    #allocation0 [shape = 'u8[4096]{0}', space=vmem, size = 0x1000, scoped, tag = 'operand span for operand 0']
    #allocation1 [shape = 'u8[4096]{0}', space=vmem, size = 0x1000, scoped, tag = 'packed  for operand 0']
    #allocation2 [shape = 'u8[4096]{0}', space=vmem, size = 0x1000, scoped, tag = 'operand span for operand 1']
    #allocation3 [shape = 'u8[4096]{0}', space=vmem, size = 0x1000, scoped, tag = 'packed  for operand 1']
    loop: start=0, step=1, limit=6
    $region2: #{custom-call.13} parent=1 // loop_pre_header
      _
    $region3: #{custom-call.13} parent=1 // loop_header
      %s3 = sphi 0, %s7
      %p4 = scmp.ge.s32.totalorder %s3, 6
      %s10 = sphi 0, %s36
      %s11 = sphi 0, %s32
      %s12 = sphi 0, %s28
      %s13 = sphi 0, %s24
      %s14 = sphi 0, %s10
      %s15 = sphi 0, %s11
      %s16 = sphi 0, %s12
      %s17 = sphi 0, %s13
      %s18 = sphi 0, %s14
      %s19 = sphi 0, %s15
      %s20 = sphi 0, %s16
      %s21 = sphi 0, %s17
    $region4: #{custom-call.13} parent=1 // loop_header_branch
      %6 = sbr.rel (%p4) target = $region8
    $region5: #{custom-call.13} parent=1 // loop_body
      %s8 = ssub.s32 %s3, 1
      %s9 = ssub.s32 %s3, 2
      %s22 = sadd.s32 1, %s13
      %p23 = scmp.ge.s32.totalorder %s22, 1
      %s24 = scalar_select %p23, 0, %s22
      %s25 = sadd.s32 1, %s12
      %s26 = scalar_select %p23, %s25, %s12
      %p27 = scmp.ge.s32.totalorder %s26, 1
      %s28 = scalar_select %p27, 0, %s26
      %s29 = sadd.s32 1, %s11
      %s30 = scalar_select %p27, %s29, %s11
      %p31 = scmp.ge.s32.totalorder %s30, 1
      %s32 = scalar_select %p31, 0, %s30
      %s33 = sadd.s32 1, %s10
      %s34 = scalar_select %p31, %s33, %s10
      %p35 = scmp.ge.s32.totalorder %s34, 4
      %s36 = scalar_select %p35, 0, %s34
      %p37 = scmp.le.s32.totalorder 1, %s3
      %p38 = scmp.lt.s32.totalorder %s3, 5
      %p39 = pnand %p37, %p38
      %p40 = pneg %p39
      // Predicated region
      $region9: #{custom-call.13} parent=5 // pred_check
        _
      $region10: #{custom-call.13} parent=5 // pred_check_branch
        %42 = sbr.rel (%p39) target = $region12
      $region11: #{custom-call.13} parent=5 // pred_region
        %s43 = ssub.s32 %s3, 1
      $region12: #{custom-call.13} parent=5 // pred_fallthru
        _
      %p44 = scmp.lt.s32.totalorder %s3, 4
      // Predicated region
      $region13: #{custom-call.13} parent=5 // pred_check
        %p45 = pneg %p44
      $region14: #{custom-call.13} parent=5 // pred_check_branch
        %47 = sbr.rel (%p45) target = $region16
      $region15: #{custom-call.13} parent=5 // pred_region
        %s48 = sand.u32 %s3, 1
        %s49 = sand.u32 %s3, 1
        %s50 = smul.addr %s49, 4
        %s51 = scalar_lea.vmem [#allocation1], %s50
        %s52 = sadd.s32 %s13, %s12
        %s53 = sadd.s32 %s52, %s11
        %s54 = sadd.s32 %s53, %s10
        %s55 = smul.addr %s54, 4
        %s56 = scalar_lea.vmem %s0, %s55
        // Predicated region
        $region17: #{custom-call.13} parent=15 // pred_check
          _
        $region18: #{custom-call.13} parent=15 // pred_check_branch
          %58 = sbr.rel (0) target = $region20
        $region19: #{custom-call.13} parent=15 // pred_region
          // Predicated region
          $region21: #{custom-call.13} parent=19 // pred_check
            _
          $region22: #{custom-call.13} parent=19 // pred_check_branch
            %60 = sbr.rel target = $region24
          $region23: #{custom-call.13} parent=19 // pred_region
            // Predicated region
            $region36: #{custom-call.13} parent=23 // pred_check
              _
            $region37: #{custom-call.13} parent=23 // pred_check_branch
              %75 = sbr.rel (0) target = $region39
            $region38: #{custom-call.13} parent=23 // pred_region
              loop: start=0, step=1, limit=1
              $region40: #{custom-call.13} parent=38 // loop_pre_header
                _
              $region41: #{custom-call.13} parent=38 // loop_header
                %s78 = sphi 0, %s82
                %p79 = scmp.ge.s32.totalorder %s78, 1
                %s83 = sphi %s56, %s56
                %s84 = sphi %s51, %s51
              $region42: #{custom-call.13} parent=38 // loop_header_branch
                %81 = sbr.rel (%p79) target = $region46
              $region43: #{custom-call.13} parent=38 // loop_body
                %v85 = vld [vmem:[%s83] sm:$0xf]
                %86 = vst [vmem:[%s84] sm:$0xf] %v85
              $region44: #{custom-call.13} parent=38 // loop_footer
                %s82 = sadd.s32 1, %s78
              $region45: #{custom-call.13} parent=38 // loop_footer_branch
                %77 = sbr.rel target = $region41
              $region46: #{custom-call.13} parent=38 // loop_exit
                _
            $region39: #{custom-call.13} parent=23 // pred_fallthru
              _
          $region24: #{custom-call.13} parent=19 // pred_fallthru
            _
          // Predicated region
          $region25: #{custom-call.13} parent=19 // pred_check
            _
          $region26: #{custom-call.13} parent=19 // pred_check_branch
            %62 = sbr.rel (0) target = $region28
          $region27: #{custom-call.13} parent=19 // pred_region
            loop: start=0, step=1, limit=1
            $region29: #{custom-call.13} parent=27 // loop_pre_header
              _
            $region30: #{custom-call.13} parent=27 // loop_header
              %s65 = sphi 0, %s69
              %p66 = scmp.ge.s32.totalorder %s65, 1
              %s70 = sphi %s56, %s56
              %s71 = sphi %s51, %s51
            $region31: #{custom-call.13} parent=27 // loop_header_branch
              %68 = sbr.rel (%p66) target = $region35
            $region32: #{custom-call.13} parent=27 // loop_body
              %v72 = vld [vmem:[%s70] sm:$0xf]
              %73 = vst [vmem:[%s71] sm:$0xf] %v72
            $region33: #{custom-call.13} parent=27 // loop_footer
              %s69 = sadd.s32 1, %s65
            $region34: #{custom-call.13} parent=27 // loop_footer_branch
              %64 = sbr.rel target = $region30
            $region35: #{custom-call.13} parent=27 // loop_exit
              _
          $region28: #{custom-call.13} parent=19 // pred_fallthru
            _
        $region20: #{custom-call.13} parent=15 // pred_fallthru
          _
        %87 = vnop
      $region16: #{custom-call.13} parent=5 // pred_fallthru
        _
      %p88 = scmp.le.s32.totalorder 1, %s3
      %p89 = scmp.lt.s32.totalorder %s3, 5
      %p90 = pnand %p88, %p89
      %p91 = pneg %p90
      // Predicated region
      $region47: #{custom-call.13} parent=5 // pred_check
        _
      $region48: #{custom-call.13} parent=5 // pred_check_branch
        %93 = sbr.rel (%p90) target = $region50
      $region49: #{custom-call.13} parent=5 // pred_region
        #allocation4 [shape = 'f32[4,4]{1,0}', space=vmem, size = 0x1000, scoped, tag = 'rescaled input a']
        %s94 = ssub.s32 %s3, 1
        %s95 = sand.u32 %s8, 1
        %s96 = sand.u32 %s8, 1
        %s97 = smul.addr %s96, 4
        %s98 = scalar_lea.vmem [#allocation1], %s97
        %s99 = sand.u32 %s8, 1
        %s100 = sand.u32 %s8, 1
        %s101 = smul.addr %s100, 4
        %s102 = scalar_lea.vmem [#allocation1], %s101
        %s103 = sand.u32 %s8, 1
        %s104 = sand.u32 %s8, 1
        %s105 = smul.addr %s104, 4
        %s106 = scalar_lea.vmem [#allocation3], %s105
        %s108 = sshllo.u32 0, 4
        %v109 = vld [vmem:[%s102] sm:%s108]
        %110 = vst [vmem:[#allocation0] sm:%s108] %v109
        %v111 = vlaneseq
        %v112 = vand.u32 %v111, 127
        %vm113 = vcmp.lt.s32.totalorder %v112, 4
        %v114 = vlaneseq
        %v115 = vshrl.u32 %v114, 7
        %vm117 = vcmp.eq.s32.totalorder %v115, %v112
        %v118 = vld [vmem:[#allocation0] sm:$0xff]
        %v119 = vsel %vm117, %v118, 0.0
        %120 = vadd.xlane.f32.xlu0 %v119
        %v121 = vpop.xlane.xlu0 %120
        %vm122 = vcmp.ge.s32.totalorder %v115, %v112
        %vm123 = vmand %vm122, %vm113
        %v124 = vsel %vm123, %v118, 0.0
        %v125 = vrcp.pop %v121
        %v126 = vmul.f32 %v124, %v125
        %127 = vst [vmem:[#allocation4] sm:$0xff] %v126
        %v128 = vlaneseq
        %v129 = vand.u32 %v128, 127
        %v130 = vlaneseq
        %v131 = vshrl.u32 %v130, 7
        %vm133 = vcmp.eq.s32.totalorder %v129, %v131
        %v134 = vlaneseq
        %v135 = vand.u32 %v134, 127
        %vm136 = vcmp.eq.s32.totalorder %v135, 0
        %v137 = vsel %vm136, 1.0, -1.0
        %v138 = vsel %vm133, %v137, 0.0
        %s139 = scalar_lea.vmem [#allocation4], 1
        %v140 = vld [vmem:[%s139] ss:$0 sm:$0xff]
        %v141 = vxor.u32 %v140, 2147483648
        %v142 = vlaneseq
        %v143 = vand.u32 %v142, 127
        %vm144 = vcmp.eq.s32.totalorder %v143, 1
        %v145 = vmul.f32 %v141, %v138
        %146 = vadd.xlane.f32.xlu0 %v145
        %v147 = vpop.xlane.xlu0 %146
        %v148 = vsel %vm144, %v147, %v138
        %s149 = scalar_lea.vmem [#allocation4], 2
        %v150 = vld [vmem:[%s149] ss:$0 sm:$0xff]
        %v151 = vxor.u32 %v150, 2147483648
        %v152 = vlaneseq
        %v153 = vand.u32 %v152, 127
        %vm154 = vcmp.eq.s32.totalorder %v153, 2
        %v155 = vmul.f32 %v151, %v148
        %156 = vadd.xlane.f32.xlu0 %v155
        %v157 = vpop.xlane.xlu0 %156
        %v158 = vsel %vm154, %v157, %v148
        %s159 = scalar_lea.vmem [#allocation4], 3
        %v160 = vld [vmem:[%s159] ss:$0 sm:$0xff]
        %v161 = vxor.u32 %v160, 2147483648
        %v162 = vlaneseq
        %v163 = vand.u32 %v162, 127
        %vm164 = vcmp.eq.s32.totalorder %v163, 3
        %v165 = vmul.f32 %v161, %v158
        %166 = vadd.xlane.f32.xlu0 %v165
        %v167 = vpop.xlane.xlu0 %166
        %v168 = vsel %vm164, %v167, %v158
        %v169 = vrcp.pop %v121
        %v170 = vmul.f32 %v168, %v169
        %vm171 = vweird.f32 %v121
        %v172 = vsel %vm171, %v168, %v170
        %173 = vst [vmem:[#allocation2] sm:$0xff] %v172
        %s175 = sshllo.u32 0, 4
        %v177 = vld [vmem:[#allocation2] sm:%s175]
        %s178 = sshllo.u32 0, 4
        %179 = vst [vmem:[%s106] sm:%s178] %v177
        %s180 = sand.u32 %s8, 1
        %s181 = sand.u32 %s8, 1
        %s182 = smul.addr %s181, 4
        %s183 = scalar_lea.vmem [#allocation3], %s182
        %s184 = sadd.s32 %s17, %s16
        %s185 = sadd.s32 %s184, %s15
        %s186 = sadd.s32 %s185, %s14
        %s187 = smul.addr %s186, 4
        %s188 = scalar_lea.vmem %s1, %s187
        // Predicated region
        $region51: #{custom-call.13} parent=49 // pred_check
          _
        $region52: #{custom-call.13} parent=49 // pred_check_branch
          %190 = sbr.rel (0) target = $region54
        $region53: #{custom-call.13} parent=49 // pred_region
          // Predicated region
          $region55: #{custom-call.13} parent=53 // pred_check
            _
          $region56: #{custom-call.13} parent=53 // pred_check_branch
            %192 = sbr.rel target = $region58
          $region57: #{custom-call.13} parent=53 // pred_region
            // Predicated region
            $region70: #{custom-call.13} parent=57 // pred_check
              _
            $region71: #{custom-call.13} parent=57 // pred_check_branch
              %207 = sbr.rel (0) target = $region73
            $region72: #{custom-call.13} parent=57 // pred_region
              loop: start=0, step=1, limit=1
              $region74: #{custom-call.13} parent=72 // loop_pre_header
                _
              $region75: #{custom-call.13} parent=72 // loop_header
                %s210 = sphi 0, %s214
                %p211 = scmp.ge.s32.totalorder %s210, 1
                %s215 = sphi %s183, %s183
                %s216 = sphi %s188, %s188
              $region76: #{custom-call.13} parent=72 // loop_header_branch
                %213 = sbr.rel (%p211) target = $region80
              $region77: #{custom-call.13} parent=72 // loop_body
                %v217 = vld [vmem:[%s215] sm:$0xf]
                %218 = vst [vmem:[%s216] sm:$0xf] %v217
              $region78: #{custom-call.13} parent=72 // loop_footer
                %s214 = sadd.s32 1, %s210
              $region79: #{custom-call.13} parent=72 // loop_footer_branch
                %209 = sbr.rel target = $region75
              $region80: #{custom-call.13} parent=72 // loop_exit
                _
            $region73: #{custom-call.13} parent=57 // pred_fallthru
              _
          $region58: #{custom-call.13} parent=53 // pred_fallthru
            _
          // Predicated region
          $region59: #{custom-call.13} parent=53 // pred_check
            _
          $region60: #{custom-call.13} parent=53 // pred_check_branch
            %194 = sbr.rel (0) target = $region62
          $region61: #{custom-call.13} parent=53 // pred_region
            loop: start=0, step=1, limit=1
            $region63: #{custom-call.13} parent=61 // loop_pre_header
              _
            $region64: #{custom-call.13} parent=61 // loop_header
              %s197 = sphi 0, %s201
              %p198 = scmp.ge.s32.totalorder %s197, 1
              %s202 = sphi %s183, %s183
              %s203 = sphi %s188, %s188
            $region65: #{custom-call.13} parent=61 // loop_header_branch
              %200 = sbr.rel (%p198) target = $region69
            $region66: #{custom-call.13} parent=61 // loop_body
              %v204 = vld [vmem:[%s202] sm:$0xf]
              %205 = vst [vmem:[%s203] sm:$0xf] %v204
            $region67: #{custom-call.13} parent=61 // loop_footer
              %s201 = sadd.s32 1, %s197
            $region68: #{custom-call.13} parent=61 // loop_footer_branch
              %196 = sbr.rel target = $region64
            $region69: #{custom-call.13} parent=61 // loop_exit
              _
          $region62: #{custom-call.13} parent=53 // pred_fallthru
            _
        $region54: #{custom-call.13} parent=49 // pred_fallthru
          _
        %219 = vnop
      $region50: #{custom-call.13} parent=5 // pred_fallthru
        _
      %p220 = scmp.le.s32.totalorder 2, %s3
      // Predicated region
      $region81: #{custom-call.13} parent=5 // pred_check
        %p221 = pneg %p220
      $region82: #{custom-call.13} parent=5 // pred_check_branch
        %223 = sbr.rel (%p221) target = $region84
      $region83: #{custom-call.13} parent=5 // pred_region
        %s224 = ssub.s32 %s3, 2
        %s225 = sand.u32 %s9, 1
        %s226 = sand.u32 %s9, 1
        %s227 = smul.addr %s226, 4
        %s228 = scalar_lea.vmem [#allocation3], %s227
      $region84: #{custom-call.13} parent=5 // pred_fallthru
        _
    $region6: #{custom-call.13} parent=1 // loop_footer
      %s7 = sadd.s32 1, %s3
    $region7: #{custom-call.13} parent=1 // loop_footer_branch
      %2 = sbr.rel target = $region3
    $region8: #{custom-call.13} parent=1 // loop_exit
      _

// kernel: custom-call.12
$region0: #{custom-call.12}
  %s0 = inlined_call_operand.vmem [shape: f32[4,1,4,4], index: 0, kind: input, shape index: {}]
  %s1 = inlined_call_operand.vmem [shape: f32[4,1,4,4], index: 1, kind: output, shape index: {}]
  $region1: #{custom-call.12} parent=0
    #allocation0 [shape = 'u8[4096]{0}', space=vmem, size = 0x1000, scoped, tag = 'operand span for operand 0']
    #allocation1 [shape = 'u8[4096]{0}', space=vmem, size = 0x1000, scoped, tag = 'packed  for operand 0']
    #allocation2 [shape = 'u8[4096]{0}', space=vmem, size = 0x1000, scoped, tag = 'operand span for operand 1']
    #allocation3 [shape = 'u8[4096]{0}', space=vmem, size = 0x1000, scoped, tag = 'packed  for operand 1']
    loop: start=0, step=1, limit=6
    $region2: #{custom-call.12} parent=1 // loop_pre_header
      _
    $region3: #{custom-call.12} parent=1 // loop_header
      %s3 = sphi 0, %s7
      %p4 = scmp.ge.s32.totalorder %s3, 6
      %s10 = sphi 0, %s36
      %s11 = sphi 0, %s32
      %s12 = sphi 0, %s28
      %s13 = sphi 0, %s24
      %s14 = sphi 0, %s10
      %s15 = sphi 0, %s11
      %s16 = sphi 0, %s12
      %s17 = sphi 0, %s13
      %s18 = sphi 0, %s14
      %s19 = sphi 0, %s15
      %s20 = sphi 0, %s16
      %s21 = sphi 0, %s17
    $region4: #{custom-call.12} parent=1 // loop_header_branch
      %6 = sbr.rel (%p4) target = $region8
    $region5: #{custom-call.12} parent=1 // loop_body
      %s8 = ssub.s32 %s3, 1
      %s9 = ssub.s32 %s3, 2
      %s22 = sadd.s32 1, %s13
      %p23 = scmp.ge.s32.totalorder %s22, 1
      %s24 = scalar_select %p23, 0, %s22
      %s25 = sadd.s32 1, %s12
      %s26 = scalar_select %p23, %s25, %s12
      %p27 = scmp.ge.s32.totalorder %s26, 1
      %s28 = scalar_select %p27, 0, %s26
      %s29 = sadd.s32 1, %s11
      %s30 = scalar_select %p27, %s29, %s11
      %p31 = scmp.ge.s32.totalorder %s30, 1
      %s32 = scalar_select %p31, 0, %s30
      %s33 = sadd.s32 1, %s10
      %s34 = scalar_select %p31, %s33, %s10
      %p35 = scmp.ge.s32.totalorder %s34, 4
      %s36 = scalar_select %p35, 0, %s34
      %p37 = scmp.le.s32.totalorder 1, %s3
      %p38 = scmp.lt.s32.totalorder %s3, 5
      %p39 = pnand %p37, %p38
      %p40 = pneg %p39
      // Predicated region
      $region9: #{custom-call.12} parent=5 // pred_check
        _
      $region10: #{custom-call.12} parent=5 // pred_check_branch
        %42 = sbr.rel (%p39) target = $region12
      $region11: #{custom-call.12} parent=5 // pred_region
        %s43 = ssub.s32 %s3, 1
      $region12: #{custom-call.12} parent=5 // pred_fallthru
        _
      %p44 = scmp.lt.s32.totalorder %s3, 4
      // Predicated region
      $region13: #{custom-call.12} parent=5 // pred_check
        %p45 = pneg %p44
      $region14: #{custom-call.12} parent=5 // pred_check_branch
        %47 = sbr.rel (%p45) target = $region16
      $region15: #{custom-call.12} parent=5 // pred_region
        %s48 = sand.u32 %s3, 1
        %s49 = sand.u32 %s3, 1
        %s50 = smul.addr %s49, 4
        %s51 = scalar_lea.vmem [#allocation1], %s50
        %s52 = sadd.s32 %s13, %s12
        %s53 = sadd.s32 %s52, %s11
        %s54 = sadd.s32 %s53, %s10
        %s55 = smul.addr %s54, 4
        %s56 = scalar_lea.vmem %s0, %s55
        // Predicated region
        $region17: #{custom-call.12} parent=15 // pred_check
          _
        $region18: #{custom-call.12} parent=15 // pred_check_branch
          %58 = sbr.rel (0) target = $region20
        $region19: #{custom-call.12} parent=15 // pred_region
          // Predicated region
          $region21: #{custom-call.12} parent=19 // pred_check
            _
          $region22: #{custom-call.12} parent=19 // pred_check_branch
            %60 = sbr.rel target = $region24
          $region23: #{custom-call.12} parent=19 // pred_region
            // Predicated region
            $region36: #{custom-call.12} parent=23 // pred_check
              _
            $region37: #{custom-call.12} parent=23 // pred_check_branch
              %75 = sbr.rel (0) target = $region39
            $region38: #{custom-call.12} parent=23 // pred_region
              loop: start=0, step=1, limit=1
              $region40: #{custom-call.12} parent=38 // loop_pre_header
                _
              $region41: #{custom-call.12} parent=38 // loop_header
                %s78 = sphi 0, %s82
                %p79 = scmp.ge.s32.totalorder %s78, 1
                %s83 = sphi %s56, %s56
                %s84 = sphi %s51, %s51
              $region42: #{custom-call.12} parent=38 // loop_header_branch
                %81 = sbr.rel (%p79) target = $region46
              $region43: #{custom-call.12} parent=38 // loop_body
                %v85 = vld [vmem:[%s83] sm:$0xf]
                %86 = vst [vmem:[%s84] sm:$0xf] %v85
              $region44: #{custom-call.12} parent=38 // loop_footer
                %s82 = sadd.s32 1, %s78
              $region45: #{custom-call.12} parent=38 // loop_footer_branch
                %77 = sbr.rel target = $region41
              $region46: #{custom-call.12} parent=38 // loop_exit
                _
            $region39: #{custom-call.12} parent=23 // pred_fallthru
              _
          $region24: #{custom-call.12} parent=19 // pred_fallthru
            _
          // Predicated region
          $region25: #{custom-call.12} parent=19 // pred_check
            _
          $region26: #{custom-call.12} parent=19 // pred_check_branch
            %62 = sbr.rel (0) target = $region28
          $region27: #{custom-call.12} parent=19 // pred_region
            loop: start=0, step=1, limit=1
            $region29: #{custom-call.12} parent=27 // loop_pre_header
              _
            $region30: #{custom-call.12} parent=27 // loop_header
              %s65 = sphi 0, %s69
              %p66 = scmp.ge.s32.totalorder %s65, 1
              %s70 = sphi %s56, %s56
              %s71 = sphi %s51, %s51
            $region31: #{custom-call.12} parent=27 // loop_header_branch
              %68 = sbr.rel (%p66) target = $region35
            $region32: #{custom-call.12} parent=27 // loop_body
              %v72 = vld [vmem:[%s70] sm:$0xf]
              %73 = vst [vmem:[%s71] sm:$0xf] %v72
            $region33: #{custom-call.12} parent=27 // loop_footer
              %s69 = sadd.s32 1, %s65
            $region34: #{custom-call.12} parent=27 // loop_footer_branch
              %64 = sbr.rel target = $region30
            $region35: #{custom-call.12} parent=27 // loop_exit
              _
          $region28: #{custom-call.12} parent=19 // pred_fallthru
            _
        $region20: #{custom-call.12} parent=15 // pred_fallthru
          _
        %87 = vnop
      $region16: #{custom-call.12} parent=5 // pred_fallthru
        _
      %p88 = scmp.le.s32.totalorder 1, %s3
      %p89 = scmp.lt.s32.totalorder %s3, 5
      %p90 = pnand %p88, %p89
      %p91 = pneg %p90
      // Predicated region
      $region47: #{custom-call.12} parent=5 // pred_check
        _
      $region48: #{custom-call.12} parent=5 // pred_check_branch
        %93 = sbr.rel (%p90) target = $region50
      $region49: #{custom-call.12} parent=5 // pred_region
        #allocation4 [shape = 'f32[4,4]{1,0}', space=vmem, size = 0x1000, scoped, tag = 'rescaled input a']
        %s94 = ssub.s32 %s3, 1
        %s95 = sand.u32 %s8, 1
        %s96 = sand.u32 %s8, 1
        %s97 = smul.addr %s96, 4
        %s98 = scalar_lea.vmem [#allocation1], %s97
        %s99 = sand.u32 %s8, 1
        %s100 = sand.u32 %s8, 1
        %s101 = smul.addr %s100, 4
        %s102 = scalar_lea.vmem [#allocation1], %s101
        %s103 = sand.u32 %s8, 1
        %s104 = sand.u32 %s8, 1
        %s105 = smul.addr %s104, 4
        %s106 = scalar_lea.vmem [#allocation3], %s105
        %s108 = sshllo.u32 0, 4
        %v109 = vld [vmem:[%s102] sm:%s108]
        %110 = vst [vmem:[#allocation0] sm:%s108] %v109
        %v111 = vlaneseq
        %v112 = vand.u32 %v111, 127
        %vm113 = vcmp.lt.s32.totalorder %v112, 4
        %v114 = vlaneseq
        %v115 = vshrl.u32 %v114, 7
        %vm117 = vcmp.eq.s32.totalorder %v115, %v112
        %v118 = vld [vmem:[#allocation0] sm:$0xff]
        %v119 = vsel %vm117, %v118, 0.0
        %120 = vadd.xlane.f32.xlu0 %v119
        %v121 = vpop.xlane.xlu0 %120
        %vm122 = vcmp.le.s32.totalorder %v115, %v112
        %vm123 = vmand %vm122, %vm113
        %v124 = vsel %vm123, %v118, 0.0
        %v125 = vrcp.pop %v121
        %v126 = vmul.f32 %v124, %v125
        %127 = vst [vmem:[#allocation4] sm:$0xff] %v126
        %v128 = vlaneseq
        %v129 = vand.u32 %v128, 127
        %v130 = vlaneseq
        %v131 = vshrl.u32 %v130, 7
        %vm133 = vcmp.eq.s32.totalorder %v129, %v131
        %v134 = vlaneseq
        %v135 = vand.u32 %v134, 127
        %vm136 = vcmp.eq.s32.totalorder %v135, 3
        %v137 = vsel %vm136, 1.0, -1.0
        %v138 = vsel %vm133, %v137, 0.0
        %s139 = scalar_lea.vmem [#allocation4], 2
        %v140 = vld [vmem:[%s139] ss:$0 sm:$0xff]
        %v141 = vxor.u32 %v140, 2147483648
        %v142 = vlaneseq
        %v143 = vand.u32 %v142, 127
        %vm144 = vcmp.eq.s32.totalorder %v143, 2
        %v145 = vmul.f32 %v141, %v138
        %146 = vadd.xlane.f32.xlu0 %v145
        %v147 = vpop.xlane.xlu0 %146
        %v148 = vsel %vm144, %v147, %v138
        %s149 = scalar_lea.vmem [#allocation4], 1
        %v150 = vld [vmem:[%s149] ss:$0 sm:$0xff]
        %v151 = vxor.u32 %v150, 2147483648
        %v152 = vlaneseq
        %v153 = vand.u32 %v152, 127
        %vm154 = vcmp.eq.s32.totalorder %v153, 1
        %v155 = vmul.f32 %v151, %v148
        %156 = vadd.xlane.f32.xlu0 %v155
        %v157 = vpop.xlane.xlu0 %156
        %v158 = vsel %vm154, %v157, %v148
        %v159 = vld [vmem:[#allocation4] ss:$0 sm:$0xff]
        %v160 = vxor.u32 %v159, 2147483648
        %v161 = vlaneseq
        %v162 = vand.u32 %v161, 127
        %vm163 = vcmp.eq.s32.totalorder %v162, 0
        %v164 = vmul.f32 %v160, %v158
        %165 = vadd.xlane.f32.xlu0 %v164
        %v166 = vpop.xlane.xlu0 %165
        %v167 = vsel %vm163, %v166, %v158
        %v168 = vrcp.pop %v121
        %v169 = vmul.f32 %v167, %v168
        %vm170 = vweird.f32 %v121
        %v171 = vsel %vm170, %v167, %v169
        %172 = vst [vmem:[#allocation2] sm:$0xff] %v171
        %s174 = sshllo.u32 0, 4
        %v176 = vld [vmem:[#allocation2] sm:%s174]
        %s177 = sshllo.u32 0, 4
        %178 = vst [vmem:[%s106] sm:%s177] %v176
        %s179 = sand.u32 %s8, 1
        %s180 = sand.u32 %s8, 1
        %s181 = smul.addr %s180, 4
        %s182 = scalar_lea.vmem [#allocation3], %s181
        %s183 = sadd.s32 %s17, %s16
        %s184 = sadd.s32 %s183, %s15
        %s185 = sadd.s32 %s184, %s14
        %s186 = smul.addr %s185, 4
        %s187 = scalar_lea.vmem %s1, %s186
        // Predicated region
        $region51: #{custom-call.12} parent=49 // pred_check
          _
        $region52: #{custom-call.12} parent=49 // pred_check_branch
          %189 = sbr.rel (0) target = $region54
        $region53: #{custom-call.12} parent=49 // pred_region
          // Predicated region
          $region55: #{custom-call.12} parent=53 // pred_check
            _
          $region56: #{custom-call.12} parent=53 // pred_check_branch
            %191 = sbr.rel target = $region58
          $region57: #{custom-call.12} parent=53 // pred_region
            // Predicated region
            $region70: #{custom-call.12} parent=57 // pred_check
              _
            $region71: #{custom-call.12} parent=57 // pred_check_branch
              %206 = sbr.rel (0) target = $region73
            $region72: #{custom-call.12} parent=57 // pred_region
              loop: start=0, step=1, limit=1
              $region74: #{custom-call.12} parent=72 // loop_pre_header
                _
              $region75: #{custom-call.12} parent=72 // loop_header
                %s209 = sphi 0, %s213
                %p210 = scmp.ge.s32.totalorder %s209, 1
                %s214 = sphi %s182, %s182
                %s215 = sphi %s187, %s187
              $region76: #{custom-call.12} parent=72 // loop_header_branch
                %212 = sbr.rel (%p210) target = $region80
              $region77: #{custom-call.12} parent=72 // loop_body
                %v216 = vld [vmem:[%s214] sm:$0xf]
                %217 = vst [vmem:[%s215] sm:$0xf] %v216
              $region78: #{custom-call.12} parent=72 // loop_footer
                %s213 = sadd.s32 1, %s209
              $region79: #{custom-call.12} parent=72 // loop_footer_branch
                %208 = sbr.rel target = $region75
              $region80: #{custom-call.12} parent=72 // loop_exit
                _
            $region73: #{custom-call.12} parent=57 // pred_fallthru
              _
          $region58: #{custom-call.12} parent=53 // pred_fallthru
            _
          // Predicated region
          $region59: #{custom-call.12} parent=53 // pred_check
            _
          $region60: #{custom-call.12} parent=53 // pred_check_branch
            %193 = sbr.rel (0) target = $region62
          $region61: #{custom-call.12} parent=53 // pred_region
            loop: start=0, step=1, limit=1
            $region63: #{custom-call.12} parent=61 // loop_pre_header
              _
            $region64: #{custom-call.12} parent=61 // loop_header
              %s196 = sphi 0, %s200
              %p197 = scmp.ge.s32.totalorder %s196, 1
              %s201 = sphi %s182, %s182
              %s202 = sphi %s187, %s187
            $region65: #{custom-call.12} parent=61 // loop_header_branch
              %199 = sbr.rel (%p197) target = $region69
            $region66: #{custom-call.12} parent=61 // loop_body
              %v203 = vld [vmem:[%s201] sm:$0xf]
              %204 = vst [vmem:[%s202] sm:$0xf] %v203
            $region67: #{custom-call.12} parent=61 // loop_footer
              %s200 = sadd.s32 1, %s196
            $region68: #{custom-call.12} parent=61 // loop_footer_branch
              %195 = sbr.rel target = $region64
            $region69: #{custom-call.12} parent=61 // loop_exit
              _
          $region62: #{custom-call.12} parent=53 // pred_fallthru
            _
        $region54: #{custom-call.12} parent=49 // pred_fallthru
          _
        %218 = vnop
      $region50: #{custom-call.12} parent=5 // pred_fallthru
        _
      %p219 = scmp.le.s32.totalorder 2, %s3
      // Predicated region
      $region81: #{custom-call.12} parent=5 // pred_check
        %p220 = pneg %p219
      $region82: #{custom-call.12} parent=5 // pred_check_branch
        %222 = sbr.rel (%p220) target = $region84
      $region83: #{custom-call.12} parent=5 // pred_region
        %s223 = ssub.s32 %s3, 2
        %s224 = sand.u32 %s9, 1
        %s225 = sand.u32 %s9, 1
        %s226 = smul.addr %s225, 4
        %s227 = scalar_lea.vmem [#allocation3], %s226
      $region84: #{custom-call.12} parent=5 // pred_fallthru
        _
    $region6: #{custom-call.12} parent=1 // loop_footer
      %s7 = sadd.s32 1, %s3
    $region7: #{custom-call.12} parent=1 // loop_footer_branch
      %2 = sbr.rel target = $region3
    $region8: #{custom-call.12} parent=1 // loop_exit
      _

// kernel: stereo_pose_net_forward.3
$region0: #{stereo_pose_net_forward.3}
  #allocation0 [shape = 'u32[]', space=smem, size = 0x4, offset = 0x4, fixed_abs, tag = 'smem constant byte address 0x4 - core index']
  #allocation1 [shape = 'u32[144,128]{1,0:T(1,128)}', space=vmem, size = 0x12000, scoped, tag = 'internal scratch']
  %s0 = inlined_call_operand.vmem [shape: f32[4,3,1024], index: 0, kind: input, shape index: {}]
  %s1 = inlined_call_operand.vmem [shape: f32[32,3], index: 1, kind: input, shape index: {}]
  %s2 = inlined_call_operand.vmem [shape: f32[32,1], index: 2, kind: input, shape index: {}]
  %s3 = inlined_call_operand.hbm [shape: f32[32,32], index: 3, kind: input, shape index: {}]
  %s4 = inlined_call_operand.vmem [shape: f32[32,1], index: 4, kind: input, shape index: {}]
  %s5 = inlined_call_operand.vmem [shape: bf16[4,32,1024], index: 5, kind: output, shape index: {}]
  %s6 = sld [smem:[#allocation0]]
  $region76: #{stereo_pose_net_forward.3} parent=0
    _
  %s8 = ssub.s32 1, %s6
  %s9 = scalar_select 0, %s8, %s6
  $region1: #{stereo_pose_net_forward.3} parent=0
    #allocation2 [shape = 'u8[16384]{0}', space=vmem, size = 0x4000, scoped, tag = 'input window, operand 3, single buffered']
    #allocation3 [shape = 's32[2]{0}', space=sflag, size = 0x8, scoped, tag = 'scoped memory for stereo_pose_net_forward.3']
    #allocation4 [shape = 'u8[65536]{0}', space=vmem, size = 0x10000, scoped, tag = 'output window, operand 0']
    %10 = vsyncpa [#allocation3], 0
    loop: start=0, step=1, limit=10
    $region2: #{stereo_pose_net_forward.3} parent=1 // loop_pre_header
      _
    $region3: #{stereo_pose_net_forward.3} parent=1 // loop_header
      %s12 = sphi 0, %s16
      %p13 = scmp.ge.s32.totalorder %s12, 10
      %s19 = sphi 0, %s31
      %s20 = sphi 0, %s27
      %s21 = sphi 0, %s19
      %s22 = sphi 0, %s20
      %s23 = sphi 0, %s21
      %s24 = sphi 0, %s22
      %s36 = sphi 0, %s38
      %s39 = sphi 0, %s36
      %s40 = sphi 0, %s39
      %s56 = sphi 0, %s40
      %s60 = sphi 0, %s60
      %s62 = sphi 0, %s60
      %s63 = sphi 0, %s62
      %s77 = sphi 0, %s63
      %s81 = sphi 0, %s81
      %s83 = sphi 0, %s81
      %s84 = sphi 0, %s83
      %s98 = sphi 0, %s84
      %s102 = sphi 0, %s102
      %s104 = sphi 0, %s102
      %s105 = sphi 0, %s104
      %s119 = sphi 0, %s105
      %s123 = sphi 0, %s123
      %s125 = sphi 0, %s123
      %s126 = sphi 0, %s125
      %s140 = sphi 0, %s126
      %s148 = sphi 0, %s150
      %s151 = sphi 0, %s148
      %s152 = sphi 0, %s151
      %s168 = sphi 0, %s152
    $region4: #{stereo_pose_net_forward.3} parent=1 // loop_header_branch
      %15 = sbr.rel (%p13) target = $region8
    $region5: #{stereo_pose_net_forward.3} parent=1 // loop_body
      %s17 = ssub.s32 %s12, 1
      %s18 = ssub.s32 %s12, 2
      %s25 = sadd.s32 1, %s20
      %p26 = scmp.ge.s32.totalorder %s25, 2
      %s27 = scalar_select %p26, 0, %s25
      %s28 = sadd.s32 1, %s19
      %s29 = scalar_select %p26, %s28, %s19
      %p30 = scmp.ge.s32.totalorder %s29, 4
      %s31 = scalar_select %p30, 0, %s29
      %s32 = ssub.s32 %s19, %s31
      %s33 = ssub.s32 %s20, %s27
      %s34 = sor.u32 %s32, %s33
      %p35 = scmp.eq.s32.totalorder %s34, 0
      %s37 = sadd.s32 %s36, 1
      %s38 = scalar_select %p35, %s36, %s37
      %p41 = pneg %p35
      %p42 = scmp.eq.s32.totalorder %s12, 7
      %p43 = por %p41, %p42
      %p44 = scmp.ne.s32.totalorder %s36, %s39
      %p45 = scmp.eq.s32.totalorder %s12, 0
      %p46 = por %p44, %p45
      %p47 = scmp.ne.s32.totalorder %s36, %s39
      %p48 = scmp.eq.s32.totalorder %s17, 7
      %p49 = por %p47, %p48
      %p50 = scmp.ne.s32.totalorder %s39, %s40
      %p51 = scmp.eq.s32.totalorder %s17, 0
      %p52 = por %p50, %p51
      %p53 = scmp.ne.s32.totalorder %s39, %s40
      %p54 = scmp.eq.s32.totalorder %s18, 7
      %p55 = por %p53, %p54
      %p57 = scmp.ne.s32.totalorder %s40, %s56
      %p58 = scmp.eq.s32.totalorder %s18, 0
      %p59 = por %p57, %p58
      %s61 = sadd.s32 %s60, 1
      %p64 = scmp.eq.s32.totalorder %s12, 7
      %p65 = scmp.ne.s32.totalorder %s60, %s62
      %p66 = scmp.eq.s32.totalorder %s12, 0
      %p67 = por %p65, %p66
      %p68 = scmp.ne.s32.totalorder %s60, %s62
      %p69 = scmp.eq.s32.totalorder %s17, 7
      %p70 = por %p68, %p69
      %p71 = scmp.ne.s32.totalorder %s62, %s63
      %p72 = scmp.eq.s32.totalorder %s17, 0
      %p73 = por %p71, %p72
      %p74 = scmp.ne.s32.totalorder %s62, %s63
      %p75 = scmp.eq.s32.totalorder %s18, 7
      %p76 = por %p74, %p75
      %p78 = scmp.ne.s32.totalorder %s63, %s77
      %p79 = scmp.eq.s32.totalorder %s18, 0
      %p80 = por %p78, %p79
      %s82 = sadd.s32 %s81, 1
      %p85 = scmp.eq.s32.totalorder %s12, 7
      %p86 = scmp.ne.s32.totalorder %s81, %s83
      %p87 = scmp.eq.s32.totalorder %s12, 0
      %p88 = por %p86, %p87
      %p89 = scmp.ne.s32.totalorder %s81, %s83
      %p90 = scmp.eq.s32.totalorder %s17, 7
      %p91 = por %p89, %p90
      %p92 = scmp.ne.s32.totalorder %s83, %s84
      %p93 = scmp.eq.s32.totalorder %s17, 0
      %p94 = por %p92, %p93
      %p95 = scmp.ne.s32.totalorder %s83, %s84
      %p96 = scmp.eq.s32.totalorder %s18, 7
      %p97 = por %p95, %p96
      %p99 = scmp.ne.s32.totalorder %s84, %s98
      %p100 = scmp.eq.s32.totalorder %s18, 0
      %p101 = por %p99, %p100
      %s103 = sadd.s32 %s102, 1
      %p106 = scmp.eq.s32.totalorder %s12, 7
      %p107 = scmp.ne.s32.totalorder %s102, %s104
      %p108 = scmp.eq.s32.totalorder %s12, 0
      %p109 = por %p107, %p108
      %p110 = scmp.ne.s32.totalorder %s102, %s104
      %p111 = scmp.eq.s32.totalorder %s17, 7
      %p112 = por %p110, %p111
      %p113 = scmp.ne.s32.totalorder %s104, %s105
      %p114 = scmp.eq.s32.totalorder %s17, 0
      %p115 = por %p113, %p114
      %p116 = scmp.ne.s32.totalorder %s104, %s105
      %p117 = scmp.eq.s32.totalorder %s18, 7
      %p118 = por %p116, %p117
      %p120 = scmp.ne.s32.totalorder %s105, %s119
      %p121 = scmp.eq.s32.totalorder %s18, 0
      %p122 = por %p120, %p121
      %s124 = sadd.s32 %s123, 1
      %p127 = scmp.eq.s32.totalorder %s12, 7
      %p128 = scmp.ne.s32.totalorder %s123, %s125
      %p129 = scmp.eq.s32.totalorder %s12, 0
      %p130 = por %p128, %p129
      %p131 = scmp.ne.s32.totalorder %s123, %s125
      %p132 = scmp.eq.s32.totalorder %s17, 7
      %p133 = por %p131, %p132
      %p134 = scmp.ne.s32.totalorder %s125, %s126
      %p135 = scmp.eq.s32.totalorder %s17, 0
      %p136 = por %p134, %p135
      %p137 = scmp.ne.s32.totalorder %s125, %s126
      %p138 = scmp.eq.s32.totalorder %s18, 7
      %p139 = por %p137, %p138
      %p141 = scmp.ne.s32.totalorder %s126, %s140
      %p142 = scmp.eq.s32.totalorder %s18, 0
      %p143 = por %p141, %p142
      %s144 = ssub.s32 %s19, %s31
      %s145 = ssub.s32 %s20, %s27
      %s146 = sor.u32 %s144, %s145
      %p147 = scmp.eq.s32.totalorder %s146, 0
      %s149 = sadd.s32 %s148, 1
      %s150 = scalar_select %p147, %s148, %s149
      %p153 = pneg %p147
      %p154 = scmp.eq.s32.totalorder %s12, 7
      %p155 = por %p153, %p154
      %p156 = scmp.ne.s32.totalorder %s148, %s151
      %p157 = scmp.eq.s32.totalorder %s12, 0
      %p158 = por %p156, %p157
      %p159 = scmp.ne.s32.totalorder %s148, %s151
      %p160 = scmp.eq.s32.totalorder %s17, 7
      %p161 = por %p159, %p160
      %p162 = scmp.ne.s32.totalorder %s151, %s152
      %p163 = scmp.eq.s32.totalorder %s17, 0
      %p164 = por %p162, %p163
      %p165 = scmp.ne.s32.totalorder %s151, %s152
      %p166 = scmp.eq.s32.totalorder %s18, 7
      %p167 = por %p165, %p166
      %p169 = scmp.ne.s32.totalorder %s152, %s168
      %p170 = scmp.eq.s32.totalorder %s18, 0
      %p171 = por %p169, %p170
      %p172 = scmp.le.s32.totalorder 1, %s12
      %p173 = scmp.lt.s32.totalorder %s12, 9
      %p174 = pnand %p172, %p173
      %p175 = pneg %p174
      // Predicated region
      $region9: #{stereo_pose_net_forward.3} parent=5 // pred_check
        _
      $region10: #{stereo_pose_net_forward.3} parent=5 // pred_check_branch
        %177 = sbr.rel (%p174) target = $region12
      $region11: #{stereo_pose_net_forward.3} parent=5 // pred_region
        %s178 = ssub.s32 %s12, 1
        // Predicated region
        $region13: #{stereo_pose_net_forward.3} parent=11 // pred_check
          %p179 = pneg %p73
        $region14: #{stereo_pose_net_forward.3} parent=11 // pred_check_branch
          %181 = sbr.rel (%p179) target = $region16
        $region15: #{stereo_pose_net_forward.3} parent=11 // pred_region
          _
        $region16: #{stereo_pose_net_forward.3} parent=11 // pred_fallthru
          _
        // Predicated region
        $region17: #{stereo_pose_net_forward.3} parent=11 // pred_check
          %p182 = pneg %p94
        $region18: #{stereo_pose_net_forward.3} parent=11 // pred_check_branch
          %184 = sbr.rel (%p182) target = $region20
        $region19: #{stereo_pose_net_forward.3} parent=11 // pred_region
          _
        $region20: #{stereo_pose_net_forward.3} parent=11 // pred_fallthru
          _
        // Predicated region
        $region21: #{stereo_pose_net_forward.3} parent=11 // pred_check
          %p185 = pneg %p115
        $region22: #{stereo_pose_net_forward.3} parent=11 // pred_check_branch
          %187 = sbr.rel (%p185) target = $region24
        $region23: #{stereo_pose_net_forward.3} parent=11 // pred_region
          %s189 = ssub.s32 512, 512
          %190 = vsyncadd [#allocation3], %s189
          %s191 = sshll.u32 [#allocation2], 4
          %s192 = int_to_ptr.vmem [resolvable:$true] %s191
          %197 = dma.hbm_to_vmem [thread:$0]  %s3, 512, %s192, [#allocation3], 128, 128, 8
        $region24: #{stereo_pose_net_forward.3} parent=11 // pred_fallthru
          _
        // Predicated region
        $region25: #{stereo_pose_net_forward.3} parent=11 // pred_check
          %p198 = pneg %p136
        $region26: #{stereo_pose_net_forward.3} parent=11 // pred_check_branch
          %200 = sbr.rel (%p198) target = $region28
        $region27: #{stereo_pose_net_forward.3} parent=11 // pred_region
          _
        $region28: #{stereo_pose_net_forward.3} parent=11 // pred_fallthru
          _
      $region12: #{stereo_pose_net_forward.3} parent=5 // pred_fallthru
        _
      %p201 = scmp.lt.s32.totalorder %s12, 8
      // Predicated region
      $region29: #{stereo_pose_net_forward.3} parent=5 // pred_check
        %p202 = pneg %p201
      $region30: #{stereo_pose_net_forward.3} parent=5 // pred_check_branch
        %204 = sbr.rel (%p202) target = $region32
      $region31: #{stereo_pose_net_forward.3} parent=5 // pred_region
        // Predicated region
        $region33: #{stereo_pose_net_forward.3} parent=31 // pred_check
          %p205 = pneg %p46
        $region34: #{stereo_pose_net_forward.3} parent=31 // pred_check_branch
          %207 = sbr.rel (%p205) target = $region36
        $region35: #{stereo_pose_net_forward.3} parent=31 // pred_region
          %s208 = smul.u32 4, %s20
          %p209 = scmp.lt.s32.totalorder %s19, 3
          %s210 = scalar_select %p209, %s19, 3
          %p211 = scmp.lt.s32.totalorder %s208, 7
          %s212 = scalar_select %p211, %s208, 7
          %s213 = smul.addr %s210, 8
          %s214 = sadd.s32 %s212, %s213
          %s215 = smul.addr %s214, 4
          %s216 = scalar_lea.vmem %s0, %s215
          %s217 = smul.u32 4, %s20
        $region36: #{stereo_pose_net_forward.3} parent=31 // pred_fallthru
          _
      $region32: #{stereo_pose_net_forward.3} parent=5 // pred_fallthru
        _
      %p218 = scmp.le.s32.totalorder 1, %s12
      %p219 = scmp.lt.s32.totalorder %s12, 9
      %p220 = pnand %p218, %p219
      %p221 = pneg %p220
      // Predicated region
      $region37: #{stereo_pose_net_forward.3} parent=5 // pred_check
        _
      $region38: #{stereo_pose_net_forward.3} parent=5 // pred_check_branch
        %223 = sbr.rel (%p220) target = $region40
      $region39: #{stereo_pose_net_forward.3} parent=5 // pred_region
        %s224 = ssub.s32 %s12, 1
        // Predicated region
        $region41: #{stereo_pose_net_forward.3} parent=39 // pred_check
          %p225 = pneg %p115
        $region42: #{stereo_pose_net_forward.3} parent=39 // pred_check_branch
          %227 = sbr.rel (%p225) target = $region44
        $region43: #{stereo_pose_net_forward.3} parent=39 // pred_region
          %228 = dma.done [#allocation3], 512
        $region44: #{stereo_pose_net_forward.3} parent=39 // pred_fallthru
          _
        %s229 = smul.u32 4, %s22
        %p230 = scmp.lt.s32.totalorder %s21, 3
        %s231 = scalar_select %p230, %s21, 3
        %p232 = scmp.lt.s32.totalorder %s229, 7
        %s233 = scalar_select %p232, %s229, 7
        %s234 = smul.addr %s231, 8
        %s235 = sadd.s32 %s233, %s234
        %s236 = smul.addr %s235, 4
        %s237 = scalar_lea.vmem %s0, %s236
        %p238 = pneg %p52
        %p239 = pneg %p49
        %p240 = pneg %p73
        %p241 = pneg %p70
        %p242 = pneg %p94
        %p243 = pneg %p91
        %p244 = pneg %p115
        %p245 = pneg %p112
        %p246 = pneg %p136
        %p247 = pneg %p133
        %p248 = pneg %p164
        %p249 = pneg %p161
        %s250 = sand.u32 %s151, 1
        %s251 = sand.u32 %s151, 1
        %s252 = smul.addr %s251, 64
        %s253 = scalar_lea.vmem [#allocation4], %s252
        %s254 = smul.u32 4, %s22
        %p255 = scmp.lt.s32.totalorder %s21, 3
        %s256 = scalar_select %p255, %s21, 3
        %p257 = scmp.lt.s32.totalorder %s254, 7
        %s258 = scalar_select %p257, %s254, 7
        %s259 = smul.addr %s256, 8
        %s260 = sadd.s32 %s258, %s259
        %s261 = smul.addr %s260, 4
        %s262 = scalar_lea.vmem %s0, %s261
        %s263 = smul.u32 4, %s22
        %s264 = smul.u32 4, %s22
        %v265 = vld [vmem:[%s262] sm:$0x77]
        %v266 = vld [vmem:[%s262 + $0x8] sm:$0x77]
        %v267 = vld [vmem:[%s1] sm:$0xff]
        %v268 = vld [vmem:[%s1 + $0x8] sm:$0xff]
        %v269 = vld [vmem:[%s1 + $0x10] sm:$0xff]
        %v270 = vld [vmem:[%s1 + $0x18] sm:$0xff]
        %v271 = vld [vmem:[%s2] sm:$0xff]
        %v272 = vld [vmem:[%s2 + $0x8] sm:$0xff]
        %v273 = vld [vmem:[%s2 + $0x10] sm:$0xff]
        %v274 = vld [vmem:[%s2 + $0x18] sm:$0xff]
        %276 = vset.pattern.permute.xlu0 0
        %277 = vperm.xlu0 %276, %v271
        %v278 = vpop.permute.xlu0 %277
        %281 = vset.pattern.permute.xlu0 0
        %282 = vperm.xlu0 %281, %v272
        %v283 = vpop.permute.xlu0 %282
        %286 = vset.pattern.permute.xlu0 0
        %287 = vperm.xlu0 %286, %v273
        %v288 = vpop.permute.xlu0 %287
        %291 = vset.pattern.permute.xlu0 0
        %292 = vperm.xlu0 %291, %v274
        %v293 = vpop.permute.xlu0 %292
        %v297 = vcombine.high %v265, %v265
        %v298 = vcombine.high %v266, %v266
        %vm299 = vcmask 23552
        %v301 = vsel %vm299, %v267, 0
        %v304 = vsel %vm299, %v268, 0
        %v307 = vsel %vm299, %v269, 0
        %v310 = vsel %vm299, %v270, 0
        %vm312 = vcmask 1042432
        %v313 = vsel %vm312, %v265, 0
        %v315 = vsel %vm312, %v297, 0
        %v317 = vsel %vm312, %v266, 0
        %v319 = vsel %vm312, %v298, 0
        %321 = vmatprep.subr.mxu0 %v315
        %322 = vmatpush1.msra.mxu0 %v313
        %323 = vmatprep.subr.mxu0 0.0
        %324 = vmatpush1.msra.mxu0 0.0
        %325 = vmatprep.subr.mxu0 0.0
        %326 = vmatpush1.msra.mxu0 0.0
        %327 = vmatprep.subr.mxu0 0.0
        %328 = vmatpush1.msra.mxu0 0.0
        %329 = vmatprep.subr.mxu0 0.0
        %330 = vmatpush1.msra.mxu0 0.0
        %331 = vmatprep.subr.mxu0 0.0
        %332 = vmatpush1.msra.mxu0 0.0
        %333 = vmatprep.subr.mxu0 0.0
        %334 = vmatpush1.msra.mxu0 0.0
        %335 = vmatprep.subr.mxu0 0.0
        %336 = vmatpush1.msra.mxu0 0.0
        %337 = vmatprep.subr.mxu0 0.0
        %338 = vmatpush1.msra.mxu0 0.0
        %339 = vmatprep.subr.mxu0 0.0
        %340 = vmatpush1.msra.mxu0 0.0
        %341 = vmatprep.subr.mxu0 0.0
        %342 = vmatpush1.msra.mxu0 0.0
        %343 = vmatprep.subr.mxu0 0.0
        %344 = vmatpush1.msra.mxu0 0.0
        %345 = vmatprep.subr.mxu0 0.0
        %346 = vmatpush1.msra.mxu0 0.0
        %347 = vmatprep.subr.mxu0 0.0
        %348 = vmatpush1.msra.mxu0 0.0
        %349 = vmatprep.subr.mxu0 0.0
        %350 = vmatpush1.msra.mxu0 0.0
        %351 = vmatprep.subr.mxu0 0.0
        %352 = vmatpush1.msra.mxu0 0.0
        %353 = vmatprep.subr.mxu0 0.0
        %354 = vmatpush1.msra.mxu0 0.0
        %355 = vmatprep.subr.mxu0 0.0
        %356 = vmatpush1.msra.mxu0 0.0
        %357 = vmatprep.subr.mxu0 0.0
        %358 = vmatpush1.msra.mxu0 0.0
        %359 = vmatprep.subr.mxu0 0.0
        %360 = vmatpush1.msra.mxu0 0.0
        %361 = vmatprep.subr.mxu0 0.0
        %362 = vmatpush1.msra.mxu0 0.0
        %363 = vmatprep.subr.mxu0 0.0
        %364 = vmatpush1.msra.mxu0 0.0
        %365 = vmatprep.subr.mxu0 0.0
        %366 = vmatpush1.msra.mxu0 0.0
        %367 = vmatprep.subr.mxu0 0.0
        %368 = vmatpush1.msra.mxu0 0.0
        %369 = vmatprep.subr.mxu0 0.0
        %370 = vmatpush1.msra.mxu0 0.0
        %371 = vmatprep.subr.mxu0 0.0
        %372 = vmatpush1.msra.mxu0 0.0
        %373 = vmatprep.subr.mxu0 0.0
        %374 = vmatpush1.msra.mxu0 0.0
        %375 = vmatprep.subr.mxu0 0.0
        %376 = vmatpush1.msra.mxu0 0.0
        %377 = vmatprep.subr.mxu0 0.0
        %378 = vmatpush1.msra.mxu0 0.0
        %379 = vmatprep.subr.mxu0 0.0
        %380 = vmatpush1.msra.mxu0 0.0
        %381 = vmatprep.subr.mxu0 0.0
        %382 = vmatpush1.msra.mxu0 0.0
        %383 = vmatprep.subr.mxu0 0.0
        %384 = vmatpush1.msra.mxu0 0.0
        %385 = vmatprep.mubr.f32.mxu0 0.0
        %386 = vmatmul.mubr.f32.gmra.mrb[0].mxu0 %v301
        %v387 = vpop.f32.mrb[0].mxu0
        %v388 = vadd.f32 %v278, %v387
        %v389 = vpop.f32.mrb[0].mxu0
        %v390 = vadd.f32 %v278, %v389
        %391 = vmatprep.mubr.f32.mxu0 0.0
        %392 = vmatmul.mubr.f32.gmra.mrb[0].mxu0 %v304
        %v393 = vpop.f32.mrb[0].mxu0
        %v394 = vadd.f32 %v283, %v393
        %v395 = vpop.f32.mrb[0].mxu0
        %v396 = vadd.f32 %v283, %v395
        %397 = vmatprep.mubr.f32.mxu0 0.0
        %398 = vmatmul.mubr.f32.gmra.mrb[0].mxu0 %v307
        %v399 = vpop.f32.mrb[0].mxu0
        %v400 = vadd.f32 %v288, %v399
        %v401 = vpop.f32.mrb[0].mxu0
        %v402 = vadd.f32 %v288, %v401
        %403 = vmatprep.mubr.f32.mxu0 0.0
        %404 = vmatmul.mubr.f32.gmra.mrb[0].mxu0 %v310
        %v405 = vpop.f32.mrb[0].mxu0
        %v406 = vadd.f32 %v293, %v405
        %v407 = vpop.f32.mrb[0].mxu0
        %v408 = vadd.f32 %v293, %v407
        %409 = vdwg.mxu0
        %410 = vmatprep.subr.mxu0 %v319
        %411 = vmatpush1.msra.mxu0 %v317
        %412 = vmatprep.subr.mxu0 0.0
        %413 = vmatpush1.msra.mxu0 0.0
        %414 = vmatprep.subr.mxu0 0.0
        %415 = vmatpush1.msra.mxu0 0.0
        %416 = vmatprep.subr.mxu0 0.0
        %417 = vmatpush1.msra.mxu0 0.0
        %418 = vmatprep.subr.mxu0 0.0
        %419 = vmatpush1.msra.mxu0 0.0
        %420 = vmatprep.subr.mxu0 0.0
        %421 = vmatpush1.msra.mxu0 0.0
        %422 = vmatprep.subr.mxu0 0.0
        %423 = vmatpush1.msra.mxu0 0.0
        %424 = vmatprep.subr.mxu0 0.0
        %425 = vmatpush1.msra.mxu0 0.0
        %426 = vmatprep.subr.mxu0 0.0
        %427 = vmatpush1.msra.mxu0 0.0
        %428 = vmatprep.subr.mxu0 0.0
        %429 = vmatpush1.msra.mxu0 0.0
        %430 = vmatprep.subr.mxu0 0.0
        %431 = vmatpush1.msra.mxu0 0.0
        %432 = vmatprep.subr.mxu0 0.0
        %433 = vmatpush1.msra.mxu0 0.0
        %434 = vmatprep.subr.mxu0 0.0
        %435 = vmatpush1.msra.mxu0 0.0
        %436 = vmatprep.subr.mxu0 0.0
        %437 = vmatpush1.msra.mxu0 0.0
        %438 = vmatprep.subr.mxu0 0.0
        %439 = vmatpush1.msra.mxu0 0.0
        %440 = vmatprep.subr.mxu0 0.0
        %441 = vmatpush1.msra.mxu0 0.0
        %442 = vmatprep.subr.mxu0 0.0
        %443 = vmatpush1.msra.mxu0 0.0
        %444 = vmatprep.subr.mxu0 0.0
        %445 = vmatpush1.msra.mxu0 0.0
        %446 = vmatprep.subr.mxu0 0.0
        %447 = vmatpush1.msra.mxu0 0.0
        %448 = vmatprep.subr.mxu0 0.0
        %449 = vmatpush1.msra.mxu0 0.0
        %450 = vmatprep.subr.mxu0 0.0
        %451 = vmatpush1.msra.mxu0 0.0
        %452 = vmatprep.subr.mxu0 0.0
        %453 = vmatpush1.msra.mxu0 0.0
        %454 = vmatprep.subr.mxu0 0.0
        %455 = vmatpush1.msra.mxu0 0.0
        %456 = vmatprep.subr.mxu0 0.0
        %457 = vmatpush1.msra.mxu0 0.0
        %458 = vmatprep.subr.mxu0 0.0
        %459 = vmatpush1.msra.mxu0 0.0
        %460 = vmatprep.subr.mxu0 0.0
        %461 = vmatpush1.msra.mxu0 0.0
        %462 = vmatprep.subr.mxu0 0.0
        %463 = vmatpush1.msra.mxu0 0.0
        %464 = vmatprep.subr.mxu0 0.0
        %465 = vmatpush1.msra.mxu0 0.0
        %466 = vmatprep.subr.mxu0 0.0
        %467 = vmatpush1.msra.mxu0 0.0
        %468 = vmatprep.subr.mxu0 0.0
        %469 = vmatpush1.msra.mxu0 0.0
        %470 = vmatprep.subr.mxu0 0.0
        %471 = vmatpush1.msra.mxu0 0.0
        %472 = vmatprep.subr.mxu0 0.0
        %473 = vmatpush1.msra.mxu0 0.0
        %474 = vmatprep.mubr.f32.mxu0 0.0
        %475 = vmatmul.mubr.f32.gmra.mrb[0].mxu0 %v301
        %v476 = vpop.f32.mrb[0].mxu0
        %v477 = vadd.f32 %v278, %v476
        %v478 = vpop.f32.mrb[0].mxu0
        %v479 = vadd.f32 %v278, %v478
        %480 = vmatprep.mubr.f32.mxu0 0.0
        %481 = vmatmul.mubr.f32.gmra.mrb[0].mxu0 %v304
        %v482 = vpop.f32.mrb[0].mxu0
        %v483 = vadd.f32 %v283, %v482
        %v484 = vpop.f32.mrb[0].mxu0
        %v485 = vadd.f32 %v283, %v484
        %486 = vmatprep.mubr.f32.mxu0 0.0
        %487 = vmatmul.mubr.f32.gmra.mrb[0].mxu0 %v307
        %v488 = vpop.f32.mrb[0].mxu0
        %v489 = vadd.f32 %v288, %v488
        %v490 = vpop.f32.mrb[0].mxu0
        %v491 = vadd.f32 %v288, %v490
        %492 = vmatprep.mubr.f32.mxu0 0.0
        %493 = vmatmul.mubr.f32.gmra.mrb[0].mxu0 %v310
        %v494 = vpop.f32.mrb[0].mxu0
        %v495 = vadd.f32 %v293, %v494
        %v496 = vpop.f32.mrb[0].mxu0
        %v497 = vadd.f32 %v293, %v496
        %498 = vdwg.mxu0
        %v499 = vmax.f32 %v388, 0.0
        %v500 = vmax.f32 %v390, 0.0
        %v501 = vmax.f32 %v477, 0.0
        %v502 = vmax.f32 %v479, 0.0
        %v503 = vmax.f32 %v394, 0.0
        %v504 = vmax.f32 %v396, 0.0
        %v505 = vmax.f32 %v483, 0.0
        %v506 = vmax.f32 %v485, 0.0
        %v507 = vmax.f32 %v400, 0.0
        %v508 = vmax.f32 %v402, 0.0
        %v509 = vmax.f32 %v489, 0.0
        %v510 = vmax.f32 %v491, 0.0
        %v511 = vmax.f32 %v406, 0.0
        %v512 = vmax.f32 %v408, 0.0
        %v513 = vmax.f32 %v495, 0.0
        %v514 = vmax.f32 %v497, 0.0
        %v515 = vld [vmem:[#allocation2] sm:$0xff]
        %v516 = vld [vmem:[#allocation2 + $0x8] sm:$0xff]
        %v517 = vld [vmem:[#allocation2 + $0x10] sm:$0xff]
        %v518 = vld [vmem:[#allocation2 + $0x18] sm:$0xff]
        %v519 = vld [vmem:[%s4] sm:$0xff]
        %v520 = vld [vmem:[%s4 + $0x8] sm:$0xff]
        %v521 = vld [vmem:[%s4 + $0x10] sm:$0xff]
        %v522 = vld [vmem:[%s4 + $0x18] sm:$0xff]
        %524 = vset.pattern.permute.xlu0 0
        %525 = vperm.xlu0 %524, %v519
        %v526 = vpop.permute.xlu0 %525
        %529 = vset.pattern.permute.xlu0 0
        %530 = vperm.xlu0 %529, %v520
        %v531 = vpop.permute.xlu0 %530
        %534 = vset.pattern.permute.xlu0 0
        %535 = vperm.xlu0 %534, %v521
        %v536 = vpop.permute.xlu0 %535
        %539 = vset.pattern.permute.xlu0 0
        %540 = vperm.xlu0 %539, %v522
        %v541 = vpop.permute.xlu0 %540
        %vm543 = vcmask 261120
        %v545 = vsel %vm543, %v515, 0
        %v548 = vsel %vm543, %v516, 0
        %v551 = vsel %vm543, %v517, 0
        %v554 = vsel %vm543, %v518, 0
        %556 = vmatprep.subr.mxu0 %v500
        %557 = vmatpush1.msra.mxu0 %v499
        %558 = vmatprep.subr.mxu0 %v504
        %559 = vmatpush1.msra.mxu0 %v503
        %560 = vmatprep.subr.mxu0 %v508
        %561 = vmatpush1.msra.mxu0 %v507
        %562 = vmatprep.subr.mxu0 %v512
        %563 = vmatpush1.msra.mxu0 %v511
        %564 = vmatprep.subr.mxu0 0.0
        %565 = vmatpush1.msra.mxu0 0.0
        %566 = vmatprep.subr.mxu0 0.0
        %567 = vmatpush1.msra.mxu0 0.0
        %568 = vmatprep.subr.mxu0 0.0
        %569 = vmatpush1.msra.mxu0 0.0
        %570 = vmatprep.subr.mxu0 0.0
        %571 = vmatpush1.msra.mxu0 0.0
        %572 = vmatprep.subr.mxu0 0.0
        %573 = vmatpush1.msra.mxu0 0.0
        %574 = vmatprep.subr.mxu0 0.0
        %575 = vmatpush1.msra.mxu0 0.0
        %576 = vmatprep.subr.mxu0 0.0
        %577 = vmatpush1.msra.mxu0 0.0
        %578 = vmatprep.subr.mxu0 0.0
        %579 = vmatpush1.msra.mxu0 0.0
        %580 = vmatprep.subr.mxu0 0.0
        %581 = vmatpush1.msra.mxu0 0.0
        %582 = vmatprep.subr.mxu0 0.0
        %583 = vmatpush1.msra.mxu0 0.0
        %584 = vmatprep.subr.mxu0 0.0
        %585 = vmatpush1.msra.mxu0 0.0
        %586 = vmatprep.subr.mxu0 0.0
        %587 = vmatpush1.msra.mxu0 0.0
        %588 = vmatprep.subr.mxu0 0.0
        %589 = vmatpush1.msra.mxu0 0.0
        %590 = vmatprep.subr.mxu0 0.0
        %591 = vmatpush1.msra.mxu0 0.0
        %592 = vmatprep.subr.mxu0 0.0
        %593 = vmatpush1.msra.mxu0 0.0
        %594 = vmatprep.subr.mxu0 0.0
        %595 = vmatpush1.msra.mxu0 0.0
        %596 = vmatprep.subr.mxu0 0.0
        %597 = vmatpush1.msra.mxu0 0.0
        %598 = vmatprep.subr.mxu0 0.0
        %599 = vmatpush1.msra.mxu0 0.0
        %600 = vmatprep.subr.mxu0 0.0
        %601 = vmatpush1.msra.mxu0 0.0
        %602 = vmatprep.subr.mxu0 0.0
        %603 = vmatpush1.msra.mxu0 0.0
        %604 = vmatprep.subr.mxu0 0.0
        %605 = vmatpush1.msra.mxu0 0.0
        %606 = vmatprep.subr.mxu0 0.0
        %607 = vmatpush1.msra.mxu0 0.0
        %608 = vmatprep.subr.mxu0 0.0
        %609 = vmatpush1.msra.mxu0 0.0
        %610 = vmatprep.subr.mxu0 0.0
        %611 = vmatpush1.msra.mxu0 0.0
        %612 = vmatprep.subr.mxu0 0.0
        %613 = vmatpush1.msra.mxu0 0.0
        %614 = vmatprep.subr.mxu0 0.0
        %615 = vmatpush1.msra.mxu0 0.0
        %616 = vmatprep.subr.mxu0 0.0
        %617 = vmatpush1.msra.mxu0 0.0
        %618 = vmatprep.subr.mxu0 0.0
        %619 = vmatpush1.msra.mxu0 0.0
        %620 = vmatprep.mubr.f32.mxu0 0.0
        %621 = vmatmul.mubr.f32.gmra.mrb[0].mxu0 %v545
        %v622 = vpop.f32.mrb[0].mxu0
        %v623 = vadd.f32 %v526, %v622
        %v624 = vpop.f32.mrb[0].mxu0
        %v625 = vadd.f32 %v526, %v624
        %626 = vmatprep.mubr.f32.mxu0 0.0
        %627 = vmatmul.mubr.f32.gmra.mrb[0].mxu0 %v548
        %v628 = vpop.f32.mrb[0].mxu0
        %v629 = vadd.f32 %v531, %v628
        %v630 = vpop.f32.mrb[0].mxu0
        %v631 = vadd.f32 %v531, %v630
        %632 = vmatprep.mubr.f32.mxu0 0.0
        %633 = vmatmul.mubr.f32.gmra.mrb[0].mxu0 %v551
        %v634 = vpop.f32.mrb[0].mxu0
        %v635 = vadd.f32 %v536, %v634
        %v636 = vpop.f32.mrb[0].mxu0
        %v637 = vadd.f32 %v536, %v636
        %638 = vmatprep.mubr.f32.mxu0 0.0
        %639 = vmatmul.mubr.f32.gmra.mrb[0].mxu0 %v554
        %v640 = vpop.f32.mrb[0].mxu0
        %v641 = vadd.f32 %v541, %v640
        %v642 = vpop.f32.mrb[0].mxu0
        %v643 = vadd.f32 %v541, %v642
        %644 = vdwg.mxu0
        %645 = vmatprep.subr.mxu0 %v502
        %646 = vmatpush1.msra.mxu0 %v501
        %647 = vmatprep.subr.mxu0 %v506
        %648 = vmatpush1.msra.mxu0 %v505
        %649 = vmatprep.subr.mxu0 %v510
        %650 = vmatpush1.msra.mxu0 %v509
        %651 = vmatprep.subr.mxu0 %v514
        %652 = vmatpush1.msra.mxu0 %v513
        %653 = vmatprep.subr.mxu0 0.0
        %654 = vmatpush1.msra.mxu0 0.0
        %655 = vmatprep.subr.mxu0 0.0
        %656 = vmatpush1.msra.mxu0 0.0
        %657 = vmatprep.subr.mxu0 0.0
        %658 = vmatpush1.msra.mxu0 0.0
        %659 = vmatprep.subr.mxu0 0.0
        %660 = vmatpush1.msra.mxu0 0.0
        %661 = vmatprep.subr.mxu0 0.0
        %662 = vmatpush1.msra.mxu0 0.0
        %663 = vmatprep.subr.mxu0 0.0
        %664 = vmatpush1.msra.mxu0 0.0
        %665 = vmatprep.subr.mxu0 0.0
        %666 = vmatpush1.msra.mxu0 0.0
        %667 = vmatprep.subr.mxu0 0.0
        %668 = vmatpush1.msra.mxu0 0.0
        %669 = vmatprep.subr.mxu0 0.0
        %670 = vmatpush1.msra.mxu0 0.0
        %671 = vmatprep.subr.mxu0 0.0
        %672 = vmatpush1.msra.mxu0 0.0
        %673 = vmatprep.subr.mxu0 0.0
        %674 = vmatpush1.msra.mxu0 0.0
        %675 = vmatprep.subr.mxu0 0.0
        %676 = vmatpush1.msra.mxu0 0.0
        %677 = vmatprep.subr.mxu0 0.0
        %678 = vmatpush1.msra.mxu0 0.0
        %679 = vmatprep.subr.mxu0 0.0
        %680 = vmatpush1.msra.mxu0 0.0
        %681 = vmatprep.subr.mxu0 0.0
        %682 = vmatpush1.msra.mxu0 0.0
        %683 = vmatprep.subr.mxu0 0.0
        %684 = vmatpush1.msra.mxu0 0.0
        %685 = vmatprep.subr.mxu0 0.0
        %686 = vmatpush1.msra.mxu0 0.0
        %687 = vmatprep.subr.mxu0 0.0
        %688 = vmatpush1.msra.mxu0 0.0
        %689 = vmatprep.subr.mxu0 0.0
        %690 = vmatpush1.msra.mxu0 0.0
        %691 = vmatprep.subr.mxu0 0.0
        %692 = vmatpush1.msra.mxu0 0.0
        %693 = vmatprep.subr.mxu0 0.0
        %694 = vmatpush1.msra.mxu0 0.0
        %695 = vmatprep.subr.mxu0 0.0
        %696 = vmatpush1.msra.mxu0 0.0
        %697 = vmatprep.subr.mxu0 0.0
        %698 = vmatpush1.msra.mxu0 0.0
        %699 = vmatprep.subr.mxu0 0.0
        %700 = vmatpush1.msra.mxu0 0.0
        %701 = vmatprep.subr.mxu0 0.0
        %702 = vmatpush1.msra.mxu0 0.0
        %703 = vmatprep.subr.mxu0 0.0
        %704 = vmatpush1.msra.mxu0 0.0
        %705 = vmatprep.subr.mxu0 0.0
        %706 = vmatpush1.msra.mxu0 0.0
        %707 = vmatprep.subr.mxu0 0.0
        %708 = vmatpush1.msra.mxu0 0.0
        %709 = vmatprep.mubr.f32.mxu0 0.0
        %710 = vmatmul.mubr.f32.gmra.mrb[0].mxu0 %v545
        %v711 = vpop.f32.mrb[0].mxu0
        %v712 = vadd.f32 %v526, %v711
        %v713 = vpop.f32.mrb[0].mxu0
        %v714 = vadd.f32 %v526, %v713
        %715 = vmatprep.mubr.f32.mxu0 0.0
        %716 = vmatmul.mubr.f32.gmra.mrb[0].mxu0 %v548
        %v717 = vpop.f32.mrb[0].mxu0
        %v718 = vadd.f32 %v531, %v717
        %v719 = vpop.f32.mrb[0].mxu0
        %v720 = vadd.f32 %v531, %v719
        %721 = vmatprep.mubr.f32.mxu0 0.0
        %722 = vmatmul.mubr.f32.gmra.mrb[0].mxu0 %v551
        %v723 = vpop.f32.mrb[0].mxu0
        %v724 = vadd.f32 %v536, %v723
        %v725 = vpop.f32.mrb[0].mxu0
        %v726 = vadd.f32 %v536, %v725
        %727 = vmatprep.mubr.f32.mxu0 0.0
        %728 = vmatmul.mubr.f32.gmra.mrb[0].mxu0 %v554
        %v729 = vpop.f32.mrb[0].mxu0
        %v730 = vadd.f32 %v541, %v729
        %v731 = vpop.f32.mrb[0].mxu0
        %v732 = vadd.f32 %v541, %v731
        %733 = vdwg.mxu0
        %v734 = vmax.f32 %v623, 0.0
        %v735 = vmax.f32 %v625, 0.0
        %v736 = vmax.f32 %v712, 0.0
        %v737 = vmax.f32 %v714, 0.0
        %v738 = vmax.f32 %v629, 0.0
        %v739 = vmax.f32 %v631, 0.0
        %v740 = vmax.f32 %v718, 0.0
        %v741 = vmax.f32 %v720, 0.0
        %v742 = vmax.f32 %v635, 0.0
        %v743 = vmax.f32 %v637, 0.0
        %v744 = vmax.f32 %v724, 0.0
        %v745 = vmax.f32 %v726, 0.0
        %v746 = vmax.f32 %v641, 0.0
        %v747 = vmax.f32 %v643, 0.0
        %v748 = vmax.f32 %v730, 0.0
        %v749 = vmax.f32 %v732, 0.0
        %v750 = vpack.c.bf16 %v738, %v734
        %v751 = vpack.c.bf16 %v739, %v735
        %v752 = vpack.c.bf16 %v740, %v736
        %v753 = vpack.c.bf16 %v741, %v737
        %v754 = vpack.c.bf16 %v746, %v742
        %v755 = vpack.c.bf16 %v747, %v743
        %v756 = vpack.c.bf16 %v748, %v744
        %v757 = vpack.c.bf16 %v749, %v745
        %v766 = vunpack.c.l.b16 %v750
        %v767 = vunpack.c.l.b16 %v751
        %v768 = vunpack.c.l.b16 %v752
        %v769 = vunpack.c.l.b16 %v753
        %v770 = vunpack.c.h.b16 %v750
        %v771 = vunpack.c.h.b16 %v751
        %v772 = vunpack.c.h.b16 %v752
        %v773 = vunpack.c.h.b16 %v753
        %v774 = vunpack.c.l.b16 %v754
        %v775 = vunpack.c.l.b16 %v755
        %v776 = vunpack.c.l.b16 %v756
        %v777 = vunpack.c.l.b16 %v757
        %v778 = vunpack.c.h.b16 %v754
        %v779 = vunpack.c.h.b16 %v755
        %v780 = vunpack.c.h.b16 %v756
        %v781 = vunpack.c.h.b16 %v757
        %v782 = vpack.c.b16 %v767, %v766
        %v783 = vpack.c.b16 %v769, %v768
        %v784 = vpack.c.b16 %v771, %v770
        %v785 = vpack.c.b16 %v773, %v772
        %v786 = vpack.c.b16 %v775, %v774
        %v787 = vpack.c.b16 %v777, %v776
        %v788 = vpack.c.b16 %v779, %v778
        %v789 = vpack.c.b16 %v781, %v780
        %798 = vst [vmem:[%s253] sm:$0xff] %v782
        %799 = vst [vmem:[%s253 + $0x8] sm:$0xff] %v783
        %800 = vst [vmem:[%s253 + $0x10] sm:$0xff] %v784
        %801 = vst [vmem:[%s253 + $0x18] sm:$0xff] %v785
        %802 = vst [vmem:[%s253 + $0x20] sm:$0xff] %v786
        %803 = vst [vmem:[%s253 + $0x28] sm:$0xff] %v787
        %804 = vst [vmem:[%s253 + $0x30] sm:$0xff] %v788
        %805 = vst [vmem:[%s253 + $0x38] sm:$0xff] %v789
        %s806 = sand.u32 %s151, 1
        %s807 = sand.u32 %s151, 1
        %s808 = smul.addr %s807, 64
        %s809 = scalar_lea.vmem [#allocation4], %s808
        // Predicated region
        $region45: #{stereo_pose_net_forward.3} parent=39 // pred_check
          %p810 = pneg %p161
        $region46: #{stereo_pose_net_forward.3} parent=39 // pred_check_branch
          %812 = sbr.rel (%p810) target = $region48
        $region47: #{stereo_pose_net_forward.3} parent=39 // pred_region
          %s813 = smul.u32 4, %s22
          %s814 = smul.addr %s21, 32
          %s815 = sadd.s32 %s813, %s814
          %s816 = smul.addr %s815, 4
          %s817 = scalar_lea.vmem %s5, %s816
          // Predicated region
          $region49: #{stereo_pose_net_forward.3} parent=47 // pred_check
            _
          $region50: #{stereo_pose_net_forward.3} parent=47 // pred_check_branch
            %819 = sbr.rel (0) target = $region52
          $region51: #{stereo_pose_net_forward.3} parent=47 // pred_region
            // Predicated region
            $region53: #{stereo_pose_net_forward.3} parent=51 // pred_check
              _
            $region54: #{stereo_pose_net_forward.3} parent=51 // pred_check_branch
              %821 = sbr.rel (0) target = $region56
            $region55: #{stereo_pose_net_forward.3} parent=51 // pred_region
              loop: start=0, step=1, limit=1
              $region57: #{stereo_pose_net_forward.3} parent=55 // loop_pre_header
                _
              $region58: #{stereo_pose_net_forward.3} parent=55 // loop_header
                %s823 = sphi 0, %s827
                %p824 = scmp.ge.s32.totalorder %s823, 1
                %s828 = sphi %s809, %s809
                %s829 = sphi %s817, %s817
              $region59: #{stereo_pose_net_forward.3} parent=55 // loop_header_branch
                %826 = sbr.rel (%p824) target = $region63
              $region60: #{stereo_pose_net_forward.3} parent=55 // loop_body
                %v830 = vld [vmem:[%s828] sm:$0xff]
                %831 = vst [vmem:[%s829] sm:$0xff] %v830
                %v832 = vld [vmem:[%s828 + $0x8] sm:$0xff]
                %833 = vst [vmem:[%s829 + $0x8] sm:$0xff] %v832
                %v834 = vld [vmem:[%s828 + $0x10] sm:$0xff]
                %835 = vst [vmem:[%s829 + $0x20] sm:$0xff] %v834
                %v836 = vld [vmem:[%s828 + $0x18] sm:$0xff]
                %837 = vst [vmem:[%s829 + $0x28] sm:$0xff] %v836
                %v838 = vld [vmem:[%s828 + $0x20] sm:$0xff]
                %839 = vst [vmem:[%s829 + $0x40] sm:$0xff] %v838
                %v840 = vld [vmem:[%s828 + $0x28] sm:$0xff]
                %841 = vst [vmem:[%s829 + $0x48] sm:$0xff] %v840
                %v842 = vld [vmem:[%s828 + $0x30] sm:$0xff]
                %843 = vst [vmem:[%s829 + $0x60] sm:$0xff] %v842
                %v844 = vld [vmem:[%s828 + $0x38] sm:$0xff]
                %845 = vst [vmem:[%s829 + $0x68] sm:$0xff] %v844
              $region61: #{stereo_pose_net_forward.3} parent=55 // loop_footer
                %s827 = sadd.s32 1, %s823
              $region62: #{stereo_pose_net_forward.3} parent=55 // loop_footer_branch
                %822 = sbr.rel target = $region58
              $region63: #{stereo_pose_net_forward.3} parent=55 // loop_exit
                _
            $region56: #{stereo_pose_net_forward.3} parent=51 // pred_fallthru
              _
            // Predicated region
            $region64: #{stereo_pose_net_forward.3} parent=51 // pred_check
              _
            $region65: #{stereo_pose_net_forward.3} parent=51 // pred_check_branch
              %847 = sbr.rel target = $region67
            $region66: #{stereo_pose_net_forward.3} parent=51 // pred_region
              _
            $region67: #{stereo_pose_net_forward.3} parent=51 // pred_fallthru
              _
          $region52: #{stereo_pose_net_forward.3} parent=47 // pred_fallthru
            _
          %848 = vnop
        $region48: #{stereo_pose_net_forward.3} parent=39 // pred_fallthru
          _
      $region40: #{stereo_pose_net_forward.3} parent=5 // pred_fallthru
        _
      %p849 = scmp.le.s32.totalorder 2, %s12
      // Predicated region
      $region68: #{stereo_pose_net_forward.3} parent=5 // pred_check
        %p850 = pneg %p849
      $region69: #{stereo_pose_net_forward.3} parent=5 // pred_check_branch
        %852 = sbr.rel (%p850) target = $region71
      $region70: #{stereo_pose_net_forward.3} parent=5 // pred_region
        %s853 = ssub.s32 %s12, 2
        // Predicated region
        $region72: #{stereo_pose_net_forward.3} parent=70 // pred_check
          %p854 = pneg %p167
        $region73: #{stereo_pose_net_forward.3} parent=70 // pred_check_branch
          %856 = sbr.rel (%p854) target = $region75
        $region74: #{stereo_pose_net_forward.3} parent=70 // pred_region
          %s857 = sand.u32 %s152, 1
          %s858 = sand.u32 %s152, 1
          %s859 = smul.addr %s858, 64
          %s860 = scalar_lea.vmem [#allocation4], %s859
        $region75: #{stereo_pose_net_forward.3} parent=70 // pred_fallthru
          _
      $region71: #{stereo_pose_net_forward.3} parent=5 // pred_fallthru
        _
    $region6: #{stereo_pose_net_forward.3} parent=1 // loop_footer
      %s16 = sadd.s32 1, %s12
    $region7: #{stereo_pose_net_forward.3} parent=1 // loop_footer_branch
      %11 = sbr.rel target = $region3
    $region8: #{stereo_pose_net_forward.3} parent=1 // loop_exit
      _
    %861 = vsyncpa [#allocation3], 1
    %s862 = scalar_lea.sflag [#allocation3], 1
    %863 = vsyncpa %s862, 1

// kernel: stereo_pose_net_forward.4
$region0: #{stereo_pose_net_forward.4}
  #allocation0 [shape = 'u32[]', space=smem, size = 0x4, offset = 0x4, fixed_abs, tag = 'smem constant byte address 0x4 - core index']
  #allocation1 [shape = 'u32[144,128]{1,0:T(1,128)}', space=vmem, size = 0x12000, scoped, tag = 'internal scratch']
  #allocation2 [shape = 'f32[1,1]{1,0:T(1,128)S(1)}', space=vmem, size = 0x200, scoped, tag = 'scoped memory for stereo_pose_net_forward.4']
  %s0 = inlined_call_operand.vmem [shape: bf16[4,32,1024], index: 0, kind: input, shape index: {}]
  %s1 = inlined_call_operand.vmem [shape: bf16[4,8,32,1024], index: 1, kind: input, shape index: {}]
  %s2 = inlined_call_operand.vmem [shape: f32[8,32], index: 2, kind: input, shape index: {}]
  %s3 = inlined_call_operand.vmem [shape: f32[8,1], index: 3, kind: input, shape index: {}]
  %s4 = inlined_call_operand.vmem [shape: f32[8,1], index: 4, kind: input, shape index: {}]
  %s5 = inlined_call_operand.<no memory space> [shape: f32[1,1], index: 5, kind: input, shape index: {}]
  %s6 = inlined_call_operand.vmem [shape: f32[4,8,1024], index: 6, kind: output, shape index: {}]
  %s7 = sld [smem:[#allocation0]]
  $region103: #{stereo_pose_net_forward.4} parent=0
    _
  %s9 = ssub.s32 1, %s7
  %s10 = scalar_select 0, %s9, %s7
  %v11 = vstv %s5
  %12 = vst [vmem:[#allocation2] sm:$0x1] %v11
  $region1: #{stereo_pose_net_forward.4} parent=0
    #allocation3 [shape = 'u8[65536]{0}', space=vmem, size = 0x10000, scoped, tag = 'input window, operand 0']
    #allocation4 [shape = 'u8[524288]{0}', space=vmem, size = 0x80000, scoped, tag = 'input window, operand 1']
    loop: start=0, step=1, limit=10
    $region2: #{stereo_pose_net_forward.4} parent=1 // loop_pre_header
      _
    $region3: #{stereo_pose_net_forward.4} parent=1 // loop_header
      %s14 = sphi 0, %s18
      %p15 = scmp.ge.s32.totalorder %s14, 10
      %s21 = sphi 0, %s33
      %s22 = sphi 0, %s29
      %s23 = sphi 0, %s21
      %s24 = sphi 0, %s22
      %s25 = sphi 0, %s23
      %s26 = sphi 0, %s24
      %s38 = sphi 0, %s40
      %s41 = sphi 0, %s38
      %s42 = sphi 0, %s41
      %s58 = sphi 0, %s42
      %s66 = sphi 0, %s68
      %s69 = sphi 0, %s66
      %s70 = sphi 0, %s69
      %s86 = sphi 0, %s70
      %s90 = sphi 0, %s90
      %s92 = sphi 0, %s90
      %s93 = sphi 0, %s92
      %s107 = sphi 0, %s93
      %s111 = sphi 0, %s111
      %s113 = sphi 0, %s111
      %s114 = sphi 0, %s113
      %s128 = sphi 0, %s114
      %s132 = sphi 0, %s132
      %s134 = sphi 0, %s132
      %s135 = sphi 0, %s134
      %s149 = sphi 0, %s135
      %s153 = sphi 0, %s153
      %s155 = sphi 0, %s153
      %s156 = sphi 0, %s155
      %s170 = sphi 0, %s156
      %s178 = sphi 0, %s180
      %s181 = sphi 0, %s178
      %s182 = sphi 0, %s181
      %s198 = sphi 0, %s182
    $region4: #{stereo_pose_net_forward.4} parent=1 // loop_header_branch
      %17 = sbr.rel (%p15) target = $region8
    $region5: #{stereo_pose_net_forward.4} parent=1 // loop_body
      %s19 = ssub.s32 %s14, 1
      %s20 = ssub.s32 %s14, 2
      %s27 = sadd.s32 1, %s22
      %p28 = scmp.ge.s32.totalorder %s27, 2
      %s29 = scalar_select %p28, 0, %s27
      %s30 = sadd.s32 1, %s21
      %s31 = scalar_select %p28, %s30, %s21
      %p32 = scmp.ge.s32.totalorder %s31, 4
      %s33 = scalar_select %p32, 0, %s31
      %s34 = ssub.s32 %s21, %s33
      %s35 = ssub.s32 %s22, %s29
      %s36 = sor.u32 %s34, %s35
      %p37 = scmp.eq.s32.totalorder %s36, 0
      %s39 = sadd.s32 %s38, 1
      %s40 = scalar_select %p37, %s38, %s39
      %p43 = pneg %p37
      %p44 = scmp.eq.s32.totalorder %s14, 7
      %p45 = por %p43, %p44
      %p46 = scmp.ne.s32.totalorder %s38, %s41
      %p47 = scmp.eq.s32.totalorder %s14, 0
      %p48 = por %p46, %p47
      %p49 = scmp.ne.s32.totalorder %s38, %s41
      %p50 = scmp.eq.s32.totalorder %s19, 7
      %p51 = por %p49, %p50
      %p52 = scmp.ne.s32.totalorder %s41, %s42
      %p53 = scmp.eq.s32.totalorder %s19, 0
      %p54 = por %p52, %p53
      %p55 = scmp.ne.s32.totalorder %s41, %s42
      %p56 = scmp.eq.s32.totalorder %s20, 7
      %p57 = por %p55, %p56
      %p59 = scmp.ne.s32.totalorder %s42, %s58
      %p60 = scmp.eq.s32.totalorder %s20, 0
      %p61 = por %p59, %p60
      %s62 = ssub.s32 %s21, %s33
      %s63 = ssub.s32 %s22, %s29
      %s64 = sor.u32 %s62, %s63
      %p65 = scmp.eq.s32.totalorder %s64, 0
      %s67 = sadd.s32 %s66, 1
      %s68 = scalar_select %p65, %s66, %s67
      %p71 = pneg %p65
      %p72 = scmp.eq.s32.totalorder %s14, 7
      %p73 = por %p71, %p72
      %p74 = scmp.ne.s32.totalorder %s66, %s69
      %p75 = scmp.eq.s32.totalorder %s14, 0
      %p76 = por %p74, %p75
      %p77 = scmp.ne.s32.totalorder %s66, %s69
      %p78 = scmp.eq.s32.totalorder %s19, 7
      %p79 = por %p77, %p78
      %p80 = scmp.ne.s32.totalorder %s69, %s70
      %p81 = scmp.eq.s32.totalorder %s19, 0
      %p82 = por %p80, %p81
      %p83 = scmp.ne.s32.totalorder %s69, %s70
      %p84 = scmp.eq.s32.totalorder %s20, 7
      %p85 = por %p83, %p84
      %p87 = scmp.ne.s32.totalorder %s70, %s86
      %p88 = scmp.eq.s32.totalorder %s20, 0
      %p89 = por %p87, %p88
      %s91 = sadd.s32 %s90, 1
      %p94 = scmp.eq.s32.totalorder %s14, 7
      %p95 = scmp.ne.s32.totalorder %s90, %s92
      %p96 = scmp.eq.s32.totalorder %s14, 0
      %p97 = por %p95, %p96
      %p98 = scmp.ne.s32.totalorder %s90, %s92
      %p99 = scmp.eq.s32.totalorder %s19, 7
      %p100 = por %p98, %p99
      %p101 = scmp.ne.s32.totalorder %s92, %s93
      %p102 = scmp.eq.s32.totalorder %s19, 0
      %p103 = por %p101, %p102
      %p104 = scmp.ne.s32.totalorder %s92, %s93
      %p105 = scmp.eq.s32.totalorder %s20, 7
      %p106 = por %p104, %p105
      %p108 = scmp.ne.s32.totalorder %s93, %s107
      %p109 = scmp.eq.s32.totalorder %s20, 0
      %p110 = por %p108, %p109
      %s112 = sadd.s32 %s111, 1
      %p115 = scmp.eq.s32.totalorder %s14, 7
      %p116 = scmp.ne.s32.totalorder %s111, %s113
      %p117 = scmp.eq.s32.totalorder %s14, 0
      %p118 = por %p116, %p117
      %p119 = scmp.ne.s32.totalorder %s111, %s113
      %p120 = scmp.eq.s32.totalorder %s19, 7
      %p121 = por %p119, %p120
      %p122 = scmp.ne.s32.totalorder %s113, %s114
      %p123 = scmp.eq.s32.totalorder %s19, 0
      %p124 = por %p122, %p123
      %p125 = scmp.ne.s32.totalorder %s113, %s114
      %p126 = scmp.eq.s32.totalorder %s20, 7
      %p127 = por %p125, %p126
      %p129 = scmp.ne.s32.totalorder %s114, %s128
      %p130 = scmp.eq.s32.totalorder %s20, 0
      %p131 = por %p129, %p130
      %s133 = sadd.s32 %s132, 1
      %p136 = scmp.eq.s32.totalorder %s14, 7
      %p137 = scmp.ne.s32.totalorder %s132, %s134
      %p138 = scmp.eq.s32.totalorder %s14, 0
      %p139 = por %p137, %p138
      %p140 = scmp.ne.s32.totalorder %s132, %s134
      %p141 = scmp.eq.s32.totalorder %s19, 7
      %p142 = por %p140, %p141
      %p143 = scmp.ne.s32.totalorder %s134, %s135
      %p144 = scmp.eq.s32.totalorder %s19, 0
      %p145 = por %p143, %p144
      %p146 = scmp.ne.s32.totalorder %s134, %s135
      %p147 = scmp.eq.s32.totalorder %s20, 7
      %p148 = por %p146, %p147
      %p150 = scmp.ne.s32.totalorder %s135, %s149
      %p151 = scmp.eq.s32.totalorder %s20, 0
      %p152 = por %p150, %p151
      %s154 = sadd.s32 %s153, 1
      %p157 = scmp.eq.s32.totalorder %s14, 7
      %p158 = scmp.ne.s32.totalorder %s153, %s155
      %p159 = scmp.eq.s32.totalorder %s14, 0
      %p160 = por %p158, %p159
      %p161 = scmp.ne.s32.totalorder %s153, %s155
      %p162 = scmp.eq.s32.totalorder %s19, 7
      %p163 = por %p161, %p162
      %p164 = scmp.ne.s32.totalorder %s155, %s156
      %p165 = scmp.eq.s32.totalorder %s19, 0
      %p166 = por %p164, %p165
      %p167 = scmp.ne.s32.totalorder %s155, %s156
      %p168 = scmp.eq.s32.totalorder %s20, 7
      %p169 = por %p167, %p168
      %p171 = scmp.ne.s32.totalorder %s156, %s170
      %p172 = scmp.eq.s32.totalorder %s20, 0
      %p173 = por %p171, %p172
      %s174 = ssub.s32 %s21, %s33
      %s175 = ssub.s32 %s22, %s29
      %s176 = sor.u32 %s174, %s175
      %p177 = scmp.eq.s32.totalorder %s176, 0
      %s179 = sadd.s32 %s178, 1
      %s180 = scalar_select %p177, %s178, %s179
      %p183 = pneg %p177
      %p184 = scmp.eq.s32.totalorder %s14, 7
      %p185 = por %p183, %p184
      %p186 = scmp.ne.s32.totalorder %s178, %s181
      %p187 = scmp.eq.s32.totalorder %s14, 0
      %p188 = por %p186, %p187
      %p189 = scmp.ne.s32.totalorder %s178, %s181
      %p190 = scmp.eq.s32.totalorder %s19, 7
      %p191 = por %p189, %p190
      %p192 = scmp.ne.s32.totalorder %s181, %s182
      %p193 = scmp.eq.s32.totalorder %s19, 0
      %p194 = por %p192, %p193
      %p195 = scmp.ne.s32.totalorder %s181, %s182
      %p196 = scmp.eq.s32.totalorder %s20, 7
      %p197 = por %p195, %p196
      %p199 = scmp.ne.s32.totalorder %s182, %s198
      %p200 = scmp.eq.s32.totalorder %s20, 0
      %p201 = por %p199, %p200
      %p202 = scmp.le.s32.totalorder 1, %s14
      %p203 = scmp.lt.s32.totalorder %s14, 9
      %p204 = pnand %p202, %p203
      %p205 = pneg %p204
      // Predicated region
      $region9: #{stereo_pose_net_forward.4} parent=5 // pred_check
        _
      $region10: #{stereo_pose_net_forward.4} parent=5 // pred_check_branch
        %207 = sbr.rel (%p204) target = $region12
      $region11: #{stereo_pose_net_forward.4} parent=5 // pred_region
        %s208 = ssub.s32 %s14, 1
        // Predicated region
        $region13: #{stereo_pose_net_forward.4} parent=11 // pred_check
          %p209 = pneg %p103
        $region14: #{stereo_pose_net_forward.4} parent=11 // pred_check_branch
          %211 = sbr.rel (%p209) target = $region16
        $region15: #{stereo_pose_net_forward.4} parent=11 // pred_region
          _
        $region16: #{stereo_pose_net_forward.4} parent=11 // pred_fallthru
          _
        // Predicated region
        $region17: #{stereo_pose_net_forward.4} parent=11 // pred_check
          %p212 = pneg %p124
        $region18: #{stereo_pose_net_forward.4} parent=11 // pred_check_branch
          %214 = sbr.rel (%p212) target = $region20
        $region19: #{stereo_pose_net_forward.4} parent=11 // pred_region
          _
        $region20: #{stereo_pose_net_forward.4} parent=11 // pred_fallthru
          _
        // Predicated region
        $region21: #{stereo_pose_net_forward.4} parent=11 // pred_check
          %p215 = pneg %p145
        $region22: #{stereo_pose_net_forward.4} parent=11 // pred_check_branch
          %217 = sbr.rel (%p215) target = $region24
        $region23: #{stereo_pose_net_forward.4} parent=11 // pred_region
          _
        $region24: #{stereo_pose_net_forward.4} parent=11 // pred_fallthru
          _
        // Predicated region
        $region25: #{stereo_pose_net_forward.4} parent=11 // pred_check
          %p218 = pneg %p166
        $region26: #{stereo_pose_net_forward.4} parent=11 // pred_check_branch
          %220 = sbr.rel (%p218) target = $region28
        $region27: #{stereo_pose_net_forward.4} parent=11 // pred_region
          _
        $region28: #{stereo_pose_net_forward.4} parent=11 // pred_fallthru
          _
      $region12: #{stereo_pose_net_forward.4} parent=5 // pred_fallthru
        _
      %p221 = scmp.lt.s32.totalorder %s14, 8
      // Predicated region
      $region29: #{stereo_pose_net_forward.4} parent=5 // pred_check
        %p222 = pneg %p221
      $region30: #{stereo_pose_net_forward.4} parent=5 // pred_check_branch
        %224 = sbr.rel (%p222) target = $region32
      $region31: #{stereo_pose_net_forward.4} parent=5 // pred_region
        // Predicated region
        $region33: #{stereo_pose_net_forward.4} parent=31 // pred_check
          %p225 = pneg %p48
        $region34: #{stereo_pose_net_forward.4} parent=31 // pred_check_branch
          %227 = sbr.rel (%p225) target = $region36
        $region35: #{stereo_pose_net_forward.4} parent=31 // pred_region
          %s228 = sand.u32 %s38, 1
          %s229 = sand.u32 %s38, 1
          %s230 = smul.addr %s229, 64
          %s231 = scalar_lea.vmem [#allocation3], %s230
          %s232 = smul.u32 4, %s22
          %s233 = smul.addr %s21, 32
          %s234 = sadd.s32 %s232, %s233
          %s235 = smul.addr %s234, 4
          %s236 = scalar_lea.vmem %s0, %s235
          // Predicated region
          $region37: #{stereo_pose_net_forward.4} parent=35 // pred_check
            _
          $region38: #{stereo_pose_net_forward.4} parent=35 // pred_check_branch
            %238 = sbr.rel (0) target = $region40
          $region39: #{stereo_pose_net_forward.4} parent=35 // pred_region
            // Predicated region
            $region41: #{stereo_pose_net_forward.4} parent=39 // pred_check
              _
            $region42: #{stereo_pose_net_forward.4} parent=39 // pred_check_branch
              %240 = sbr.rel (0) target = $region44
            $region43: #{stereo_pose_net_forward.4} parent=39 // pred_region
              loop: start=0, step=1, limit=1
              $region45: #{stereo_pose_net_forward.4} parent=43 // loop_pre_header
                _
              $region46: #{stereo_pose_net_forward.4} parent=43 // loop_header
                %s242 = sphi 0, %s246
                %p243 = scmp.ge.s32.totalorder %s242, 1
                %s247 = sphi %s236, %s236
                %s248 = sphi %s231, %s231
              $region47: #{stereo_pose_net_forward.4} parent=43 // loop_header_branch
                %245 = sbr.rel (%p243) target = $region51
              $region48: #{stereo_pose_net_forward.4} parent=43 // loop_body
                %v249 = vld [vmem:[%s247] sm:$0xff]
                %250 = vst [vmem:[%s248] sm:$0xff] %v249
                %v251 = vld [vmem:[%s247 + $0x8] sm:$0xff]
                %252 = vst [vmem:[%s248 + $0x8] sm:$0xff] %v251
                %v253 = vld [vmem:[%s247 + $0x20] sm:$0xff]
                %254 = vst [vmem:[%s248 + $0x10] sm:$0xff] %v253
                %v255 = vld [vmem:[%s247 + $0x28] sm:$0xff]
                %256 = vst [vmem:[%s248 + $0x18] sm:$0xff] %v255
                %v257 = vld [vmem:[%s247 + $0x40] sm:$0xff]
                %258 = vst [vmem:[%s248 + $0x20] sm:$0xff] %v257
                %v259 = vld [vmem:[%s247 + $0x48] sm:$0xff]
                %260 = vst [vmem:[%s248 + $0x28] sm:$0xff] %v259
                %v261 = vld [vmem:[%s247 + $0x60] sm:$0xff]
                %262 = vst [vmem:[%s248 + $0x30] sm:$0xff] %v261
                %v263 = vld [vmem:[%s247 + $0x68] sm:$0xff]
                %264 = vst [vmem:[%s248 + $0x38] sm:$0xff] %v263
              $region49: #{stereo_pose_net_forward.4} parent=43 // loop_footer
                %s246 = sadd.s32 1, %s242
              $region50: #{stereo_pose_net_forward.4} parent=43 // loop_footer_branch
                %241 = sbr.rel target = $region46
              $region51: #{stereo_pose_net_forward.4} parent=43 // loop_exit
                _
            $region44: #{stereo_pose_net_forward.4} parent=39 // pred_fallthru
              _
            // Predicated region
            $region52: #{stereo_pose_net_forward.4} parent=39 // pred_check
              _
            $region53: #{stereo_pose_net_forward.4} parent=39 // pred_check_branch
              %266 = sbr.rel target = $region55
            $region54: #{stereo_pose_net_forward.4} parent=39 // pred_region
              _
            $region55: #{stereo_pose_net_forward.4} parent=39 // pred_fallthru
              _
          $region40: #{stereo_pose_net_forward.4} parent=35 // pred_fallthru
            _
          %267 = vnop
        $region36: #{stereo_pose_net_forward.4} parent=31 // pred_fallthru
          _
        // Predicated region
        $region56: #{stereo_pose_net_forward.4} parent=31 // pred_check
          %p268 = pneg %p76
        $region57: #{stereo_pose_net_forward.4} parent=31 // pred_check_branch
          %270 = sbr.rel (%p268) target = $region59
        $region58: #{stereo_pose_net_forward.4} parent=31 // pred_region
          %s271 = sand.u32 %s66, 1
          %s272 = sand.u32 %s66, 1
          %s273 = smul.addr %s272, 512
          %s274 = scalar_lea.vmem [#allocation4], %s273
          %s275 = smul.u32 4, %s22
          %s276 = smul.addr %s21, 256
          %s277 = sadd.s32 %s275, %s276
          %s278 = smul.addr %s277, 4
          %s279 = scalar_lea.vmem %s1, %s278
          // Predicated region
          $region60: #{stereo_pose_net_forward.4} parent=58 // pred_check
            _
          $region61: #{stereo_pose_net_forward.4} parent=58 // pred_check_branch
            %281 = sbr.rel (0) target = $region63
          $region62: #{stereo_pose_net_forward.4} parent=58 // pred_region
            // Predicated region
            $region64: #{stereo_pose_net_forward.4} parent=62 // pred_check
              _
            $region65: #{stereo_pose_net_forward.4} parent=62 // pred_check_branch
              %283 = sbr.rel (0) target = $region67
            $region66: #{stereo_pose_net_forward.4} parent=62 // pred_region
              loop: start=0, step=1, limit=1
              $region68: #{stereo_pose_net_forward.4} parent=66 // loop_pre_header
                _
              $region69: #{stereo_pose_net_forward.4} parent=66 // loop_header
                %s285 = sphi 0, %s289
                %p286 = scmp.ge.s32.totalorder %s285, 1
                %s290 = sphi %s279, %s279
                %s291 = sphi %s274, %s274
              $region70: #{stereo_pose_net_forward.4} parent=66 // loop_header_branch
                %288 = sbr.rel (%p286) target = $region74
              $region71: #{stereo_pose_net_forward.4} parent=66 // loop_body
                %v292 = vld [vmem:[%s290] sm:$0xff]
                %293 = vst [vmem:[%s291] sm:$0xff] %v292
                %v294 = vld [vmem:[%s290 + $0x8] sm:$0xff]
                %295 = vst [vmem:[%s291 + $0x8] sm:$0xff] %v294
                %v296 = vld [vmem:[%s290 + $0x20] sm:$0xff]
                %297 = vst [vmem:[%s291 + $0x10] sm:$0xff] %v296
                %v298 = vld [vmem:[%s290 + $0x28] sm:$0xff]
                %299 = vst [vmem:[%s291 + $0x18] sm:$0xff] %v298
                %v300 = vld [vmem:[%s290 + $0x40] sm:$0xff]
                %301 = vst [vmem:[%s291 + $0x20] sm:$0xff] %v300
                %v302 = vld [vmem:[%s290 + $0x48] sm:$0xff]
                %303 = vst [vmem:[%s291 + $0x28] sm:$0xff] %v302
                %v304 = vld [vmem:[%s290 + $0x60] sm:$0xff]
                %305 = vst [vmem:[%s291 + $0x30] sm:$0xff] %v304
                %v306 = vld [vmem:[%s290 + $0x68] sm:$0xff]
                %307 = vst [vmem:[%s291 + $0x38] sm:$0xff] %v306
                %v308 = vld [vmem:[%s290 + $0x80] sm:$0xff]
                %309 = vst [vmem:[%s291 + $0x40] sm:$0xff] %v308
                %v310 = vld [vmem:[%s290 + $0x88] sm:$0xff]
                %311 = vst [vmem:[%s291 + $0x48] sm:$0xff] %v310
                %v312 = vld [vmem:[%s290 + $0xa0] sm:$0xff]
                %313 = vst [vmem:[%s291 + $0x50] sm:$0xff] %v312
                %v314 = vld [vmem:[%s290 + $0xa8] sm:$0xff]
                %315 = vst [vmem:[%s291 + $0x58] sm:$0xff] %v314
                %v316 = vld [vmem:[%s290 + $0xc0] sm:$0xff]
                %317 = vst [vmem:[%s291 + $0x60] sm:$0xff] %v316
                %v318 = vld [vmem:[%s290 + $0xc8] sm:$0xff]
                %319 = vst [vmem:[%s291 + $0x68] sm:$0xff] %v318
                %v320 = vld [vmem:[%s290 + $0xe0] sm:$0xff]
                %321 = vst [vmem:[%s291 + $0x70] sm:$0xff] %v320
                %v322 = vld [vmem:[%s290 + $0xe8] sm:$0xff]
                %323 = vst [vmem:[%s291 + $0x78] sm:$0xff] %v322
                %v324 = vld [vmem:[%s290 + $0x100] sm:$0xff]
                %325 = vst [vmem:[%s291 + $0x80] sm:$0xff] %v324
                %v326 = vld [vmem:[%s290 + $0x108] sm:$0xff]
                %327 = vst [vmem:[%s291 + $0x88] sm:$0xff] %v326
                %v328 = vld [vmem:[%s290 + $0x120] sm:$0xff]
                %329 = vst [vmem:[%s291 + $0x90] sm:$0xff] %v328
                %v330 = vld [vmem:[%s290 + $0x128] sm:$0xff]
                %331 = vst [vmem:[%s291 + $0x98] sm:$0xff] %v330
                %v332 = vld [vmem:[%s290 + $0x140] sm:$0xff]
                %333 = vst [vmem:[%s291 + $0xa0] sm:$0xff] %v332
                %v334 = vld [vmem:[%s290 + $0x148] sm:$0xff]
                %335 = vst [vmem:[%s291 + $0xa8] sm:$0xff] %v334
                %v336 = vld [vmem:[%s290 + $0x160] sm:$0xff]
                %337 = vst [vmem:[%s291 + $0xb0] sm:$0xff] %v336
                %v338 = vld [vmem:[%s290 + $0x168] sm:$0xff]
                %339 = vst [vmem:[%s291 + $0xb8] sm:$0xff] %v338
                %v340 = vld [vmem:[%s290 + $0x180] sm:$0xff]
                %341 = vst [vmem:[%s291 + $0xc0] sm:$0xff] %v340
                %v342 = vld [vmem:[%s290 + $0x188] sm:$0xff]
                %343 = vst [vmem:[%s291 + $0xc8] sm:$0xff] %v342
                %v344 = vld [vmem:[%s290 + $0x1a0] sm:$0xff]
                %345 = vst [vmem:[%s291 + $0xd0] sm:$0xff] %v344
                %v346 = vld [vmem:[%s290 + $0x1a8] sm:$0xff]
                %347 = vst [vmem:[%s291 + $0xd8] sm:$0xff] %v346
                %v348 = vld [vmem:[%s290 + $0x1c0] sm:$0xff]
                %349 = vst [vmem:[%s291 + $0xe0] sm:$0xff] %v348
                %v350 = vld [vmem:[%s290 + $0x1c8] sm:$0xff]
                %351 = vst [vmem:[%s291 + $0xe8] sm:$0xff] %v350
                %v352 = vld [vmem:[%s290 + $0x1e0] sm:$0xff]
                %353 = vst [vmem:[%s291 + $0xf0] sm:$0xff] %v352
                %v354 = vld [vmem:[%s290 + $0x1e8] sm:$0xff]
                %355 = vst [vmem:[%s291 + $0xf8] sm:$0xff] %v354
                %v356 = vld [vmem:[%s290 + $0x200] sm:$0xff]
                %357 = vst [vmem:[%s291 + $0x100] sm:$0xff] %v356
                %v358 = vld [vmem:[%s290 + $0x208] sm:$0xff]
                %359 = vst [vmem:[%s291 + $0x108] sm:$0xff] %v358
                %v360 = vld [vmem:[%s290 + $0x220] sm:$0xff]
                %361 = vst [vmem:[%s291 + $0x110] sm:$0xff] %v360
                %v362 = vld [vmem:[%s290 + $0x228] sm:$0xff]
                %363 = vst [vmem:[%s291 + $0x118] sm:$0xff] %v362
                %v364 = vld [vmem:[%s290 + $0x240] sm:$0xff]
                %365 = vst [vmem:[%s291 + $0x120] sm:$0xff] %v364
                %v366 = vld [vmem:[%s290 + $0x248] sm:$0xff]
                %367 = vst [vmem:[%s291 + $0x128] sm:$0xff] %v366
                %v368 = vld [vmem:[%s290 + $0x260] sm:$0xff]
                %369 = vst [vmem:[%s291 + $0x130] sm:$0xff] %v368
                %v370 = vld [vmem:[%s290 + $0x268] sm:$0xff]
                %371 = vst [vmem:[%s291 + $0x138] sm:$0xff] %v370
                %v372 = vld [vmem:[%s290 + $0x280] sm:$0xff]
                %373 = vst [vmem:[%s291 + $0x140] sm:$0xff] %v372
                %v374 = vld [vmem:[%s290 + $0x288] sm:$0xff]
                %375 = vst [vmem:[%s291 + $0x148] sm:$0xff] %v374
                %v376 = vld [vmem:[%s290 + $0x2a0] sm:$0xff]
                %377 = vst [vmem:[%s291 + $0x150] sm:$0xff] %v376
                %v378 = vld [vmem:[%s290 + $0x2a8] sm:$0xff]
                %379 = vst [vmem:[%s291 + $0x158] sm:$0xff] %v378
                %v380 = vld [vmem:[%s290 + $0x2c0] sm:$0xff]
                %381 = vst [vmem:[%s291 + $0x160] sm:$0xff] %v380
                %v382 = vld [vmem:[%s290 + $0x2c8] sm:$0xff]
                %383 = vst [vmem:[%s291 + $0x168] sm:$0xff] %v382
                %v384 = vld [vmem:[%s290 + $0x2e0] sm:$0xff]
                %385 = vst [vmem:[%s291 + $0x170] sm:$0xff] %v384
                %v386 = vld [vmem:[%s290 + $0x2e8] sm:$0xff]
                %387 = vst [vmem:[%s291 + $0x178] sm:$0xff] %v386
                %v388 = vld [vmem:[%s290 + $0x300] sm:$0xff]
                %389 = vst [vmem:[%s291 + $0x180] sm:$0xff] %v388
                %v390 = vld [vmem:[%s290 + $0x308] sm:$0xff]
                %391 = vst [vmem:[%s291 + $0x188] sm:$0xff] %v390
                %v392 = vld [vmem:[%s290 + $0x320] sm:$0xff]
                %393 = vst [vmem:[%s291 + $0x190] sm:$0xff] %v392
                %v394 = vld [vmem:[%s290 + $0x328] sm:$0xff]
                %395 = vst [vmem:[%s291 + $0x198] sm:$0xff] %v394
                %v396 = vld [vmem:[%s290 + $0x340] sm:$0xff]
                %397 = vst [vmem:[%s291 + $0x1a0] sm:$0xff] %v396
                %v398 = vld [vmem:[%s290 + $0x348] sm:$0xff]
                %399 = vst [vmem:[%s291 + $0x1a8] sm:$0xff] %v398
                %v400 = vld [vmem:[%s290 + $0x360] sm:$0xff]
                %401 = vst [vmem:[%s291 + $0x1b0] sm:$0xff] %v400
                %v402 = vld [vmem:[%s290 + $0x368] sm:$0xff]
                %403 = vst [vmem:[%s291 + $0x1b8] sm:$0xff] %v402
                %v404 = vld [vmem:[%s290 + $0x380] sm:$0xff]
                %405 = vst [vmem:[%s291 + $0x1c0] sm:$0xff] %v404
                %v406 = vld [vmem:[%s290 + $0x388] sm:$0xff]
                %407 = vst [vmem:[%s291 + $0x1c8] sm:$0xff] %v406
                %v408 = vld [vmem:[%s290 + $0x3a0] sm:$0xff]
                %409 = vst [vmem:[%s291 + $0x1d0] sm:$0xff] %v408
                %v410 = vld [vmem:[%s290 + $0x3a8] sm:$0xff]
                %411 = vst [vmem:[%s291 + $0x1d8] sm:$0xff] %v410
                %v412 = vld [vmem:[%s290 + $0x3c0] sm:$0xff]
                %413 = vst [vmem:[%s291 + $0x1e0] sm:$0xff] %v412
                %v414 = vld [vmem:[%s290 + $0x3c8] sm:$0xff]
                %415 = vst [vmem:[%s291 + $0x1e8] sm:$0xff] %v414
                %v416 = vld [vmem:[%s290 + $0x3e0] sm:$0xff]
                %417 = vst [vmem:[%s291 + $0x1f0] sm:$0xff] %v416
                %v418 = vld [vmem:[%s290 + $0x3e8] sm:$0xff]
                %419 = vst [vmem:[%s291 + $0x1f8] sm:$0xff] %v418
              $region72: #{stereo_pose_net_forward.4} parent=66 // loop_footer
                %s289 = sadd.s32 1, %s285
              $region73: #{stereo_pose_net_forward.4} parent=66 // loop_footer_branch
                %284 = sbr.rel target = $region69
              $region74: #{stereo_pose_net_forward.4} parent=66 // loop_exit
                _
            $region67: #{stereo_pose_net_forward.4} parent=62 // pred_fallthru
              _
            // Predicated region
            $region75: #{stereo_pose_net_forward.4} parent=62 // pred_check
              _
            $region76: #{stereo_pose_net_forward.4} parent=62 // pred_check_branch
              %421 = sbr.rel target = $region78
            $region77: #{stereo_pose_net_forward.4} parent=62 // pred_region
              _
            $region78: #{stereo_pose_net_forward.4} parent=62 // pred_fallthru
              _
          $region63: #{stereo_pose_net_forward.4} parent=58 // pred_fallthru
            _
          %422 = vnop
        $region59: #{stereo_pose_net_forward.4} parent=31 // pred_fallthru
          _
      $region32: #{stereo_pose_net_forward.4} parent=5 // pred_fallthru
        _
      %p423 = scmp.le.s32.totalorder 1, %s14
      %p424 = scmp.lt.s32.totalorder %s14, 9
      %p425 = pnand %p423, %p424
      %p426 = pneg %p425
      // Predicated region
      $region79: #{stereo_pose_net_forward.4} parent=5 // pred_check
        _
      $region80: #{stereo_pose_net_forward.4} parent=5 // pred_check_branch
        %428 = sbr.rel (%p425) target = $region82
      $region81: #{stereo_pose_net_forward.4} parent=5 // pred_region
        %s429 = ssub.s32 %s14, 1
        %s430 = sand.u32 %s41, 1
        %s431 = sand.u32 %s41, 1
        %s432 = smul.addr %s431, 64
        %s433 = scalar_lea.vmem [#allocation3], %s432
        // Predicated region
        $region83: #{stereo_pose_net_forward.4} parent=81 // pred_check
          %p434 = pneg %p54
        $region84: #{stereo_pose_net_forward.4} parent=81 // pred_check_branch
          %436 = sbr.rel (%p434) target = $region86
        $region85: #{stereo_pose_net_forward.4} parent=81 // pred_region
          _
        $region86: #{stereo_pose_net_forward.4} parent=81 // pred_fallthru
          _
        %s437 = sand.u32 %s69, 1
        %s438 = sand.u32 %s69, 1
        %s439 = smul.addr %s438, 512
        %s440 = scalar_lea.vmem [#allocation4], %s439
        // Predicated region
        $region87: #{stereo_pose_net_forward.4} parent=81 // pred_check
          %p441 = pneg %p82
        $region88: #{stereo_pose_net_forward.4} parent=81 // pred_check_branch
          %443 = sbr.rel (%p441) target = $region90
        $region89: #{stereo_pose_net_forward.4} parent=81 // pred_region
          _
        $region90: #{stereo_pose_net_forward.4} parent=81 // pred_fallthru
          _
        %s444 = sand.u32 %s41, 1
        %s445 = sand.u32 %s41, 1
        %s446 = smul.addr %s445, 64
        %s447 = scalar_lea.vmem [#allocation3], %s446
        %p448 = pneg %p54
        %p449 = pneg %p51
        %s450 = sand.u32 %s69, 1
        %s451 = sand.u32 %s69, 1
        %s452 = smul.addr %s451, 512
        %s453 = scalar_lea.vmem [#allocation4], %s452
        %p454 = pneg %p82
        %p455 = pneg %p79
        %p456 = pneg %p103
        %p457 = pneg %p100
        %p458 = pneg %p124
        %p459 = pneg %p121
        %p460 = pneg %p145
        %p461 = pneg %p142
        %p462 = pneg %p166
        %p463 = pneg %p163
        %p464 = pneg %p194
        %p465 = pneg %p191
        %s466 = smul.u32 4, %s24
        %p467 = scmp.lt.s32.totalorder %s23, 3
        %s468 = scalar_select %p467, %s23, 3
        %p469 = scmp.lt.s32.totalorder %s466, 7
        %s470 = scalar_select %p469, %s466, 7
        %s471 = smul.addr %s468, 8
        %s472 = sadd.s32 %s470, %s471
        %s473 = smul.addr %s472, 8
        %s474 = scalar_lea.vmem %s6, %s473
        %s475 = smul.u32 4, %s24
        %s476 = smul.u32 4, %s24
        %s477 = smul.u32 4, %s24
        %p478 = scmp.lt.s32.totalorder %s23, 3
        %s479 = scalar_select %p478, %s23, 3
        %p480 = scmp.lt.s32.totalorder %s477, 7
        %s481 = scalar_select %p480, %s477, 7
        %s482 = smul.addr %s479, 8
        %s483 = sadd.s32 %s481, %s482
        %s484 = smul.addr %s483, 8
        %s485 = scalar_lea.vmem %s6, %s484
        %s486 = smul.u32 4, %s24
        %v487 = vld [vmem:[%s433] sm:$0xff]
        %v488 = vld [vmem:[%s433 + $0x8] sm:$0xff]
        %v489 = vld [vmem:[%s433 + $0x10] sm:$0xff]
        %v490 = vld [vmem:[%s433 + $0x18] sm:$0xff]
        %v491 = vld [vmem:[%s433 + $0x20] sm:$0xff]
        %v492 = vld [vmem:[%s433 + $0x28] sm:$0xff]
        %v493 = vld [vmem:[%s433 + $0x30] sm:$0xff]
        %v494 = vld [vmem:[%s433 + $0x38] sm:$0xff]
        %v495 = vunpack.c.l.bf16 %v487
        %v496 = vunpack.c.h.bf16 %v487
        %v497 = vunpack.c.l.bf16 %v488
        %v498 = vunpack.c.h.bf16 %v488
        %v499 = vunpack.c.l.bf16 %v489
        %v500 = vunpack.c.h.bf16 %v489
        %v501 = vunpack.c.l.bf16 %v490
        %v502 = vunpack.c.h.bf16 %v490
        %v503 = vunpack.c.l.bf16 %v491
        %v504 = vunpack.c.h.bf16 %v491
        %v505 = vunpack.c.l.bf16 %v492
        %v506 = vunpack.c.h.bf16 %v492
        %v507 = vunpack.c.l.bf16 %v493
        %v508 = vunpack.c.h.bf16 %v493
        %v509 = vunpack.c.l.bf16 %v494
        %v510 = vunpack.c.h.bf16 %v494
        %v511 = vmul.f32 %v495, -2.0
        %v512 = vmul.f32 %v496, -2.0
        %v513 = vmul.f32 %v497, -2.0
        %v514 = vmul.f32 %v498, -2.0
        %v515 = vmul.f32 %v499, -2.0
        %v516 = vmul.f32 %v500, -2.0
        %v517 = vmul.f32 %v501, -2.0
        %v518 = vmul.f32 %v502, -2.0
        %v519 = vmul.f32 %v503, -2.0
        %v520 = vmul.f32 %v504, -2.0
        %v521 = vmul.f32 %v505, -2.0
        %v522 = vmul.f32 %v506, -2.0
        %v523 = vmul.f32 %v507, -2.0
        %v524 = vmul.f32 %v508, -2.0
        %v525 = vmul.f32 %v509, -2.0
        %v526 = vmul.f32 %v510, -2.0
        %v527 = vld [vmem:[%s2] sm:$0xff]
        %v528 = vld [vmem:[%s3] sm:$0xff]
        %v529 = vld [vmem:[%s4] sm:$0xff]
        %v530 = vld [vmem:[#allocation2] sm:$0x1]
        %v531 = vld [vmem:[%s440] sm:$0xff]
        %v532 = vld [vmem:[%s440 + $0x8] sm:$0xff]
        %v533 = vld [vmem:[%s440 + $0x10] sm:$0xff]
        %v534 = vld [vmem:[%s440 + $0x18] sm:$0xff]
        %v535 = vld [vmem:[%s440 + $0x20] sm:$0xff]
        %v536 = vld [vmem:[%s440 + $0x28] sm:$0xff]
        %v537 = vld [vmem:[%s440 + $0x30] sm:$0xff]
        %v538 = vld [vmem:[%s440 + $0x38] sm:$0xff]
        %v539 = vunpack.c.l.bf16 %v531
        %v540 = vunpack.c.h.bf16 %v531
        %v541 = vunpack.c.l.bf16 %v532
        %v542 = vunpack.c.h.bf16 %v532
        %v543 = vunpack.c.l.bf16 %v533
        %v544 = vunpack.c.h.bf16 %v533
        %v545 = vunpack.c.l.bf16 %v534
        %v546 = vunpack.c.h.bf16 %v534
        %v547 = vunpack.c.l.bf16 %v535
        %v548 = vunpack.c.h.bf16 %v535
        %v549 = vunpack.c.l.bf16 %v536
        %v550 = vunpack.c.h.bf16 %v536
        %v551 = vunpack.c.l.bf16 %v537
        %v552 = vunpack.c.h.bf16 %v537
        %v553 = vunpack.c.l.bf16 %v538
        %v554 = vunpack.c.h.bf16 %v538
        %v555 = vmul.f32 %v511, %v539
        %v556 = vmul.f32 %v512, %v540
        %v557 = vmul.f32 %v513, %v541
        %v558 = vmul.f32 %v514, %v542
        %v559 = vmul.f32 %v515, %v543
        %v560 = vmul.f32 %v516, %v544
        %v561 = vmul.f32 %v517, %v545
        %v562 = vmul.f32 %v518, %v546
        %v563 = vmul.f32 %v519, %v547
        %v564 = vmul.f32 %v520, %v548
        %v565 = vmul.f32 %v521, %v549
        %v566 = vmul.f32 %v522, %v550
        %v567 = vmul.f32 %v523, %v551
        %v568 = vmul.f32 %v524, %v552
        %v569 = vmul.f32 %v525, %v553
        %v570 = vmul.f32 %v526, %v554
        %572 = vset.pattern.permute.xlu0 0
        %573 = vperm.xlu0 %572, %v528
        %v574 = vpop.permute.xlu0 %573
        %vm576 = vcmask 261120
        %v578 = vsel %vm576, %v527, 0
        %580 = vmatprep.subr.mxu0 %v556
        %581 = vmatpush1.msra.mxu0 %v555
        %582 = vmatprep.subr.mxu0 %v560
        %583 = vmatpush1.msra.mxu0 %v559
        %584 = vmatprep.subr.mxu0 %v564
        %585 = vmatpush1.msra.mxu0 %v563
        %586 = vmatprep.subr.mxu0 %v568
        %587 = vmatpush1.msra.mxu0 %v567
        %588 = vmatprep.subr.mxu0 0.0
        %589 = vmatpush1.msra.mxu0 0.0
        %590 = vmatprep.subr.mxu0 0.0
        %591 = vmatpush1.msra.mxu0 0.0
        %592 = vmatprep.subr.mxu0 0.0
        %593 = vmatpush1.msra.mxu0 0.0
        %594 = vmatprep.subr.mxu0 0.0
        %595 = vmatpush1.msra.mxu0 0.0
        %596 = vmatprep.subr.mxu0 0.0
        %597 = vmatpush1.msra.mxu0 0.0
        %598 = vmatprep.subr.mxu0 0.0
        %599 = vmatpush1.msra.mxu0 0.0
        %600 = vmatprep.subr.mxu0 0.0
        %601 = vmatpush1.msra.mxu0 0.0
        %602 = vmatprep.subr.mxu0 0.0
        %603 = vmatpush1.msra.mxu0 0.0
        %604 = vmatprep.subr.mxu0 0.0
        %605 = vmatpush1.msra.mxu0 0.0
        %606 = vmatprep.subr.mxu0 0.0
        %607 = vmatpush1.msra.mxu0 0.0
        %608 = vmatprep.subr.mxu0 0.0
        %609 = vmatpush1.msra.mxu0 0.0
        %610 = vmatprep.subr.mxu0 0.0
        %611 = vmatpush1.msra.mxu0 0.0
        %612 = vmatprep.subr.mxu0 0.0
        %613 = vmatpush1.msra.mxu0 0.0
        %614 = vmatprep.subr.mxu0 0.0
        %615 = vmatpush1.msra.mxu0 0.0
        %616 = vmatprep.subr.mxu0 0.0
        %617 = vmatpush1.msra.mxu0 0.0
        %618 = vmatprep.subr.mxu0 0.0
        %619 = vmatpush1.msra.mxu0 0.0
        %620 = vmatprep.subr.mxu0 0.0
        %621 = vmatpush1.msra.mxu0 0.0
        %622 = vmatprep.subr.mxu0 0.0
        %623 = vmatpush1.msra.mxu0 0.0
        %624 = vmatprep.subr.mxu0 0.0
        %625 = vmatpush1.msra.mxu0 0.0
        %626 = vmatprep.subr.mxu0 0.0
        %627 = vmatpush1.msra.mxu0 0.0
        %628 = vmatprep.subr.mxu0 0.0
        %629 = vmatpush1.msra.mxu0 0.0
        %630 = vmatprep.subr.mxu0 0.0
        %631 = vmatpush1.msra.mxu0 0.0
        %632 = vmatprep.subr.mxu0 0.0
        %633 = vmatpush1.msra.mxu0 0.0
        %634 = vmatprep.subr.mxu0 0.0
        %635 = vmatpush1.msra.mxu0 0.0
        %636 = vmatprep.subr.mxu0 0.0
        %637 = vmatpush1.msra.mxu0 0.0
        %638 = vmatprep.subr.mxu0 0.0
        %639 = vmatpush1.msra.mxu0 0.0
        %640 = vmatprep.subr.mxu0 0.0
        %641 = vmatpush1.msra.mxu0 0.0
        %642 = vmatprep.subr.mxu0 0.0
        %643 = vmatpush1.msra.mxu0 0.0
        %644 = vmatprep.mubr.f32.mxu0 0.0
        %645 = vmatmul.mubr.f32.gmra.mrb[0].mxu0 %v578
        %v646 = vpop.f32.mrb[0].mxu0
        %v647 = vadd.f32 %v574, %v646
        %v648 = vpop.f32.mrb[0].mxu0
        %v649 = vadd.f32 %v574, %v648
        %650 = vdwg.mxu0
        %651 = vmatprep.subr.mxu0 %v558
        %652 = vmatpush1.msra.mxu0 %v557
        %653 = vmatprep.subr.mxu0 %v562
        %654 = vmatpush1.msra.mxu0 %v561
        %655 = vmatprep.subr.mxu0 %v566
        %656 = vmatpush1.msra.mxu0 %v565
        %657 = vmatprep.subr.mxu0 %v570
        %658 = vmatpush1.msra.mxu0 %v569
        %659 = vmatprep.subr.mxu0 0.0
        %660 = vmatpush1.msra.mxu0 0.0
        %661 = vmatprep.subr.mxu0 0.0
        %662 = vmatpush1.msra.mxu0 0.0
        %663 = vmatprep.subr.mxu0 0.0
        %664 = vmatpush1.msra.mxu0 0.0
        %665 = vmatprep.subr.mxu0 0.0
        %666 = vmatpush1.msra.mxu0 0.0
        %667 = vmatprep.subr.mxu0 0.0
        %668 = vmatpush1.msra.mxu0 0.0
        %669 = vmatprep.subr.mxu0 0.0
        %670 = vmatpush1.msra.mxu0 0.0
        %671 = vmatprep.subr.mxu0 0.0
        %672 = vmatpush1.msra.mxu0 0.0
        %673 = vmatprep.subr.mxu0 0.0
        %674 = vmatpush1.msra.mxu0 0.0
        %675 = vmatprep.subr.mxu0 0.0
        %676 = vmatpush1.msra.mxu0 0.0
        %677 = vmatprep.subr.mxu0 0.0
        %678 = vmatpush1.msra.mxu0 0.0
        %679 = vmatprep.subr.mxu0 0.0
        %680 = vmatpush1.msra.mxu0 0.0
        %681 = vmatprep.subr.mxu0 0.0
        %682 = vmatpush1.msra.mxu0 0.0
        %683 = vmatprep.subr.mxu0 0.0
        %684 = vmatpush1.msra.mxu0 0.0
        %685 = vmatprep.subr.mxu0 0.0
        %686 = vmatpush1.msra.mxu0 0.0
        %687 = vmatprep.subr.mxu0 0.0
        %688 = vmatpush1.msra.mxu0 0.0
        %689 = vmatprep.subr.mxu0 0.0
        %690 = vmatpush1.msra.mxu0 0.0
        %691 = vmatprep.subr.mxu0 0.0
        %692 = vmatpush1.msra.mxu0 0.0
        %693 = vmatprep.subr.mxu0 0.0
        %694 = vmatpush1.msra.mxu0 0.0
        %695 = vmatprep.subr.mxu0 0.0
        %696 = vmatpush1.msra.mxu0 0.0
        %697 = vmatprep.subr.mxu0 0.0
        %698 = vmatpush1.msra.mxu0 0.0
        %699 = vmatprep.subr.mxu0 0.0
        %700 = vmatpush1.msra.mxu0 0.0
        %701 = vmatprep.subr.mxu0 0.0
        %702 = vmatpush1.msra.mxu0 0.0
        %703 = vmatprep.subr.mxu0 0.0
        %704 = vmatpush1.msra.mxu0 0.0
        %705 = vmatprep.subr.mxu0 0.0
        %706 = vmatpush1.msra.mxu0 0.0
        %707 = vmatprep.subr.mxu0 0.0
        %708 = vmatpush1.msra.mxu0 0.0
        %709 = vmatprep.subr.mxu0 0.0
        %710 = vmatpush1.msra.mxu0 0.0
        %711 = vmatprep.subr.mxu0 0.0
        %712 = vmatpush1.msra.mxu0 0.0
        %713 = vmatprep.subr.mxu0 0.0
        %714 = vmatpush1.msra.mxu0 0.0
        %715 = vmatprep.mubr.f32.mxu0 0.0
        %716 = vmatmul.mubr.f32.gmra.mrb[0].mxu0 %v578
        %v717 = vpop.f32.mrb[0].mxu0
        %v718 = vadd.f32 %v574, %v717
        %v719 = vpop.f32.mrb[0].mxu0
        %v720 = vadd.f32 %v574, %v719
        %721 = vdwg.mxu0
        %v722 = vmax.f32 %v647, 0.0
        %v723 = vmax.f32 %v649, 0.0
        %v724 = vmax.f32 %v718, 0.0
        %v725 = vmax.f32 %v720, 0.0
        %727 = vset.pattern.permute.xlu0 0
        %728 = vperm.xlu0 %727, %v529
        %v729 = vpop.permute.xlu0 %728
        %v731 = vmul.f32 %v722, %v729
        %v732 = vmul.f32 %v723, %v729
        %v733 = vmul.f32 %v724, %v729
        %v734 = vmul.f32 %v725, %v729
        %v735 = vrot.slane %v731, 4
        %v736 = vadd.f32 %v731, %v735
        %v737 = vrot.slane %v736, 2
        %v738 = vadd.f32 %v736, %v737
        %v739 = vrot.slane %v738, 1
        %v740 = vadd.f32 %v738, %v739
        %v741 = vrot.slane %v732, 4
        %v742 = vadd.f32 %v732, %v741
        %v743 = vrot.slane %v742, 2
        %v744 = vadd.f32 %v742, %v743
        %v745 = vrot.slane %v744, 1
        %v746 = vadd.f32 %v744, %v745
        %v747 = vrot.slane %v733, 4
        %v748 = vadd.f32 %v733, %v747
        %v749 = vrot.slane %v748, 2
        %v750 = vadd.f32 %v748, %v749
        %v751 = vrot.slane %v750, 1
        %v752 = vadd.f32 %v750, %v751
        %v753 = vrot.slane %v734, 4
        %v754 = vadd.f32 %v734, %v753
        %v755 = vrot.slane %v754, 2
        %v756 = vadd.f32 %v754, %v755
        %v757 = vrot.slane %v756, 1
        %v758 = vadd.f32 %v756, %v757
        %760 = vset.pattern.permute.xlu0 0
        %761 = vperm.xlu0 %760, %v530
        %v762 = vpop.permute.xlu0 %761
        %v764 = vlaneseq
        %v765 = vshrl.u32 %v764, 7
        %v766 = vsub.s32 0, %v765
        %v767 = vrot.slane %v762, %v766
        %v768 = vadd.f32 %v740, %v767
        %v769 = vadd.f32 %v746, %v767
        %v770 = vadd.f32 %v752, %v767
        %v771 = vadd.f32 %v758, %v767
        %v776 = vcombine.low %v768, %v769
        %v777 = vcombine.low %v770, %v771
        %v779 = vunpack.c.l.s4 1966171168
        %v780 = vunpack.c.0.s8 %v779
        %v781 = vlaneseq
        %v782 = vshrl.u32 %v781, 7
        %v783 = vsub.s32 %v780, %v782
        %v784 = vrot.slane %v776, %v783
        %v786 = vunpack.c.l.s4 1966171168
        %v787 = vunpack.c.0.s8 %v786
        %v788 = vlaneseq
        %v789 = vshrl.u32 %v788, 7
        %v790 = vsub.s32 %v787, %v789
        %v791 = vrot.slane %v777, %v790
        %v792 = vcombine.low %v784, %v791
        %v794 = vunpack.c.l.s4 1966171168
        %v795 = vunpack.c.0.s8 %v794
        %v796 = vlaneseq
        %v797 = vshrl.u32 %v796, 7
        %v798 = vsub.s32 %v795, %v797
        %v799 = vrot.slane %v792, %v798
        %v801 = vlaneseq
        %vm802 = vcmp.ge.s32.totalorder %v801, 0
        %vm803 = vcmp.lt.s32.totalorder %v801, 512
        %vm804 = vmand %vm802, %vm803
        %805 = vst.msk [vmem:[%s485] ss:$8 sm:$0xf] %vm804, %v799
        %806 = vst.msk [vmem:[%s485] ss:$8 sm:$0x0] %vm804, %v799
        %s807 = scalar_lea.vmem %s440, 64 [#allocation4]
        %v808 = vld [vmem:[%s807] sm:$0xff]
        %v809 = vld [vmem:[%s807 + $0x8] sm:$0xff]
        %v810 = vld [vmem:[%s807 + $0x10] sm:$0xff]
        %v811 = vld [vmem:[%s807 + $0x18] sm:$0xff]
        %v812 = vld [vmem:[%s807 + $0x20] sm:$0xff]
        %v813 = vld [vmem:[%s807 + $0x28] sm:$0xff]
        %v814 = vld [vmem:[%s807 + $0x30] sm:$0xff]
        %v815 = vld [vmem:[%s807 + $0x38] sm:$0xff]
        %v816 = vunpack.c.l.bf16 %v808
        %v817 = vunpack.c.h.bf16 %v808
        %v818 = vunpack.c.l.bf16 %v809
        %v819 = vunpack.c.h.bf16 %v809
        %v820 = vunpack.c.l.bf16 %v810
        %v821 = vunpack.c.h.bf16 %v810
        %v822 = vunpack.c.l.bf16 %v811
        %v823 = vunpack.c.h.bf16 %v811
        %v824 = vunpack.c.l.bf16 %v812
        %v825 = vunpack.c.h.bf16 %v812
        %v826 = vunpack.c.l.bf16 %v813
        %v827 = vunpack.c.h.bf16 %v813
        %v828 = vunpack.c.l.bf16 %v814
        %v829 = vunpack.c.h.bf16 %v814
        %v830 = vunpack.c.l.bf16 %v815
        %v831 = vunpack.c.h.bf16 %v815
        %v832 = vmul.f32 %v511, %v816
        %v833 = vmul.f32 %v512, %v817
        %v834 = vmul.f32 %v513, %v818
        %v835 = vmul.f32 %v514, %v819
        %v836 = vmul.f32 %v515, %v820
        %v837 = vmul.f32 %v516, %v821
        %v838 = vmul.f32 %v517, %v822
        %v839 = vmul.f32 %v518, %v823
        %v840 = vmul.f32 %v519, %v824
        %v841 = vmul.f32 %v520, %v825
        %v842 = vmul.f32 %v521, %v826
        %v843 = vmul.f32 %v522, %v827
        %v844 = vmul.f32 %v523, %v828
        %v845 = vmul.f32 %v524, %v829
        %v846 = vmul.f32 %v525, %v830
        %v847 = vmul.f32 %v526, %v831
        %848 = vmatprep.subr.mxu0 %v833
        %849 = vmatpush1.msra.mxu0 %v832
        %850 = vmatprep.subr.mxu0 %v837
        %851 = vmatpush1.msra.mxu0 %v836
        %852 = vmatprep.subr.mxu0 %v841
        %853 = vmatpush1.msra.mxu0 %v840
        %854 = vmatprep.subr.mxu0 %v845
        %855 = vmatpush1.msra.mxu0 %v844
        %856 = vmatprep.subr.mxu0 0.0
        %857 = vmatpush1.msra.mxu0 0.0
        %858 = vmatprep.subr.mxu0 0.0
        %859 = vmatpush1.msra.mxu0 0.0
        %860 = vmatprep.subr.mxu0 0.0
        %861 = vmatpush1.msra.mxu0 0.0
        %862 = vmatprep.subr.mxu0 0.0
        %863 = vmatpush1.msra.mxu0 0.0
        %864 = vmatprep.subr.mxu0 0.0
        %865 = vmatpush1.msra.mxu0 0.0
        %866 = vmatprep.subr.mxu0 0.0
        %867 = vmatpush1.msra.mxu0 0.0
        %868 = vmatprep.subr.mxu0 0.0
        %869 = vmatpush1.msra.mxu0 0.0
        %870 = vmatprep.subr.mxu0 0.0
        %871 = vmatpush1.msra.mxu0 0.0
        %872 = vmatprep.subr.mxu0 0.0
        %873 = vmatpush1.msra.mxu0 0.0
        %874 = vmatprep.subr.mxu0 0.0
        %875 = vmatpush1.msra.mxu0 0.0
        %876 = vmatprep.subr.mxu0 0.0
        %877 = vmatpush1.msra.mxu0 0.0
        %878 = vmatprep.subr.mxu0 0.0
        %879 = vmatpush1.msra.mxu0 0.0
        %880 = vmatprep.subr.mxu0 0.0
        %881 = vmatpush1.msra.mxu0 0.0
        %882 = vmatprep.subr.mxu0 0.0
        %883 = vmatpush1.msra.mxu0 0.0
        %884 = vmatprep.subr.mxu0 0.0
        %885 = vmatpush1.msra.mxu0 0.0
        %886 = vmatprep.subr.mxu0 0.0
        %887 = vmatpush1.msra.mxu0 0.0
        %888 = vmatprep.subr.mxu0 0.0
        %889 = vmatpush1.msra.mxu0 0.0
        %890 = vmatprep.subr.mxu0 0.0
        %891 = vmatpush1.msra.mxu0 0.0
        %892 = vmatprep.subr.mxu0 0.0
        %893 = vmatpush1.msra.mxu0 0.0
        %894 = vmatprep.subr.mxu0 0.0
        %895 = vmatpush1.msra.mxu0 0.0
        %896 = vmatprep.subr.mxu0 0.0
        %897 = vmatpush1.msra.mxu0 0.0
        %898 = vmatprep.subr.mxu0 0.0
        %899 = vmatpush1.msra.mxu0 0.0
        %900 = vmatprep.subr.mxu0 0.0
        %901 = vmatpush1.msra.mxu0 0.0
        %902 = vmatprep.subr.mxu0 0.0
        %903 = vmatpush1.msra.mxu0 0.0
        %904 = vmatprep.subr.mxu0 0.0
        %905 = vmatpush1.msra.mxu0 0.0
        %906 = vmatprep.subr.mxu0 0.0
        %907 = vmatpush1.msra.mxu0 0.0
        %908 = vmatprep.subr.mxu0 0.0
        %909 = vmatpush1.msra.mxu0 0.0
        %910 = vmatprep.subr.mxu0 0.0
        %911 = vmatpush1.msra.mxu0 0.0
        %912 = vmatprep.mubr.f32.mxu0 0.0
        %913 = vmatmul.mubr.f32.gmra.mrb[0].mxu0 %v578
        %v914 = vpop.f32.mrb[0].mxu0
        %v915 = vadd.f32 %v574, %v914
        %v916 = vpop.f32.mrb[0].mxu0
        %v917 = vadd.f32 %v574, %v916
        %918 = vdwg.mxu0
        %919 = vmatprep.subr.mxu0 %v835
        %920 = vmatpush1.msra.mxu0 %v834
        %921 = vmatprep.subr.mxu0 %v839
        %922 = vmatpush1.msra.mxu0 %v838
        %923 = vmatprep.subr.mxu0 %v843
        %924 = vmatpush1.msra.mxu0 %v842
        %925 = vmatprep.subr.mxu0 %v847
        %926 = vmatpush1.msra.mxu0 %v846
        %927 = vmatprep.subr.mxu0 0.0
        %928 = vmatpush1.msra.mxu0 0.0
        %929 = vmatprep.subr.mxu0 0.0
        %930 = vmatpush1.msra.mxu0 0.0
        %931 = vmatprep.subr.mxu0 0.0
        %932 = vmatpush1.msra.mxu0 0.0
        %933 = vmatprep.subr.mxu0 0.0
        %934 = vmatpush1.msra.mxu0 0.0
        %935 = vmatprep.subr.mxu0 0.0
        %936 = vmatpush1.msra.mxu0 0.0
        %937 = vmatprep.subr.mxu0 0.0
        %938 = vmatpush1.msra.mxu0 0.0
        %939 = vmatprep.subr.mxu0 0.0
        %940 = vmatpush1.msra.mxu0 0.0
        %941 = vmatprep.subr.mxu0 0.0
        %942 = vmatpush1.msra.mxu0 0.0
        %943 = vmatprep.subr.mxu0 0.0
        %944 = vmatpush1.msra.mxu0 0.0
        %945 = vmatprep.subr.mxu0 0.0
        %946 = vmatpush1.msra.mxu0 0.0
        %947 = vmatprep.subr.mxu0 0.0
        %948 = vmatpush1.msra.mxu0 0.0
        %949 = vmatprep.subr.mxu0 0.0
        %950 = vmatpush1.msra.mxu0 0.0
        %951 = vmatprep.subr.mxu0 0.0
        %952 = vmatpush1.msra.mxu0 0.0
        %953 = vmatprep.subr.mxu0 0.0
        %954 = vmatpush1.msra.mxu0 0.0
        %955 = vmatprep.subr.mxu0 0.0
        %956 = vmatpush1.msra.mxu0 0.0
        %957 = vmatprep.subr.mxu0 0.0
        %958 = vmatpush1.msra.mxu0 0.0
        %959 = vmatprep.subr.mxu0 0.0
        %960 = vmatpush1.msra.mxu0 0.0
        %961 = vmatprep.subr.mxu0 0.0
        %962 = vmatpush1.msra.mxu0 0.0
        %963 = vmatprep.subr.mxu0 0.0
        %964 = vmatpush1.msra.mxu0 0.0
        %965 = vmatprep.subr.mxu0 0.0
        %966 = vmatpush1.msra.mxu0 0.0
        %967 = vmatprep.subr.mxu0 0.0
        %968 = vmatpush1.msra.mxu0 0.0
        %969 = vmatprep.subr.mxu0 0.0
        %970 = vmatpush1.msra.mxu0 0.0
        %971 = vmatprep.subr.mxu0 0.0
        %972 = vmatpush1.msra.mxu0 0.0
        %973 = vmatprep.subr.mxu0 0.0
        %974 = vmatpush1.msra.mxu0 0.0
        %975 = vmatprep.subr.mxu0 0.0
        %976 = vmatpush1.msra.mxu0 0.0
        %977 = vmatprep.subr.mxu0 0.0
        %978 = vmatpush1.msra.mxu0 0.0
        %979 = vmatprep.subr.mxu0 0.0
        %980 = vmatpush1.msra.mxu0 0.0
        %981 = vmatprep.subr.mxu0 0.0
        %982 = vmatpush1.msra.mxu0 0.0
        %983 = vmatprep.mubr.f32.mxu0 0.0
        %984 = vmatmul.mubr.f32.gmra.mrb[0].mxu0 %v578
        %v985 = vpop.f32.mrb[0].mxu0
        %v986 = vadd.f32 %v574, %v985
        %v987 = vpop.f32.mrb[0].mxu0
        %v988 = vadd.f32 %v574, %v987
        %989 = vdwg.mxu0
        %v990 = vmax.f32 %v915, 0.0
        %v991 = vmax.f32 %v917, 0.0
        %v992 = vmax.f32 %v986, 0.0
        %v993 = vmax.f32 %v988, 0.0
        %v994 = vmul.f32 %v990, %v729
        %v995 = vmul.f32 %v991, %v729
        %v996 = vmul.f32 %v992, %v729
        %v997 = vmul.f32 %v993, %v729
        %v998 = vrot.slane %v994, 4
        %v999 = vadd.f32 %v994, %v998
        %v1000 = vrot.slane %v999, 2
        %v1001 = vadd.f32 %v999, %v1000
        %v1002 = vrot.slane %v1001, 1
        %v1003 = vadd.f32 %v1001, %v1002
        %v1004 = vrot.slane %v995, 4
        %v1005 = vadd.f32 %v995, %v1004
        %v1006 = vrot.slane %v1005, 2
        %v1007 = vadd.f32 %v1005, %v1006
        %v1008 = vrot.slane %v1007, 1
        %v1009 = vadd.f32 %v1007, %v1008
        %v1010 = vrot.slane %v996, 4
        %v1011 = vadd.f32 %v996, %v1010
        %v1012 = vrot.slane %v1011, 2
        %v1013 = vadd.f32 %v1011, %v1012
        %v1014 = vrot.slane %v1013, 1
        %v1015 = vadd.f32 %v1013, %v1014
        %v1016 = vrot.slane %v997, 4
        %v1017 = vadd.f32 %v997, %v1016
        %v1018 = vrot.slane %v1017, 2
        %v1019 = vadd.f32 %v1017, %v1018
        %v1020 = vrot.slane %v1019, 1
        %v1021 = vadd.f32 %v1019, %v1020
        %v1022 = vadd.f32 %v1003, %v767
        %v1023 = vadd.f32 %v1009, %v767
        %v1024 = vadd.f32 %v1015, %v767
        %v1025 = vadd.f32 %v1021, %v767
        %v1030 = vcombine.low %v1022, %v1023
        %v1031 = vcombine.low %v1024, %v1025
        %v1033 = vunpack.c.l.s4 1966171168
        %v1034 = vunpack.c.0.s8 %v1033
        %v1035 = vlaneseq
        %v1036 = vshrl.u32 %v1035, 7
        %v1037 = vsub.s32 %v1034, %v1036
        %v1038 = vrot.slane %v1030, %v1037
        %v1040 = vunpack.c.l.s4 1966171168
        %v1041 = vunpack.c.0.s8 %v1040
        %v1042 = vlaneseq
        %v1043 = vshrl.u32 %v1042, 7
        %v1044 = vsub.s32 %v1041, %v1043
        %v1045 = vrot.slane %v1031, %v1044
        %v1046 = vcombine.low %v1038, %v1045
        %v1048 = vunpack.c.l.s4 1966171168
        %v1049 = vunpack.c.0.s8 %v1048
        %v1050 = vlaneseq
        %v1051 = vshrl.u32 %v1050, 7
        %v1052 = vsub.s32 %v1049, %v1051
        %v1053 = vrot.slane %v1046, %v1052
        %s1055 = scalar_lea.vmem %s485, 1
        %1056 = vst.msk [vmem:[%s1055] ss:$8 sm:$0xf] %vm804, %v1053
        %1057 = vst.msk [vmem:[%s1055] ss:$8 sm:$0x0] %vm804, %v1053
        %s1058 = scalar_lea.vmem %s440, 128 [#allocation4]
        %v1059 = vld [vmem:[%s1058] sm:$0xff]
        %v1060 = vld [vmem:[%s1058 + $0x8] sm:$0xff]
        %v1061 = vld [vmem:[%s1058 + $0x10] sm:$0xff]
        %v1062 = vld [vmem:[%s1058 + $0x18] sm:$0xff]
        %v1063 = vld [vmem:[%s1058 + $0x20] sm:$0xff]
        %v1064 = vld [vmem:[%s1058 + $0x28] sm:$0xff]
        %v1065 = vld [vmem:[%s1058 + $0x30] sm:$0xff]
        %v1066 = vld [vmem:[%s1058 + $0x38] sm:$0xff]
        %v1067 = vunpack.c.l.bf16 %v1059
        %v1068 = vunpack.c.h.bf16 %v1059
        %v1069 = vunpack.c.l.bf16 %v1060
        %v1070 = vunpack.c.h.bf16 %v1060
        %v1071 = vunpack.c.l.bf16 %v1061
        %v1072 = vunpack.c.h.bf16 %v1061
        %v1073 = vunpack.c.l.bf16 %v1062
        %v1074 = vunpack.c.h.bf16 %v1062
        %v1075 = vunpack.c.l.bf16 %v1063
        %v1076 = vunpack.c.h.bf16 %v1063
        %v1077 = vunpack.c.l.bf16 %v1064
        %v1078 = vunpack.c.h.bf16 %v1064
        %v1079 = vunpack.c.l.bf16 %v1065
        %v1080 = vunpack.c.h.bf16 %v1065
        %v1081 = vunpack.c.l.bf16 %v1066
        %v1082 = vunpack.c.h.bf16 %v1066
        %v1083 = vmul.f32 %v511, %v1067
        %v1084 = vmul.f32 %v512, %v1068
        %v1085 = vmul.f32 %v513, %v1069
        %v1086 = vmul.f32 %v514, %v1070
        %v1087 = vmul.f32 %v515, %v1071
        %v1088 = vmul.f32 %v516, %v1072
        %v1089 = vmul.f32 %v517, %v1073
        %v1090 = vmul.f32 %v518, %v1074
        %v1091 = vmul.f32 %v519, %v1075
        %v1092 = vmul.f32 %v520, %v1076
        %v1093 = vmul.f32 %v521, %v1077
        %v1094 = vmul.f32 %v522, %v1078
        %v1095 = vmul.f32 %v523, %v1079
        %v1096 = vmul.f32 %v524, %v1080
        %v1097 = vmul.f32 %v525, %v1081
        %v1098 = vmul.f32 %v526, %v1082
        %1099 = vmatprep.subr.mxu0 %v1084
        %1100 = vmatpush1.msra.mxu0 %v1083
        %1101 = vmatprep.subr.mxu0 %v1088
        %1102 = vmatpush1.msra.mxu0 %v1087
        %1103 = vmatprep.subr.mxu0 %v1092
        %1104 = vmatpush1.msra.mxu0 %v1091
        %1105 = vmatprep.subr.mxu0 %v1096
        %1106 = vmatpush1.msra.mxu0 %v1095
        %1107 = vmatprep.subr.mxu0 0.0
        %1108 = vmatpush1.msra.mxu0 0.0
        %1109 = vmatprep.subr.mxu0 0.0
        %1110 = vmatpush1.msra.mxu0 0.0
        %1111 = vmatprep.subr.mxu0 0.0
        %1112 = vmatpush1.msra.mxu0 0.0
        %1113 = vmatprep.subr.mxu0 0.0
        %1114 = vmatpush1.msra.mxu0 0.0
        %1115 = vmatprep.subr.mxu0 0.0
        %1116 = vmatpush1.msra.mxu0 0.0
        %1117 = vmatprep.subr.mxu0 0.0
        %1118 = vmatpush1.msra.mxu0 0.0
        %1119 = vmatprep.subr.mxu0 0.0
        %1120 = vmatpush1.msra.mxu0 0.0
        %1121 = vmatprep.subr.mxu0 0.0
        %1122 = vmatpush1.msra.mxu0 0.0
        %1123 = vmatprep.subr.mxu0 0.0
        %1124 = vmatpush1.msra.mxu0 0.0
        %1125 = vmatprep.subr.mxu0 0.0
        %1126 = vmatpush1.msra.mxu0 0.0
        %1127 = vmatprep.subr.mxu0 0.0
        %1128 = vmatpush1.msra.mxu0 0.0
        %1129 = vmatprep.subr.mxu0 0.0
        %1130 = vmatpush1.msra.mxu0 0.0
        %1131 = vmatprep.subr.mxu0 0.0
        %1132 = vmatpush1.msra.mxu0 0.0
        %1133 = vmatprep.subr.mxu0 0.0
        %1134 = vmatpush1.msra.mxu0 0.0
        %1135 = vmatprep.subr.mxu0 0.0
        %1136 = vmatpush1.msra.mxu0 0.0
        %1137 = vmatprep.subr.mxu0 0.0
        %1138 = vmatpush1.msra.mxu0 0.0
        %1139 = vmatprep.subr.mxu0 0.0
        %1140 = vmatpush1.msra.mxu0 0.0
        %1141 = vmatprep.subr.mxu0 0.0
        %1142 = vmatpush1.msra.mxu0 0.0
        %1143 = vmatprep.subr.mxu0 0.0
        %1144 = vmatpush1.msra.mxu0 0.0
        %1145 = vmatprep.subr.mxu0 0.0
        %1146 = vmatpush1.msra.mxu0 0.0
        %1147 = vmatprep.subr.mxu0 0.0
        %1148 = vmatpush1.msra.mxu0 0.0
        %1149 = vmatprep.subr.mxu0 0.0
        %1150 = vmatpush1.msra.mxu0 0.0
        %1151 = vmatprep.subr.mxu0 0.0
        %1152 = vmatpush1.msra.mxu0 0.0
        %1153 = vmatprep.subr.mxu0 0.0
        %1154 = vmatpush1.msra.mxu0 0.0
        %1155 = vmatprep.subr.mxu0 0.0
        %1156 = vmatpush1.msra.mxu0 0.0
        %1157 = vmatprep.subr.mxu0 0.0
        %1158 = vmatpush1.msra.mxu0 0.0
        %1159 = vmatprep.subr.mxu0 0.0
        %1160 = vmatpush1.msra.mxu0 0.0
        %1161 = vmatprep.subr.mxu0 0.0
        %1162 = vmatpush1.msra.mxu0 0.0
        %1163 = vmatprep.mubr.f32.mxu0 0.0
        %1164 = vmatmul.mubr.f32.gmra.mrb[0].mxu0 %v578
        %v1165 = vpop.f32.mrb[0].mxu0
        %v1166 = vadd.f32 %v574, %v1165
        %v1167 = vpop.f32.mrb[0].mxu0
        %v1168 = vadd.f32 %v574, %v1167
        %1169 = vdwg.mxu0
        %1170 = vmatprep.subr.mxu0 %v1086
        %1171 = vmatpush1.msra.mxu0 %v1085
        %1172 = vmatprep.subr.mxu0 %v1090
        %1173 = vmatpush1.msra.mxu0 %v1089
        %1174 = vmatprep.subr.mxu0 %v1094
        %1175 = vmatpush1.msra.mxu0 %v1093
        %1176 = vmatprep.subr.mxu0 %v1098
        %1177 = vmatpush1.msra.mxu0 %v1097
        %1178 = vmatprep.subr.mxu0 0.0
        %1179 = vmatpush1.msra.mxu0 0.0
        %1180 = vmatprep.subr.mxu0 0.0
        %1181 = vmatpush1.msra.mxu0 0.0
        %1182 = vmatprep.subr.mxu0 0.0
        %1183 = vmatpush1.msra.mxu0 0.0
        %1184 = vmatprep.subr.mxu0 0.0
        %1185 = vmatpush1.msra.mxu0 0.0
        %1186 = vmatprep.subr.mxu0 0.0
        %1187 = vmatpush1.msra.mxu0 0.0
        %1188 = vmatprep.subr.mxu0 0.0
        %1189 = vmatpush1.msra.mxu0 0.0
        %1190 = vmatprep.subr.mxu0 0.0
        %1191 = vmatpush1.msra.mxu0 0.0
        %1192 = vmatprep.subr.mxu0 0.0
        %1193 = vmatpush1.msra.mxu0 0.0
        %1194 = vmatprep.subr.mxu0 0.0
        %1195 = vmatpush1.msra.mxu0 0.0
        %1196 = vmatprep.subr.mxu0 0.0
        %1197 = vmatpush1.msra.mxu0 0.0
        %1198 = vmatprep.subr.mxu0 0.0
        %1199 = vmatpush1.msra.mxu0 0.0
        %1200 = vmatprep.subr.mxu0 0.0
        %1201 = vmatpush1.msra.mxu0 0.0
        %1202 = vmatprep.subr.mxu0 0.0
        %1203 = vmatpush1.msra.mxu0 0.0
        %1204 = vmatprep.subr.mxu0 0.0
        %1205 = vmatpush1.msra.mxu0 0.0
        %1206 = vmatprep.subr.mxu0 0.0
        %1207 = vmatpush1.msra.mxu0 0.0
        %1208 = vmatprep.subr.mxu0 0.0
        %1209 = vmatpush1.msra.mxu0 0.0
        %1210 = vmatprep.subr.mxu0 0.0
        %1211 = vmatpush1.msra.mxu0 0.0
        %1212 = vmatprep.subr.mxu0 0.0
        %1213 = vmatpush1.msra.mxu0 0.0
        %1214 = vmatprep.subr.mxu0 0.0
        %1215 = vmatpush1.msra.mxu0 0.0
        %1216 = vmatprep.subr.mxu0 0.0
        %1217 = vmatpush1.msra.mxu0 0.0
        %1218 = vmatprep.subr.mxu0 0.0
        %1219 = vmatpush1.msra.mxu0 0.0
        %1220 = vmatprep.subr.mxu0 0.0
        %1221 = vmatpush1.msra.mxu0 0.0
        %1222 = vmatprep.subr.mxu0 0.0
        %1223 = vmatpush1.msra.mxu0 0.0
        %1224 = vmatprep.subr.mxu0 0.0
        %1225 = vmatpush1.msra.mxu0 0.0
        %1226 = vmatprep.subr.mxu0 0.0
        %1227 = vmatpush1.msra.mxu0 0.0
        %1228 = vmatprep.subr.mxu0 0.0
        %1229 = vmatpush1.msra.mxu0 0.0
        %1230 = vmatprep.subr.mxu0 0.0
        %1231 = vmatpush1.msra.mxu0 0.0
        %1232 = vmatprep.subr.mxu0 0.0
        %1233 = vmatpush1.msra.mxu0 0.0
        %1234 = vmatprep.mubr.f32.mxu0 0.0
        %1235 = vmatmul.mubr.f32.gmra.mrb[0].mxu0 %v578
        %v1236 = vpop.f32.mrb[0].mxu0
        %v1237 = vadd.f32 %v574, %v1236
        %v1238 = vpop.f32.mrb[0].mxu0
        %v1239 = vadd.f32 %v574, %v1238
        %1240 = vdwg.mxu0
        %v1241 = vmax.f32 %v1166, 0.0
        %v1242 = vmax.f32 %v1168, 0.0
        %v1243 = vmax.f32 %v1237, 0.0
        %v1244 = vmax.f32 %v1239, 0.0
        %v1245 = vmul.f32 %v1241, %v729
        %v1246 = vmul.f32 %v1242, %v729
        %v1247 = vmul.f32 %v1243, %v729
        %v1248 = vmul.f32 %v1244, %v729
        %v1249 = vrot.slane %v1245, 4
        %v1250 = vadd.f32 %v1245, %v1249
        %v1251 = vrot.slane %v1250, 2
        %v1252 = vadd.f32 %v1250, %v1251
        %v1253 = vrot.slane %v1252, 1
        %v1254 = vadd.f32 %v1252, %v1253
        %v1255 = vrot.slane %v1246, 4
        %v1256 = vadd.f32 %v1246, %v1255
        %v1257 = vrot.slane %v1256, 2
        %v1258 = vadd.f32 %v1256, %v1257
        %v1259 = vrot.slane %v1258, 1
        %v1260 = vadd.f32 %v1258, %v1259
        %v1261 = vrot.slane %v1247, 4
        %v1262 = vadd.f32 %v1247, %v1261
        %v1263 = vrot.slane %v1262, 2
        %v1264 = vadd.f32 %v1262, %v1263
        %v1265 = vrot.slane %v1264, 1
        %v1266 = vadd.f32 %v1264, %v1265
        %v1267 = vrot.slane %v1248, 4
        %v1268 = vadd.f32 %v1248, %v1267
        %v1269 = vrot.slane %v1268, 2
        %v1270 = vadd.f32 %v1268, %v1269
        %v1271 = vrot.slane %v1270, 1
        %v1272 = vadd.f32 %v1270, %v1271
        %v1273 = vadd.f32 %v1254, %v767
        %v1274 = vadd.f32 %v1260, %v767
        %v1275 = vadd.f32 %v1266, %v767
        %v1276 = vadd.f32 %v1272, %v767
        %v1281 = vcombine.low %v1273, %v1274
        %v1282 = vcombine.low %v1275, %v1276
        %v1284 = vunpack.c.l.s4 1966171168
        %v1285 = vunpack.c.0.s8 %v1284
        %v1286 = vlaneseq
        %v1287 = vshrl.u32 %v1286, 7
        %v1288 = vsub.s32 %v1285, %v1287
        %v1289 = vrot.slane %v1281, %v1288
        %v1291 = vunpack.c.l.s4 1966171168
        %v1292 = vunpack.c.0.s8 %v1291
        %v1293 = vlaneseq
        %v1294 = vshrl.u32 %v1293, 7
        %v1295 = vsub.s32 %v1292, %v1294
        %v1296 = vrot.slane %v1282, %v1295
        %v1297 = vcombine.low %v1289, %v1296
        %v1299 = vunpack.c.l.s4 1966171168
        %v1300 = vunpack.c.0.s8 %v1299
        %v1301 = vlaneseq
        %v1302 = vshrl.u32 %v1301, 7
        %v1303 = vsub.s32 %v1300, %v1302
        %v1304 = vrot.slane %v1297, %v1303
        %s1306 = scalar_lea.vmem %s485, 2
        %1307 = vst.msk [vmem:[%s1306] ss:$8 sm:$0xf] %vm804, %v1304
        %1308 = vst.msk [vmem:[%s1306] ss:$8 sm:$0x0] %vm804, %v1304
        %s1309 = scalar_lea.vmem %s440, 192 [#allocation4]
        %v1310 = vld [vmem:[%s1309] sm:$0xff]
        %v1311 = vld [vmem:[%s1309 + $0x8] sm:$0xff]
        %v1312 = vld [vmem:[%s1309 + $0x10] sm:$0xff]
        %v1313 = vld [vmem:[%s1309 + $0x18] sm:$0xff]
        %v1314 = vld [vmem:[%s1309 + $0x20] sm:$0xff]
        %v1315 = vld [vmem:[%s1309 + $0x28] sm:$0xff]
        %v1316 = vld [vmem:[%s1309 + $0x30] sm:$0xff]
        %v1317 = vld [vmem:[%s1309 + $0x38] sm:$0xff]
        %v1318 = vunpack.c.l.bf16 %v1310
        %v1319 = vunpack.c.h.bf16 %v1310
        %v1320 = vunpack.c.l.bf16 %v1311
        %v1321 = vunpack.c.h.bf16 %v1311
        %v1322 = vunpack.c.l.bf16 %v1312
        %v1323 = vunpack.c.h.bf16 %v1312
        %v1324 = vunpack.c.l.bf16 %v1313
        %v1325 = vunpack.c.h.bf16 %v1313
        %v1326 = vunpack.c.l.bf16 %v1314
        %v1327 = vunpack.c.h.bf16 %v1314
        %v1328 = vunpack.c.l.bf16 %v1315
        %v1329 = vunpack.c.h.bf16 %v1315
        %v1330 = vunpack.c.l.bf16 %v1316
        %v1331 = vunpack.c.h.bf16 %v1316
        %v1332 = vunpack.c.l.bf16 %v1317
        %v1333 = vunpack.c.h.bf16 %v1317
        %v1334 = vmul.f32 %v511, %v1318
        %v1335 = vmul.f32 %v512, %v1319
        %v1336 = vmul.f32 %v513, %v1320
        %v1337 = vmul.f32 %v514, %v1321
        %v1338 = vmul.f32 %v515, %v1322
        %v1339 = vmul.f32 %v516, %v1323
        %v1340 = vmul.f32 %v517, %v1324
        %v1341 = vmul.f32 %v518, %v1325
        %v1342 = vmul.f32 %v519, %v1326
        %v1343 = vmul.f32 %v520, %v1327
        %v1344 = vmul.f32 %v521, %v1328
        %v1345 = vmul.f32 %v522, %v1329
        %v1346 = vmul.f32 %v523, %v1330
        %v1347 = vmul.f32 %v524, %v1331
        %v1348 = vmul.f32 %v525, %v1332
        %v1349 = vmul.f32 %v526, %v1333
        %1350 = vmatprep.subr.mxu0 %v1335
        %1351 = vmatpush1.msra.mxu0 %v1334
        %1352 = vmatprep.subr.mxu0 %v1339
        %1353 = vmatpush1.msra.mxu0 %v1338
        %1354 = vmatprep.subr.mxu0 %v1343
        %1355 = vmatpush1.msra.mxu0 %v1342
        %1356 = vmatprep.subr.mxu0 %v1347
        %1357 = vmatpush1.msra.mxu0 %v1346
        %1358 = vmatprep.subr.mxu0 0.0
        %1359 = vmatpush1.msra.mxu0 0.0
        %1360 = vmatprep.subr.mxu0 0.0
        %1361 = vmatpush1.msra.mxu0 0.0
        %1362 = vmatprep.subr.mxu0 0.0
        %1363 = vmatpush1.msra.mxu0 0.0
        %1364 = vmatprep.subr.mxu0 0.0
        %1365 = vmatpush1.msra.mxu0 0.0
        %1366 = vmatprep.subr.mxu0 0.0
        %1367 = vmatpush1.msra.mxu0 0.0
        %1368 = vmatprep.subr.mxu0 0.0
        %1369 = vmatpush1.msra.mxu0 0.0
        %1370 = vmatprep.subr.mxu0 0.0
        %1371 = vmatpush1.msra.mxu0 0.0
        %1372 = vmatprep.subr.mxu0 0.0
        %1373 = vmatpush1.msra.mxu0 0.0
        %1374 = vmatprep.subr.mxu0 0.0
        %1375 = vmatpush1.msra.mxu0 0.0
        %1376 = vmatprep.subr.mxu0 0.0
        %1377 = vmatpush1.msra.mxu0 0.0
        %1378 = vmatprep.subr.mxu0 0.0
        %1379 = vmatpush1.msra.mxu0 0.0
        %1380 = vmatprep.subr.mxu0 0.0
        %1381 = vmatpush1.msra.mxu0 0.0
        %1382 = vmatprep.subr.mxu0 0.0
        %1383 = vmatpush1.msra.mxu0 0.0
        %1384 = vmatprep.subr.mxu0 0.0
        %1385 = vmatpush1.msra.mxu0 0.0
        %1386 = vmatprep.subr.mxu0 0.0
        %1387 = vmatpush1.msra.mxu0 0.0
        %1388 = vmatprep.subr.mxu0 0.0
        %1389 = vmatpush1.msra.mxu0 0.0
        %1390 = vmatprep.subr.mxu0 0.0
        %1391 = vmatpush1.msra.mxu0 0.0
        %1392 = vmatprep.subr.mxu0 0.0
        %1393 = vmatpush1.msra.mxu0 0.0
        %1394 = vmatprep.subr.mxu0 0.0
        %1395 = vmatpush1.msra.mxu0 0.0
        %1396 = vmatprep.subr.mxu0 0.0
        %1397 = vmatpush1.msra.mxu0 0.0
        %1398 = vmatprep.subr.mxu0 0.0
        %1399 = vmatpush1.msra.mxu0 0.0
        %1400 = vmatprep.subr.mxu0 0.0
        %1401 = vmatpush1.msra.mxu0 0.0
        %1402 = vmatprep.subr.mxu0 0.0
        %1403 = vmatpush1.msra.mxu0 0.0
        %1404 = vmatprep.subr.mxu0 0.0
        %1405 = vmatpush1.msra.mxu0 0.0
        %1406 = vmatprep.subr.mxu0 0.0
        %1407 = vmatpush1.msra.mxu0 0.0
        %1408 = vmatprep.subr.mxu0 0.0
        %1409 = vmatpush1.msra.mxu0 0.0
        %1410 = vmatprep.subr.mxu0 0.0
        %1411 = vmatpush1.msra.mxu0 0.0
        %1412 = vmatprep.subr.mxu0 0.0
        %1413 = vmatpush1.msra.mxu0 0.0
        %1414 = vmatprep.mubr.f32.mxu0 0.0
        %1415 = vmatmul.mubr.f32.gmra.mrb[0].mxu0 %v578
        %v1416 = vpop.f32.mrb[0].mxu0
        %v1417 = vadd.f32 %v574, %v1416
        %v1418 = vpop.f32.mrb[0].mxu0
        %v1419 = vadd.f32 %v574, %v1418
        %1420 = vdwg.mxu0
        %1421 = vmatprep.subr.mxu0 %v1337
        %1422 = vmatpush1.msra.mxu0 %v1336
        %1423 = vmatprep.subr.mxu0 %v1341
        %1424 = vmatpush1.msra.mxu0 %v1340
        %1425 = vmatprep.subr.mxu0 %v1345
        %1426 = vmatpush1.msra.mxu0 %v1344
        %1427 = vmatprep.subr.mxu0 %v1349
        %1428 = vmatpush1.msra.mxu0 %v1348
        %1429 = vmatprep.subr.mxu0 0.0
        %1430 = vmatpush1.msra.mxu0 0.0
        %1431 = vmatprep.subr.mxu0 0.0
        %1432 = vmatpush1.msra.mxu0 0.0
        %1433 = vmatprep.subr.mxu0 0.0
        %1434 = vmatpush1.msra.mxu0 0.0
        %1435 = vmatprep.subr.mxu0 0.0
        %1436 = vmatpush1.msra.mxu0 0.0
        %1437 = vmatprep.subr.mxu0 0.0
        %1438 = vmatpush1.msra.mxu0 0.0
        %1439 = vmatprep.subr.mxu0 0.0
        %1440 = vmatpush1.msra.mxu0 0.0
        %1441 = vmatprep.subr.mxu0 0.0
        %1442 = vmatpush1.msra.mxu0 0.0
        %1443 = vmatprep.subr.mxu0 0.0
        %1444 = vmatpush1.msra.mxu0 0.0
        %1445 = vmatprep.subr.mxu0 0.0
        %1446 = vmatpush1.msra.mxu0 0.0
        %1447 = vmatprep.subr.mxu0 0.0
        %1448 = vmatpush1.msra.mxu0 0.0
        %1449 = vmatprep.subr.mxu0 0.0
        %1450 = vmatpush1.msra.mxu0 0.0
        %1451 = vmatprep.subr.mxu0 0.0
        %1452 = vmatpush1.msra.mxu0 0.0
        %1453 = vmatprep.subr.mxu0 0.0
        %1454 = vmatpush1.msra.mxu0 0.0
        %1455 = vmatprep.subr.mxu0 0.0
        %1456 = vmatpush1.msra.mxu0 0.0
        %1457 = vmatprep.subr.mxu0 0.0
        %1458 = vmatpush1.msra.mxu0 0.0
        %1459 = vmatprep.subr.mxu0 0.0
        %1460 = vmatpush1.msra.mxu0 0.0
        %1461 = vmatprep.subr.mxu0 0.0
        %1462 = vmatpush1.msra.mxu0 0.0
        %1463 = vmatprep.subr.mxu0 0.0
        %1464 = vmatpush1.msra.mxu0 0.0
        %1465 = vmatprep.subr.mxu0 0.0
        %1466 = vmatpush1.msra.mxu0 0.0
        %1467 = vmatprep.subr.mxu0 0.0
        %1468 = vmatpush1.msra.mxu0 0.0
        %1469 = vmatprep.subr.mxu0 0.0
        %1470 = vmatpush1.msra.mxu0 0.0
        %1471 = vmatprep.subr.mxu0 0.0
        %1472 = vmatpush1.msra.mxu0 0.0
        %1473 = vmatprep.subr.mxu0 0.0
        %1474 = vmatpush1.msra.mxu0 0.0
        %1475 = vmatprep.subr.mxu0 0.0
        %1476 = vmatpush1.msra.mxu0 0.0
        %1477 = vmatprep.subr.mxu0 0.0
        %1478 = vmatpush1.msra.mxu0 0.0
        %1479 = vmatprep.subr.mxu0 0.0
        %1480 = vmatpush1.msra.mxu0 0.0
        %1481 = vmatprep.subr.mxu0 0.0
        %1482 = vmatpush1.msra.mxu0 0.0
        %1483 = vmatprep.subr.mxu0 0.0
        %1484 = vmatpush1.msra.mxu0 0.0
        %1485 = vmatprep.mubr.f32.mxu0 0.0
        %1486 = vmatmul.mubr.f32.gmra.mrb[0].mxu0 %v578
        %v1487 = vpop.f32.mrb[0].mxu0
        %v1488 = vadd.f32 %v574, %v1487
        %v1489 = vpop.f32.mrb[0].mxu0
        %v1490 = vadd.f32 %v574, %v1489
        %1491 = vdwg.mxu0
        %v1492 = vmax.f32 %v1417, 0.0
        %v1493 = vmax.f32 %v1419, 0.0
        %v1494 = vmax.f32 %v1488, 0.0
        %v1495 = vmax.f32 %v1490, 0.0
        %v1496 = vmul.f32 %v1492, %v729
        %v1497 = vmul.f32 %v1493, %v729
        %v1498 = vmul.f32 %v1494, %v729
        %v1499 = vmul.f32 %v1495, %v729
        %v1500 = vrot.slane %v1496, 4
        %v1501 = vadd.f32 %v1496, %v1500
        %v1502 = vrot.slane %v1501, 2
        %v1503 = vadd.f32 %v1501, %v1502
        %v1504 = vrot.slane %v1503, 1
        %v1505 = vadd.f32 %v1503, %v1504
        %v1506 = vrot.slane %v1497, 4
        %v1507 = vadd.f32 %v1497, %v1506
        %v1508 = vrot.slane %v1507, 2
        %v1509 = vadd.f32 %v1507, %v1508
        %v1510 = vrot.slane %v1509, 1
        %v1511 = vadd.f32 %v1509, %v1510
        %v1512 = vrot.slane %v1498, 4
        %v1513 = vadd.f32 %v1498, %v1512
        %v1514 = vrot.slane %v1513, 2
        %v1515 = vadd.f32 %v1513, %v1514
        %v1516 = vrot.slane %v1515, 1
        %v1517 = vadd.f32 %v1515, %v1516
        %v1518 = vrot.slane %v1499, 4
        %v1519 = vadd.f32 %v1499, %v1518
        %v1520 = vrot.slane %v1519, 2
        %v1521 = vadd.f32 %v1519, %v1520
        %v1522 = vrot.slane %v1521, 1
        %v1523 = vadd.f32 %v1521, %v1522
        %v1524 = vadd.f32 %v1505, %v767
        %v1525 = vadd.f32 %v1511, %v767
        %v1526 = vadd.f32 %v1517, %v767
        %v1527 = vadd.f32 %v1523, %v767
        %v1532 = vcombine.low %v1524, %v1525
        %v1533 = vcombine.low %v1526, %v1527
        %v1535 = vunpack.c.l.s4 1966171168
        %v1536 = vunpack.c.0.s8 %v1535
        %v1537 = vlaneseq
        %v1538 = vshrl.u32 %v1537, 7
        %v1539 = vsub.s32 %v1536, %v1538
        %v1540 = vrot.slane %v1532, %v1539
        %v1542 = vunpack.c.l.s4 1966171168
        %v1543 = vunpack.c.0.s8 %v1542
        %v1544 = vlaneseq
        %v1545 = vshrl.u32 %v1544, 7
        %v1546 = vsub.s32 %v1543, %v1545
        %v1547 = vrot.slane %v1533, %v1546
        %v1548 = vcombine.low %v1540, %v1547
        %v1550 = vunpack.c.l.s4 1966171168
        %v1551 = vunpack.c.0.s8 %v1550
        %v1552 = vlaneseq
        %v1553 = vshrl.u32 %v1552, 7
        %v1554 = vsub.s32 %v1551, %v1553
        %v1555 = vrot.slane %v1548, %v1554
        %s1557 = scalar_lea.vmem %s485, 3
        %1558 = vst.msk [vmem:[%s1557] ss:$8 sm:$0xf] %vm804, %v1555
        %1559 = vst.msk [vmem:[%s1557] ss:$8 sm:$0x0] %vm804, %v1555
        %s1560 = scalar_lea.vmem %s440, 256 [#allocation4]
        %v1561 = vld [vmem:[%s1560] sm:$0xff]
        %v1562 = vld [vmem:[%s1560 + $0x8] sm:$0xff]
        %v1563 = vld [vmem:[%s1560 + $0x10] sm:$0xff]
        %v1564 = vld [vmem:[%s1560 + $0x18] sm:$0xff]
        %v1565 = vld [vmem:[%s1560 + $0x20] sm:$0xff]
        %v1566 = vld [vmem:[%s1560 + $0x28] sm:$0xff]
        %v1567 = vld [vmem:[%s1560 + $0x30] sm:$0xff]
        %v1568 = vld [vmem:[%s1560 + $0x38] sm:$0xff]
        %v1569 = vunpack.c.l.bf16 %v1561
        %v1570 = vunpack.c.h.bf16 %v1561
        %v1571 = vunpack.c.l.bf16 %v1562
        %v1572 = vunpack.c.h.bf16 %v1562
        %v1573 = vunpack.c.l.bf16 %v1563
        %v1574 = vunpack.c.h.bf16 %v1563
        %v1575 = vunpack.c.l.bf16 %v1564
        %v1576 = vunpack.c.h.bf16 %v1564
        %v1577 = vunpack.c.l.bf16 %v1565
        %v1578 = vunpack.c.h.bf16 %v1565
        %v1579 = vunpack.c.l.bf16 %v1566
        %v1580 = vunpack.c.h.bf16 %v1566
        %v1581 = vunpack.c.l.bf16 %v1567
        %v1582 = vunpack.c.h.bf16 %v1567
        %v1583 = vunpack.c.l.bf16 %v1568
        %v1584 = vunpack.c.h.bf16 %v1568
        %v1585 = vmul.f32 %v511, %v1569
        %v1586 = vmul.f32 %v512, %v1570
        %v1587 = vmul.f32 %v513, %v1571
        %v1588 = vmul.f32 %v514, %v1572
        %v1589 = vmul.f32 %v515, %v1573
        %v1590 = vmul.f32 %v516, %v1574
        %v1591 = vmul.f32 %v517, %v1575
        %v1592 = vmul.f32 %v518, %v1576
        %v1593 = vmul.f32 %v519, %v1577
        %v1594 = vmul.f32 %v520, %v1578
        %v1595 = vmul.f32 %v521, %v1579
        %v1596 = vmul.f32 %v522, %v1580
        %v1597 = vmul.f32 %v523, %v1581
        %v1598 = vmul.f32 %v524, %v1582
        %v1599 = vmul.f32 %v525, %v1583
        %v1600 = vmul.f32 %v526, %v1584
        %1601 = vmatprep.subr.mxu0 %v1586
        %1602 = vmatpush1.msra.mxu0 %v1585
        %1603 = vmatprep.subr.mxu0 %v1590
        %1604 = vmatpush1.msra.mxu0 %v1589
        %1605 = vmatprep.subr.mxu0 %v1594
        %1606 = vmatpush1.msra.mxu0 %v1593
        %1607 = vmatprep.subr.mxu0 %v1598
        %1608 = vmatpush1.msra.mxu0 %v1597
        %1609 = vmatprep.subr.mxu0 0.0
        %1610 = vmatpush1.msra.mxu0 0.0
        %1611 = vmatprep.subr.mxu0 0.0
        %1612 = vmatpush1.msra.mxu0 0.0
        %1613 = vmatprep.subr.mxu0 0.0
        %1614 = vmatpush1.msra.mxu0 0.0
        %1615 = vmatprep.subr.mxu0 0.0
        %1616 = vmatpush1.msra.mxu0 0.0
        %1617 = vmatprep.subr.mxu0 0.0
        %1618 = vmatpush1.msra.mxu0 0.0
        %1619 = vmatprep.subr.mxu0 0.0
        %1620 = vmatpush1.msra.mxu0 0.0
        %1621 = vmatprep.subr.mxu0 0.0
        %1622 = vmatpush1.msra.mxu0 0.0
        %1623 = vmatprep.subr.mxu0 0.0
        %1624 = vmatpush1.msra.mxu0 0.0
        %1625 = vmatprep.subr.mxu0 0.0
        %1626 = vmatpush1.msra.mxu0 0.0
        %1627 = vmatprep.subr.mxu0 0.0
        %1628 = vmatpush1.msra.mxu0 0.0
        %1629 = vmatprep.subr.mxu0 0.0
        %1630 = vmatpush1.msra.mxu0 0.0
        %1631 = vmatprep.subr.mxu0 0.0
        %1632 = vmatpush1.msra.mxu0 0.0
        %1633 = vmatprep.subr.mxu0 0.0
        %1634 = vmatpush1.msra.mxu0 0.0
        %1635 = vmatprep.subr.mxu0 0.0
        %1636 = vmatpush1.msra.mxu0 0.0
        %1637 = vmatprep.subr.mxu0 0.0
        %1638 = vmatpush1.msra.mxu0 0.0
        %1639 = vmatprep.subr.mxu0 0.0
        %1640 = vmatpush1.msra.mxu0 0.0
        %1641 = vmatprep.subr.mxu0 0.0
        %1642 = vmatpush1.msra.mxu0 0.0
        %1643 = vmatprep.subr.mxu0 0.0
        %1644 = vmatpush1.msra.mxu0 0.0
        %1645 = vmatprep.subr.mxu0 0.0
        %1646 = vmatpush1.msra.mxu0 0.0
        %1647 = vmatprep.subr.mxu0 0.0
        %1648 = vmatpush1.msra.mxu0 0.0
        %1649 = vmatprep.subr.mxu0 0.0
        %1650 = vmatpush1.msra.mxu0 0.0
        %1651 = vmatprep.subr.mxu0 0.0
        %1652 = vmatpush1.msra.mxu0 0.0
        %1653 = vmatprep.subr.mxu0 0.0
        %1654 = vmatpush1.msra.mxu0 0.0
        %1655 = vmatprep.subr.mxu0 0.0
        %1656 = vmatpush1.msra.mxu0 0.0
        %1657 = vmatprep.subr.mxu0 0.0
        %1658 = vmatpush1.msra.mxu0 0.0
        %1659 = vmatprep.subr.mxu0 0.0
        %1660 = vmatpush1.msra.mxu0 0.0
        %1661 = vmatprep.subr.mxu0 0.0
        %1662 = vmatpush1.msra.mxu0 0.0
        %1663 = vmatprep.subr.mxu0 0.0
        %1664 = vmatpush1.msra.mxu0 0.0
        %1665 = vmatprep.mubr.f32.mxu0 0.0
        %1666 = vmatmul.mubr.f32.gmra.mrb[0].mxu0 %v578
        %v1667 = vpop.f32.mrb[0].mxu0
        %v1668 = vadd.f32 %v574, %v1667
        %v1669 = vpop.f32.mrb[0].mxu0
        %v1670 = vadd.f32 %v574, %v1669
        %1671 = vdwg.mxu0
        %1672 = vmatprep.subr.mxu0 %v1588
        %1673 = vmatpush1.msra.mxu0 %v1587
        %1674 = vmatprep.subr.mxu0 %v1592
        %1675 = vmatpush1.msra.mxu0 %v1591
        %1676 = vmatprep.subr.mxu0 %v1596
        %1677 = vmatpush1.msra.mxu0 %v1595
        %1678 = vmatprep.subr.mxu0 %v1600
        %1679 = vmatpush1.msra.mxu0 %v1599
        %1680 = vmatprep.subr.mxu0 0.0
        %1681 = vmatpush1.msra.mxu0 0.0
        %1682 = vmatprep.subr.mxu0 0.0
        %1683 = vmatpush1.msra.mxu0 0.0
        %1684 = vmatprep.subr.mxu0 0.0
        %1685 = vmatpush1.msra.mxu0 0.0
        %1686 = vmatprep.subr.mxu0 0.0
        %1687 = vmatpush1.msra.mxu0 0.0
        %1688 = vmatprep.subr.mxu0 0.0
        %1689 = vmatpush1.msra.mxu0 0.0
        %1690 = vmatprep.subr.mxu0 0.0
        %1691 = vmatpush1.msra.mxu0 0.0
        %1692 = vmatprep.subr.mxu0 0.0
        %1693 = vmatpush1.msra.mxu0 0.0
        %1694 = vmatprep.subr.mxu0 0.0
        %1695 = vmatpush1.msra.mxu0 0.0
        %1696 = vmatprep.subr.mxu0 0.0
        %1697 = vmatpush1.msra.mxu0 0.0
        %1698 = vmatprep.subr.mxu0 0.0
        %1699 = vmatpush1.msra.mxu0 0.0
        %1700 = vmatprep.subr.mxu0 0.0
        %1701 = vmatpush1.msra.mxu0 0.0
        %1702 = vmatprep.subr.mxu0 0.0
        %1703 = vmatpush1.msra.mxu0 0.0
        %1704 = vmatprep.subr.mxu0 0.0
        %1705 = vmatpush1.msra.mxu0 0.0
        %1706 = vmatprep.subr.mxu0 0.0
        %1707 = vmatpush1.msra.mxu0 0.0
        %1708 = vmatprep.subr.mxu0 0.0
        %1709 = vmatpush1.msra.mxu0 0.0
        %1710 = vmatprep.subr.mxu0 0.0
        %1711 = vmatpush1.msra.mxu0 0.0
        %1712 = vmatprep.subr.mxu0 0.0
        %1713 = vmatpush1.msra.mxu0 0.0
        %1714 = vmatprep.subr.mxu0 0.0
        %1715 = vmatpush1.msra.mxu0 0.0
        %1716 = vmatprep.subr.mxu0 0.0
        %1717 = vmatpush1.msra.mxu0 0.0
        %1718 = vmatprep.subr.mxu0 0.0
        %1719 = vmatpush1.msra.mxu0 0.0
        %1720 = vmatprep.subr.mxu0 0.0
        %1721 = vmatpush1.msra.mxu0 0.0
        %1722 = vmatprep.subr.mxu0 0.0
        %1723 = vmatpush1.msra.mxu0 0.0
        %1724 = vmatprep.subr.mxu0 0.0
        %1725 = vmatpush1.msra.mxu0 0.0
        %1726 = vmatprep.subr.mxu0 0.0
        %1727 = vmatpush1.msra.mxu0 0.0
        %1728 = vmatprep.subr.mxu0 0.0
        %1729 = vmatpush1.msra.mxu0 0.0
        %1730 = vmatprep.subr.mxu0 0.0
        %1731 = vmatpush1.msra.mxu0 0.0
        %1732 = vmatprep.subr.mxu0 0.0
        %1733 = vmatpush1.msra.mxu0 0.0
        %1734 = vmatprep.subr.mxu0 0.0
        %1735 = vmatpush1.msra.mxu0 0.0
        %1736 = vmatprep.mubr.f32.mxu0 0.0
        %1737 = vmatmul.mubr.f32.gmra.mrb[0].mxu0 %v578
        %v1738 = vpop.f32.mrb[0].mxu0
        %v1739 = vadd.f32 %v574, %v1738
        %v1740 = vpop.f32.mrb[0].mxu0
        %v1741 = vadd.f32 %v574, %v1740
        %1742 = vdwg.mxu0
        %v1743 = vmax.f32 %v1668, 0.0
        %v1744 = vmax.f32 %v1670, 0.0
        %v1745 = vmax.f32 %v1739, 0.0
        %v1746 = vmax.f32 %v1741, 0.0
        %v1747 = vmul.f32 %v1743, %v729
        %v1748 = vmul.f32 %v1744, %v729
        %v1749 = vmul.f32 %v1745, %v729
        %v1750 = vmul.f32 %v1746, %v729
        %v1751 = vrot.slane %v1747, 4
        %v1752 = vadd.f32 %v1747, %v1751
        %v1753 = vrot.slane %v1752, 2
        %v1754 = vadd.f32 %v1752, %v1753
        %v1755 = vrot.slane %v1754, 1
        %v1756 = vadd.f32 %v1754, %v1755
        %v1757 = vrot.slane %v1748, 4
        %v1758 = vadd.f32 %v1748, %v1757
        %v1759 = vrot.slane %v1758, 2
        %v1760 = vadd.f32 %v1758, %v1759
        %v1761 = vrot.slane %v1760, 1
        %v1762 = vadd.f32 %v1760, %v1761
        %v1763 = vrot.slane %v1749, 4
        %v1764 = vadd.f32 %v1749, %v1763
        %v1765 = vrot.slane %v1764, 2
        %v1766 = vadd.f32 %v1764, %v1765
        %v1767 = vrot.slane %v1766, 1
        %v1768 = vadd.f32 %v1766, %v1767
        %v1769 = vrot.slane %v1750, 4
        %v1770 = vadd.f32 %v1750, %v1769
        %v1771 = vrot.slane %v1770, 2
        %v1772 = vadd.f32 %v1770, %v1771
        %v1773 = vrot.slane %v1772, 1
        %v1774 = vadd.f32 %v1772, %v1773
        %v1775 = vadd.f32 %v1756, %v767
        %v1776 = vadd.f32 %v1762, %v767
        %v1777 = vadd.f32 %v1768, %v767
        %v1778 = vadd.f32 %v1774, %v767
        %v1783 = vcombine.low %v1775, %v1776
        %v1784 = vcombine.low %v1777, %v1778
        %v1786 = vunpack.c.l.s4 1966171168
        %v1787 = vunpack.c.0.s8 %v1786
        %v1788 = vlaneseq
        %v1789 = vshrl.u32 %v1788, 7
        %v1790 = vsub.s32 %v1787, %v1789
        %v1791 = vrot.slane %v1783, %v1790
        %v1793 = vunpack.c.l.s4 1966171168
        %v1794 = vunpack.c.0.s8 %v1793
        %v1795 = vlaneseq
        %v1796 = vshrl.u32 %v1795, 7
        %v1797 = vsub.s32 %v1794, %v1796
        %v1798 = vrot.slane %v1784, %v1797
        %v1799 = vcombine.low %v1791, %v1798
        %v1801 = vunpack.c.l.s4 1966171168
        %v1802 = vunpack.c.0.s8 %v1801
        %v1803 = vlaneseq
        %v1804 = vshrl.u32 %v1803, 7
        %v1805 = vsub.s32 %v1802, %v1804
        %v1806 = vrot.slane %v1799, %v1805
        %s1808 = scalar_lea.vmem %s485, 4
        %1809 = vst.msk [vmem:[%s1808] ss:$8 sm:$0xf] %vm804, %v1806
        %1810 = vst.msk [vmem:[%s1808] ss:$8 sm:$0x0] %vm804, %v1806
        %s1811 = scalar_lea.vmem %s440, 320 [#allocation4]
        %v1812 = vld [vmem:[%s1811] sm:$0xff]
        %v1813 = vld [vmem:[%s1811 + $0x8] sm:$0xff]
        %v1814 = vld [vmem:[%s1811 + $0x10] sm:$0xff]
        %v1815 = vld [vmem:[%s1811 + $0x18] sm:$0xff]
        %v1816 = vld [vmem:[%s1811 + $0x20] sm:$0xff]
        %v1817 = vld [vmem:[%s1811 + $0x28] sm:$0xff]
        %v1818 = vld [vmem:[%s1811 + $0x30] sm:$0xff]
        %v1819 = vld [vmem:[%s1811 + $0x38] sm:$0xff]
        %v1820 = vunpack.c.l.bf16 %v1812
        %v1821 = vunpack.c.h.bf16 %v1812
        %v1822 = vunpack.c.l.bf16 %v1813
        %v1823 = vunpack.c.h.bf16 %v1813
        %v1824 = vunpack.c.l.bf16 %v1814
        %v1825 = vunpack.c.h.bf16 %v1814
        %v1826 = vunpack.c.l.bf16 %v1815
        %v1827 = vunpack.c.h.bf16 %v1815
        %v1828 = vunpack.c.l.bf16 %v1816
        %v1829 = vunpack.c.h.bf16 %v1816
        %v1830 = vunpack.c.l.bf16 %v1817
        %v1831 = vunpack.c.h.bf16 %v1817
        %v1832 = vunpack.c.l.bf16 %v1818
        %v1833 = vunpack.c.h.bf16 %v1818
        %v1834 = vunpack.c.l.bf16 %v1819
        %v1835 = vunpack.c.h.bf16 %v1819
        %v1836 = vmul.f32 %v511, %v1820
        %v1837 = vmul.f32 %v512, %v1821
        %v1838 = vmul.f32 %v513, %v1822
        %v1839 = vmul.f32 %v514, %v1823
        %v1840 = vmul.f32 %v515, %v1824
        %v1841 = vmul.f32 %v516, %v1825
        %v1842 = vmul.f32 %v517, %v1826
        %v1843 = vmul.f32 %v518, %v1827
        %v1844 = vmul.f32 %v519, %v1828
        %v1845 = vmul.f32 %v520, %v1829
        %v1846 = vmul.f32 %v521, %v1830
        %v1847 = vmul.f32 %v522, %v1831
        %v1848 = vmul.f32 %v523, %v1832
        %v1849 = vmul.f32 %v524, %v1833
        %v1850 = vmul.f32 %v525, %v1834
        %v1851 = vmul.f32 %v526, %v1835
        %1852 = vmatprep.subr.mxu0 %v1837
        %1853 = vmatpush1.msra.mxu0 %v1836
        %1854 = vmatprep.subr.mxu0 %v1841
        %1855 = vmatpush1.msra.mxu0 %v1840
        %1856 = vmatprep.subr.mxu0 %v1845
        %1857 = vmatpush1.msra.mxu0 %v1844
        %1858 = vmatprep.subr.mxu0 %v1849
        %1859 = vmatpush1.msra.mxu0 %v1848
        %1860 = vmatprep.subr.mxu0 0.0
        %1861 = vmatpush1.msra.mxu0 0.0
        %1862 = vmatprep.subr.mxu0 0.0
        %1863 = vmatpush1.msra.mxu0 0.0
        %1864 = vmatprep.subr.mxu0 0.0
        %1865 = vmatpush1.msra.mxu0 0.0
        %1866 = vmatprep.subr.mxu0 0.0
        %1867 = vmatpush1.msra.mxu0 0.0
        %1868 = vmatprep.subr.mxu0 0.0
        %1869 = vmatpush1.msra.mxu0 0.0
        %1870 = vmatprep.subr.mxu0 0.0
        %1871 = vmatpush1.msra.mxu0 0.0
        %1872 = vmatprep.subr.mxu0 0.0
        %1873 = vmatpush1.msra.mxu0 0.0
        %1874 = vmatprep.subr.mxu0 0.0
        %1875 = vmatpush1.msra.mxu0 0.0
        %1876 = vmatprep.subr.mxu0 0.0
        %1877 = vmatpush1.msra.mxu0 0.0
        %1878 = vmatprep.subr.mxu0 0.0
        %1879 = vmatpush1.msra.mxu0 0.0
        %1880 = vmatprep.subr.mxu0 0.0
        %1881 = vmatpush1.msra.mxu0 0.0
        %1882 = vmatprep.subr.mxu0 0.0
        %1883 = vmatpush1.msra.mxu0 0.0
        %1884 = vmatprep.subr.mxu0 0.0
        %1885 = vmatpush1.msra.mxu0 0.0
        %1886 = vmatprep.subr.mxu0 0.0
        %1887 = vmatpush1.msra.mxu0 0.0
        %1888 = vmatprep.subr.mxu0 0.0
        %1889 = vmatpush1.msra.mxu0 0.0
        %1890 = vmatprep.subr.mxu0 0.0
        %1891 = vmatpush1.msra.mxu0 0.0
        %1892 = vmatprep.subr.mxu0 0.0
        %1893 = vmatpush1.msra.mxu0 0.0
        %1894 = vmatprep.subr.mxu0 0.0
        %1895 = vmatpush1.msra.mxu0 0.0
        %1896 = vmatprep.subr.mxu0 0.0
        %1897 = vmatpush1.msra.mxu0 0.0
        %1898 = vmatprep.subr.mxu0 0.0
        %1899 = vmatpush1.msra.mxu0 0.0
        %1900 = vmatprep.subr.mxu0 0.0
        %1901 = vmatpush1.msra.mxu0 0.0
        %1902 = vmatprep.subr.mxu0 0.0
        %1903 = vmatpush1.msra.mxu0 0.0
        %1904 = vmatprep.subr.mxu0 0.0
        %1905 = vmatpush1.msra.mxu0 0.0
        %1906 = vmatprep.subr.mxu0 0.0
        %1907 = vmatpush1.msra.mxu0 0.0
        %1908 = vmatprep.subr.mxu0 0.0
        %1909 = vmatpush1.msra.mxu0 0.0
        %1910 = vmatprep.subr.mxu0 0.0
        %1911 = vmatpush1.msra.mxu0 0.0
        %1912 = vmatprep.subr.mxu0 0.0
        %1913 = vmatpush1.msra.mxu0 0.0
        %1914 = vmatprep.subr.mxu0 0.0
        %1915 = vmatpush1.msra.mxu0 0.0
        %1916 = vmatprep.mubr.f32.mxu0 0.0
        %1917 = vmatmul.mubr.f32.gmra.mrb[0].mxu0 %v578
        %v1918 = vpop.f32.mrb[0].mxu0
        %v1919 = vadd.f32 %v574, %v1918
        %v1920 = vpop.f32.mrb[0].mxu0
        %v1921 = vadd.f32 %v574, %v1920
        %1922 = vdwg.mxu0
        %1923 = vmatprep.subr.mxu0 %v1839
        %1924 = vmatpush1.msra.mxu0 %v1838
        %1925 = vmatprep.subr.mxu0 %v1843
        %1926 = vmatpush1.msra.mxu0 %v1842
        %1927 = vmatprep.subr.mxu0 %v1847
        %1928 = vmatpush1.msra.mxu0 %v1846
        %1929 = vmatprep.subr.mxu0 %v1851
        %1930 = vmatpush1.msra.mxu0 %v1850
        %1931 = vmatprep.subr.mxu0 0.0
        %1932 = vmatpush1.msra.mxu0 0.0
        %1933 = vmatprep.subr.mxu0 0.0
        %1934 = vmatpush1.msra.mxu0 0.0
        %1935 = vmatprep.subr.mxu0 0.0
        %1936 = vmatpush1.msra.mxu0 0.0
        %1937 = vmatprep.subr.mxu0 0.0
        %1938 = vmatpush1.msra.mxu0 0.0
        %1939 = vmatprep.subr.mxu0 0.0
        %1940 = vmatpush1.msra.mxu0 0.0
        %1941 = vmatprep.subr.mxu0 0.0
        %1942 = vmatpush1.msra.mxu0 0.0
        %1943 = vmatprep.subr.mxu0 0.0
        %1944 = vmatpush1.msra.mxu0 0.0
        %1945 = vmatprep.subr.mxu0 0.0
        %1946 = vmatpush1.msra.mxu0 0.0
        %1947 = vmatprep.subr.mxu0 0.0
        %1948 = vmatpush1.msra.mxu0 0.0
        %1949 = vmatprep.subr.mxu0 0.0
        %1950 = vmatpush1.msra.mxu0 0.0
        %1951 = vmatprep.subr.mxu0 0.0
        %1952 = vmatpush1.msra.mxu0 0.0
        %1953 = vmatprep.subr.mxu0 0.0
        %1954 = vmatpush1.msra.mxu0 0.0
        %1955 = vmatprep.subr.mxu0 0.0
        %1956 = vmatpush1.msra.mxu0 0.0
        %1957 = vmatprep.subr.mxu0 0.0
        %1958 = vmatpush1.msra.mxu0 0.0
        %1959 = vmatprep.subr.mxu0 0.0
        %1960 = vmatpush1.msra.mxu0 0.0
        %1961 = vmatprep.subr.mxu0 0.0
        %1962 = vmatpush1.msra.mxu0 0.0
        %1963 = vmatprep.subr.mxu0 0.0
        %1964 = vmatpush1.msra.mxu0 0.0
        %1965 = vmatprep.subr.mxu0 0.0
        %1966 = vmatpush1.msra.mxu0 0.0
        %1967 = vmatprep.subr.mxu0 0.0
        %1968 = vmatpush1.msra.mxu0 0.0
        %1969 = vmatprep.subr.mxu0 0.0
        %1970 = vmatpush1.msra.mxu0 0.0
        %1971 = vmatprep.subr.mxu0 0.0
        %1972 = vmatpush1.msra.mxu0 0.0
        %1973 = vmatprep.subr.mxu0 0.0
        %1974 = vmatpush1.msra.mxu0 0.0
        %1975 = vmatprep.subr.mxu0 0.0
        %1976 = vmatpush1.msra.mxu0 0.0
        %1977 = vmatprep.subr.mxu0 0.0
        %1978 = vmatpush1.msra.mxu0 0.0
        %1979 = vmatprep.subr.mxu0 0.0
        %1980 = vmatpush1.msra.mxu0 0.0
        %1981 = vmatprep.subr.mxu0 0.0
        %1982 = vmatpush1.msra.mxu0 0.0
        %1983 = vmatprep.subr.mxu0 0.0
        %1984 = vmatpush1.msra.mxu0 0.0
        %1985 = vmatprep.subr.mxu0 0.0
        %1986 = vmatpush1.msra.mxu0 0.0
        %1987 = vmatprep.mubr.f32.mxu0 0.0
        %1988 = vmatmul.mubr.f32.gmra.mrb[0].mxu0 %v578
        %v1989 = vpop.f32.mrb[0].mxu0
        %v1990 = vadd.f32 %v574, %v1989
        %v1991 = vpop.f32.mrb[0].mxu0
        %v1992 = vadd.f32 %v574, %v1991
        %1993 = vdwg.mxu0
        %v1994 = vmax.f32 %v1919, 0.0
        %v1995 = vmax.f32 %v1921, 0.0
        %v1996 = vmax.f32 %v1990, 0.0
        %v1997 = vmax.f32 %v1992, 0.0
        %v1998 = vmul.f32 %v1994, %v729
        %v1999 = vmul.f32 %v1995, %v729
        %v2000 = vmul.f32 %v1996, %v729
        %v2001 = vmul.f32 %v1997, %v729
        %v2002 = vrot.slane %v1998, 4
        %v2003 = vadd.f32 %v1998, %v2002
        %v2004 = vrot.slane %v2003, 2
        %v2005 = vadd.f32 %v2003, %v2004
        %v2006 = vrot.slane %v2005, 1
        %v2007 = vadd.f32 %v2005, %v2006
        %v2008 = vrot.slane %v1999, 4
        %v2009 = vadd.f32 %v1999, %v2008
        %v2010 = vrot.slane %v2009, 2
        %v2011 = vadd.f32 %v2009, %v2010
        %v2012 = vrot.slane %v2011, 1
        %v2013 = vadd.f32 %v2011, %v2012
        %v2014 = vrot.slane %v2000, 4
        %v2015 = vadd.f32 %v2000, %v2014
        %v2016 = vrot.slane %v2015, 2
        %v2017 = vadd.f32 %v2015, %v2016
        %v2018 = vrot.slane %v2017, 1
        %v2019 = vadd.f32 %v2017, %v2018
        %v2020 = vrot.slane %v2001, 4
        %v2021 = vadd.f32 %v2001, %v2020
        %v2022 = vrot.slane %v2021, 2
        %v2023 = vadd.f32 %v2021, %v2022
        %v2024 = vrot.slane %v2023, 1
        %v2025 = vadd.f32 %v2023, %v2024
        %v2026 = vadd.f32 %v2007, %v767
        %v2027 = vadd.f32 %v2013, %v767
        %v2028 = vadd.f32 %v2019, %v767
        %v2029 = vadd.f32 %v2025, %v767
        %v2034 = vcombine.low %v2026, %v2027
        %v2035 = vcombine.low %v2028, %v2029
        %v2037 = vunpack.c.l.s4 1966171168
        %v2038 = vunpack.c.0.s8 %v2037
        %v2039 = vlaneseq
        %v2040 = vshrl.u32 %v2039, 7
        %v2041 = vsub.s32 %v2038, %v2040
        %v2042 = vrot.slane %v2034, %v2041
        %v2044 = vunpack.c.l.s4 1966171168
        %v2045 = vunpack.c.0.s8 %v2044
        %v2046 = vlaneseq
        %v2047 = vshrl.u32 %v2046, 7
        %v2048 = vsub.s32 %v2045, %v2047
        %v2049 = vrot.slane %v2035, %v2048
        %v2050 = vcombine.low %v2042, %v2049
        %v2052 = vunpack.c.l.s4 1966171168
        %v2053 = vunpack.c.0.s8 %v2052
        %v2054 = vlaneseq
        %v2055 = vshrl.u32 %v2054, 7
        %v2056 = vsub.s32 %v2053, %v2055
        %v2057 = vrot.slane %v2050, %v2056
        %s2059 = scalar_lea.vmem %s485, 5
        %2060 = vst.msk [vmem:[%s2059] ss:$8 sm:$0xf] %vm804, %v2057
        %2061 = vst.msk [vmem:[%s2059] ss:$8 sm:$0x0] %vm804, %v2057
        %s2062 = scalar_lea.vmem %s440, 384 [#allocation4]
        %v2063 = vld [vmem:[%s2062] sm:$0xff]
        %v2064 = vld [vmem:[%s2062 + $0x8] sm:$0xff]
        %v2065 = vld [vmem:[%s2062 + $0x10] sm:$0xff]
        %v2066 = vld [vmem:[%s2062 + $0x18] sm:$0xff]
        %v2067 = vld [vmem:[%s2062 + $0x20] sm:$0xff]
        %v2068 = vld [vmem:[%s2062 + $0x28] sm:$0xff]
        %v2069 = vld [vmem:[%s2062 + $0x30] sm:$0xff]
        %v2070 = vld [vmem:[%s2062 + $0x38] sm:$0xff]
        %v2071 = vunpack.c.l.bf16 %v2063
        %v2072 = vunpack.c.h.bf16 %v2063
        %v2073 = vunpack.c.l.bf16 %v2064
        %v2074 = vunpack.c.h.bf16 %v2064
        %v2075 = vunpack.c.l.bf16 %v2065
        %v2076 = vunpack.c.h.bf16 %v2065
        %v2077 = vunpack.c.l.bf16 %v2066
        %v2078 = vunpack.c.h.bf16 %v2066
        %v2079 = vunpack.c.l.bf16 %v2067
        %v2080 = vunpack.c.h.bf16 %v2067
        %v2081 = vunpack.c.l.bf16 %v2068
        %v2082 = vunpack.c.h.bf16 %v2068
        %v2083 = vunpack.c.l.bf16 %v2069
        %v2084 = vunpack.c.h.bf16 %v2069
        %v2085 = vunpack.c.l.bf16 %v2070
        %v2086 = vunpack.c.h.bf16 %v2070
        %v2087 = vmul.f32 %v511, %v2071
        %v2088 = vmul.f32 %v512, %v2072
        %v2089 = vmul.f32 %v513, %v2073
        %v2090 = vmul.f32 %v514, %v2074
        %v2091 = vmul.f32 %v515, %v2075
        %v2092 = vmul.f32 %v516, %v2076
        %v2093 = vmul.f32 %v517, %v2077
        %v2094 = vmul.f32 %v518, %v2078
        %v2095 = vmul.f32 %v519, %v2079
        %v2096 = vmul.f32 %v520, %v2080
        %v2097 = vmul.f32 %v521, %v2081
        %v2098 = vmul.f32 %v522, %v2082
        %v2099 = vmul.f32 %v523, %v2083
        %v2100 = vmul.f32 %v524, %v2084
        %v2101 = vmul.f32 %v525, %v2085
        %v2102 = vmul.f32 %v526, %v2086
        %2103 = vmatprep.subr.mxu0 %v2088
        %2104 = vmatpush1.msra.mxu0 %v2087
        %2105 = vmatprep.subr.mxu0 %v2092
        %2106 = vmatpush1.msra.mxu0 %v2091
        %2107 = vmatprep.subr.mxu0 %v2096
        %2108 = vmatpush1.msra.mxu0 %v2095
        %2109 = vmatprep.subr.mxu0 %v2100
        %2110 = vmatpush1.msra.mxu0 %v2099
        %2111 = vmatprep.subr.mxu0 0.0
        %2112 = vmatpush1.msra.mxu0 0.0
        %2113 = vmatprep.subr.mxu0 0.0
        %2114 = vmatpush1.msra.mxu0 0.0
        %2115 = vmatprep.subr.mxu0 0.0
        %2116 = vmatpush1.msra.mxu0 0.0
        %2117 = vmatprep.subr.mxu0 0.0
        %2118 = vmatpush1.msra.mxu0 0.0
        %2119 = vmatprep.subr.mxu0 0.0
        %2120 = vmatpush1.msra.mxu0 0.0
        %2121 = vmatprep.subr.mxu0 0.0
        %2122 = vmatpush1.msra.mxu0 0.0
        %2123 = vmatprep.subr.mxu0 0.0
        %2124 = vmatpush1.msra.mxu0 0.0
        %2125 = vmatprep.subr.mxu0 0.0
        %2126 = vmatpush1.msra.mxu0 0.0
        %2127 = vmatprep.subr.mxu0 0.0
        %2128 = vmatpush1.msra.mxu0 0.0
        %2129 = vmatprep.subr.mxu0 0.0
        %2130 = vmatpush1.msra.mxu0 0.0
        %2131 = vmatprep.subr.mxu0 0.0
        %2132 = vmatpush1.msra.mxu0 0.0
        %2133 = vmatprep.subr.mxu0 0.0
        %2134 = vmatpush1.msra.mxu0 0.0
        %2135 = vmatprep.subr.mxu0 0.0
        %2136 = vmatpush1.msra.mxu0 0.0
        %2137 = vmatprep.subr.mxu0 0.0
        %2138 = vmatpush1.msra.mxu0 0.0
        %2139 = vmatprep.subr.mxu0 0.0
        %2140 = vmatpush1.msra.mxu0 0.0
        %2141 = vmatprep.subr.mxu0 0.0
        %2142 = vmatpush1.msra.mxu0 0.0
        %2143 = vmatprep.subr.mxu0 0.0
        %2144 = vmatpush1.msra.mxu0 0.0
        %2145 = vmatprep.subr.mxu0 0.0
        %2146 = vmatpush1.msra.mxu0 0.0
        %2147 = vmatprep.subr.mxu0 0.0
        %2148 = vmatpush1.msra.mxu0 0.0
        %2149 = vmatprep.subr.mxu0 0.0
        %2150 = vmatpush1.msra.mxu0 0.0
        %2151 = vmatprep.subr.mxu0 0.0
        %2152 = vmatpush1.msra.mxu0 0.0
        %2153 = vmatprep.subr.mxu0 0.0
        %2154 = vmatpush1.msra.mxu0 0.0
        %2155 = vmatprep.subr.mxu0 0.0
        %2156 = vmatpush1.msra.mxu0 0.0
        %2157 = vmatprep.subr.mxu0 0.0
        %2158 = vmatpush1.msra.mxu0 0.0
        %2159 = vmatprep.subr.mxu0 0.0
        %2160 = vmatpush1.msra.mxu0 0.0
        %2161 = vmatprep.subr.mxu0 0.0
        %2162 = vmatpush1.msra.mxu0 0.0
        %2163 = vmatprep.subr.mxu0 0.0
        %2164 = vmatpush1.msra.mxu0 0.0
        %2165 = vmatprep.subr.mxu0 0.0
        %2166 = vmatpush1.msra.mxu0 0.0
        %2167 = vmatprep.mubr.f32.mxu0 0.0
        %2168 = vmatmul.mubr.f32.gmra.mrb[0].mxu0 %v578
        %v2169 = vpop.f32.mrb[0].mxu0
        %v2170 = vadd.f32 %v574, %v2169
        %v2171 = vpop.f32.mrb[0].mxu0
        %v2172 = vadd.f32 %v574, %v2171
        %2173 = vdwg.mxu0
        %2174 = vmatprep.subr.mxu0 %v2090
        %2175 = vmatpush1.msra.mxu0 %v2089
        %2176 = vmatprep.subr.mxu0 %v2094
        %2177 = vmatpush1.msra.mxu0 %v2093
        %2178 = vmatprep.subr.mxu0 %v2098
        %2179 = vmatpush1.msra.mxu0 %v2097
        %2180 = vmatprep.subr.mxu0 %v2102
        %2181 = vmatpush1.msra.mxu0 %v2101
        %2182 = vmatprep.subr.mxu0 0.0
        %2183 = vmatpush1.msra.mxu0 0.0
        %2184 = vmatprep.subr.mxu0 0.0
        %2185 = vmatpush1.msra.mxu0 0.0
        %2186 = vmatprep.subr.mxu0 0.0
        %2187 = vmatpush1.msra.mxu0 0.0
        %2188 = vmatprep.subr.mxu0 0.0
        %2189 = vmatpush1.msra.mxu0 0.0
        %2190 = vmatprep.subr.mxu0 0.0
        %2191 = vmatpush1.msra.mxu0 0.0
        %2192 = vmatprep.subr.mxu0 0.0
        %2193 = vmatpush1.msra.mxu0 0.0
        %2194 = vmatprep.subr.mxu0 0.0
        %2195 = vmatpush1.msra.mxu0 0.0
        %2196 = vmatprep.subr.mxu0 0.0
        %2197 = vmatpush1.msra.mxu0 0.0
        %2198 = vmatprep.subr.mxu0 0.0
        %2199 = vmatpush1.msra.mxu0 0.0
        %2200 = vmatprep.subr.mxu0 0.0
        %2201 = vmatpush1.msra.mxu0 0.0
        %2202 = vmatprep.subr.mxu0 0.0
        %2203 = vmatpush1.msra.mxu0 0.0
        %2204 = vmatprep.subr.mxu0 0.0
        %2205 = vmatpush1.msra.mxu0 0.0
        %2206 = vmatprep.subr.mxu0 0.0
        %2207 = vmatpush1.msra.mxu0 0.0
        %2208 = vmatprep.subr.mxu0 0.0
        %2209 = vmatpush1.msra.mxu0 0.0
        %2210 = vmatprep.subr.mxu0 0.0
        %2211 = vmatpush1.msra.mxu0 0.0
        %2212 = vmatprep.subr.mxu0 0.0
        %2213 = vmatpush1.msra.mxu0 0.0
        %2214 = vmatprep.subr.mxu0 0.0
        %2215 = vmatpush1.msra.mxu0 0.0
        %2216 = vmatprep.subr.mxu0 0.0
        %2217 = vmatpush1.msra.mxu0 0.0
        %2218 = vmatprep.subr.mxu0 0.0
        %2219 = vmatpush1.msra.mxu0 0.0
        %2220 = vmatprep.subr.mxu0 0.0
        %2221 = vmatpush1.msra.mxu0 0.0
        %2222 = vmatprep.subr.mxu0 0.0
        %2223 = vmatpush1.msra.mxu0 0.0
        %2224 = vmatprep.subr.mxu0 0.0
        %2225 = vmatpush1.msra.mxu0 0.0
        %2226 = vmatprep.subr.mxu0 0.0
        %2227 = vmatpush1.msra.mxu0 0.0
        %2228 = vmatprep.subr.mxu0 0.0
        %2229 = vmatpush1.msra.mxu0 0.0
        %2230 = vmatprep.subr.mxu0 0.0
        %2231 = vmatpush1.msra.mxu0 0.0
        %2232 = vmatprep.subr.mxu0 0.0
        %2233 = vmatpush1.msra.mxu0 0.0
        %2234 = vmatprep.subr.mxu0 0.0
        %2235 = vmatpush1.msra.mxu0 0.0
        %2236 = vmatprep.subr.mxu0 0.0
        %2237 = vmatpush1.msra.mxu0 0.0
        %2238 = vmatprep.mubr.f32.mxu0 0.0
        %2239 = vmatmul.mubr.f32.gmra.mrb[0].mxu0 %v578
        %v2240 = vpop.f32.mrb[0].mxu0
        %v2241 = vadd.f32 %v574, %v2240
        %v2242 = vpop.f32.mrb[0].mxu0
        %v2243 = vadd.f32 %v574, %v2242
        %2244 = vdwg.mxu0
        %v2245 = vmax.f32 %v2170, 0.0
        %v2246 = vmax.f32 %v2172, 0.0
        %v2247 = vmax.f32 %v2241, 0.0
        %v2248 = vmax.f32 %v2243, 0.0
        %v2249 = vmul.f32 %v2245, %v729
        %v2250 = vmul.f32 %v2246, %v729
        %v2251 = vmul.f32 %v2247, %v729
        %v2252 = vmul.f32 %v2248, %v729
        %v2253 = vrot.slane %v2249, 4
        %v2254 = vadd.f32 %v2249, %v2253
        %v2255 = vrot.slane %v2254, 2
        %v2256 = vadd.f32 %v2254, %v2255
        %v2257 = vrot.slane %v2256, 1
        %v2258 = vadd.f32 %v2256, %v2257
        %v2259 = vrot.slane %v2250, 4
        %v2260 = vadd.f32 %v2250, %v2259
        %v2261 = vrot.slane %v2260, 2
        %v2262 = vadd.f32 %v2260, %v2261
        %v2263 = vrot.slane %v2262, 1
        %v2264 = vadd.f32 %v2262, %v2263
        %v2265 = vrot.slane %v2251, 4
        %v2266 = vadd.f32 %v2251, %v2265
        %v2267 = vrot.slane %v2266, 2
        %v2268 = vadd.f32 %v2266, %v2267
        %v2269 = vrot.slane %v2268, 1
        %v2270 = vadd.f32 %v2268, %v2269
        %v2271 = vrot.slane %v2252, 4
        %v2272 = vadd.f32 %v2252, %v2271
        %v2273 = vrot.slane %v2272, 2
        %v2274 = vadd.f32 %v2272, %v2273
        %v2275 = vrot.slane %v2274, 1
        %v2276 = vadd.f32 %v2274, %v2275
        %v2277 = vadd.f32 %v2258, %v767
        %v2278 = vadd.f32 %v2264, %v767
        %v2279 = vadd.f32 %v2270, %v767
        %v2280 = vadd.f32 %v2276, %v767
        %v2285 = vcombine.low %v2277, %v2278
        %v2286 = vcombine.low %v2279, %v2280
        %v2288 = vunpack.c.l.s4 1966171168
        %v2289 = vunpack.c.0.s8 %v2288
        %v2290 = vlaneseq
        %v2291 = vshrl.u32 %v2290, 7
        %v2292 = vsub.s32 %v2289, %v2291
        %v2293 = vrot.slane %v2285, %v2292
        %v2295 = vunpack.c.l.s4 1966171168
        %v2296 = vunpack.c.0.s8 %v2295
        %v2297 = vlaneseq
        %v2298 = vshrl.u32 %v2297, 7
        %v2299 = vsub.s32 %v2296, %v2298
        %v2300 = vrot.slane %v2286, %v2299
        %v2301 = vcombine.low %v2293, %v2300
        %v2303 = vunpack.c.l.s4 1966171168
        %v2304 = vunpack.c.0.s8 %v2303
        %v2305 = vlaneseq
        %v2306 = vshrl.u32 %v2305, 7
        %v2307 = vsub.s32 %v2304, %v2306
        %v2308 = vrot.slane %v2301, %v2307
        %s2310 = scalar_lea.vmem %s485, 6
        %2311 = vst.msk [vmem:[%s2310] ss:$8 sm:$0xf] %vm804, %v2308
        %2312 = vst.msk [vmem:[%s2310] ss:$8 sm:$0x0] %vm804, %v2308
        %s2313 = scalar_lea.vmem %s440, 448 [#allocation4]
        %v2314 = vld [vmem:[%s2313] sm:$0xff]
        %v2315 = vld [vmem:[%s2313 + $0x8] sm:$0xff]
        %v2316 = vld [vmem:[%s2313 + $0x10] sm:$0xff]
        %v2317 = vld [vmem:[%s2313 + $0x18] sm:$0xff]
        %v2318 = vld [vmem:[%s2313 + $0x20] sm:$0xff]
        %v2319 = vld [vmem:[%s2313 + $0x28] sm:$0xff]
        %v2320 = vld [vmem:[%s2313 + $0x30] sm:$0xff]
        %v2321 = vld [vmem:[%s2313 + $0x38] sm:$0xff]
        %v2322 = vunpack.c.l.bf16 %v2314
        %v2323 = vunpack.c.h.bf16 %v2314
        %v2324 = vunpack.c.l.bf16 %v2315
        %v2325 = vunpack.c.h.bf16 %v2315
        %v2326 = vunpack.c.l.bf16 %v2316
        %v2327 = vunpack.c.h.bf16 %v2316
        %v2328 = vunpack.c.l.bf16 %v2317
        %v2329 = vunpack.c.h.bf16 %v2317
        %v2330 = vunpack.c.l.bf16 %v2318
        %v2331 = vunpack.c.h.bf16 %v2318
        %v2332 = vunpack.c.l.bf16 %v2319
        %v2333 = vunpack.c.h.bf16 %v2319
        %v2334 = vunpack.c.l.bf16 %v2320
        %v2335 = vunpack.c.h.bf16 %v2320
        %v2336 = vunpack.c.l.bf16 %v2321
        %v2337 = vunpack.c.h.bf16 %v2321
        %v2338 = vmul.f32 %v511, %v2322
        %v2339 = vmul.f32 %v512, %v2323
        %v2340 = vmul.f32 %v513, %v2324
        %v2341 = vmul.f32 %v514, %v2325
        %v2342 = vmul.f32 %v515, %v2326
        %v2343 = vmul.f32 %v516, %v2327
        %v2344 = vmul.f32 %v517, %v2328
        %v2345 = vmul.f32 %v518, %v2329
        %v2346 = vmul.f32 %v519, %v2330
        %v2347 = vmul.f32 %v520, %v2331
        %v2348 = vmul.f32 %v521, %v2332
        %v2349 = vmul.f32 %v522, %v2333
        %v2350 = vmul.f32 %v523, %v2334
        %v2351 = vmul.f32 %v524, %v2335
        %v2352 = vmul.f32 %v525, %v2336
        %v2353 = vmul.f32 %v526, %v2337
        %2354 = vmatprep.subr.mxu0 %v2339
        %2355 = vmatpush1.msra.mxu0 %v2338
        %2356 = vmatprep.subr.mxu0 %v2343
        %2357 = vmatpush1.msra.mxu0 %v2342
        %2358 = vmatprep.subr.mxu0 %v2347
        %2359 = vmatpush1.msra.mxu0 %v2346
        %2360 = vmatprep.subr.mxu0 %v2351
        %2361 = vmatpush1.msra.mxu0 %v2350
        %2362 = vmatprep.subr.mxu0 0.0
        %2363 = vmatpush1.msra.mxu0 0.0
        %2364 = vmatprep.subr.mxu0 0.0
        %2365 = vmatpush1.msra.mxu0 0.0
        %2366 = vmatprep.subr.mxu0 0.0
        %2367 = vmatpush1.msra.mxu0 0.0
        %2368 = vmatprep.subr.mxu0 0.0
        %2369 = vmatpush1.msra.mxu0 0.0
        %2370 = vmatprep.subr.mxu0 0.0
        %2371 = vmatpush1.msra.mxu0 0.0
        %2372 = vmatprep.subr.mxu0 0.0
        %2373 = vmatpush1.msra.mxu0 0.0
        %2374 = vmatprep.subr.mxu0 0.0
        %2375 = vmatpush1.msra.mxu0 0.0
        %2376 = vmatprep.subr.mxu0 0.0
        %2377 = vmatpush1.msra.mxu0 0.0
        %2378 = vmatprep.subr.mxu0 0.0
        %2379 = vmatpush1.msra.mxu0 0.0
        %2380 = vmatprep.subr.mxu0 0.0
        %2381 = vmatpush1.msra.mxu0 0.0
        %2382 = vmatprep.subr.mxu0 0.0
        %2383 = vmatpush1.msra.mxu0 0.0
        %2384 = vmatprep.subr.mxu0 0.0
        %2385 = vmatpush1.msra.mxu0 0.0
        %2386 = vmatprep.subr.mxu0 0.0
        %2387 = vmatpush1.msra.mxu0 0.0
        %2388 = vmatprep.subr.mxu0 0.0
        %2389 = vmatpush1.msra.mxu0 0.0
        %2390 = vmatprep.subr.mxu0 0.0
        %2391 = vmatpush1.msra.mxu0 0.0
        %2392 = vmatprep.subr.mxu0 0.0
        %2393 = vmatpush1.msra.mxu0 0.0
        %2394 = vmatprep.subr.mxu0 0.0
        %2395 = vmatpush1.msra.mxu0 0.0
        %2396 = vmatprep.subr.mxu0 0.0
        %2397 = vmatpush1.msra.mxu0 0.0
        %2398 = vmatprep.subr.mxu0 0.0
        %2399 = vmatpush1.msra.mxu0 0.0
        %2400 = vmatprep.subr.mxu0 0.0
        %2401 = vmatpush1.msra.mxu0 0.0
        %2402 = vmatprep.subr.mxu0 0.0
        %2403 = vmatpush1.msra.mxu0 0.0
        %2404 = vmatprep.subr.mxu0 0.0
        %2405 = vmatpush1.msra.mxu0 0.0
        %2406 = vmatprep.subr.mxu0 0.0
        %2407 = vmatpush1.msra.mxu0 0.0
        %2408 = vmatprep.subr.mxu0 0.0
        %2409 = vmatpush1.msra.mxu0 0.0
        %2410 = vmatprep.subr.mxu0 0.0
        %2411 = vmatpush1.msra.mxu0 0.0
        %2412 = vmatprep.subr.mxu0 0.0
        %2413 = vmatpush1.msra.mxu0 0.0
        %2414 = vmatprep.subr.mxu0 0.0
        %2415 = vmatpush1.msra.mxu0 0.0
        %2416 = vmatprep.subr.mxu0 0.0
        %2417 = vmatpush1.msra.mxu0 0.0
        %2418 = vmatprep.mubr.f32.mxu0 0.0
        %2419 = vmatmul.mubr.f32.gmra.mrb[0].mxu0 %v578
        %v2420 = vpop.f32.mrb[0].mxu0
        %v2421 = vadd.f32 %v574, %v2420
        %v2422 = vpop.f32.mrb[0].mxu0
        %v2423 = vadd.f32 %v574, %v2422
        %2424 = vdwg.mxu0
        %2425 = vmatprep.subr.mxu0 %v2341
        %2426 = vmatpush1.msra.mxu0 %v2340
        %2427 = vmatprep.subr.mxu0 %v2345
        %2428 = vmatpush1.msra.mxu0 %v2344
        %2429 = vmatprep.subr.mxu0 %v2349
        %2430 = vmatpush1.msra.mxu0 %v2348
        %2431 = vmatprep.subr.mxu0 %v2353
        %2432 = vmatpush1.msra.mxu0 %v2352
        %2433 = vmatprep.subr.mxu0 0.0
        %2434 = vmatpush1.msra.mxu0 0.0
        %2435 = vmatprep.subr.mxu0 0.0
        %2436 = vmatpush1.msra.mxu0 0.0
        %2437 = vmatprep.subr.mxu0 0.0
        %2438 = vmatpush1.msra.mxu0 0.0
        %2439 = vmatprep.subr.mxu0 0.0
        %2440 = vmatpush1.msra.mxu0 0.0
        %2441 = vmatprep.subr.mxu0 0.0
        %2442 = vmatpush1.msra.mxu0 0.0
        %2443 = vmatprep.subr.mxu0 0.0
        %2444 = vmatpush1.msra.mxu0 0.0
        %2445 = vmatprep.subr.mxu0 0.0
        %2446 = vmatpush1.msra.mxu0 0.0
        %2447 = vmatprep.subr.mxu0 0.0
        %2448 = vmatpush1.msra.mxu0 0.0
        %2449 = vmatprep.subr.mxu0 0.0
        %2450 = vmatpush1.msra.mxu0 0.0
        %2451 = vmatprep.subr.mxu0 0.0
        %2452 = vmatpush1.msra.mxu0 0.0
        %2453 = vmatprep.subr.mxu0 0.0
        %2454 = vmatpush1.msra.mxu0 0.0
        %2455 = vmatprep.subr.mxu0 0.0
        %2456 = vmatpush1.msra.mxu0 0.0
        %2457 = vmatprep.subr.mxu0 0.0
        %2458 = vmatpush1.msra.mxu0 0.0
        %2459 = vmatprep.subr.mxu0 0.0
        %2460 = vmatpush1.msra.mxu0 0.0
        %2461 = vmatprep.subr.mxu0 0.0
        %2462 = vmatpush1.msra.mxu0 0.0
        %2463 = vmatprep.subr.mxu0 0.0
        %2464 = vmatpush1.msra.mxu0 0.0
        %2465 = vmatprep.subr.mxu0 0.0
        %2466 = vmatpush1.msra.mxu0 0.0
        %2467 = vmatprep.subr.mxu0 0.0
        %2468 = vmatpush1.msra.mxu0 0.0
        %2469 = vmatprep.subr.mxu0 0.0
        %2470 = vmatpush1.msra.mxu0 0.0
        %2471 = vmatprep.subr.mxu0 0.0
        %2472 = vmatpush1.msra.mxu0 0.0
        %2473 = vmatprep.subr.mxu0 0.0
        %2474 = vmatpush1.msra.mxu0 0.0
        %2475 = vmatprep.subr.mxu0 0.0
        %2476 = vmatpush1.msra.mxu0 0.0
        %2477 = vmatprep.subr.mxu0 0.0
        %2478 = vmatpush1.msra.mxu0 0.0
        %2479 = vmatprep.subr.mxu0 0.0
        %2480 = vmatpush1.msra.mxu0 0.0
        %2481 = vmatprep.subr.mxu0 0.0
        %2482 = vmatpush1.msra.mxu0 0.0
        %2483 = vmatprep.subr.mxu0 0.0
        %2484 = vmatpush1.msra.mxu0 0.0
        %2485 = vmatprep.subr.mxu0 0.0
        %2486 = vmatpush1.msra.mxu0 0.0
        %2487 = vmatprep.subr.mxu0 0.0
        %2488 = vmatpush1.msra.mxu0 0.0
        %2489 = vmatprep.mubr.f32.mxu0 0.0
        %2490 = vmatmul.mubr.f32.gmra.mrb[0].mxu0 %v578
        %v2491 = vpop.f32.mrb[0].mxu0
        %v2492 = vadd.f32 %v574, %v2491
        %v2493 = vpop.f32.mrb[0].mxu0
        %v2494 = vadd.f32 %v574, %v2493
        %2495 = vdwg.mxu0
        %v2496 = vmax.f32 %v2421, 0.0
        %v2497 = vmax.f32 %v2423, 0.0
        %v2498 = vmax.f32 %v2492, 0.0
        %v2499 = vmax.f32 %v2494, 0.0
        %v2500 = vmul.f32 %v2496, %v729
        %v2501 = vmul.f32 %v2497, %v729
        %v2502 = vmul.f32 %v2498, %v729
        %v2503 = vmul.f32 %v2499, %v729
        %v2504 = vrot.slane %v2500, 4
        %v2505 = vadd.f32 %v2500, %v2504
        %v2506 = vrot.slane %v2505, 2
        %v2507 = vadd.f32 %v2505, %v2506
        %v2508 = vrot.slane %v2507, 1
        %v2509 = vadd.f32 %v2507, %v2508
        %v2510 = vrot.slane %v2501, 4
        %v2511 = vadd.f32 %v2501, %v2510
        %v2512 = vrot.slane %v2511, 2
        %v2513 = vadd.f32 %v2511, %v2512
        %v2514 = vrot.slane %v2513, 1
        %v2515 = vadd.f32 %v2513, %v2514
        %v2516 = vrot.slane %v2502, 4
        %v2517 = vadd.f32 %v2502, %v2516
        %v2518 = vrot.slane %v2517, 2
        %v2519 = vadd.f32 %v2517, %v2518
        %v2520 = vrot.slane %v2519, 1
        %v2521 = vadd.f32 %v2519, %v2520
        %v2522 = vrot.slane %v2503, 4
        %v2523 = vadd.f32 %v2503, %v2522
        %v2524 = vrot.slane %v2523, 2
        %v2525 = vadd.f32 %v2523, %v2524
        %v2526 = vrot.slane %v2525, 1
        %v2527 = vadd.f32 %v2525, %v2526
        %v2528 = vadd.f32 %v2509, %v767
        %v2529 = vadd.f32 %v2515, %v767
        %v2530 = vadd.f32 %v2521, %v767
        %v2531 = vadd.f32 %v2527, %v767
        %v2536 = vcombine.low %v2528, %v2529
        %v2537 = vcombine.low %v2530, %v2531
        %v2539 = vunpack.c.l.s4 1966171168
        %v2540 = vunpack.c.0.s8 %v2539
        %v2541 = vlaneseq
        %v2542 = vshrl.u32 %v2541, 7
        %v2543 = vsub.s32 %v2540, %v2542
        %v2544 = vrot.slane %v2536, %v2543
        %v2546 = vunpack.c.l.s4 1966171168
        %v2547 = vunpack.c.0.s8 %v2546
        %v2548 = vlaneseq
        %v2549 = vshrl.u32 %v2548, 7
        %v2550 = vsub.s32 %v2547, %v2549
        %v2551 = vrot.slane %v2537, %v2550
        %v2552 = vcombine.low %v2544, %v2551
        %v2554 = vunpack.c.l.s4 1966171168
        %v2555 = vunpack.c.0.s8 %v2554
        %v2556 = vlaneseq
        %v2557 = vshrl.u32 %v2556, 7
        %v2558 = vsub.s32 %v2555, %v2557
        %v2559 = vrot.slane %v2552, %v2558
        %s2561 = scalar_lea.vmem %s485, 7
        %2562 = vst.msk [vmem:[%s2561] ss:$8 sm:$0xf] %vm804, %v2559
        %2563 = vst.msk [vmem:[%s2561] ss:$8 sm:$0x0] %vm804, %v2559
        %s2564 = smul.u32 4, %s24
        %p2565 = scmp.lt.s32.totalorder %s23, 3
        %s2566 = scalar_select %p2565, %s23, 3
        %p2567 = scmp.lt.s32.totalorder %s2564, 7
        %s2568 = scalar_select %p2567, %s2564, 7
        %s2569 = smul.addr %s2566, 8
        %s2570 = sadd.s32 %s2568, %s2569
        %s2571 = smul.addr %s2570, 8
        %s2572 = scalar_lea.vmem %s6, %s2571
        // Predicated region
        $region91: #{stereo_pose_net_forward.4} parent=81 // pred_check
          %p2573 = pneg %p191
        $region92: #{stereo_pose_net_forward.4} parent=81 // pred_check_branch
          %2575 = sbr.rel (%p2573) target = $region94
        $region93: #{stereo_pose_net_forward.4} parent=81 // pred_region
          %s2576 = smul.u32 4, %s24
        $region94: #{stereo_pose_net_forward.4} parent=81 // pred_fallthru
          _
      $region82: #{stereo_pose_net_forward.4} parent=5 // pred_fallthru
        _
      %p2577 = scmp.le.s32.totalorder 2, %s14
      // Predicated region
      $region95: #{stereo_pose_net_forward.4} parent=5 // pred_check
        %p2578 = pneg %p2577
      $region96: #{stereo_pose_net_forward.4} parent=5 // pred_check_branch
        %2580 = sbr.rel (%p2578) target = $region98
      $region97: #{stereo_pose_net_forward.4} parent=5 // pred_region
        %s2581 = ssub.s32 %s14, 2
        // Predicated region
        $region99: #{stereo_pose_net_forward.4} parent=97 // pred_check
          %p2582 = pneg %p197
        $region100: #{stereo_pose_net_forward.4} parent=97 // pred_check_branch
          %2584 = sbr.rel (%p2582) target = $region102
        $region101: #{stereo_pose_net_forward.4} parent=97 // pred_region
          %s2585 = smul.u32 4, %s26
          %p2586 = scmp.lt.s32.totalorder %s25, 3
          %s2587 = scalar_select %p2586, %s25, 3
          %p2588 = scmp.lt.s32.totalorder %s2585, 7
          %s2589 = scalar_select %p2588, %s2585, 7
          %s2590 = smul.addr %s2587, 8
          %s2591 = sadd.s32 %s2589, %s2590
          %s2592 = smul.addr %s2591, 8
          %s2593 = scalar_lea.vmem %s6, %s2592
        $region102: #{stereo_pose_net_forward.4} parent=97 // pred_fallthru
          _
      $region98: #{stereo_pose_net_forward.4} parent=5 // pred_fallthru
        _
    $region6: #{stereo_pose_net_forward.4} parent=1 // loop_footer
      %s18 = sadd.s32 1, %s14
    $region7: #{stereo_pose_net_forward.4} parent=1 // loop_footer_branch
      %13 = sbr.rel target = $region3
    $region8: #{stereo_pose_net_forward.4} parent=1 // loop_exit
      _

// kernel: stereo_pose_net_forward.5
$region0: #{stereo_pose_net_forward.5}
  #allocation0 [shape = 'u32[]', space=smem, size = 0x4, offset = 0x4, fixed_abs, tag = 'smem constant byte address 0x4 - core index']
  #allocation1 [shape = 'u32[144,128]{1,0:T(1,128)}', space=vmem, size = 0x12000, scoped, tag = 'internal scratch']
  %s0 = inlined_call_operand.vmem [shape: bf16[4,32,128], index: 0, kind: input, shape index: {}]
  %s1 = inlined_call_operand.vmem [shape: f32[4,8,128], index: 1, kind: input, shape index: {}]
  %s2 = inlined_call_operand.vmem [shape: f32[4,8,1], index: 2, kind: input, shape index: {}]
  %s3 = inlined_call_operand.vmem [shape: f32[64,32], index: 3, kind: input, shape index: {}]
  %s4 = inlined_call_operand.vmem [shape: f32[64,1], index: 4, kind: input, shape index: {}]
  %s5 = inlined_call_operand.vmem [shape: f32[128,64], index: 5, kind: input, shape index: {}]
  %s6 = inlined_call_operand.vmem [shape: f32[128,1], index: 6, kind: input, shape index: {}]
  %s7 = inlined_call_operand.vmem [shape: f32[64,128], index: 7, kind: input, shape index: {}]
  %s8 = inlined_call_operand.vmem [shape: f32[64,1], index: 8, kind: input, shape index: {}]
  %s9 = inlined_call_operand.vmem [shape: f32[3,64], index: 9, kind: input, shape index: {}]
  %s10 = inlined_call_operand.vmem [shape: f32[3,1], index: 10, kind: input, shape index: {}]
  %s11 = inlined_call_operand.vmem [shape: f32[4,3,128], index: 11, kind: output, shape index: {0}]
  %s12 = inlined_call_operand.vmem [shape: f32[4,1,128], index: 12, kind: output, shape index: {1}]
  %13 = xla_tuple %s11, %s12
  %s14 = sld [smem:[#allocation0]]
  $region85: #{stereo_pose_net_forward.5} parent=0
    _
  %s16 = ssub.s32 1, %s14
  %s17 = scalar_select 0, %s16, %s14
  loop: start=0, step=1, limit=6
  $region2: #{stereo_pose_net_forward.5} parent=0 // loop_pre_header
    _
  $region3: #{stereo_pose_net_forward.5} parent=0 // loop_header
    %s19 = sphi 0, %s23
    %p20 = scmp.ge.s32.totalorder %s19, 6
    %s29 = sphi 0, %s31
    %s32 = sphi 0, %s29
    %s33 = sphi 0, %s32
    %s49 = sphi 0, %s33
    %s55 = sphi 0, %s57
    %s58 = sphi 0, %s55
    %s59 = sphi 0, %s58
    %s75 = sphi 0, %s59
    %s81 = sphi 0, %s83
    %s84 = sphi 0, %s81
    %s85 = sphi 0, %s84
    %s101 = sphi 0, %s85
    %s105 = sphi 0, %s105
    %s107 = sphi 0, %s105
    %s108 = sphi 0, %s107
    %s122 = sphi 0, %s108
    %s126 = sphi 0, %s126
    %s128 = sphi 0, %s126
    %s129 = sphi 0, %s128
    %s143 = sphi 0, %s129
    %s147 = sphi 0, %s147
    %s149 = sphi 0, %s147
    %s150 = sphi 0, %s149
    %s164 = sphi 0, %s150
    %s168 = sphi 0, %s168
    %s170 = sphi 0, %s168
    %s171 = sphi 0, %s170
    %s185 = sphi 0, %s171
    %s189 = sphi 0, %s189
    %s191 = sphi 0, %s189
    %s192 = sphi 0, %s191
    %s206 = sphi 0, %s192
    %s210 = sphi 0, %s210
    %s212 = sphi 0, %s210
    %s213 = sphi 0, %s212
    %s227 = sphi 0, %s213
    %s231 = sphi 0, %s231
    %s233 = sphi 0, %s231
    %s234 = sphi 0, %s233
    %s248 = sphi 0, %s234
    %s252 = sphi 0, %s252
    %s254 = sphi 0, %s252
    %s255 = sphi 0, %s254
    %s269 = sphi 0, %s255
    %s275 = sphi 0, %s277
    %s278 = sphi 0, %s275
    %s279 = sphi 0, %s278
    %s295 = sphi 0, %s279
    %s301 = sphi 0, %s303
    %s304 = sphi 0, %s301
    %s305 = sphi 0, %s304
    %s321 = sphi 0, %s305
  $region4: #{stereo_pose_net_forward.5} parent=0 // loop_header_branch
    %22 = sbr.rel (%p20) target = $region8
  $region5: #{stereo_pose_net_forward.5} parent=0 // loop_body
    %s24 = ssub.s32 %s19, 1
    %s25 = ssub.s32 %s19, 2
    %s26 = sadd.s32 %s19, 1
    %s27 = ssub.s32 %s19, %s26
    %p28 = scmp.eq.s32.totalorder %s27, 0
    %s30 = sadd.s32 %s29, 1
    %s31 = scalar_select %p28, %s29, %s30
    %p34 = pneg %p28
    %p35 = scmp.eq.s32.totalorder %s19, 3
    %p36 = por %p34, %p35
    %p37 = scmp.ne.s32.totalorder %s29, %s32
    %p38 = scmp.eq.s32.totalorder %s19, 0
    %p39 = por %p37, %p38
    %p40 = scmp.ne.s32.totalorder %s29, %s32
    %p41 = scmp.eq.s32.totalorder %s24, 3
    %p42 = por %p40, %p41
    %p43 = scmp.ne.s32.totalorder %s32, %s33
    %p44 = scmp.eq.s32.totalorder %s24, 0
    %p45 = por %p43, %p44
    %p46 = scmp.ne.s32.totalorder %s32, %s33
    %p47 = scmp.eq.s32.totalorder %s25, 3
    %p48 = por %p46, %p47
    %p50 = scmp.ne.s32.totalorder %s33, %s49
    %p51 = scmp.eq.s32.totalorder %s25, 0
    %p52 = por %p50, %p51
    %s53 = ssub.s32 %s19, %s26
    %p54 = scmp.eq.s32.totalorder %s53, 0
    %s56 = sadd.s32 %s55, 1
    %s57 = scalar_select %p54, %s55, %s56
    %p60 = pneg %p54
    %p61 = scmp.eq.s32.totalorder %s19, 3
    %p62 = por %p60, %p61
    %p63 = scmp.ne.s32.totalorder %s55, %s58
    %p64 = scmp.eq.s32.totalorder %s19, 0
    %p65 = por %p63, %p64
    %p66 = scmp.ne.s32.totalorder %s55, %s58
    %p67 = scmp.eq.s32.totalorder %s24, 3
    %p68 = por %p66, %p67
    %p69 = scmp.ne.s32.totalorder %s58, %s59
    %p70 = scmp.eq.s32.totalorder %s24, 0
    %p71 = por %p69, %p70
    %p72 = scmp.ne.s32.totalorder %s58, %s59
    %p73 = scmp.eq.s32.totalorder %s25, 3
    %p74 = por %p72, %p73
    %p76 = scmp.ne.s32.totalorder %s59, %s75
    %p77 = scmp.eq.s32.totalorder %s25, 0
    %p78 = por %p76, %p77
    %s79 = ssub.s32 %s19, %s26
    %p80 = scmp.eq.s32.totalorder %s79, 0
    %s82 = sadd.s32 %s81, 1
    %s83 = scalar_select %p80, %s81, %s82
    %p86 = pneg %p80
    %p87 = scmp.eq.s32.totalorder %s19, 3
    %p88 = por %p86, %p87
    %p89 = scmp.ne.s32.totalorder %s81, %s84
    %p90 = scmp.eq.s32.totalorder %s19, 0
    %p91 = por %p89, %p90
    %p92 = scmp.ne.s32.totalorder %s81, %s84
    %p93 = scmp.eq.s32.totalorder %s24, 3
    %p94 = por %p92, %p93
    %p95 = scmp.ne.s32.totalorder %s84, %s85
    %p96 = scmp.eq.s32.totalorder %s24, 0
    %p97 = por %p95, %p96
    %p98 = scmp.ne.s32.totalorder %s84, %s85
    %p99 = scmp.eq.s32.totalorder %s25, 3
    %p100 = por %p98, %p99
    %p102 = scmp.ne.s32.totalorder %s85, %s101
    %p103 = scmp.eq.s32.totalorder %s25, 0
    %p104 = por %p102, %p103
    %s106 = sadd.s32 %s105, 1
    %p109 = scmp.eq.s32.totalorder %s19, 3
    %p110 = scmp.ne.s32.totalorder %s105, %s107
    %p111 = scmp.eq.s32.totalorder %s19, 0
    %p112 = por %p110, %p111
    %p113 = scmp.ne.s32.totalorder %s105, %s107
    %p114 = scmp.eq.s32.totalorder %s24, 3
    %p115 = por %p113, %p114
    %p116 = scmp.ne.s32.totalorder %s107, %s108
    %p117 = scmp.eq.s32.totalorder %s24, 0
    %p118 = por %p116, %p117
    %p119 = scmp.ne.s32.totalorder %s107, %s108
    %p120 = scmp.eq.s32.totalorder %s25, 3
    %p121 = por %p119, %p120
    %p123 = scmp.ne.s32.totalorder %s108, %s122
    %p124 = scmp.eq.s32.totalorder %s25, 0
    %p125 = por %p123, %p124
    %s127 = sadd.s32 %s126, 1
    %p130 = scmp.eq.s32.totalorder %s19, 3
    %p131 = scmp.ne.s32.totalorder %s126, %s128
    %p132 = scmp.eq.s32.totalorder %s19, 0
    %p133 = por %p131, %p132
    %p134 = scmp.ne.s32.totalorder %s126, %s128
    %p135 = scmp.eq.s32.totalorder %s24, 3
    %p136 = por %p134, %p135
    %p137 = scmp.ne.s32.totalorder %s128, %s129
    %p138 = scmp.eq.s32.totalorder %s24, 0
    %p139 = por %p137, %p138
    %p140 = scmp.ne.s32.totalorder %s128, %s129
    %p141 = scmp.eq.s32.totalorder %s25, 3
    %p142 = por %p140, %p141
    %p144 = scmp.ne.s32.totalorder %s129, %s143
    %p145 = scmp.eq.s32.totalorder %s25, 0
    %p146 = por %p144, %p145
    %s148 = sadd.s32 %s147, 1
    %p151 = scmp.eq.s32.totalorder %s19, 3
    %p152 = scmp.ne.s32.totalorder %s147, %s149
    %p153 = scmp.eq.s32.totalorder %s19, 0
    %p154 = por %p152, %p153
    %p155 = scmp.ne.s32.totalorder %s147, %s149
    %p156 = scmp.eq.s32.totalorder %s24, 3
    %p157 = por %p155, %p156
    %p158 = scmp.ne.s32.totalorder %s149, %s150
    %p159 = scmp.eq.s32.totalorder %s24, 0
    %p160 = por %p158, %p159
    %p161 = scmp.ne.s32.totalorder %s149, %s150
    %p162 = scmp.eq.s32.totalorder %s25, 3
    %p163 = por %p161, %p162
    %p165 = scmp.ne.s32.totalorder %s150, %s164
    %p166 = scmp.eq.s32.totalorder %s25, 0
    %p167 = por %p165, %p166
    %s169 = sadd.s32 %s168, 1
    %p172 = scmp.eq.s32.totalorder %s19, 3
    %p173 = scmp.ne.s32.totalorder %s168, %s170
    %p174 = scmp.eq.s32.totalorder %s19, 0
    %p175 = por %p173, %p174
    %p176 = scmp.ne.s32.totalorder %s168, %s170
    %p177 = scmp.eq.s32.totalorder %s24, 3
    %p178 = por %p176, %p177
    %p179 = scmp.ne.s32.totalorder %s170, %s171
    %p180 = scmp.eq.s32.totalorder %s24, 0
    %p181 = por %p179, %p180
    %p182 = scmp.ne.s32.totalorder %s170, %s171
    %p183 = scmp.eq.s32.totalorder %s25, 3
    %p184 = por %p182, %p183
    %p186 = scmp.ne.s32.totalorder %s171, %s185
    %p187 = scmp.eq.s32.totalorder %s25, 0
    %p188 = por %p186, %p187
    %s190 = sadd.s32 %s189, 1
    %p193 = scmp.eq.s32.totalorder %s19, 3
    %p194 = scmp.ne.s32.totalorder %s189, %s191
    %p195 = scmp.eq.s32.totalorder %s19, 0
    %p196 = por %p194, %p195
    %p197 = scmp.ne.s32.totalorder %s189, %s191
    %p198 = scmp.eq.s32.totalorder %s24, 3
    %p199 = por %p197, %p198
    %p200 = scmp.ne.s32.totalorder %s191, %s192
    %p201 = scmp.eq.s32.totalorder %s24, 0
    %p202 = por %p200, %p201
    %p203 = scmp.ne.s32.totalorder %s191, %s192
    %p204 = scmp.eq.s32.totalorder %s25, 3
    %p205 = por %p203, %p204
    %p207 = scmp.ne.s32.totalorder %s192, %s206
    %p208 = scmp.eq.s32.totalorder %s25, 0
    %p209 = por %p207, %p208
    %s211 = sadd.s32 %s210, 1
    %p214 = scmp.eq.s32.totalorder %s19, 3
    %p215 = scmp.ne.s32.totalorder %s210, %s212
    %p216 = scmp.eq.s32.totalorder %s19, 0
    %p217 = por %p215, %p216
    %p218 = scmp.ne.s32.totalorder %s210, %s212
    %p219 = scmp.eq.s32.totalorder %s24, 3
    %p220 = por %p218, %p219
    %p221 = scmp.ne.s32.totalorder %s212, %s213
    %p222 = scmp.eq.s32.totalorder %s24, 0
    %p223 = por %p221, %p222
    %p224 = scmp.ne.s32.totalorder %s212, %s213
    %p225 = scmp.eq.s32.totalorder %s25, 3
    %p226 = por %p224, %p225
    %p228 = scmp.ne.s32.totalorder %s213, %s227
    %p229 = scmp.eq.s32.totalorder %s25, 0
    %p230 = por %p228, %p229
    %s232 = sadd.s32 %s231, 1
    %p235 = scmp.eq.s32.totalorder %s19, 3
    %p236 = scmp.ne.s32.totalorder %s231, %s233
    %p237 = scmp.eq.s32.totalorder %s19, 0
    %p238 = por %p236, %p237
    %p239 = scmp.ne.s32.totalorder %s231, %s233
    %p240 = scmp.eq.s32.totalorder %s24, 3
    %p241 = por %p239, %p240
    %p242 = scmp.ne.s32.totalorder %s233, %s234
    %p243 = scmp.eq.s32.totalorder %s24, 0
    %p244 = por %p242, %p243
    %p245 = scmp.ne.s32.totalorder %s233, %s234
    %p246 = scmp.eq.s32.totalorder %s25, 3
    %p247 = por %p245, %p246
    %p249 = scmp.ne.s32.totalorder %s234, %s248
    %p250 = scmp.eq.s32.totalorder %s25, 0
    %p251 = por %p249, %p250
    %s253 = sadd.s32 %s252, 1
    %p256 = scmp.eq.s32.totalorder %s19, 3
    %p257 = scmp.ne.s32.totalorder %s252, %s254
    %p258 = scmp.eq.s32.totalorder %s19, 0
    %p259 = por %p257, %p258
    %p260 = scmp.ne.s32.totalorder %s252, %s254
    %p261 = scmp.eq.s32.totalorder %s24, 3
    %p262 = por %p260, %p261
    %p263 = scmp.ne.s32.totalorder %s254, %s255
    %p264 = scmp.eq.s32.totalorder %s24, 0
    %p265 = por %p263, %p264
    %p266 = scmp.ne.s32.totalorder %s254, %s255
    %p267 = scmp.eq.s32.totalorder %s25, 3
    %p268 = por %p266, %p267
    %p270 = scmp.ne.s32.totalorder %s255, %s269
    %p271 = scmp.eq.s32.totalorder %s25, 0
    %p272 = por %p270, %p271
    %s273 = ssub.s32 %s19, %s26
    %p274 = scmp.eq.s32.totalorder %s273, 0
    %s276 = sadd.s32 %s275, 1
    %s277 = scalar_select %p274, %s275, %s276
    %p280 = pneg %p274
    %p281 = scmp.eq.s32.totalorder %s19, 3
    %p282 = por %p280, %p281
    %p283 = scmp.ne.s32.totalorder %s275, %s278
    %p284 = scmp.eq.s32.totalorder %s19, 0
    %p285 = por %p283, %p284
    %p286 = scmp.ne.s32.totalorder %s275, %s278
    %p287 = scmp.eq.s32.totalorder %s24, 3
    %p288 = por %p286, %p287
    %p289 = scmp.ne.s32.totalorder %s278, %s279
    %p290 = scmp.eq.s32.totalorder %s24, 0
    %p291 = por %p289, %p290
    %p292 = scmp.ne.s32.totalorder %s278, %s279
    %p293 = scmp.eq.s32.totalorder %s25, 3
    %p294 = por %p292, %p293
    %p296 = scmp.ne.s32.totalorder %s279, %s295
    %p297 = scmp.eq.s32.totalorder %s25, 0
    %p298 = por %p296, %p297
    %s299 = ssub.s32 %s19, %s26
    %p300 = scmp.eq.s32.totalorder %s299, 0
    %s302 = sadd.s32 %s301, 1
    %s303 = scalar_select %p300, %s301, %s302
    %p306 = pneg %p300
    %p307 = scmp.eq.s32.totalorder %s19, 3
    %p308 = por %p306, %p307
    %p309 = scmp.ne.s32.totalorder %s301, %s304
    %p310 = scmp.eq.s32.totalorder %s19, 0
    %p311 = por %p309, %p310
    %p312 = scmp.ne.s32.totalorder %s301, %s304
    %p313 = scmp.eq.s32.totalorder %s24, 3
    %p314 = por %p312, %p313
    %p315 = scmp.ne.s32.totalorder %s304, %s305
    %p316 = scmp.eq.s32.totalorder %s24, 0
    %p317 = por %p315, %p316
    %p318 = scmp.ne.s32.totalorder %s304, %s305
    %p319 = scmp.eq.s32.totalorder %s25, 3
    %p320 = por %p318, %p319
    %p322 = scmp.ne.s32.totalorder %s305, %s321
    %p323 = scmp.eq.s32.totalorder %s25, 0
    %p324 = por %p322, %p323
    %p325 = scmp.le.s32.totalorder 1, %s19
    %p326 = scmp.lt.s32.totalorder %s19, 5
    %p327 = pnand %p325, %p326
    %p328 = pneg %p327
    // Predicated region
    $region9: #{stereo_pose_net_forward.5} parent=5 // pred_check
      _
    $region10: #{stereo_pose_net_forward.5} parent=5 // pred_check_branch
      %330 = sbr.rel (%p327) target = $region12
    $region11: #{stereo_pose_net_forward.5} parent=5 // pred_region
      %s331 = ssub.s32 %s19, 1
      // Predicated region
      $region13: #{stereo_pose_net_forward.5} parent=11 // pred_check
        %p332 = pneg %p118
      $region14: #{stereo_pose_net_forward.5} parent=11 // pred_check_branch
        %334 = sbr.rel (%p332) target = $region16
      $region15: #{stereo_pose_net_forward.5} parent=11 // pred_region
        _
      $region16: #{stereo_pose_net_forward.5} parent=11 // pred_fallthru
        _
      // Predicated region
      $region17: #{stereo_pose_net_forward.5} parent=11 // pred_check
        %p335 = pneg %p139
      $region18: #{stereo_pose_net_forward.5} parent=11 // pred_check_branch
        %337 = sbr.rel (%p335) target = $region20
      $region19: #{stereo_pose_net_forward.5} parent=11 // pred_region
        _
      $region20: #{stereo_pose_net_forward.5} parent=11 // pred_fallthru
        _
      // Predicated region
      $region21: #{stereo_pose_net_forward.5} parent=11 // pred_check
        %p338 = pneg %p160
      $region22: #{stereo_pose_net_forward.5} parent=11 // pred_check_branch
        %340 = sbr.rel (%p338) target = $region24
      $region23: #{stereo_pose_net_forward.5} parent=11 // pred_region
        _
      $region24: #{stereo_pose_net_forward.5} parent=11 // pred_fallthru
        _
      // Predicated region
      $region25: #{stereo_pose_net_forward.5} parent=11 // pred_check
        %p341 = pneg %p181
      $region26: #{stereo_pose_net_forward.5} parent=11 // pred_check_branch
        %343 = sbr.rel (%p341) target = $region28
      $region27: #{stereo_pose_net_forward.5} parent=11 // pred_region
        _
      $region28: #{stereo_pose_net_forward.5} parent=11 // pred_fallthru
        _
      // Predicated region
      $region29: #{stereo_pose_net_forward.5} parent=11 // pred_check
        %p344 = pneg %p202
      $region30: #{stereo_pose_net_forward.5} parent=11 // pred_check_branch
        %346 = sbr.rel (%p344) target = $region32
      $region31: #{stereo_pose_net_forward.5} parent=11 // pred_region
        _
      $region32: #{stereo_pose_net_forward.5} parent=11 // pred_fallthru
        _
      // Predicated region
      $region33: #{stereo_pose_net_forward.5} parent=11 // pred_check
        %p347 = pneg %p223
      $region34: #{stereo_pose_net_forward.5} parent=11 // pred_check_branch
        %349 = sbr.rel (%p347) target = $region36
      $region35: #{stereo_pose_net_forward.5} parent=11 // pred_region
        _
      $region36: #{stereo_pose_net_forward.5} parent=11 // pred_fallthru
        _
      // Predicated region
      $region37: #{stereo_pose_net_forward.5} parent=11 // pred_check
        %p350 = pneg %p244
      $region38: #{stereo_pose_net_forward.5} parent=11 // pred_check_branch
        %352 = sbr.rel (%p350) target = $region40
      $region39: #{stereo_pose_net_forward.5} parent=11 // pred_region
        _
      $region40: #{stereo_pose_net_forward.5} parent=11 // pred_fallthru
        _
      // Predicated region
      $region41: #{stereo_pose_net_forward.5} parent=11 // pred_check
        %p353 = pneg %p265
      $region42: #{stereo_pose_net_forward.5} parent=11 // pred_check_branch
        %355 = sbr.rel (%p353) target = $region44
      $region43: #{stereo_pose_net_forward.5} parent=11 // pred_region
        _
      $region44: #{stereo_pose_net_forward.5} parent=11 // pred_fallthru
        _
    $region12: #{stereo_pose_net_forward.5} parent=5 // pred_fallthru
      _
    %p356 = scmp.lt.s32.totalorder %s19, 4
    // Predicated region
    $region45: #{stereo_pose_net_forward.5} parent=5 // pred_check
      %p357 = pneg %p356
    $region46: #{stereo_pose_net_forward.5} parent=5 // pred_check_branch
      %359 = sbr.rel (%p357) target = $region48
    $region47: #{stereo_pose_net_forward.5} parent=5 // pred_region
      // Predicated region
      $region49: #{stereo_pose_net_forward.5} parent=47 // pred_check
        %p360 = pneg %p39
      $region50: #{stereo_pose_net_forward.5} parent=47 // pred_check_branch
        %362 = sbr.rel (%p360) target = $region52
      $region51: #{stereo_pose_net_forward.5} parent=47 // pred_region
        %p363 = scmp.lt.s32.totalorder %s19, 3
        %s364 = scalar_select %p363, %s19, 3
        %s365 = smul.addr %s364, 4
        %s366 = smul.addr %s365, 4
        %s367 = scalar_lea.vmem %s0, %s366
      $region52: #{stereo_pose_net_forward.5} parent=47 // pred_fallthru
        _
      // Predicated region
      $region53: #{stereo_pose_net_forward.5} parent=47 // pred_check
        %p368 = pneg %p65
      $region54: #{stereo_pose_net_forward.5} parent=47 // pred_check_branch
        %370 = sbr.rel (%p368) target = $region56
      $region55: #{stereo_pose_net_forward.5} parent=47 // pred_region
        %p371 = scmp.lt.s32.totalorder %s19, 3
        %s372 = scalar_select %p371, %s19, 3
        %s373 = smul.addr %s372, 8
        %s374 = scalar_lea.vmem %s1, %s373
      $region56: #{stereo_pose_net_forward.5} parent=47 // pred_fallthru
        _
      // Predicated region
      $region57: #{stereo_pose_net_forward.5} parent=47 // pred_check
        %p375 = pneg %p91
      $region58: #{stereo_pose_net_forward.5} parent=47 // pred_check_branch
        %377 = sbr.rel (%p375) target = $region60
      $region59: #{stereo_pose_net_forward.5} parent=47 // pred_region
        %p378 = scmp.lt.s32.totalorder %s19, 3
        %s379 = scalar_select %p378, %s19, 3
        %s380 = smul.addr %s379, 8
        %s381 = scalar_lea.vmem %s2, %s380
      $region60: #{stereo_pose_net_forward.5} parent=47 // pred_fallthru
        _
    $region48: #{stereo_pose_net_forward.5} parent=5 // pred_fallthru
      _
    %p382 = scmp.le.s32.totalorder 1, %s19
    %p383 = scmp.lt.s32.totalorder %s19, 5
    %p384 = pnand %p382, %p383
    %p385 = pneg %p384
    // Predicated region
    $region61: #{stereo_pose_net_forward.5} parent=5 // pred_check
      _
    $region62: #{stereo_pose_net_forward.5} parent=5 // pred_check_branch
      %387 = sbr.rel (%p384) target = $region64
    $region63: #{stereo_pose_net_forward.5} parent=5 // pred_region
      %s388 = ssub.s32 %s19, 1
      %p389 = scmp.lt.s32.totalorder %s24, 3
      %s390 = scalar_select %p389, %s24, 3
      %s391 = smul.addr %s390, 4
      %s392 = smul.addr %s391, 4
      %s393 = scalar_lea.vmem %s0, %s392
      %p394 = pneg %p45
      %p395 = pneg %p42
      %p396 = scmp.lt.s32.totalorder %s24, 3
      %s397 = scalar_select %p396, %s24, 3
      %s398 = smul.addr %s397, 8
      %s399 = scalar_lea.vmem %s1, %s398
      %p400 = pneg %p71
      %p401 = pneg %p68
      %p402 = scmp.lt.s32.totalorder %s24, 3
      %s403 = scalar_select %p402, %s24, 3
      %s404 = smul.addr %s403, 8
      %s405 = scalar_lea.vmem %s2, %s404
      %p406 = pneg %p97
      %p407 = pneg %p94
      %p408 = pneg %p118
      %p409 = pneg %p115
      %p410 = pneg %p139
      %p411 = pneg %p136
      %p412 = pneg %p160
      %p413 = pneg %p157
      %p414 = pneg %p181
      %p415 = pneg %p178
      %p416 = pneg %p202
      %p417 = pneg %p199
      %p418 = pneg %p223
      %p419 = pneg %p220
      %p420 = pneg %p244
      %p421 = pneg %p241
      %p422 = pneg %p265
      %p423 = pneg %p262
      %p424 = pneg %p291
      %p425 = pneg %p288
      %p426 = scmp.lt.s32.totalorder %s24, 3
      %s427 = scalar_select %p426, %s24, 3
      %s428 = smul.addr %s427, 4
      %s429 = scalar_lea.vmem %s11, %s428
      %p430 = pneg %p317
      %p431 = pneg %p314
      %p432 = scmp.lt.s32.totalorder %s24, 3
      %s433 = scalar_select %p432, %s24, 3
      %s434 = scalar_lea.vmem %s12, %s433
      %p435 = scmp.lt.s32.totalorder %s24, 3
      %s436 = scalar_select %p435, %s24, 3
      %s437 = smul.addr %s436, 4
      %s438 = smul.addr %s437, 4
      %s439 = scalar_lea.vmem %s0, %s438
      %p440 = scmp.lt.s32.totalorder %s24, 3
      %s441 = scalar_select %p440, %s24, 3
      %s442 = smul.addr %s441, 8
      %s443 = scalar_lea.vmem %s1, %s442
      %p444 = scmp.lt.s32.totalorder %s24, 3
      %s445 = scalar_select %p444, %s24, 3
      %s446 = smul.addr %s445, 8
      %s447 = scalar_lea.vmem %s2, %s446
      %p448 = scmp.lt.s32.totalorder %s24, 3
      %s449 = scalar_select %p448, %s24, 3
      %s450 = smul.addr %s449, 4
      %s451 = scalar_lea.vmem %s11, %s450
      %p452 = scmp.lt.s32.totalorder %s24, 3
      %s453 = scalar_select %p452, %s24, 3
      %s454 = scalar_lea.vmem %s12, %s453
      %v455 = vld [vmem:[%s439] sm:$0xf]
      %v456 = vld [vmem:[%s439 + $0x4] sm:$0xf]
      %v457 = vld [vmem:[%s439 + $0x8] sm:$0xf]
      %v458 = vld [vmem:[%s439 + $0xc] sm:$0xf]
      %v459 = vunpack.c.l.bf16 %v455
      %v460 = vunpack.c.l.bf16 %v456
      %v461 = vunpack.c.l.bf16 %v457
      %v462 = vunpack.c.l.bf16 %v458
      %v463 = vld [vmem:[%s3] sm:$0xff]
      %v464 = vld [vmem:[%s3 + $0x8] sm:$0xff]
      %v465 = vld [vmem:[%s3 + $0x10] sm:$0xff]
      %v466 = vld [vmem:[%s3 + $0x18] sm:$0xff]
      %v467 = vld [vmem:[%s3 + $0x20] sm:$0xff]
      %v468 = vld [vmem:[%s3 + $0x28] sm:$0xff]
      %v469 = vld [vmem:[%s3 + $0x30] sm:$0xff]
      %v470 = vld [vmem:[%s3 + $0x38] sm:$0xff]
      %v471 = vld [vmem:[%s4] sm:$0xff]
      %v472 = vld [vmem:[%s4 + $0x8] sm:$0xff]
      %v473 = vld [vmem:[%s4 + $0x10] sm:$0xff]
      %v474 = vld [vmem:[%s4 + $0x18] sm:$0xff]
      %v475 = vld [vmem:[%s4 + $0x20] sm:$0xff]
      %v476 = vld [vmem:[%s4 + $0x28] sm:$0xff]
      %v477 = vld [vmem:[%s4 + $0x30] sm:$0xff]
      %v478 = vld [vmem:[%s4 + $0x38] sm:$0xff]
      %480 = vset.pattern.permute.xlu0 0
      %481 = vperm.xlu0 %480, %v471
      %v482 = vpop.permute.xlu0 %481
      %485 = vset.pattern.permute.xlu0 0
      %486 = vperm.xlu0 %485, %v472
      %v487 = vpop.permute.xlu0 %486
      %490 = vset.pattern.permute.xlu0 0
      %491 = vperm.xlu0 %490, %v473
      %v492 = vpop.permute.xlu0 %491
      %495 = vset.pattern.permute.xlu0 0
      %496 = vperm.xlu0 %495, %v474
      %v497 = vpop.permute.xlu0 %496
      %500 = vset.pattern.permute.xlu0 0
      %501 = vperm.xlu0 %500, %v475
      %v502 = vpop.permute.xlu0 %501
      %505 = vset.pattern.permute.xlu0 0
      %506 = vperm.xlu0 %505, %v476
      %v507 = vpop.permute.xlu0 %506
      %510 = vset.pattern.permute.xlu0 0
      %511 = vperm.xlu0 %510, %v477
      %v512 = vpop.permute.xlu0 %511
      %515 = vset.pattern.permute.xlu0 0
      %516 = vperm.xlu0 %515, %v478
      %v517 = vpop.permute.xlu0 %516
      %vm519 = vcmask 261120
      %v521 = vsel %vm519, %v463, 0
      %v524 = vsel %vm519, %v464, 0
      %v527 = vsel %vm519, %v465, 0
      %v530 = vsel %vm519, %v466, 0
      %v533 = vsel %vm519, %v467, 0
      %v536 = vsel %vm519, %v468, 0
      %v539 = vsel %vm519, %v469, 0
      %v542 = vsel %vm519, %v470, 0
      %544 = vmatprep.subr.mxu0 0.0
      %545 = vmatpush1.msra.mxu0 %v459
      %546 = vmatprep.subr.mxu0 0.0
      %547 = vmatpush1.msra.mxu0 %v460
      %548 = vmatprep.subr.mxu0 0.0
      %549 = vmatpush1.msra.mxu0 %v461
      %550 = vmatprep.subr.mxu0 0.0
      %551 = vmatpush1.msra.mxu0 %v462
      %552 = vmatprep.subr.mxu0 0.0
      %553 = vmatpush1.msra.mxu0 0.0
      %554 = vmatprep.subr.mxu0 0.0
      %555 = vmatpush1.msra.mxu0 0.0
      %556 = vmatprep.subr.mxu0 0.0
      %557 = vmatpush1.msra.mxu0 0.0
      %558 = vmatprep.subr.mxu0 0.0
      %559 = vmatpush1.msra.mxu0 0.0
      %560 = vmatprep.subr.mxu0 0.0
      %561 = vmatpush1.msra.mxu0 0.0
      %562 = vmatprep.subr.mxu0 0.0
      %563 = vmatpush1.msra.mxu0 0.0
      %564 = vmatprep.subr.mxu0 0.0
      %565 = vmatpush1.msra.mxu0 0.0
      %566 = vmatprep.subr.mxu0 0.0
      %567 = vmatpush1.msra.mxu0 0.0
      %568 = vmatprep.subr.mxu0 0.0
      %569 = vmatpush1.msra.mxu0 0.0
      %570 = vmatprep.subr.mxu0 0.0
      %571 = vmatpush1.msra.mxu0 0.0
      %572 = vmatprep.subr.mxu0 0.0
      %573 = vmatpush1.msra.mxu0 0.0
      %574 = vmatprep.subr.mxu0 0.0
      %575 = vmatpush1.msra.mxu0 0.0
      %576 = vmatprep.subr.mxu0 0.0
      %577 = vmatpush1.msra.mxu0 0.0
      %578 = vmatprep.subr.mxu0 0.0
      %579 = vmatpush1.msra.mxu0 0.0
      %580 = vmatprep.subr.mxu0 0.0
      %581 = vmatpush1.msra.mxu0 0.0
      %582 = vmatprep.subr.mxu0 0.0
      %583 = vmatpush1.msra.mxu0 0.0
      %584 = vmatprep.subr.mxu0 0.0
      %585 = vmatpush1.msra.mxu0 0.0
      %586 = vmatprep.subr.mxu0 0.0
      %587 = vmatpush1.msra.mxu0 0.0
      %588 = vmatprep.subr.mxu0 0.0
      %589 = vmatpush1.msra.mxu0 0.0
      %590 = vmatprep.subr.mxu0 0.0
      %591 = vmatpush1.msra.mxu0 0.0
      %592 = vmatprep.subr.mxu0 0.0
      %593 = vmatpush1.msra.mxu0 0.0
      %594 = vmatprep.subr.mxu0 0.0
      %595 = vmatpush1.msra.mxu0 0.0
      %596 = vmatprep.subr.mxu0 0.0
      %597 = vmatpush1.msra.mxu0 0.0
      %598 = vmatprep.subr.mxu0 0.0
      %599 = vmatpush1.msra.mxu0 0.0
      %600 = vmatprep.subr.mxu0 0.0
      %601 = vmatpush1.msra.mxu0 0.0
      %602 = vmatprep.subr.mxu0 0.0
      %603 = vmatpush1.msra.mxu0 0.0
      %604 = vmatprep.subr.mxu0 0.0
      %605 = vmatpush1.msra.mxu0 0.0
      %606 = vmatprep.subr.mxu0 0.0
      %607 = vmatpush1.msra.mxu0 0.0
      %608 = vmatprep.mubr.f32.mxu0 0.0
      %609 = vmatmul.mubr.f32.gmra.mrb[0].mxu0 %v521
      %v610 = vpop.f32.mrb[0].mxu0
      %v611 = vadd.f32 %v482, %v610
      %v612 = vpop.f32.mrb[0].mxu0
      %613 = vmatprep.mubr.f32.mxu0 0.0
      %614 = vmatmul.mubr.f32.gmra.mrb[0].mxu0 %v524
      %v615 = vpop.f32.mrb[0].mxu0
      %v616 = vadd.f32 %v487, %v615
      %v617 = vpop.f32.mrb[0].mxu0
      %618 = vmatprep.mubr.f32.mxu0 0.0
      %619 = vmatmul.mubr.f32.gmra.mrb[0].mxu0 %v527
      %v620 = vpop.f32.mrb[0].mxu0
      %v621 = vadd.f32 %v492, %v620
      %v622 = vpop.f32.mrb[0].mxu0
      %623 = vmatprep.mubr.f32.mxu0 0.0
      %624 = vmatmul.mubr.f32.gmra.mrb[0].mxu0 %v530
      %v625 = vpop.f32.mrb[0].mxu0
      %v626 = vadd.f32 %v497, %v625
      %v627 = vpop.f32.mrb[0].mxu0
      %628 = vmatprep.mubr.f32.mxu0 0.0
      %629 = vmatmul.mubr.f32.gmra.mrb[0].mxu0 %v533
      %v630 = vpop.f32.mrb[0].mxu0
      %v631 = vadd.f32 %v502, %v630
      %v632 = vpop.f32.mrb[0].mxu0
      %633 = vmatprep.mubr.f32.mxu0 0.0
      %634 = vmatmul.mubr.f32.gmra.mrb[0].mxu0 %v536
      %v635 = vpop.f32.mrb[0].mxu0
      %v636 = vadd.f32 %v507, %v635
      %v637 = vpop.f32.mrb[0].mxu0
      %638 = vmatprep.mubr.f32.mxu0 0.0
      %639 = vmatmul.mubr.f32.gmra.mrb[0].mxu0 %v539
      %v640 = vpop.f32.mrb[0].mxu0
      %v641 = vadd.f32 %v512, %v640
      %v642 = vpop.f32.mrb[0].mxu0
      %643 = vmatprep.mubr.f32.mxu0 0.0
      %644 = vmatmul.mubr.f32.gmra.mrb[0].mxu0 %v542
      %v645 = vpop.f32.mrb[0].mxu0
      %v646 = vadd.f32 %v517, %v645
      %v647 = vpop.f32.mrb[0].mxu0
      %648 = vdwg.mxu0
      %v649 = vmax.f32 %v611, 0.0
      %v650 = vmax.f32 %v616, 0.0
      %v651 = vmax.f32 %v621, 0.0
      %v652 = vmax.f32 %v626, 0.0
      %v653 = vmax.f32 %v631, 0.0
      %v654 = vmax.f32 %v636, 0.0
      %v655 = vmax.f32 %v641, 0.0
      %v656 = vmax.f32 %v646, 0.0
      %v657 = vld [vmem:[%s5] sm:$0xff]
      %v658 = vld [vmem:[%s5 + $0x8] sm:$0xff]
      %v659 = vld [vmem:[%s5 + $0x10] sm:$0xff]
      %v660 = vld [vmem:[%s5 + $0x18] sm:$0xff]
      %v661 = vld [vmem:[%s5 + $0x20] sm:$0xff]
      %v662 = vld [vmem:[%s5 + $0x28] sm:$0xff]
      %v663 = vld [vmem:[%s5 + $0x30] sm:$0xff]
      %v664 = vld [vmem:[%s5 + $0x38] sm:$0xff]
      %v665 = vld [vmem:[%s5 + $0x40] sm:$0xff]
      %v666 = vld [vmem:[%s5 + $0x48] sm:$0xff]
      %v667 = vld [vmem:[%s5 + $0x50] sm:$0xff]
      %v668 = vld [vmem:[%s5 + $0x58] sm:$0xff]
      %v669 = vld [vmem:[%s5 + $0x60] sm:$0xff]
      %v670 = vld [vmem:[%s5 + $0x68] sm:$0xff]
      %v671 = vld [vmem:[%s5 + $0x70] sm:$0xff]
      %v672 = vld [vmem:[%s5 + $0x78] sm:$0xff]
      %v673 = vld [vmem:[%s6] sm:$0xff]
      %v674 = vld [vmem:[%s6 + $0x8] sm:$0xff]
      %v675 = vld [vmem:[%s6 + $0x10] sm:$0xff]
      %v676 = vld [vmem:[%s6 + $0x18] sm:$0xff]
      %v677 = vld [vmem:[%s6 + $0x20] sm:$0xff]
      %v678 = vld [vmem:[%s6 + $0x28] sm:$0xff]
      %v679 = vld [vmem:[%s6 + $0x30] sm:$0xff]
      %v680 = vld [vmem:[%s6 + $0x38] sm:$0xff]
      %v681 = vld [vmem:[%s6 + $0x40] sm:$0xff]
      %v682 = vld [vmem:[%s6 + $0x48] sm:$0xff]
      %v683 = vld [vmem:[%s6 + $0x50] sm:$0xff]
      %v684 = vld [vmem:[%s6 + $0x58] sm:$0xff]
      %v685 = vld [vmem:[%s6 + $0x60] sm:$0xff]
      %v686 = vld [vmem:[%s6 + $0x68] sm:$0xff]
      %v687 = vld [vmem:[%s6 + $0x70] sm:$0xff]
      %v688 = vld [vmem:[%s6 + $0x78] sm:$0xff]
      %690 = vset.pattern.permute.xlu0 0
      %691 = vperm.xlu0 %690, %v673
      %v692 = vpop.permute.xlu0 %691
      %695 = vset.pattern.permute.xlu0 0
      %696 = vperm.xlu0 %695, %v674
      %v697 = vpop.permute.xlu0 %696
      %700 = vset.pattern.permute.xlu0 0
      %701 = vperm.xlu0 %700, %v675
      %v702 = vpop.permute.xlu0 %701
      %705 = vset.pattern.permute.xlu0 0
      %706 = vperm.xlu0 %705, %v676
      %v707 = vpop.permute.xlu0 %706
      %710 = vset.pattern.permute.xlu0 0
      %711 = vperm.xlu0 %710, %v677
      %v712 = vpop.permute.xlu0 %711
      %715 = vset.pattern.permute.xlu0 0
      %716 = vperm.xlu0 %715, %v678
      %v717 = vpop.permute.xlu0 %716
      %720 = vset.pattern.permute.xlu0 0
      %721 = vperm.xlu0 %720, %v679
      %v722 = vpop.permute.xlu0 %721
      %725 = vset.pattern.permute.xlu0 0
      %726 = vperm.xlu0 %725, %v680
      %v727 = vpop.permute.xlu0 %726
      %730 = vset.pattern.permute.xlu0 0
      %731 = vperm.xlu0 %730, %v681
      %v732 = vpop.permute.xlu0 %731
      %735 = vset.pattern.permute.xlu0 0
      %736 = vperm.xlu0 %735, %v682
      %v737 = vpop.permute.xlu0 %736
      %740 = vset.pattern.permute.xlu0 0
      %741 = vperm.xlu0 %740, %v683
      %v742 = vpop.permute.xlu0 %741
      %745 = vset.pattern.permute.xlu0 0
      %746 = vperm.xlu0 %745, %v684
      %v747 = vpop.permute.xlu0 %746
      %750 = vset.pattern.permute.xlu0 0
      %751 = vperm.xlu0 %750, %v685
      %v752 = vpop.permute.xlu0 %751
      %755 = vset.pattern.permute.xlu0 0
      %756 = vperm.xlu0 %755, %v686
      %v757 = vpop.permute.xlu0 %756
      %760 = vset.pattern.permute.xlu0 0
      %761 = vperm.xlu0 %760, %v687
      %v762 = vpop.permute.xlu0 %761
      %765 = vset.pattern.permute.xlu0 0
      %766 = vperm.xlu0 %765, %v688
      %v767 = vpop.permute.xlu0 %766
      %vm769 = vcmask 523264
      %v771 = vsel %vm769, %v657, 0
      %v774 = vsel %vm769, %v658, 0
      %v777 = vsel %vm769, %v659, 0
      %v780 = vsel %vm769, %v660, 0
      %v783 = vsel %vm769, %v661, 0
      %v786 = vsel %vm769, %v662, 0
      %v789 = vsel %vm769, %v663, 0
      %v792 = vsel %vm769, %v664, 0
      %v795 = vsel %vm769, %v665, 0
      %v798 = vsel %vm769, %v666, 0
      %v801 = vsel %vm769, %v667, 0
      %v804 = vsel %vm769, %v668, 0
      %v807 = vsel %vm769, %v669, 0
      %v810 = vsel %vm769, %v670, 0
      %v813 = vsel %vm769, %v671, 0
      %v816 = vsel %vm769, %v672, 0
      %818 = vmatprep.subr.mxu0 0.0
      %819 = vmatpush1.msra.mxu0 %v649
      %820 = vmatprep.subr.mxu0 0.0
      %821 = vmatpush1.msra.mxu0 %v650
      %822 = vmatprep.subr.mxu0 0.0
      %823 = vmatpush1.msra.mxu0 %v651
      %824 = vmatprep.subr.mxu0 0.0
      %825 = vmatpush1.msra.mxu0 %v652
      %826 = vmatprep.subr.mxu0 0.0
      %827 = vmatpush1.msra.mxu0 %v653
      %828 = vmatprep.subr.mxu0 0.0
      %829 = vmatpush1.msra.mxu0 %v654
      %830 = vmatprep.subr.mxu0 0.0
      %831 = vmatpush1.msra.mxu0 %v655
      %832 = vmatprep.subr.mxu0 0.0
      %833 = vmatpush1.msra.mxu0 %v656
      %834 = vmatprep.subr.mxu0 0.0
      %835 = vmatpush1.msra.mxu0 0.0
      %836 = vmatprep.subr.mxu0 0.0
      %837 = vmatpush1.msra.mxu0 0.0
      %838 = vmatprep.subr.mxu0 0.0
      %839 = vmatpush1.msra.mxu0 0.0
      %840 = vmatprep.subr.mxu0 0.0
      %841 = vmatpush1.msra.mxu0 0.0
      %842 = vmatprep.subr.mxu0 0.0
      %843 = vmatpush1.msra.mxu0 0.0
      %844 = vmatprep.subr.mxu0 0.0
      %845 = vmatpush1.msra.mxu0 0.0
      %846 = vmatprep.subr.mxu0 0.0
      %847 = vmatpush1.msra.mxu0 0.0
      %848 = vmatprep.subr.mxu0 0.0
      %849 = vmatpush1.msra.mxu0 0.0
      %850 = vmatprep.subr.mxu0 0.0
      %851 = vmatpush1.msra.mxu0 0.0
      %852 = vmatprep.subr.mxu0 0.0
      %853 = vmatpush1.msra.mxu0 0.0
      %854 = vmatprep.subr.mxu0 0.0
      %855 = vmatpush1.msra.mxu0 0.0
      %856 = vmatprep.subr.mxu0 0.0
      %857 = vmatpush1.msra.mxu0 0.0
      %858 = vmatprep.subr.mxu0 0.0
      %859 = vmatpush1.msra.mxu0 0.0
      %860 = vmatprep.subr.mxu0 0.0
      %861 = vmatpush1.msra.mxu0 0.0
      %862 = vmatprep.subr.mxu0 0.0
      %863 = vmatpush1.msra.mxu0 0.0
      %864 = vmatprep.subr.mxu0 0.0
      %865 = vmatpush1.msra.mxu0 0.0
      %866 = vmatprep.subr.mxu0 0.0
      %867 = vmatpush1.msra.mxu0 0.0
      %868 = vmatprep.subr.mxu0 0.0
      %869 = vmatpush1.msra.mxu0 0.0
      %870 = vmatprep.subr.mxu0 0.0
      %871 = vmatpush1.msra.mxu0 0.0
      %872 = vmatprep.subr.mxu0 0.0
      %873 = vmatpush1.msra.mxu0 0.0
      %874 = vmatprep.subr.mxu0 0.0
      %875 = vmatpush1.msra.mxu0 0.0
      %876 = vmatprep.subr.mxu0 0.0
      %877 = vmatpush1.msra.mxu0 0.0
      %878 = vmatprep.subr.mxu0 0.0
      %879 = vmatpush1.msra.mxu0 0.0
      %880 = vmatprep.subr.mxu0 0.0
      %881 = vmatpush1.msra.mxu0 0.0
      %882 = vmatprep.mubr.f32.mxu0 0.0
      %883 = vmatmul.mubr.f32.gmra.mrb[0].mxu0 %v771
      %v884 = vpop.f32.mrb[0].mxu0
      %v885 = vadd.f32 %v692, %v884
      %v886 = vpop.f32.mrb[0].mxu0
      %887 = vmatprep.mubr.f32.mxu0 0.0
      %888 = vmatmul.mubr.f32.gmra.mrb[0].mxu0 %v774
      %v889 = vpop.f32.mrb[0].mxu0
      %v890 = vadd.f32 %v697, %v889
      %v891 = vpop.f32.mrb[0].mxu0
      %892 = vmatprep.mubr.f32.mxu0 0.0
      %893 = vmatmul.mubr.f32.gmra.mrb[0].mxu0 %v777
      %v894 = vpop.f32.mrb[0].mxu0
      %v895 = vadd.f32 %v702, %v894
      %v896 = vpop.f32.mrb[0].mxu0
      %897 = vmatprep.mubr.f32.mxu0 0.0
      %898 = vmatmul.mubr.f32.gmra.mrb[0].mxu0 %v780
      %v899 = vpop.f32.mrb[0].mxu0
      %v900 = vadd.f32 %v707, %v899
      %v901 = vpop.f32.mrb[0].mxu0
      %902 = vmatprep.mubr.f32.mxu0 0.0
      %903 = vmatmul.mubr.f32.gmra.mrb[0].mxu0 %v783
      %v904 = vpop.f32.mrb[0].mxu0
      %v905 = vadd.f32 %v712, %v904
      %v906 = vpop.f32.mrb[0].mxu0
      %907 = vmatprep.mubr.f32.mxu0 0.0
      %908 = vmatmul.mubr.f32.gmra.mrb[0].mxu0 %v786
      %v909 = vpop.f32.mrb[0].mxu0
      %v910 = vadd.f32 %v717, %v909
      %v911 = vpop.f32.mrb[0].mxu0
      %912 = vmatprep.mubr.f32.mxu0 0.0
      %913 = vmatmul.mubr.f32.gmra.mrb[0].mxu0 %v789
      %v914 = vpop.f32.mrb[0].mxu0
      %v915 = vadd.f32 %v722, %v914
      %v916 = vpop.f32.mrb[0].mxu0
      %917 = vmatprep.mubr.f32.mxu0 0.0
      %918 = vmatmul.mubr.f32.gmra.mrb[0].mxu0 %v792
      %v919 = vpop.f32.mrb[0].mxu0
      %v920 = vadd.f32 %v727, %v919
      %v921 = vpop.f32.mrb[0].mxu0
      %922 = vmatprep.mubr.f32.mxu0 0.0
      %923 = vmatmul.mubr.f32.gmra.mrb[0].mxu0 %v795
      %v924 = vpop.f32.mrb[0].mxu0
      %v925 = vadd.f32 %v732, %v924
      %v926 = vpop.f32.mrb[0].mxu0
      %927 = vmatprep.mubr.f32.mxu0 0.0
      %928 = vmatmul.mubr.f32.gmra.mrb[0].mxu0 %v798
      %v929 = vpop.f32.mrb[0].mxu0
      %v930 = vadd.f32 %v737, %v929
      %v931 = vpop.f32.mrb[0].mxu0
      %932 = vmatprep.mubr.f32.mxu0 0.0
      %933 = vmatmul.mubr.f32.gmra.mrb[0].mxu0 %v801
      %v934 = vpop.f32.mrb[0].mxu0
      %v935 = vadd.f32 %v742, %v934
      %v936 = vpop.f32.mrb[0].mxu0
      %937 = vmatprep.mubr.f32.mxu0 0.0
      %938 = vmatmul.mubr.f32.gmra.mrb[0].mxu0 %v804
      %v939 = vpop.f32.mrb[0].mxu0
      %v940 = vadd.f32 %v747, %v939
      %v941 = vpop.f32.mrb[0].mxu0
      %942 = vmatprep.mubr.f32.mxu0 0.0
      %943 = vmatmul.mubr.f32.gmra.mrb[0].mxu0 %v807
      %v944 = vpop.f32.mrb[0].mxu0
      %v945 = vadd.f32 %v752, %v944
      %v946 = vpop.f32.mrb[0].mxu0
      %947 = vmatprep.mubr.f32.mxu0 0.0
      %948 = vmatmul.mubr.f32.gmra.mrb[0].mxu0 %v810
      %v949 = vpop.f32.mrb[0].mxu0
      %v950 = vadd.f32 %v757, %v949
      %v951 = vpop.f32.mrb[0].mxu0
      %952 = vmatprep.mubr.f32.mxu0 0.0
      %953 = vmatmul.mubr.f32.gmra.mrb[0].mxu0 %v813
      %v954 = vpop.f32.mrb[0].mxu0
      %v955 = vadd.f32 %v762, %v954
      %v956 = vpop.f32.mrb[0].mxu0
      %957 = vmatprep.mubr.f32.mxu0 0.0
      %958 = vmatmul.mubr.f32.gmra.mrb[0].mxu0 %v816
      %v959 = vpop.f32.mrb[0].mxu0
      %v960 = vadd.f32 %v767, %v959
      %v961 = vpop.f32.mrb[0].mxu0
      %962 = vdwg.mxu0
      %v963 = vmax.f32 %v885, 0.0
      %v964 = vmax.f32 %v890, 0.0
      %v965 = vmax.f32 %v895, 0.0
      %v966 = vmax.f32 %v900, 0.0
      %v967 = vmax.f32 %v905, 0.0
      %v968 = vmax.f32 %v910, 0.0
      %v969 = vmax.f32 %v915, 0.0
      %v970 = vmax.f32 %v920, 0.0
      %v971 = vmax.f32 %v925, 0.0
      %v972 = vmax.f32 %v930, 0.0
      %v973 = vmax.f32 %v935, 0.0
      %v974 = vmax.f32 %v940, 0.0
      %v975 = vmax.f32 %v945, 0.0
      %v976 = vmax.f32 %v950, 0.0
      %v977 = vmax.f32 %v955, 0.0
      %v978 = vmax.f32 %v960, 0.0
      %v979 = vld [vmem:[%s7] sm:$0xff]
      %v980 = vld [vmem:[%s7 + $0x8] sm:$0xff]
      %v981 = vld [vmem:[%s7 + $0x10] sm:$0xff]
      %v982 = vld [vmem:[%s7 + $0x18] sm:$0xff]
      %v983 = vld [vmem:[%s7 + $0x20] sm:$0xff]
      %v984 = vld [vmem:[%s7 + $0x28] sm:$0xff]
      %v985 = vld [vmem:[%s7 + $0x30] sm:$0xff]
      %v986 = vld [vmem:[%s7 + $0x38] sm:$0xff]
      %v987 = vld [vmem:[%s8] sm:$0xff]
      %v988 = vld [vmem:[%s8 + $0x8] sm:$0xff]
      %v989 = vld [vmem:[%s8 + $0x10] sm:$0xff]
      %v990 = vld [vmem:[%s8 + $0x18] sm:$0xff]
      %v991 = vld [vmem:[%s8 + $0x20] sm:$0xff]
      %v992 = vld [vmem:[%s8 + $0x28] sm:$0xff]
      %v993 = vld [vmem:[%s8 + $0x30] sm:$0xff]
      %v994 = vld [vmem:[%s8 + $0x38] sm:$0xff]
      %996 = vset.pattern.permute.xlu0 0
      %997 = vperm.xlu0 %996, %v987
      %v998 = vpop.permute.xlu0 %997
      %1001 = vset.pattern.permute.xlu0 0
      %1002 = vperm.xlu0 %1001, %v988
      %v1003 = vpop.permute.xlu0 %1002
      %1006 = vset.pattern.permute.xlu0 0
      %1007 = vperm.xlu0 %1006, %v989
      %v1008 = vpop.permute.xlu0 %1007
      %1011 = vset.pattern.permute.xlu0 0
      %1012 = vperm.xlu0 %1011, %v990
      %v1013 = vpop.permute.xlu0 %1012
      %1016 = vset.pattern.permute.xlu0 0
      %1017 = vperm.xlu0 %1016, %v991
      %v1018 = vpop.permute.xlu0 %1017
      %1021 = vset.pattern.permute.xlu0 0
      %1022 = vperm.xlu0 %1021, %v992
      %v1023 = vpop.permute.xlu0 %1022
      %1026 = vset.pattern.permute.xlu0 0
      %1027 = vperm.xlu0 %1026, %v993
      %v1028 = vpop.permute.xlu0 %1027
      %1031 = vset.pattern.permute.xlu0 0
      %1032 = vperm.xlu0 %1031, %v994
      %v1033 = vpop.permute.xlu0 %1032
      %1035 = vmatprep.subr.mxu0 0.0
      %1036 = vmatpush1.msra.mxu0 %v963
      %1037 = vmatprep.subr.mxu0 0.0
      %1038 = vmatpush1.msra.mxu0 %v964
      %1039 = vmatprep.subr.mxu0 0.0
      %1040 = vmatpush1.msra.mxu0 %v965
      %1041 = vmatprep.subr.mxu0 0.0
      %1042 = vmatpush1.msra.mxu0 %v966
      %1043 = vmatprep.subr.mxu0 0.0
      %1044 = vmatpush1.msra.mxu0 %v967
      %1045 = vmatprep.subr.mxu0 0.0
      %1046 = vmatpush1.msra.mxu0 %v968
      %1047 = vmatprep.subr.mxu0 0.0
      %1048 = vmatpush1.msra.mxu0 %v969
      %1049 = vmatprep.subr.mxu0 0.0
      %1050 = vmatpush1.msra.mxu0 %v970
      %1051 = vmatprep.subr.mxu0 0.0
      %1052 = vmatpush1.msra.mxu0 %v971
      %1053 = vmatprep.subr.mxu0 0.0
      %1054 = vmatpush1.msra.mxu0 %v972
      %1055 = vmatprep.subr.mxu0 0.0
      %1056 = vmatpush1.msra.mxu0 %v973
      %1057 = vmatprep.subr.mxu0 0.0
      %1058 = vmatpush1.msra.mxu0 %v974
      %1059 = vmatprep.subr.mxu0 0.0
      %1060 = vmatpush1.msra.mxu0 %v975
      %1061 = vmatprep.subr.mxu0 0.0
      %1062 = vmatpush1.msra.mxu0 %v976
      %1063 = vmatprep.subr.mxu0 0.0
      %1064 = vmatpush1.msra.mxu0 %v977
      %1065 = vmatprep.subr.mxu0 0.0
      %1066 = vmatpush1.msra.mxu0 %v978
      %1067 = vmatprep.subr.mxu0 0.0
      %1068 = vmatpush1.msra.mxu0 0.0
      %1069 = vmatprep.subr.mxu0 0.0
      %1070 = vmatpush1.msra.mxu0 0.0
      %1071 = vmatprep.subr.mxu0 0.0
      %1072 = vmatpush1.msra.mxu0 0.0
      %1073 = vmatprep.subr.mxu0 0.0
      %1074 = vmatpush1.msra.mxu0 0.0
      %1075 = vmatprep.subr.mxu0 0.0
      %1076 = vmatpush1.msra.mxu0 0.0
      %1077 = vmatprep.subr.mxu0 0.0
      %1078 = vmatpush1.msra.mxu0 0.0
      %1079 = vmatprep.subr.mxu0 0.0
      %1080 = vmatpush1.msra.mxu0 0.0
      %1081 = vmatprep.subr.mxu0 0.0
      %1082 = vmatpush1.msra.mxu0 0.0
      %1083 = vmatprep.subr.mxu0 0.0
      %1084 = vmatpush1.msra.mxu0 0.0
      %1085 = vmatprep.subr.mxu0 0.0
      %1086 = vmatpush1.msra.mxu0 0.0
      %1087 = vmatprep.subr.mxu0 0.0
      %1088 = vmatpush1.msra.mxu0 0.0
      %1089 = vmatprep.subr.mxu0 0.0
      %1090 = vmatpush1.msra.mxu0 0.0
      %1091 = vmatprep.subr.mxu0 0.0
      %1092 = vmatpush1.msra.mxu0 0.0
      %1093 = vmatprep.subr.mxu0 0.0
      %1094 = vmatpush1.msra.mxu0 0.0
      %1095 = vmatprep.subr.mxu0 0.0
      %1096 = vmatpush1.msra.mxu0 0.0
      %1097 = vmatprep.subr.mxu0 0.0
      %1098 = vmatpush1.msra.mxu0 0.0
      %1099 = vmatprep.mubr.f32.mxu0 0.0
      %1100 = vmatmul.mubr.f32.gmra.mrb[0].mxu0 %v979
      %v1101 = vpop.f32.mrb[0].mxu0
      %v1102 = vadd.f32 %v998, %v1101
      %v1103 = vpop.f32.mrb[0].mxu0
      %1104 = vmatprep.mubr.f32.mxu0 0.0
      %1105 = vmatmul.mubr.f32.gmra.mrb[0].mxu0 %v980
      %v1106 = vpop.f32.mrb[0].mxu0
      %v1107 = vadd.f32 %v1003, %v1106
      %v1108 = vpop.f32.mrb[0].mxu0
      %1109 = vmatprep.mubr.f32.mxu0 0.0
      %1110 = vmatmul.mubr.f32.gmra.mrb[0].mxu0 %v981
      %v1111 = vpop.f32.mrb[0].mxu0
      %v1112 = vadd.f32 %v1008, %v1111
      %v1113 = vpop.f32.mrb[0].mxu0
      %1114 = vmatprep.mubr.f32.mxu0 0.0
      %1115 = vmatmul.mubr.f32.gmra.mrb[0].mxu0 %v982
      %v1116 = vpop.f32.mrb[0].mxu0
      %v1117 = vadd.f32 %v1013, %v1116
      %v1118 = vpop.f32.mrb[0].mxu0
      %1119 = vmatprep.mubr.f32.mxu0 0.0
      %1120 = vmatmul.mubr.f32.gmra.mrb[0].mxu0 %v983
      %v1121 = vpop.f32.mrb[0].mxu0
      %v1122 = vadd.f32 %v1018, %v1121
      %v1123 = vpop.f32.mrb[0].mxu0
      %1124 = vmatprep.mubr.f32.mxu0 0.0
      %1125 = vmatmul.mubr.f32.gmra.mrb[0].mxu0 %v984
      %v1126 = vpop.f32.mrb[0].mxu0
      %v1127 = vadd.f32 %v1023, %v1126
      %v1128 = vpop.f32.mrb[0].mxu0
      %1129 = vmatprep.mubr.f32.mxu0 0.0
      %1130 = vmatmul.mubr.f32.gmra.mrb[0].mxu0 %v985
      %v1131 = vpop.f32.mrb[0].mxu0
      %v1132 = vadd.f32 %v1028, %v1131
      %v1133 = vpop.f32.mrb[0].mxu0
      %1134 = vmatprep.mubr.f32.mxu0 0.0
      %1135 = vmatmul.mubr.f32.gmra.mrb[0].mxu0 %v986
      %v1136 = vpop.f32.mrb[0].mxu0
      %v1137 = vadd.f32 %v1033, %v1136
      %v1138 = vpop.f32.mrb[0].mxu0
      %1139 = vdwg.mxu0
      %v1140 = vmax.f32 %v1102, 0.0
      %v1141 = vmax.f32 %v1107, 0.0
      %v1142 = vmax.f32 %v1112, 0.0
      %v1143 = vmax.f32 %v1117, 0.0
      %v1144 = vmax.f32 %v1122, 0.0
      %v1145 = vmax.f32 %v1127, 0.0
      %v1146 = vmax.f32 %v1132, 0.0
      %v1147 = vmax.f32 %v1137, 0.0
      %v1148 = vld [vmem:[%s9] sm:$0x7]
      %v1149 = vld [vmem:[%s10] sm:$0x7]
      %1151 = vset.pattern.permute.xlu0 0
      %1152 = vperm.xlu0 %1151, %v1149
      %v1153 = vpop.permute.xlu0 %1152
      %v1156 = vsel %vm769, %v1148, 0
      %1158 = vmatprep.subr.mxu0 0.0
      %1159 = vmatpush1.msra.mxu0 %v1140
      %1160 = vmatprep.subr.mxu0 0.0
      %1161 = vmatpush1.msra.mxu0 %v1141
      %1162 = vmatprep.subr.mxu0 0.0
      %1163 = vmatpush1.msra.mxu0 %v1142
      %1164 = vmatprep.subr.mxu0 0.0
      %1165 = vmatpush1.msra.mxu0 %v1143
      %1166 = vmatprep.subr.mxu0 0.0
      %1167 = vmatpush1.msra.mxu0 %v1144
      %1168 = vmatprep.subr.mxu0 0.0
      %1169 = vmatpush1.msra.mxu0 %v1145
      %1170 = vmatprep.subr.mxu0 0.0
      %1171 = vmatpush1.msra.mxu0 %v1146
      %1172 = vmatprep.subr.mxu0 0.0
      %1173 = vmatpush1.msra.mxu0 %v1147
      %1174 = vmatprep.subr.mxu0 0.0
      %1175 = vmatpush1.msra.mxu0 0.0
      %1176 = vmatprep.subr.mxu0 0.0
      %1177 = vmatpush1.msra.mxu0 0.0
      %1178 = vmatprep.subr.mxu0 0.0
      %1179 = vmatpush1.msra.mxu0 0.0
      %1180 = vmatprep.subr.mxu0 0.0
      %1181 = vmatpush1.msra.mxu0 0.0
      %1182 = vmatprep.subr.mxu0 0.0
      %1183 = vmatpush1.msra.mxu0 0.0
      %1184 = vmatprep.subr.mxu0 0.0
      %1185 = vmatpush1.msra.mxu0 0.0
      %1186 = vmatprep.subr.mxu0 0.0
      %1187 = vmatpush1.msra.mxu0 0.0
      %1188 = vmatprep.subr.mxu0 0.0
      %1189 = vmatpush1.msra.mxu0 0.0
      %1190 = vmatprep.subr.mxu0 0.0
      %1191 = vmatpush1.msra.mxu0 0.0
      %1192 = vmatprep.subr.mxu0 0.0
      %1193 = vmatpush1.msra.mxu0 0.0
      %1194 = vmatprep.subr.mxu0 0.0
      %1195 = vmatpush1.msra.mxu0 0.0
      %1196 = vmatprep.subr.mxu0 0.0
      %1197 = vmatpush1.msra.mxu0 0.0
      %1198 = vmatprep.subr.mxu0 0.0
      %1199 = vmatpush1.msra.mxu0 0.0
      %1200 = vmatprep.subr.mxu0 0.0
      %1201 = vmatpush1.msra.mxu0 0.0
      %1202 = vmatprep.subr.mxu0 0.0
      %1203 = vmatpush1.msra.mxu0 0.0
      %1204 = vmatprep.subr.mxu0 0.0
      %1205 = vmatpush1.msra.mxu0 0.0
      %1206 = vmatprep.subr.mxu0 0.0
      %1207 = vmatpush1.msra.mxu0 0.0
      %1208 = vmatprep.subr.mxu0 0.0
      %1209 = vmatpush1.msra.mxu0 0.0
      %1210 = vmatprep.subr.mxu0 0.0
      %1211 = vmatpush1.msra.mxu0 0.0
      %1212 = vmatprep.subr.mxu0 0.0
      %1213 = vmatpush1.msra.mxu0 0.0
      %1214 = vmatprep.subr.mxu0 0.0
      %1215 = vmatpush1.msra.mxu0 0.0
      %1216 = vmatprep.subr.mxu0 0.0
      %1217 = vmatpush1.msra.mxu0 0.0
      %1218 = vmatprep.subr.mxu0 0.0
      %1219 = vmatpush1.msra.mxu0 0.0
      %1220 = vmatprep.subr.mxu0 0.0
      %1221 = vmatpush1.msra.mxu0 0.0
      %1222 = vmatprep.mubr.f32.mxu0 0.0
      %1223 = vmatmul.mubr.f32.gmra.mrb[0].mxu0 %v1156
      %v1224 = vpop.f32.mrb[0].mxu0
      %v1225 = vadd.f32 %v1153, %v1224
      %v1226 = vpop.f32.mrb[0].mxu0
      %1227 = vdwg.mxu0
      %v1228 = vtanh.pop %v1225
      %1229 = vst [vmem:[%s451] sm:$0x7] %v1228
      %v1230 = vld [vmem:[%s443] sm:$0xff]
      %v1231 = vrot.slane %v1230, 4
      %v1232 = vmax.f32 %v1230, %v1231
      %v1233 = vrot.slane %v1232, 2
      %v1234 = vmax.f32 %v1232, %v1233
      %v1235 = vrot.slane %v1234, 1
      %v1236 = vmax.f32 %v1234, %v1235
      %v1237 = vsub.f32 %v1230, %v1236
      %v1238 = vmul.f32 %v1237, 1.442695
      %v1239 = vpow.pop %v1238
      %v1240 = vrot.slane %v1239, 4
      %v1241 = vadd.f32 %v1239, %v1240
      %v1242 = vrot.slane %v1241, 2
      %v1243 = vadd.f32 %v1241, %v1242
      %v1244 = vrot.slane %v1243, 1
      %v1245 = vadd.f32 %v1243, %v1244
      %v1246 = vrcp.pop %v1245
      %v1247 = vmul.f32 %v1239, %v1246
      %v1248 = vld [vmem:[%s447] sm:$0xff]
      %1250 = vset.pattern.permute.xlu0 0
      %1251 = vperm.xlu0 %1250, %v1248
      %v1252 = vpop.permute.xlu0 %1251
      %v1254 = vmul.f32 %v1247, %v1252
      %v1255 = vrot.slane %v1254, 4
      %v1256 = vadd.f32 %v1254, %v1255
      %v1257 = vrot.slane %v1256, 2
      %v1258 = vadd.f32 %v1256, %v1257
      %v1259 = vrot.slane %v1258, 1
      %v1260 = vadd.f32 %v1258, %v1259
      %1261 = vst [vmem:[%s454] sm:$0x1] %v1260
      %p1262 = scmp.lt.s32.totalorder %s24, 3
      %s1263 = scalar_select %p1262, %s24, 3
      %s1264 = smul.addr %s1263, 4
      %s1265 = scalar_lea.vmem %s11, %s1264
      %p1266 = scmp.lt.s32.totalorder %s24, 3
      %s1267 = scalar_select %p1266, %s24, 3
      %s1268 = scalar_lea.vmem %s12, %s1267
      // Predicated region
      $region65: #{stereo_pose_net_forward.5} parent=63 // pred_check
        %p1269 = pneg %p288
      $region66: #{stereo_pose_net_forward.5} parent=63 // pred_check_branch
        %1271 = sbr.rel (%p1269) target = $region68
      $region67: #{stereo_pose_net_forward.5} parent=63 // pred_region
        _
      $region68: #{stereo_pose_net_forward.5} parent=63 // pred_fallthru
        _
      // Predicated region
      $region69: #{stereo_pose_net_forward.5} parent=63 // pred_check
        %p1272 = pneg %p314
      $region70: #{stereo_pose_net_forward.5} parent=63 // pred_check_branch
        %1274 = sbr.rel (%p1272) target = $region72
      $region71: #{stereo_pose_net_forward.5} parent=63 // pred_region
        _
      $region72: #{stereo_pose_net_forward.5} parent=63 // pred_fallthru
        _
    $region64: #{stereo_pose_net_forward.5} parent=5 // pred_fallthru
      _
    %p1275 = scmp.le.s32.totalorder 2, %s19
    // Predicated region
    $region73: #{stereo_pose_net_forward.5} parent=5 // pred_check
      %p1276 = pneg %p1275
    $region74: #{stereo_pose_net_forward.5} parent=5 // pred_check_branch
      %1278 = sbr.rel (%p1276) target = $region76
    $region75: #{stereo_pose_net_forward.5} parent=5 // pred_region
      %s1279 = ssub.s32 %s19, 2
      // Predicated region
      $region77: #{stereo_pose_net_forward.5} parent=75 // pred_check
        %p1280 = pneg %p294
      $region78: #{stereo_pose_net_forward.5} parent=75 // pred_check_branch
        %1282 = sbr.rel (%p1280) target = $region80
      $region79: #{stereo_pose_net_forward.5} parent=75 // pred_region
        %p1283 = scmp.lt.s32.totalorder %s25, 3
        %s1284 = scalar_select %p1283, %s25, 3
        %s1285 = smul.addr %s1284, 4
        %s1286 = scalar_lea.vmem %s11, %s1285
      $region80: #{stereo_pose_net_forward.5} parent=75 // pred_fallthru
        _
      // Predicated region
      $region81: #{stereo_pose_net_forward.5} parent=75 // pred_check
        %p1287 = pneg %p320
      $region82: #{stereo_pose_net_forward.5} parent=75 // pred_check_branch
        %1289 = sbr.rel (%p1287) target = $region84
      $region83: #{stereo_pose_net_forward.5} parent=75 // pred_region
        %p1290 = scmp.lt.s32.totalorder %s25, 3
        %s1291 = scalar_select %p1290, %s25, 3
        %s1292 = scalar_lea.vmem %s12, %s1291
      $region84: #{stereo_pose_net_forward.5} parent=75 // pred_fallthru
        _
    $region76: #{stereo_pose_net_forward.5} parent=5 // pred_fallthru
      _
  $region6: #{stereo_pose_net_forward.5} parent=0 // loop_footer
    %s23 = sadd.s32 1, %s19
  $region7: #{stereo_pose_net_forward.5} parent=0 // loop_footer_branch
    %18 = sbr.rel target = $region3
  $region8: #{stereo_pose_net_forward.5} parent=0 // loop_exit
    _

</llo_original>
